<compile_context>
chip_gen: v6e
topology: v6e:2x2x1
jax: 0.10.0
libtpu: 0.0.40
codegen_flags: <defaults>
</compile_context>

<pallas_src>
import jax
import jax.numpy as jnp
from jax.experimental import pallas as pl
from jax.experimental.pallas import tpu as pltpu


N_FINE, N_COARSE = 100, 20
N_HEAD = N_FINE + N_COARSE
NOUT = 128  # lane-dense padded head width (100 fine | 20 coarse | 8 zero)


def _round_up(v, m):
    return ((v + m - 1) // m) * m


# ----------------------------- Pallas kernel --------------------------------
def _make_kernel(TH, WMF, PWC):
    """Kernel closure over the row tile TH, conv-output lane width WMF=W*MFp
    and padded-image lane width PWC=(W+2)*C."""

    def kernel(x_ref, wt_ref, bconv_ref, whead_ref, bhead_ref, out_ref,
               feat_acc):
        t = pl.program_id(1)

        @pl.when(t == 0)
        def _init():
            feat_acc[...] = jnp.zeros_like(feat_acc)

        # Aligned dynamic window of padded image rows for this row tile.
        # (TH is a multiple of 16 whenever n_t > 1, so the start is aligned
        #  to the packed-bf16 sublane tile.)
        row0 = t * TH
        if TH % 16 == 0:
            row0 = pl.multiple_of(row0, 16)
        slab = x_ref[0, pl.ds(row0, TH + 2), :]               # [TH+2, PWC] bf16

        # 3x3 SAME conv as 3 row-shifted matmuls against per-dy block-Toeplitz
        # weights.  Output lanes are ordered (w, member*F + f) so the w-sum of
        # the pooled features can be folded into the fused head matmul.
        z = jnp.dot(slab[0:TH, :], wt_ref[0],
                    preferred_element_type=jnp.float32)       # [TH, WMF] f32
        for dy in (1, 2):                                     # static unroll
            z = z + jnp.dot(slab[dy:dy + TH, :], wt_ref[dy],
                            preferred_element_type=jnp.float32)
        z = jnp.maximum(z + bconv_ref[...], 0.0)              # bias + ReLU

        # Global-average-pool: accumulate the row sum (1/(H*W) is folded into
        # the head weights, exactly, in f32).
        feat_acc[...] += jnp.sum(z, axis=0, keepdims=True)    # [1, WMF]

        # Fused (fine|coarse) heads of all members, ensemble mean folded in.
        @pl.when(t == pl.num_programs(1) - 1)
        def _finalize():
            w = whead_ref[...].astype(jnp.float32)            # bf16 -> f32
            out = jnp.dot(feat_acc[...], w,
                          preferred_element_type=jnp.float32) + bhead_ref[...]
            out_ref[...] = out.reshape(out_ref.shape)         # [1, 1, NOUT]

    return kernel


# ------------------------------- glue (JAX) ----------------------------------
def _pick_row_tile(H, WMF, z_budget_bytes):
    """Largest TH that is a multiple of 16 (packed-bf16 sublane tile), divides
    H and whose f32 z-tile fits the budget; falls back to TH=H (single step)."""
    best = None
    th = 16
    while th <= H:
        if H % th == 0 and th * WMF * 4 <= z_budget_bytes:
            best = th
        th += 16
    return best if best is not None else H


def ensemble_forward(x, params, row_tile=None):
    """Pallas implementation of EnsembleNet.forward (eval mode)."""
    B, C, H, W = x.shape
    HW = H * W
    wconv, bconv = params["wconv"], params["bconv"]          # [M,3,3,C,F], [M,F]
    wfine, bfine = params["wfine"], params["bfine"]          # [M,F,100], [M,100]
    wcoarse, bcoarse = params["wcoarse"], params["bcoarse"]  # [M,F,20],  [M,20]
    M, F = wconv.shape[0], wconv.shape[-1]
    MF = M * F
    MFp = _round_up(MF, 128)          # fused (member, feature) width, lane dense
    PWC = (W + 2) * C                 # padded-image lane width
    WMF = W * MFp                     # conv-output lane width (w-major)

    # --- operand assembly (host/XLA side, one-time) --------------------------
    # Raw padded image, NHWC, lanes = (w_pad, c), bf16.  This is the only
    # per-batch HBM stream (constant index along the row-tile grid axis, so it
    # is DMA'd once per batch).
    xp = jnp.pad(x, ((0, 0), (0, 0), (1, 1), (1, 1)))         # [B,C,H+2,W+2]
    x_in = jnp.transpose(xp, (0, 2, 3, 1)).reshape(B, H + 2, PWC)
    x_in = x_in.astype(jnp.bfloat16)

    # Per-dy block-Toeplitz conv weights:
    #   wt[dy, (w+dx)*C + c, w*MFp + (m*F+f)] = wconv[m, dy, dx, c, f]
    wA = jnp.transpose(wconv, (1, 2, 3, 0, 4)).reshape(3, 3, C, MF)
    wA = jnp.pad(wA, ((0, 0), (0, 0), (0, 0), (0, MFp - MF)))  # [3,3,C,MFp]
    wt = jnp.zeros((3, PWC, WMF), jnp.float32)
    for w in range(W):
        for dx in range(3):
            wt = wt.at[:, (w + dx) * C:(w + dx + 1) * C,
                       w * MFp:(w + 1) * MFp].set(wA[:, dx])
    wt = wt.astype(jnp.bfloat16)

    # Conv bias, tiled over w (kept f32: added to the f32 accumulator path).
    bconv_all = jnp.pad(bconv.reshape(MF), (0, MFp - MF))
    bconv_all = jnp.tile(bconv_all, (W,)).reshape(1, WMF).astype(jnp.float32)

    # Fused (fine|coarse) heads of all members with the 1/M ensemble mean and
    # the 1/(H*W) pooling mean folded in (exactly, in f32) before the bf16
    # cast; tiled over w so the w-sum is folded into this single matmul.
    whead = jnp.concatenate([wfine, wcoarse], axis=-1) / (M * HW)  # [M,F,120]
    whead = whead.reshape(MF, N_HEAD)
    whead = jnp.pad(whead, ((0, MFp - MF), (0, NOUT - N_HEAD)))    # [MFp,128]
    whead_big = jnp.tile(whead, (W, 1)).astype(jnp.bfloat16)       # [WMF,128]

    bhead = jnp.concatenate([bfine, bcoarse], axis=-1).mean(axis=0)
    bhead = jnp.pad(bhead, (0, NOUT - N_HEAD)).reshape(1, NOUT)
    bhead = bhead.astype(jnp.float32)

    # --- per-generation VMEM budget / row tile / vmem limit -------------------
    try:
        vmem_cap = int(pltpu.get_tpu_info().vmem_capacity_bytes)
    except Exception:                                 # noqa: BLE001
        vmem_cap = 64 * 1024 * 1024                   # v7x per-TC physical
    resident = 2 * ((H + 2) * PWC * 2 + 3 * PWC * WMF * 2 + WMF * 4
                    + WMF * NOUT * 2 + NOUT * 4 + NOUT * 4)
    z_budget = max(vmem_cap // 4 - resident, 1 << 20)
    TH = row_tile if row_tile is not None else _pick_row_tile(H, WMF, z_budget)
    assert H % TH == 0, "row tile must divide H"
    assert TH % 16 == 0 or TH == H, "row tile must be a multiple of 16"
    n_t = H // TH
    est = resident + TH * WMF * 4 + (TH + 2) * PWC * 2 + WMF * 4
    vmem_limit = int(min(max(2 * est, 32 << 20), (3 * vmem_cap) // 4))

    out3 = pl.pallas_call(
        _make_kernel(TH, WMF, PWC),
        out_shape=jax.ShapeDtypeStruct((B, 1, NOUT), jnp.float32),
        grid_spec=pltpu.PrefetchScalarGridSpec(
            num_scalar_prefetch=0,
            grid=(B, n_t),                 # batch parallel, row-tile reduction
            in_specs=[
                pl.BlockSpec((1, H + 2, PWC), lambda b, t: (b, 0, 0)),  # image
                pl.BlockSpec((3, PWC, WMF), lambda b, t: (0, 0, 0)),    # conv W
                pl.BlockSpec((1, WMF), lambda b, t: (0, 0)),            # conv b
                pl.BlockSpec((WMF, NOUT), lambda b, t: (0, 0)),         # head W
                pl.BlockSpec((1, NOUT), lambda b, t: (0, 0)),           # head b
            ],
            out_specs=pl.BlockSpec((1, 1, NOUT), lambda b, t: (b, 0, 0)),
            scratch_shapes=[pltpu.VMEM((1, WMF), jnp.float32)],  # pooled feats
        ),
        compiler_params=pltpu.CompilerParams(
            dimension_semantics=("parallel", "arbitrary"),
            vmem_limit_bytes=vmem_limit),
    )(x_in, wt, bconv_all, whead_big, bhead)

    out = out3[:, 0, :]
    return out[:, :N_FINE], out[:, N_FINE:N_HEAD]


# -------------------------- pure-JAX reference --------------------------------
def ensemble_reference(x, params):
    """Per-member reference.  Mirrors the kernel's bf16 input / conv-weight
    quantization (f32 accumulation); head path kept in f32."""
    B, C, H, W = x.shape
    M, F = params["wconv"].shape[0], params["wconv"].shape[-1]
    xp = jnp.pad(x, ((0, 0), (0, 0), (1, 1), (1, 1)))
    xp = xp.astype(jnp.bfloat16).astype(jnp.float32)          # mirror bf16 cast
    cols = [xp[:, :, dy:dy + H, dx:dx + W]
            for dy in range(3) for dx in range(3)]            # 9 x [B,C,H,W]
    pat = jnp.stack(cols, axis=-1)                            # [B,C,H,W,9]
    fs, cs = [], []
    for m in range(M):
        wc = params["wconv"][m].astype(jnp.bfloat16).astype(jnp.float32)
        z = jnp.einsum("bchwk,kcf->bhwf", pat, wc.reshape(9, C, F))
        z = jnp.maximum(z + params["bconv"][m], 0.0)          # [B,H,W,F]
        feat = z.mean(axis=(1, 2))                            # global avg pool
        fs.append(feat @ params["wfine"][m] + params["bfine"][m])
        cs.append(feat @ params["wcoarse"][m] + params["bcoarse"][m])
    return jnp.mean(jnp.stack(fs), axis=0), jnp.mean(jnp.stack(cs), axis=0)


# --------------------------- deterministic params ------------------------------
def init_params(key, M, C, F):
    ks = jax.random.split(key, 6)
    return {
        # hemisphere conv weight [M, dy, dx, C, F] (3x3, SAME padding)
        "wconv":   0.05 * jax.random.normal(ks[0], (M, 3, 3, C, F), jnp.float32),
        "bconv":   0.05 * jax.random.normal(ks[1], (M, F), jnp.float32),
        # Linear heads stored pre-transposed: [in_features, out_features]
        "wfine":   0.05 * jax.random.normal(ks[2], (M, F, 100), jnp.float32),
        "bfine":   0.05 * jax.random.normal(ks[3], (M, 100), jnp.float32),
        "wcoarse": 0.05 * jax.random.normal(ks[4], (M, F, 20), jnp.float32),
        "bcoarse": 0.05 * jax.random.normal(ks[5], (M, 20), jnp.float32),
    }


if __name__ == "__main__":
    # CIFAR-100-shaped input (100 fine / 20 coarse classes) at a small batch.
    B, C, H, W = 2, 3, 32, 32
    F = 32                      # hemisphere num_features
    M = 3                       # ensemble size

    root = jax.random.PRNGKey(0)
    kx, kp = jax.random.split(root)
    x = jax.random.normal(kx, (B, C, H, W), jnp.float32)
    params = init_params(kp, M, C, F)

    # row_tile=16 -> 2 row-tile grid steps, exercising the accumulator path.
    out_f, out_c = ensemble_forward(x, params, row_tile=16)
    out_f, out_c = jax.block_until_ready((out_f, out_c))

    ref_f, ref_c = ensemble_reference(x, params)
    assert out_f.shape == (B, 100) and out_c.shape == (B, 20)
    assert jnp.allclose(out_f, ref_f, atol=2e-3, rtol=2e-2), \
        float(jnp.max(jnp.abs(out_f - ref_f)))
    assert jnp.allclose(out_c, ref_c, atol=2e-3, rtol=2e-2), \
        float(jnp.max(jnp.abs(out_c - ref_c)))

    print("KERNEL_OK")
</pallas_src>

<mosaic_0001>
module attributes {stable_mosaic.version = 11 : i64} {
  func.func @kernel(%arg0: i32, %arg1: i32, %arg2: memref<1x34x102xbf16, #tpu.memory_space<vmem>>, %arg3: memref<3x102x4096xbf16, #tpu.memory_space<vmem>>, %arg4: memref<1x4096xf32, #tpu.memory_space<vmem>>, %arg5: memref<4096x128xbf16, #tpu.memory_space<vmem>>, %arg6: memref<1x128xf32, #tpu.memory_space<vmem>>, %arg7: memref<1x1x128xf32, #tpu.memory_space<vmem>>, %arg8: memref<1x4096xf32, #tpu.memory_space<vmem>>) attributes {dimension_semantics = [#tpu.dimension_semantics<parallel>, #tpu.dimension_semantics<arbitrary>], iteration_bounds = array<i64: 2, 2>, scalar_prefetch = 0 : i64, scratch_operands = 1 : i64, tpu.core_type = #tpu.core_type<tc>, window_params = [{transform_indices = @transform_0, window_bounds = array<i64: 1, 34, 102>}, {pipeline_mode = #tpu.pipeline_mode<synchronous>, transform_indices = @transform_1, window_bounds = array<i64: 3, 102, 4096>}, {pipeline_mode = #tpu.pipeline_mode<synchronous>, transform_indices = @transform_2, window_bounds = array<i64: 1, 4096>}, {pipeline_mode = #tpu.pipeline_mode<synchronous>, transform_indices = @transform_3, window_bounds = array<i64: 4096, 128>}, {pipeline_mode = #tpu.pipeline_mode<synchronous>, transform_indices = @transform_4, window_bounds = array<i64: 1, 128>}, {transform_indices = @transform_5, window_bounds = array<i64: 1, 1, 128>}]} {
    %c0_i32 = arith.constant 0 : i32
    %0 = arith.cmpi eq, %arg1, %c0_i32 : i32
    %1 = arith.extui %0 : i1 to i32
    %c0_i32_0 = arith.constant 0 : i32
    %2 = arith.cmpi ne, %1, %c0_i32_0 : i32
    scf.if %2 {
      %cst_20 = arith.constant 0.000000e+00 : f32
      %35 = vector.broadcast %cst_20 : f32 to vector<1x4096xf32>
      %c0_21 = arith.constant 0 : index
      %c0_22 = arith.constant 0 : index
      %36 = vector.load %arg8[%c0_21, %c0_22] : memref<1x4096xf32, #tpu.memory_space<vmem>>, vector<1x4096xf32>
      tpu.vector_store %arg8[%c0_21, %c0_22], %35 {strides = array<i32>} : memref<1x4096xf32, #tpu.memory_space<vmem>>, vector<1x4096xf32>,
    } else {
    }
    %c16_i32 = arith.constant 16 : i32
    %3 = arith.muli %arg1, %c16_i32 : i32
    %4 = tpu.assume_multiple %3, 16 : i32
    %c0 = arith.constant 0 : index
    %5 = arith.index_cast %4 : i32 to index
    %c0_1 = arith.constant 0 : index
    %6 = vector.load %arg2[%c0, %5, %c0_1] : memref<1x34x102xbf16, #tpu.memory_space<vmem>>, vector<1x18x102xbf16>
    %7 = vector.shape_cast %6 : vector<1x18x102xbf16> to vector<18x102xbf16>
    %8 = vector.extract_strided_slice %7 {offsets = [0, 0], sizes = [16, 102], strides = [1, 1]} : vector<18x102xbf16> to vector<16x102xbf16>
    %c0_2 = arith.constant 0 : index
    %c0_3 = arith.constant 0 : index
    %c0_4 = arith.constant 0 : index
    %9 = vector.load %arg3[%c0_2, %c0_3, %c0_4] : memref<3x102x4096xbf16, #tpu.memory_space<vmem>>, vector<1x102x4096xbf16>
    %10 = vector.shape_cast %9 : vector<1x102x4096xbf16> to vector<102x4096xbf16>
    %cst = arith.constant dense<0.000000e+00> : vector<16x4096xf32>
    %11 = tpu.matmul %8, %10, %cst {dimension_numbers = #tpu.dot_dimension_numbers<[1], [0], [0], [1], [0, 0, 1, 1], [], []>} : vector<16x102xbf16>, vector<102x4096xbf16>, vector<16x4096xf32> -> vector<16x4096xf32>
    %12 = vector.extract_strided_slice %7 {offsets = [1, 0], sizes = [16, 102], strides = [1, 1]} : vector<18x102xbf16> to vector<16x102xbf16>
    %c1 = arith.constant 1 : index
    %c0_5 = arith.constant 0 : index
    %c0_6 = arith.constant 0 : index
    %13 = vector.load %arg3[%c1, %c0_5, %c0_6] : memref<3x102x4096xbf16, #tpu.memory_space<vmem>>, vector<1x102x4096xbf16>
    %14 = vector.shape_cast %13 : vector<1x102x4096xbf16> to vector<102x4096xbf16>
    %cst_7 = arith.constant dense<0.000000e+00> : vector<16x4096xf32>
    %15 = tpu.matmul %12, %14, %cst_7 {dimension_numbers = #tpu.dot_dimension_numbers<[1], [0], [0], [1], [0, 0, 1, 1], [], []>} : vector<16x102xbf16>, vector<102x4096xbf16>, vector<16x4096xf32> -> vector<16x4096xf32>
    %16 = arith.addf %11, %15 : vector<16x4096xf32>
    %17 = vector.extract_strided_slice %7 {offsets = [2, 0], sizes = [16, 102], strides = [1, 1]} : vector<18x102xbf16> to vector<16x102xbf16>
    %c2 = arith.constant 2 : index
    %c0_8 = arith.constant 0 : index
    %c0_9 = arith.constant 0 : index
    %18 = vector.load %arg3[%c2, %c0_8, %c0_9] : memref<3x102x4096xbf16, #tpu.memory_space<vmem>>, vector<1x102x4096xbf16>
    %19 = vector.shape_cast %18 : vector<1x102x4096xbf16> to vector<102x4096xbf16>
    %cst_10 = arith.constant dense<0.000000e+00> : vector<16x4096xf32>
    %20 = tpu.matmul %17, %19, %cst_10 {dimension_numbers = #tpu.dot_dimension_numbers<[1], [0], [0], [1], [0, 0, 1, 1], [], []>} : vector<16x102xbf16>, vector<102x4096xbf16>, vector<16x4096xf32> -> vector<16x4096xf32>
    %21 = arith.addf %16, %20 : vector<16x4096xf32>
    %c0_11 = arith.constant 0 : index
    %c0_12 = arith.constant 0 : index
    %22 = vector.load %arg4[%c0_11, %c0_12] : memref<1x4096xf32, #tpu.memory_space<vmem>>, vector<1x4096xf32>
    %23 = vector.broadcast %22 : vector<1x4096xf32> to vector<16x4096xf32>
    %24 = arith.addf %21, %23 : vector<16x4096xf32>
    %cst_13 = arith.constant 0.000000e+00 : f32
    %25 = vector.broadcast %cst_13 : f32 to vector<16x4096xf32>
    %26 = arith.maximumf %24, %25 : vector<16x4096xf32>
    %c0_14 = arith.constant 0 : index
    %c0_15 = arith.constant 0 : index
    %27 = vector.load %arg8[%c0_14, %c0_15] : memref<1x4096xf32, #tpu.memory_space<vmem>>, vector<1x4096xf32>
    %cst_16 = arith.constant dense<0.000000e+00> : vector<4096xf32>
    %28 = vector.multi_reduction <add>, %26, %cst_16 [0] : vector<16x4096xf32> to vector<4096xf32>
    %29 = vector.shape_cast %28 : vector<4096xf32> to vector<1x4096xf32>
    %30 = arith.addf %27, %29 : vector<1x4096xf32>
    %c0_17 = arith.constant 0 : index
    %c0_18 = arith.constant 0 : index
    %31 = vector.load %arg8[%c0_17, %c0_18] : memref<1x4096xf32, #tpu.memory_space<vmem>>, vector<1x4096xf32>
    tpu.vector_store %arg8[%c0_17, %c0_18], %30 {strides = array<i32>} : memref<1x4096xf32, #tpu.memory_space<vmem>>, vector<1x4096xf32>,
    %c1_i32 = arith.constant 1 : i32
    %32 = arith.cmpi eq, %arg1, %c1_i32 : i32
    %33 = arith.extui %32 : i1 to i32
    %c0_i32_19 = arith.constant 0 : i32
    %34 = arith.cmpi ne, %33, %c0_i32_19 : i32
    scf.if %34 {
      %c0_20 = arith.constant 0 : index
      %c0_21 = arith.constant 0 : index
      %35 = vector.load %arg5[%c0_20, %c0_21] : memref<4096x128xbf16, #tpu.memory_space<vmem>>, vector<4096x128xbf16>
      %36 = arith.extf %35 : vector<4096x128xbf16> to vector<4096x128xf32>
      %c0_22 = arith.constant 0 : index
      %c0_23 = arith.constant 0 : index
      %37 = vector.load %arg8[%c0_22, %c0_23] : memref<1x4096xf32, #tpu.memory_space<vmem>>, vector<1x4096xf32>
      %cst_24 = arith.constant dense<0.000000e+00> : vector<1x128xf32>
      %38 = tpu.matmul %37, %36, %cst_24 {dimension_numbers = #tpu.dot_dimension_numbers<[1], [0], [0], [1], [0, 0, 1, 1], [], []>} : vector<1x4096xf32>, vector<4096x128xf32>, vector<1x128xf32> -> vector<1x128xf32>
      %c0_25 = arith.constant 0 : index
      %c0_26 = arith.constant 0 : index
      %39 = vector.load %arg6[%c0_25, %c0_26] : memref<1x128xf32, #tpu.memory_space<vmem>>, vector<1x128xf32>
      %40 = arith.addf %38, %39 : vector<1x128xf32>
      %41 = vector.shape_cast %40 : vector<1x128xf32> to vector<1x1x128xf32>
      %c0_27 = arith.constant 0 : index
      %c0_28 = arith.constant 0 : index
      %c0_29 = arith.constant 0 : index
      %42 = vector.load %arg7[%c0_27, %c0_28, %c0_29] : memref<1x1x128xf32, #tpu.memory_space<vmem>>, vector<1x1x128xf32>
      tpu.vector_store %arg7[%c0_27, %c0_28, %c0_29], %41 {strides = array<i32>} : memref<1x1x128xf32, #tpu.memory_space<vmem>>, vector<1x1x128xf32>,
    } else {
    }
    return
  }
  func.func @transform_0(%arg0: i32, %arg1: i32) -> (i32, i32, i32) {
    %c0_i32 = arith.constant 0 : i32
    %c0_i32_0 = arith.constant 0 : i32
    %c0_i32_1 = arith.constant 0 : i32
    return %arg0, %c0_i32, %c0_i32_0 : i32, i32, i32
  }
  func.func @transform_1(%arg0: i32, %arg1: i32) -> (i32, i32, i32) {
    %c0_i32 = arith.constant 0 : i32
    %c0_i32_0 = arith.constant 0 : i32
    %c0_i32_1 = arith.constant 0 : i32
    %c0_i32_2 = arith.constant 0 : i32
    return %c0_i32, %c0_i32_0, %c0_i32_1 : i32, i32, i32
  }
  func.func @transform_2(%arg0: i32, %arg1: i32) -> (i32, i32) {
    %c0_i32 = arith.constant 0 : i32
    %c0_i32_0 = arith.constant 0 : i32
    %c0_i32_1 = arith.constant 0 : i32
    return %c0_i32, %c0_i32_0 : i32, i32
  }
  func.func @transform_3(%arg0: i32, %arg1: i32) -> (i32, i32) {
    %c0_i32 = arith.constant 0 : i32
    %c0_i32_0 = arith.constant 0 : i32
    %c0_i32_1 = arith.constant 0 : i32
    return %c0_i32, %c0_i32_0 : i32, i32
  }
  func.func @transform_4(%arg0: i32, %arg1: i32) -> (i32, i32) {
    %c0_i32 = arith.constant 0 : i32
    %c0_i32_0 = arith.constant 0 : i32
    %c0_i32_1 = arith.constant 0 : i32
    return %c0_i32, %c0_i32_0 : i32, i32
  }
  func.func @transform_5(%arg0: i32, %arg1: i32) -> (i32, i32, i32) {
    %c0_i32 = arith.constant 0 : i32
    %c0_i32_0 = arith.constant 0 : i32
    %c0_i32_1 = arith.constant 0 : i32
    return %arg0, %c0_i32, %c0_i32_0 : i32, i32, i32
  }
}

</mosaic_0001>

<llo_original>
// kernel: tpu_custom_call.1
$region0: #{tpu_custom_call.1}
  #allocation0 [shape = 'u32[]', space=smem, size = 0x4, offset = 0x4, fixed_abs, tag = 'smem constant byte address 0x4 - core index']
  #allocation1 [shape = 'u32[144,128]{1,0:T(1,128)}', space=vmem, size = 0x12000, scoped, tag = 'internal scratch']
  #allocation2 [shape = 'f32[1,4096]{1,0:T(1,128)}', space=vmem, size = 0x4000, scoped, tag = 'scratch operand']
  %s0 = inlined_call_operand.vmem [shape: bf16[2,34,102], index: 0, kind: input, shape index: {}]
  %s1 = inlined_call_operand.hbm [shape: bf16[3,102,4096], index: 1, kind: input, shape index: {}]
  %s2 = inlined_call_operand.hbm [shape: f32[1,4096], index: 2, kind: input, shape index: {}]
  %s3 = inlined_call_operand.hbm [shape: bf16[4096,128], index: 3, kind: input, shape index: {}]
  %s4 = inlined_call_operand.hbm [shape: f32[1,128], index: 4, kind: input, shape index: {}]
  %s5 = inlined_call_operand.hbm [shape: f32[2,1,128], index: 5, kind: output, shape index: {}]
  %s6 = sld [smem:[#allocation0]]
  $region77: #{tpu_custom_call.1} parent=0
    _
  %s8 = ssub.s32 1, %s6
  %s9 = scalar_select 0, %s8, %s6
  $region1: #{tpu_custom_call.1} parent=0
    #allocation3 [shape = 'u8[2555904]{0}', space=vmem, size = 0x270000, scoped, tag = 'input window, operand 1, single buffered']
    #allocation4 [shape = 's32[2]{0}', space=sflag, size = 0x8, scoped, tag = 'scoped memory for tpu_custom_call.1']
    #allocation5 [shape = 's32[2]{0}', space=sflag, size = 0x8, scoped, tag = 'scoped memory for tpu_custom_call.1']
    #allocation6 [shape = 'u8[16384]{0}', space=vmem, size = 0x4000, scoped, tag = 'input window, operand 2, single buffered']
    #allocation7 [shape = 's32[1]{0}', space=sflag, size = 0x4, scoped, tag = 'scoped memory for tpu_custom_call.1']
    #allocation8 [shape = 'u8[1048576]{0}', space=vmem, size = 0x100000, scoped, tag = 'input window, operand 3, single buffered']
    #allocation9 [shape = 'u8[512]{0}', space=vmem, size = 0x400, scoped, tag = 'input window, operand 4, single buffered']
    #allocation10 [shape = 's32[1]{0}', space=sflag, size = 0x4, scoped, tag = 'scoped memory for tpu_custom_call.1']
    #allocation11 [shape = 'u8[1024]{0}', space=vmem, size = 0x400, scoped, tag = 'output window, operand 0']
    %10 = vsyncpa [#allocation4], 0
    %11 = vsyncpa [#allocation7], 0
    %12 = vsyncpa [#allocation10], 0
    %13 = vsyncpa [#allocation5], 0
    %s14 = scalar_lea.sflag [#allocation5], 1
    %15 = vsyncpa %s14, 0
    loop: start=0, step=1, limit=6
    $region2: #{tpu_custom_call.1} parent=1 // loop_pre_header
      _
    $region3: #{tpu_custom_call.1} parent=1 // loop_header
      %s17 = sphi 0, %s21
      %p18 = scmp.ge.s32.totalorder %s17, 6
      %s24 = sphi 0, %s36
      %s25 = sphi 0, %s32
      %s26 = sphi 0, %s24
      %s27 = sphi 0, %s25
      %s28 = sphi 0, %s26
      %s29 = sphi 0, %s27
      %s39 = sphi 0, %s41
      %s42 = sphi 0, %s39
      %s43 = sphi 0, %s42
      %s59 = sphi 0, %s43
      %s63 = sphi 0, %s63
      %s65 = sphi 0, %s63
      %s66 = sphi 0, %s65
      %s80 = sphi 0, %s66
      %s84 = sphi 0, %s84
      %s86 = sphi 0, %s84
      %s87 = sphi 0, %s86
      %s101 = sphi 0, %s87
      %s105 = sphi 0, %s105
      %s107 = sphi 0, %s105
      %s108 = sphi 0, %s107
      %s122 = sphi 0, %s108
      %s126 = sphi 0, %s126
      %s128 = sphi 0, %s126
      %s129 = sphi 0, %s128
      %s143 = sphi 0, %s129
      %s149 = sphi 0, %s151
      %s152 = sphi 0, %s149
      %s153 = sphi 0, %s152
      %s169 = sphi 0, %s153
    $region4: #{tpu_custom_call.1} parent=1 // loop_header_branch
      %20 = sbr.rel (%p18) target = $region8
    $region5: #{tpu_custom_call.1} parent=1 // loop_body
      %s22 = ssub.s32 %s17, 1
      %s23 = ssub.s32 %s17, 2
      %s30 = sadd.s32 1, %s25
      %p31 = scmp.ge.s32.totalorder %s30, 2
      %s32 = scalar_select %p31, 0, %s30
      %s33 = sadd.s32 1, %s24
      %s34 = scalar_select %p31, %s33, %s24
      %p35 = scmp.ge.s32.totalorder %s34, 2
      %s36 = scalar_select %p35, 0, %s34
      %s37 = ssub.s32 %s24, %s36
      %p38 = scmp.eq.s32.totalorder %s37, 0
      %s40 = sadd.s32 %s39, 1
      %s41 = scalar_select %p38, %s39, %s40
      %p44 = pneg %p38
      %p45 = scmp.eq.s32.totalorder %s17, 3
      %p46 = por %p44, %p45
      %p47 = scmp.ne.s32.totalorder %s39, %s42
      %p48 = scmp.eq.s32.totalorder %s17, 0
      %p49 = por %p47, %p48
      %p50 = scmp.ne.s32.totalorder %s39, %s42
      %p51 = scmp.eq.s32.totalorder %s22, 3
      %p52 = por %p50, %p51
      %p53 = scmp.ne.s32.totalorder %s42, %s43
      %p54 = scmp.eq.s32.totalorder %s22, 0
      %p55 = por %p53, %p54
      %p56 = scmp.ne.s32.totalorder %s42, %s43
      %p57 = scmp.eq.s32.totalorder %s23, 3
      %p58 = por %p56, %p57
      %p60 = scmp.ne.s32.totalorder %s43, %s59
      %p61 = scmp.eq.s32.totalorder %s23, 0
      %p62 = por %p60, %p61
      %s64 = sadd.s32 %s63, 1
      %p67 = scmp.eq.s32.totalorder %s17, 3
      %p68 = scmp.ne.s32.totalorder %s63, %s65
      %p69 = scmp.eq.s32.totalorder %s17, 0
      %p70 = por %p68, %p69
      %p71 = scmp.ne.s32.totalorder %s63, %s65
      %p72 = scmp.eq.s32.totalorder %s22, 3
      %p73 = por %p71, %p72
      %p74 = scmp.ne.s32.totalorder %s65, %s66
      %p75 = scmp.eq.s32.totalorder %s22, 0
      %p76 = por %p74, %p75
      %p77 = scmp.ne.s32.totalorder %s65, %s66
      %p78 = scmp.eq.s32.totalorder %s23, 3
      %p79 = por %p77, %p78
      %p81 = scmp.ne.s32.totalorder %s66, %s80
      %p82 = scmp.eq.s32.totalorder %s23, 0
      %p83 = por %p81, %p82
      %s85 = sadd.s32 %s84, 1
      %p88 = scmp.eq.s32.totalorder %s17, 3
      %p89 = scmp.ne.s32.totalorder %s84, %s86
      %p90 = scmp.eq.s32.totalorder %s17, 0
      %p91 = por %p89, %p90
      %p92 = scmp.ne.s32.totalorder %s84, %s86
      %p93 = scmp.eq.s32.totalorder %s22, 3
      %p94 = por %p92, %p93
      %p95 = scmp.ne.s32.totalorder %s86, %s87
      %p96 = scmp.eq.s32.totalorder %s22, 0
      %p97 = por %p95, %p96
      %p98 = scmp.ne.s32.totalorder %s86, %s87
      %p99 = scmp.eq.s32.totalorder %s23, 3
      %p100 = por %p98, %p99
      %p102 = scmp.ne.s32.totalorder %s87, %s101
      %p103 = scmp.eq.s32.totalorder %s23, 0
      %p104 = por %p102, %p103
      %s106 = sadd.s32 %s105, 1
      %p109 = scmp.eq.s32.totalorder %s17, 3
      %p110 = scmp.ne.s32.totalorder %s105, %s107
      %p111 = scmp.eq.s32.totalorder %s17, 0
      %p112 = por %p110, %p111
      %p113 = scmp.ne.s32.totalorder %s105, %s107
      %p114 = scmp.eq.s32.totalorder %s22, 3
      %p115 = por %p113, %p114
      %p116 = scmp.ne.s32.totalorder %s107, %s108
      %p117 = scmp.eq.s32.totalorder %s22, 0
      %p118 = por %p116, %p117
      %p119 = scmp.ne.s32.totalorder %s107, %s108
      %p120 = scmp.eq.s32.totalorder %s23, 3
      %p121 = por %p119, %p120
      %p123 = scmp.ne.s32.totalorder %s108, %s122
      %p124 = scmp.eq.s32.totalorder %s23, 0
      %p125 = por %p123, %p124
      %s127 = sadd.s32 %s126, 1
      %p130 = scmp.eq.s32.totalorder %s17, 3
      %p131 = scmp.ne.s32.totalorder %s126, %s128
      %p132 = scmp.eq.s32.totalorder %s17, 0
      %p133 = por %p131, %p132
      %p134 = scmp.ne.s32.totalorder %s126, %s128
      %p135 = scmp.eq.s32.totalorder %s22, 3
      %p136 = por %p134, %p135
      %p137 = scmp.ne.s32.totalorder %s128, %s129
      %p138 = scmp.eq.s32.totalorder %s22, 0
      %p139 = por %p137, %p138
      %p140 = scmp.ne.s32.totalorder %s128, %s129
      %p141 = scmp.eq.s32.totalorder %s23, 3
      %p142 = por %p140, %p141
      %p144 = scmp.ne.s32.totalorder %s129, %s143
      %p145 = scmp.eq.s32.totalorder %s23, 0
      %p146 = por %p144, %p145
      %s147 = ssub.s32 %s24, %s36
      %p148 = scmp.eq.s32.totalorder %s147, 0
      %s150 = sadd.s32 %s149, 1
      %s151 = scalar_select %p148, %s149, %s150
      %p154 = pneg %p148
      %p155 = scmp.eq.s32.totalorder %s17, 3
      %p156 = por %p154, %p155
      %p157 = scmp.ne.s32.totalorder %s149, %s152
      %p158 = scmp.eq.s32.totalorder %s17, 0
      %p159 = por %p157, %p158
      %p160 = scmp.ne.s32.totalorder %s149, %s152
      %p161 = scmp.eq.s32.totalorder %s22, 3
      %p162 = por %p160, %p161
      %p163 = scmp.ne.s32.totalorder %s152, %s153
      %p164 = scmp.eq.s32.totalorder %s22, 0
      %p165 = por %p163, %p164
      %p166 = scmp.ne.s32.totalorder %s152, %s153
      %p167 = scmp.eq.s32.totalorder %s23, 3
      %p168 = por %p166, %p167
      %p170 = scmp.ne.s32.totalorder %s153, %s169
      %p171 = scmp.eq.s32.totalorder %s23, 0
      %p172 = por %p170, %p171
      %p173 = scmp.le.s32.totalorder 1, %s17
      %p174 = scmp.lt.s32.totalorder %s17, 5
      %p175 = pnand %p173, %p174
      %p176 = pneg %p175
      // Predicated region
      $region9: #{tpu_custom_call.1} parent=5 // pred_check
        _
      $region10: #{tpu_custom_call.1} parent=5 // pred_check_branch
        %178 = sbr.rel (%p175) target = $region12
      $region11: #{tpu_custom_call.1} parent=5 // pred_region
        %s179 = ssub.s32 %s17, 1
        // Predicated region
        $region13: #{tpu_custom_call.1} parent=11 // pred_check
          %p180 = pneg %p76
        $region14: #{tpu_custom_call.1} parent=11 // pred_check_branch
          %182 = sbr.rel (%p180) target = $region16
        $region15: #{tpu_custom_call.1} parent=11 // pred_region
          %s184 = ssub.s32 79872, 79872
          %185 = vsyncadd [#allocation4], %s184
          %s186 = sshll.u32 [#allocation3], 4
          %s187 = int_to_ptr.vmem [resolvable:$true] %s186
          %192 = dma.hbm_to_vmem [thread:$0]  %s1, 79872, %s187, [#allocation4], 2048, 2048, 128
        $region16: #{tpu_custom_call.1} parent=11 // pred_fallthru
          _
        // Predicated region
        $region17: #{tpu_custom_call.1} parent=11 // pred_check
          %p193 = pneg %p97
        $region18: #{tpu_custom_call.1} parent=11 // pred_check_branch
          %195 = sbr.rel (%p193) target = $region20
        $region19: #{tpu_custom_call.1} parent=11 // pred_region
          %s197 = ssub.s32 512, 512
          %198 = vsyncadd [#allocation7], %s197
          %s200 = sshll.u32 [#allocation6], 4
          %s201 = int_to_ptr.vmem [resolvable:$true] %s200
          %203 = dma.hbm_to_vmem [thread:$0]  %s2, 512, %s201, [#allocation7]
        $region20: #{tpu_custom_call.1} parent=11 // pred_fallthru
          _
        // Predicated region
        $region21: #{tpu_custom_call.1} parent=11 // pred_check
          %p204 = pneg %p118
        $region22: #{tpu_custom_call.1} parent=11 // pred_check_branch
          %206 = sbr.rel (%p204) target = $region24
        $region23: #{tpu_custom_call.1} parent=11 // pred_region
          %s208 = ssub.s32 32768, 32768
          %209 = vsyncadd [#allocation7], %s208
          %s210 = sshll.u32 [#allocation8], 4
          %s211 = int_to_ptr.vmem [resolvable:$true] %s210
          %216 = dma.hbm_to_vmem [thread:$0]  %s3, 32768, %s211, [#allocation7], 64, 64, 4
        $region24: #{tpu_custom_call.1} parent=11 // pred_fallthru
          _
        // Predicated region
        $region25: #{tpu_custom_call.1} parent=11 // pred_check
          %p217 = pneg %p139
        $region26: #{tpu_custom_call.1} parent=11 // pred_check_branch
          %219 = sbr.rel (%p217) target = $region28
        $region27: #{tpu_custom_call.1} parent=11 // pred_region
          %s221 = ssub.s32 16, 16
          %222 = vsyncadd [#allocation10], %s221
          %s224 = sshll.u32 [#allocation9], 4
          %s225 = int_to_ptr.vmem [resolvable:$true] %s224
          %227 = dma.hbm_to_vmem [thread:$0]  %s4, 16, %s225, [#allocation10]
        $region28: #{tpu_custom_call.1} parent=11 // pred_fallthru
          _
      $region12: #{tpu_custom_call.1} parent=5 // pred_fallthru
        _
      %p228 = scmp.lt.s32.totalorder %s17, 4
      // Predicated region
      $region29: #{tpu_custom_call.1} parent=5 // pred_check
        %p229 = pneg %p228
      $region30: #{tpu_custom_call.1} parent=5 // pred_check_branch
        %231 = sbr.rel (%p229) target = $region32
      $region31: #{tpu_custom_call.1} parent=5 // pred_region
        // Predicated region
        $region33: #{tpu_custom_call.1} parent=31 // pred_check
          %p232 = pneg %p49
        $region34: #{tpu_custom_call.1} parent=31 // pred_check_branch
          %234 = sbr.rel (%p232) target = $region36
        $region35: #{tpu_custom_call.1} parent=31 // pred_region
          %p235 = scmp.lt.s32.totalorder %s24, 1
          %s236 = scalar_select %p235, %s24, 1
          %s237 = smul.addr %s236, 5
          %s238 = smul.addr %s237, 4
          %s239 = scalar_lea.vmem %s0, %s238
        $region36: #{tpu_custom_call.1} parent=31 // pred_fallthru
          _
      $region32: #{tpu_custom_call.1} parent=5 // pred_fallthru
        _
      %p240 = scmp.le.s32.totalorder 1, %s17
      %p241 = scmp.lt.s32.totalorder %s17, 5
      %p242 = pnand %p240, %p241
      %p243 = pneg %p242
      // Predicated region
      $region37: #{tpu_custom_call.1} parent=5 // pred_check
        _
      $region38: #{tpu_custom_call.1} parent=5 // pred_check_branch
        %245 = sbr.rel (%p242) target = $region40
      $region39: #{tpu_custom_call.1} parent=5 // pred_region
        %s246 = ssub.s32 %s17, 1
        // Predicated region
        $region41: #{tpu_custom_call.1} parent=39 // pred_check
          %p247 = pneg %p76
        $region42: #{tpu_custom_call.1} parent=39 // pred_check_branch
          %249 = sbr.rel (%p247) target = $region44
        $region43: #{tpu_custom_call.1} parent=39 // pred_region
          %250 = dma.done [#allocation4], 79872
        $region44: #{tpu_custom_call.1} parent=39 // pred_fallthru
          _
        // Predicated region
        $region45: #{tpu_custom_call.1} parent=39 // pred_check
          %p251 = pneg %p97
        $region46: #{tpu_custom_call.1} parent=39 // pred_check_branch
          %253 = sbr.rel (%p251) target = $region48
        $region47: #{tpu_custom_call.1} parent=39 // pred_region
          %254 = dma.done [#allocation7], 512
        $region48: #{tpu_custom_call.1} parent=39 // pred_fallthru
          _
        // Predicated region
        $region49: #{tpu_custom_call.1} parent=39 // pred_check
          %p255 = pneg %p118
        $region50: #{tpu_custom_call.1} parent=39 // pred_check_branch
          %257 = sbr.rel (%p255) target = $region52
        $region51: #{tpu_custom_call.1} parent=39 // pred_region
          %258 = dma.done [#allocation7], 32768
        $region52: #{tpu_custom_call.1} parent=39 // pred_fallthru
          _
        // Predicated region
        $region53: #{tpu_custom_call.1} parent=39 // pred_check
          %p259 = pneg %p139
        $region54: #{tpu_custom_call.1} parent=39 // pred_check_branch
          %261 = sbr.rel (%p259) target = $region56
        $region55: #{tpu_custom_call.1} parent=39 // pred_region
          %262 = dma.done [#allocation10], 16
        $region56: #{tpu_custom_call.1} parent=39 // pred_fallthru
          _
        %p263 = scmp.lt.s32.totalorder %s26, 1
        %s264 = scalar_select %p263, %s26, 1
        %s265 = smul.addr %s264, 5
        %s266 = smul.addr %s265, 4
        %s267 = scalar_lea.vmem %s0, %s266
        %p268 = pneg %p55
        %p269 = pneg %p52
        %p270 = pneg %p76
        %p271 = pneg %p73
        %p272 = pneg %p97
        %p273 = pneg %p94
        %p274 = pneg %p118
        %p275 = pneg %p115
        %p276 = pneg %p139
        %p277 = pneg %p136
        %p278 = pneg %p165
        %p279 = pneg %p162
        %s280 = sand.u32 %s152, 1
        %s281 = scalar_lea.sflag [#allocation5], %s280
        %s282 = sand.u32 %s152, 1
        %s283 = scalar_lea.vmem [#allocation11], %s282
        %p284 = scmp.lt.s32.totalorder %s26, 1
        %s285 = scalar_select %p284, %s26, 1
        %s286 = smul.addr %s285, 5
        %s287 = smul.addr %s286, 4
        %s288 = scalar_lea.vmem %s0, %s287
        %p290 = scmp.eq.s32.totalorder %s27, 0
        // Predicated region
        $region57: #{tpu_custom_call.1} parent=39 // pred_check
          %p291 = pneg %p290
        $region58: #{tpu_custom_call.1} parent=39 // pred_check_branch
          %293 = sbr.rel (%p291) target = $region60
        $region59: #{tpu_custom_call.1} parent=39 // pred_region
          %294 = vst [vmem:[#allocation2] sm:$0xff] 0.0
          %295 = vst [vmem:[#allocation2 + $0x8] sm:$0xff] 0.0
          %296 = vst [vmem:[#allocation2 + $0x10] sm:$0xff] 0.0
          %297 = vst [vmem:[#allocation2 + $0x18] sm:$0xff] 0.0
        $region60: #{tpu_custom_call.1} parent=39 // pred_fallthru
          _
        %s298 = smul.u32 %s27, 16
        %s299 = sshra.s32 %s298, 3
        %s300 = sand.u32 %s298, 7
        %s301 = smul.addr %s299, 4
        %s302 = scalar_lea.vmem %s288, %s301
        %v303 = vld [vmem:[%s302] sm:$0xf]
        %v304 = vld [vmem:[%s302 + $0x4] sm:$0xf]
        %v305 = vld [vmem:[%s302 + $0x8] sm:$0x1]
        %v306 = vld [vmem:[#allocation3] sm:$0xff]
        %v307 = vld [vmem:[#allocation3 + $0x8] sm:$0xff]
        %v308 = vld [vmem:[#allocation3 + $0x10] sm:$0xff]
        %v309 = vld [vmem:[#allocation3 + $0x18] sm:$0xff]
        %v310 = vld [vmem:[#allocation3 + $0x20] sm:$0xff]
        %v311 = vld [vmem:[#allocation3 + $0x28] sm:$0xff]
        %v312 = vld [vmem:[#allocation3 + $0x30] sm:$0xff]
        %v313 = vld [vmem:[#allocation3 + $0x38] sm:$0xff]
        %v314 = vld [vmem:[#allocation3 + $0x40] sm:$0xff]
        %v315 = vld [vmem:[#allocation3 + $0x48] sm:$0xff]
        %v316 = vld [vmem:[#allocation3 + $0x50] sm:$0xff]
        %v317 = vld [vmem:[#allocation3 + $0x58] sm:$0xff]
        %v318 = vld [vmem:[#allocation3 + $0x60] sm:$0xff]
        %v319 = vld [vmem:[#allocation3 + $0x68] sm:$0xff]
        %v320 = vld [vmem:[#allocation3 + $0x70] sm:$0xff]
        %v321 = vld [vmem:[#allocation3 + $0x78] sm:$0xff]
        %v322 = vld [vmem:[#allocation3 + $0x80] sm:$0xff]
        %v323 = vld [vmem:[#allocation3 + $0x88] sm:$0xff]
        %v324 = vld [vmem:[#allocation3 + $0x90] sm:$0xff]
        %v325 = vld [vmem:[#allocation3 + $0x98] sm:$0xff]
        %v326 = vld [vmem:[#allocation3 + $0xa0] sm:$0xff]
        %v327 = vld [vmem:[#allocation3 + $0xa8] sm:$0xff]
        %v328 = vld [vmem:[#allocation3 + $0xb0] sm:$0xff]
        %v329 = vld [vmem:[#allocation3 + $0xb8] sm:$0xff]
        %v330 = vld [vmem:[#allocation3 + $0xc0] sm:$0xff]
        %v331 = vld [vmem:[#allocation3 + $0xc8] sm:$0xff]
        %v332 = vld [vmem:[#allocation3 + $0xd0] sm:$0xff]
        %v333 = vld [vmem:[#allocation3 + $0xd8] sm:$0xff]
        %v334 = vld [vmem:[#allocation3 + $0xe0] sm:$0xff]
        %v335 = vld [vmem:[#allocation3 + $0xe8] sm:$0xff]
        %v336 = vld [vmem:[#allocation3 + $0xf0] sm:$0xff]
        %v337 = vld [vmem:[#allocation3 + $0xf8] sm:$0xff]
        %v338 = vld [vmem:[#allocation3 + $0x100] sm:$0xff]
        %v339 = vld [vmem:[#allocation3 + $0x108] sm:$0xff]
        %v340 = vld [vmem:[#allocation3 + $0x110] sm:$0xff]
        %v341 = vld [vmem:[#allocation3 + $0x118] sm:$0xff]
        %v342 = vld [vmem:[#allocation3 + $0x120] sm:$0xff]
        %v343 = vld [vmem:[#allocation3 + $0x128] sm:$0xff]
        %v344 = vld [vmem:[#allocation3 + $0x130] sm:$0xff]
        %v345 = vld [vmem:[#allocation3 + $0x138] sm:$0xff]
        %v346 = vld [vmem:[#allocation3 + $0x140] sm:$0xff]
        %v347 = vld [vmem:[#allocation3 + $0x148] sm:$0xff]
        %v348 = vld [vmem:[#allocation3 + $0x150] sm:$0xff]
        %v349 = vld [vmem:[#allocation3 + $0x158] sm:$0xff]
        %v350 = vld [vmem:[#allocation3 + $0x160] sm:$0xff]
        %v351 = vld [vmem:[#allocation3 + $0x168] sm:$0xff]
        %v352 = vld [vmem:[#allocation3 + $0x170] sm:$0xff]
        %v353 = vld [vmem:[#allocation3 + $0x178] sm:$0xff]
        %v354 = vld [vmem:[#allocation3 + $0x180] sm:$0xff]
        %v355 = vld [vmem:[#allocation3 + $0x188] sm:$0xff]
        %v356 = vld [vmem:[#allocation3 + $0x190] sm:$0xff]
        %v357 = vld [vmem:[#allocation3 + $0x198] sm:$0xff]
        %v358 = vld [vmem:[#allocation3 + $0x1a0] sm:$0xff]
        %v359 = vld [vmem:[#allocation3 + $0x1a8] sm:$0xff]
        %v360 = vld [vmem:[#allocation3 + $0x1b0] sm:$0xff]
        %v361 = vld [vmem:[#allocation3 + $0x1b8] sm:$0xff]
        %v362 = vld [vmem:[#allocation3 + $0x1c0] sm:$0xff]
        %v363 = vld [vmem:[#allocation3 + $0x1c8] sm:$0xff]
        %v364 = vld [vmem:[#allocation3 + $0x1d0] sm:$0xff]
        %v365 = vld [vmem:[#allocation3 + $0x1d8] sm:$0xff]
        %v366 = vld [vmem:[#allocation3 + $0x1e0] sm:$0xff]
        %v367 = vld [vmem:[#allocation3 + $0x1e8] sm:$0xff]
        %v368 = vld [vmem:[#allocation3 + $0x1f0] sm:$0xff]
        %v369 = vld [vmem:[#allocation3 + $0x1f8] sm:$0xff]
        %v370 = vld [vmem:[#allocation3 + $0x200] sm:$0xff]
        %v371 = vld [vmem:[#allocation3 + $0x208] sm:$0xff]
        %v372 = vld [vmem:[#allocation3 + $0x210] sm:$0xff]
        %v373 = vld [vmem:[#allocation3 + $0x218] sm:$0xff]
        %v374 = vld [vmem:[#allocation3 + $0x220] sm:$0xff]
        %v375 = vld [vmem:[#allocation3 + $0x228] sm:$0xff]
        %v376 = vld [vmem:[#allocation3 + $0x230] sm:$0xff]
        %v377 = vld [vmem:[#allocation3 + $0x238] sm:$0xff]
        %v378 = vld [vmem:[#allocation3 + $0x240] sm:$0xff]
        %v379 = vld [vmem:[#allocation3 + $0x248] sm:$0xff]
        %v380 = vld [vmem:[#allocation3 + $0x250] sm:$0xff]
        %v381 = vld [vmem:[#allocation3 + $0x258] sm:$0xff]
        %v382 = vld [vmem:[#allocation3 + $0x260] sm:$0xff]
        %v383 = vld [vmem:[#allocation3 + $0x268] sm:$0xff]
        %v384 = vld [vmem:[#allocation3 + $0x270] sm:$0xff]
        %v385 = vld [vmem:[#allocation3 + $0x278] sm:$0xff]
        %v386 = vld [vmem:[#allocation3 + $0x280] sm:$0xff]
        %v387 = vld [vmem:[#allocation3 + $0x288] sm:$0xff]
        %v388 = vld [vmem:[#allocation3 + $0x290] sm:$0xff]
        %v389 = vld [vmem:[#allocation3 + $0x298] sm:$0xff]
        %v390 = vld [vmem:[#allocation3 + $0x2a0] sm:$0xff]
        %v391 = vld [vmem:[#allocation3 + $0x2a8] sm:$0xff]
        %v392 = vld [vmem:[#allocation3 + $0x2b0] sm:$0xff]
        %v393 = vld [vmem:[#allocation3 + $0x2b8] sm:$0xff]
        %v394 = vld [vmem:[#allocation3 + $0x2c0] sm:$0xff]
        %v395 = vld [vmem:[#allocation3 + $0x2c8] sm:$0xff]
        %v396 = vld [vmem:[#allocation3 + $0x2d0] sm:$0xff]
        %v397 = vld [vmem:[#allocation3 + $0x2d8] sm:$0xff]
        %v398 = vld [vmem:[#allocation3 + $0x2e0] sm:$0xff]
        %v399 = vld [vmem:[#allocation3 + $0x2e8] sm:$0xff]
        %v400 = vld [vmem:[#allocation3 + $0x2f0] sm:$0xff]
        %v401 = vld [vmem:[#allocation3 + $0x2f8] sm:$0xff]
        %v402 = vld [vmem:[#allocation3 + $0x300] sm:$0xff]
        %v403 = vld [vmem:[#allocation3 + $0x308] sm:$0xff]
        %v404 = vld [vmem:[#allocation3 + $0x310] sm:$0xff]
        %v405 = vld [vmem:[#allocation3 + $0x318] sm:$0xff]
        %v406 = vld [vmem:[#allocation3 + $0x320] sm:$0xff]
        %v407 = vld [vmem:[#allocation3 + $0x328] sm:$0xff]
        %v408 = vld [vmem:[#allocation3 + $0x330] sm:$0xff]
        %v409 = vld [vmem:[#allocation3 + $0x338] sm:$0xff]
        %v410 = vld [vmem:[#allocation3 + $0x340] sm:$0xff]
        %v411 = vld [vmem:[#allocation3 + $0x348] sm:$0xff]
        %v412 = vld [vmem:[#allocation3 + $0x350] sm:$0xff]
        %v413 = vld [vmem:[#allocation3 + $0x358] sm:$0xff]
        %v414 = vld [vmem:[#allocation3 + $0x360] sm:$0xff]
        %v415 = vld [vmem:[#allocation3 + $0x368] sm:$0xff]
        %v416 = vld [vmem:[#allocation3 + $0x370] sm:$0xff]
        %v417 = vld [vmem:[#allocation3 + $0x378] sm:$0xff]
        %v418 = vld [vmem:[#allocation3 + $0x380] sm:$0xff]
        %v419 = vld [vmem:[#allocation3 + $0x388] sm:$0xff]
        %v420 = vld [vmem:[#allocation3 + $0x390] sm:$0xff]
        %v421 = vld [vmem:[#allocation3 + $0x398] sm:$0xff]
        %v422 = vld [vmem:[#allocation3 + $0x3a0] sm:$0xff]
        %v423 = vld [vmem:[#allocation3 + $0x3a8] sm:$0xff]
        %v424 = vld [vmem:[#allocation3 + $0x3b0] sm:$0xff]
        %v425 = vld [vmem:[#allocation3 + $0x3b8] sm:$0xff]
        %v426 = vld [vmem:[#allocation3 + $0x3c0] sm:$0xff]
        %v427 = vld [vmem:[#allocation3 + $0x3c8] sm:$0xff]
        %v428 = vld [vmem:[#allocation3 + $0x3d0] sm:$0xff]
        %v429 = vld [vmem:[#allocation3 + $0x3d8] sm:$0xff]
        %v430 = vld [vmem:[#allocation3 + $0x3e0] sm:$0xff]
        %v431 = vld [vmem:[#allocation3 + $0x3e8] sm:$0xff]
        %v432 = vld [vmem:[#allocation3 + $0x3f0] sm:$0xff]
        %v433 = vld [vmem:[#allocation3 + $0x3f8] sm:$0xff]
        %v434 = vld [vmem:[#allocation3 + $0x400] sm:$0xff]
        %v435 = vld [vmem:[#allocation3 + $0x408] sm:$0xff]
        %v436 = vld [vmem:[#allocation3 + $0x410] sm:$0xff]
        %v437 = vld [vmem:[#allocation3 + $0x418] sm:$0xff]
        %v438 = vld [vmem:[#allocation3 + $0x420] sm:$0xff]
        %v439 = vld [vmem:[#allocation3 + $0x428] sm:$0xff]
        %v440 = vld [vmem:[#allocation3 + $0x430] sm:$0xff]
        %v441 = vld [vmem:[#allocation3 + $0x438] sm:$0xff]
        %v442 = vld [vmem:[#allocation3 + $0x440] sm:$0xff]
        %v443 = vld [vmem:[#allocation3 + $0x448] sm:$0xff]
        %v444 = vld [vmem:[#allocation3 + $0x450] sm:$0xff]
        %v445 = vld [vmem:[#allocation3 + $0x458] sm:$0xff]
        %v446 = vld [vmem:[#allocation3 + $0x460] sm:$0xff]
        %v447 = vld [vmem:[#allocation3 + $0x468] sm:$0xff]
        %v448 = vld [vmem:[#allocation3 + $0x470] sm:$0xff]
        %v449 = vld [vmem:[#allocation3 + $0x478] sm:$0xff]
        %v450 = vld [vmem:[#allocation3 + $0x480] sm:$0xff]
        %v451 = vld [vmem:[#allocation3 + $0x488] sm:$0xff]
        %v452 = vld [vmem:[#allocation3 + $0x490] sm:$0xff]
        %v453 = vld [vmem:[#allocation3 + $0x498] sm:$0xff]
        %v454 = vld [vmem:[#allocation3 + $0x4a0] sm:$0xff]
        %v455 = vld [vmem:[#allocation3 + $0x4a8] sm:$0xff]
        %v456 = vld [vmem:[#allocation3 + $0x4b0] sm:$0xff]
        %v457 = vld [vmem:[#allocation3 + $0x4b8] sm:$0xff]
        %v458 = vld [vmem:[#allocation3 + $0x4c0] sm:$0xff]
        %v459 = vld [vmem:[#allocation3 + $0x4c8] sm:$0xff]
        %v460 = vld [vmem:[#allocation3 + $0x4d0] sm:$0xff]
        %v461 = vld [vmem:[#allocation3 + $0x4d8] sm:$0xff]
        %v462 = vld [vmem:[#allocation3 + $0x4e0] sm:$0xff]
        %v463 = vld [vmem:[#allocation3 + $0x4e8] sm:$0xff]
        %v464 = vld [vmem:[#allocation3 + $0x4f0] sm:$0xff]
        %v465 = vld [vmem:[#allocation3 + $0x4f8] sm:$0xff]
        %v466 = vld [vmem:[#allocation3 + $0x500] sm:$0xff]
        %v467 = vld [vmem:[#allocation3 + $0x508] sm:$0xff]
        %v468 = vld [vmem:[#allocation3 + $0x510] sm:$0xff]
        %v469 = vld [vmem:[#allocation3 + $0x518] sm:$0xff]
        %v470 = vld [vmem:[#allocation3 + $0x520] sm:$0xff]
        %v471 = vld [vmem:[#allocation3 + $0x528] sm:$0xff]
        %v472 = vld [vmem:[#allocation3 + $0x530] sm:$0xff]
        %v473 = vld [vmem:[#allocation3 + $0x538] sm:$0xff]
        %v474 = vld [vmem:[#allocation3 + $0x540] sm:$0xff]
        %v475 = vld [vmem:[#allocation3 + $0x548] sm:$0xff]
        %v476 = vld [vmem:[#allocation3 + $0x550] sm:$0xff]
        %v477 = vld [vmem:[#allocation3 + $0x558] sm:$0xff]
        %v478 = vld [vmem:[#allocation3 + $0x560] sm:$0xff]
        %v479 = vld [vmem:[#allocation3 + $0x568] sm:$0xff]
        %v480 = vld [vmem:[#allocation3 + $0x570] sm:$0xff]
        %v481 = vld [vmem:[#allocation3 + $0x578] sm:$0xff]
        %v482 = vld [vmem:[#allocation3 + $0x580] sm:$0xff]
        %v483 = vld [vmem:[#allocation3 + $0x588] sm:$0xff]
        %v484 = vld [vmem:[#allocation3 + $0x590] sm:$0xff]
        %v485 = vld [vmem:[#allocation3 + $0x598] sm:$0xff]
        %v486 = vld [vmem:[#allocation3 + $0x5a0] sm:$0xff]
        %v487 = vld [vmem:[#allocation3 + $0x5a8] sm:$0xff]
        %v488 = vld [vmem:[#allocation3 + $0x5b0] sm:$0xff]
        %v489 = vld [vmem:[#allocation3 + $0x5b8] sm:$0xff]
        %v490 = vld [vmem:[#allocation3 + $0x5c0] sm:$0xff]
        %v491 = vld [vmem:[#allocation3 + $0x5c8] sm:$0xff]
        %v492 = vld [vmem:[#allocation3 + $0x5d0] sm:$0xff]
        %v493 = vld [vmem:[#allocation3 + $0x5d8] sm:$0xff]
        %v494 = vld [vmem:[#allocation3 + $0x5e0] sm:$0xff]
        %v495 = vld [vmem:[#allocation3 + $0x5e8] sm:$0xff]
        %v496 = vld [vmem:[#allocation3 + $0x5f0] sm:$0xff]
        %v497 = vld [vmem:[#allocation3 + $0x5f8] sm:$0xff]
        %v498 = vld [vmem:[#allocation3 + $0x600] sm:$0x77]
        %v499 = vld [vmem:[#allocation3 + $0x608] sm:$0x77]
        %v500 = vld [vmem:[#allocation3 + $0x610] sm:$0x77]
        %v501 = vld [vmem:[#allocation3 + $0x618] sm:$0x77]
        %v502 = vld [vmem:[#allocation3 + $0x620] sm:$0x77]
        %v503 = vld [vmem:[#allocation3 + $0x628] sm:$0x77]
        %v504 = vld [vmem:[#allocation3 + $0x630] sm:$0x77]
        %v505 = vld [vmem:[#allocation3 + $0x638] sm:$0x77]
        %v506 = vld [vmem:[#allocation3 + $0x640] sm:$0x77]
        %v507 = vld [vmem:[#allocation3 + $0x648] sm:$0x77]
        %v508 = vld [vmem:[#allocation3 + $0x650] sm:$0x77]
        %v509 = vld [vmem:[#allocation3 + $0x658] sm:$0x77]
        %v510 = vld [vmem:[#allocation3 + $0x660] sm:$0x77]
        %v511 = vld [vmem:[#allocation3 + $0x668] sm:$0x77]
        %v512 = vld [vmem:[#allocation3 + $0x670] sm:$0x77]
        %v513 = vld [vmem:[#allocation3 + $0x678] sm:$0x77]
        %s514 = scalar_lea.vmem [#allocation3], 1664
        %v515 = vld [vmem:[%s514] sm:$0xff]
        %v516 = vld [vmem:[%s514 + $0x8] sm:$0xff]
        %v517 = vld [vmem:[%s514 + $0x10] sm:$0xff]
        %v518 = vld [vmem:[%s514 + $0x18] sm:$0xff]
        %v519 = vld [vmem:[%s514 + $0x20] sm:$0xff]
        %v520 = vld [vmem:[%s514 + $0x28] sm:$0xff]
        %v521 = vld [vmem:[%s514 + $0x30] sm:$0xff]
        %v522 = vld [vmem:[%s514 + $0x38] sm:$0xff]
        %v523 = vld [vmem:[%s514 + $0x40] sm:$0xff]
        %v524 = vld [vmem:[%s514 + $0x48] sm:$0xff]
        %v525 = vld [vmem:[%s514 + $0x50] sm:$0xff]
        %v526 = vld [vmem:[%s514 + $0x58] sm:$0xff]
        %v527 = vld [vmem:[%s514 + $0x60] sm:$0xff]
        %v528 = vld [vmem:[%s514 + $0x68] sm:$0xff]
        %v529 = vld [vmem:[%s514 + $0x70] sm:$0xff]
        %v530 = vld [vmem:[%s514 + $0x78] sm:$0xff]
        %v531 = vld [vmem:[%s514 + $0x80] sm:$0xff]
        %v532 = vld [vmem:[%s514 + $0x88] sm:$0xff]
        %v533 = vld [vmem:[%s514 + $0x90] sm:$0xff]
        %v534 = vld [vmem:[%s514 + $0x98] sm:$0xff]
        %v535 = vld [vmem:[%s514 + $0xa0] sm:$0xff]
        %v536 = vld [vmem:[%s514 + $0xa8] sm:$0xff]
        %v537 = vld [vmem:[%s514 + $0xb0] sm:$0xff]
        %v538 = vld [vmem:[%s514 + $0xb8] sm:$0xff]
        %v539 = vld [vmem:[%s514 + $0xc0] sm:$0xff]
        %v540 = vld [vmem:[%s514 + $0xc8] sm:$0xff]
        %v541 = vld [vmem:[%s514 + $0xd0] sm:$0xff]
        %v542 = vld [vmem:[%s514 + $0xd8] sm:$0xff]
        %v543 = vld [vmem:[%s514 + $0xe0] sm:$0xff]
        %v544 = vld [vmem:[%s514 + $0xe8] sm:$0xff]
        %v545 = vld [vmem:[%s514 + $0xf0] sm:$0xff]
        %v546 = vld [vmem:[%s514 + $0xf8] sm:$0xff]
        %v547 = vld [vmem:[%s514 + $0x100] sm:$0xff]
        %v548 = vld [vmem:[%s514 + $0x108] sm:$0xff]
        %v549 = vld [vmem:[%s514 + $0x110] sm:$0xff]
        %v550 = vld [vmem:[%s514 + $0x118] sm:$0xff]
        %v551 = vld [vmem:[%s514 + $0x120] sm:$0xff]
        %v552 = vld [vmem:[%s514 + $0x128] sm:$0xff]
        %v553 = vld [vmem:[%s514 + $0x130] sm:$0xff]
        %v554 = vld [vmem:[%s514 + $0x138] sm:$0xff]
        %v555 = vld [vmem:[%s514 + $0x140] sm:$0xff]
        %v556 = vld [vmem:[%s514 + $0x148] sm:$0xff]
        %v557 = vld [vmem:[%s514 + $0x150] sm:$0xff]
        %v558 = vld [vmem:[%s514 + $0x158] sm:$0xff]
        %v559 = vld [vmem:[%s514 + $0x160] sm:$0xff]
        %v560 = vld [vmem:[%s514 + $0x168] sm:$0xff]
        %v561 = vld [vmem:[%s514 + $0x170] sm:$0xff]
        %v562 = vld [vmem:[%s514 + $0x178] sm:$0xff]
        %v563 = vld [vmem:[%s514 + $0x180] sm:$0xff]
        %v564 = vld [vmem:[%s514 + $0x188] sm:$0xff]
        %v565 = vld [vmem:[%s514 + $0x190] sm:$0xff]
        %v566 = vld [vmem:[%s514 + $0x198] sm:$0xff]
        %v567 = vld [vmem:[%s514 + $0x1a0] sm:$0xff]
        %v568 = vld [vmem:[%s514 + $0x1a8] sm:$0xff]
        %v569 = vld [vmem:[%s514 + $0x1b0] sm:$0xff]
        %v570 = vld [vmem:[%s514 + $0x1b8] sm:$0xff]
        %v571 = vld [vmem:[%s514 + $0x1c0] sm:$0xff]
        %v572 = vld [vmem:[%s514 + $0x1c8] sm:$0xff]
        %v573 = vld [vmem:[%s514 + $0x1d0] sm:$0xff]
        %v574 = vld [vmem:[%s514 + $0x1d8] sm:$0xff]
        %v575 = vld [vmem:[%s514 + $0x1e0] sm:$0xff]
        %v576 = vld [vmem:[%s514 + $0x1e8] sm:$0xff]
        %v577 = vld [vmem:[%s514 + $0x1f0] sm:$0xff]
        %v578 = vld [vmem:[%s514 + $0x1f8] sm:$0xff]
        %v579 = vld [vmem:[%s514 + $0x200] sm:$0xff]
        %v580 = vld [vmem:[%s514 + $0x208] sm:$0xff]
        %v581 = vld [vmem:[%s514 + $0x210] sm:$0xff]
        %v582 = vld [vmem:[%s514 + $0x218] sm:$0xff]
        %v583 = vld [vmem:[%s514 + $0x220] sm:$0xff]
        %v584 = vld [vmem:[%s514 + $0x228] sm:$0xff]
        %v585 = vld [vmem:[%s514 + $0x230] sm:$0xff]
        %v586 = vld [vmem:[%s514 + $0x238] sm:$0xff]
        %v587 = vld [vmem:[%s514 + $0x240] sm:$0xff]
        %v588 = vld [vmem:[%s514 + $0x248] sm:$0xff]
        %v589 = vld [vmem:[%s514 + $0x250] sm:$0xff]
        %v590 = vld [vmem:[%s514 + $0x258] sm:$0xff]
        %v591 = vld [vmem:[%s514 + $0x260] sm:$0xff]
        %v592 = vld [vmem:[%s514 + $0x268] sm:$0xff]
        %v593 = vld [vmem:[%s514 + $0x270] sm:$0xff]
        %v594 = vld [vmem:[%s514 + $0x278] sm:$0xff]
        %v595 = vld [vmem:[%s514 + $0x280] sm:$0xff]
        %v596 = vld [vmem:[%s514 + $0x288] sm:$0xff]
        %v597 = vld [vmem:[%s514 + $0x290] sm:$0xff]
        %v598 = vld [vmem:[%s514 + $0x298] sm:$0xff]
        %v599 = vld [vmem:[%s514 + $0x2a0] sm:$0xff]
        %v600 = vld [vmem:[%s514 + $0x2a8] sm:$0xff]
        %v601 = vld [vmem:[%s514 + $0x2b0] sm:$0xff]
        %v602 = vld [vmem:[%s514 + $0x2b8] sm:$0xff]
        %v603 = vld [vmem:[%s514 + $0x2c0] sm:$0xff]
        %v604 = vld [vmem:[%s514 + $0x2c8] sm:$0xff]
        %v605 = vld [vmem:[%s514 + $0x2d0] sm:$0xff]
        %v606 = vld [vmem:[%s514 + $0x2d8] sm:$0xff]
        %v607 = vld [vmem:[%s514 + $0x2e0] sm:$0xff]
        %v608 = vld [vmem:[%s514 + $0x2e8] sm:$0xff]
        %v609 = vld [vmem:[%s514 + $0x2f0] sm:$0xff]
        %v610 = vld [vmem:[%s514 + $0x2f8] sm:$0xff]
        %v611 = vld [vmem:[%s514 + $0x300] sm:$0xff]
        %v612 = vld [vmem:[%s514 + $0x308] sm:$0xff]
        %v613 = vld [vmem:[%s514 + $0x310] sm:$0xff]
        %v614 = vld [vmem:[%s514 + $0x318] sm:$0xff]
        %v615 = vld [vmem:[%s514 + $0x320] sm:$0xff]
        %v616 = vld [vmem:[%s514 + $0x328] sm:$0xff]
        %v617 = vld [vmem:[%s514 + $0x330] sm:$0xff]
        %v618 = vld [vmem:[%s514 + $0x338] sm:$0xff]
        %v619 = vld [vmem:[%s514 + $0x340] sm:$0xff]
        %v620 = vld [vmem:[%s514 + $0x348] sm:$0xff]
        %v621 = vld [vmem:[%s514 + $0x350] sm:$0xff]
        %v622 = vld [vmem:[%s514 + $0x358] sm:$0xff]
        %v623 = vld [vmem:[%s514 + $0x360] sm:$0xff]
        %v624 = vld [vmem:[%s514 + $0x368] sm:$0xff]
        %v625 = vld [vmem:[%s514 + $0x370] sm:$0xff]
        %v626 = vld [vmem:[%s514 + $0x378] sm:$0xff]
        %v627 = vld [vmem:[%s514 + $0x380] sm:$0xff]
        %v628 = vld [vmem:[%s514 + $0x388] sm:$0xff]
        %v629 = vld [vmem:[%s514 + $0x390] sm:$0xff]
        %v630 = vld [vmem:[%s514 + $0x398] sm:$0xff]
        %v631 = vld [vmem:[%s514 + $0x3a0] sm:$0xff]
        %v632 = vld [vmem:[%s514 + $0x3a8] sm:$0xff]
        %v633 = vld [vmem:[%s514 + $0x3b0] sm:$0xff]
        %v634 = vld [vmem:[%s514 + $0x3b8] sm:$0xff]
        %v635 = vld [vmem:[%s514 + $0x3c0] sm:$0xff]
        %v636 = vld [vmem:[%s514 + $0x3c8] sm:$0xff]
        %v637 = vld [vmem:[%s514 + $0x3d0] sm:$0xff]
        %v638 = vld [vmem:[%s514 + $0x3d8] sm:$0xff]
        %v639 = vld [vmem:[%s514 + $0x3e0] sm:$0xff]
        %v640 = vld [vmem:[%s514 + $0x3e8] sm:$0xff]
        %v641 = vld [vmem:[%s514 + $0x3f0] sm:$0xff]
        %v642 = vld [vmem:[%s514 + $0x3f8] sm:$0xff]
        %v643 = vld [vmem:[%s514 + $0x400] sm:$0xff]
        %v644 = vld [vmem:[%s514 + $0x408] sm:$0xff]
        %v645 = vld [vmem:[%s514 + $0x410] sm:$0xff]
        %v646 = vld [vmem:[%s514 + $0x418] sm:$0xff]
        %v647 = vld [vmem:[%s514 + $0x420] sm:$0xff]
        %v648 = vld [vmem:[%s514 + $0x428] sm:$0xff]
        %v649 = vld [vmem:[%s514 + $0x430] sm:$0xff]
        %v650 = vld [vmem:[%s514 + $0x438] sm:$0xff]
        %v651 = vld [vmem:[%s514 + $0x440] sm:$0xff]
        %v652 = vld [vmem:[%s514 + $0x448] sm:$0xff]
        %v653 = vld [vmem:[%s514 + $0x450] sm:$0xff]
        %v654 = vld [vmem:[%s514 + $0x458] sm:$0xff]
        %v655 = vld [vmem:[%s514 + $0x460] sm:$0xff]
        %v656 = vld [vmem:[%s514 + $0x468] sm:$0xff]
        %v657 = vld [vmem:[%s514 + $0x470] sm:$0xff]
        %v658 = vld [vmem:[%s514 + $0x478] sm:$0xff]
        %v659 = vld [vmem:[%s514 + $0x480] sm:$0xff]
        %v660 = vld [vmem:[%s514 + $0x488] sm:$0xff]
        %v661 = vld [vmem:[%s514 + $0x490] sm:$0xff]
        %v662 = vld [vmem:[%s514 + $0x498] sm:$0xff]
        %v663 = vld [vmem:[%s514 + $0x4a0] sm:$0xff]
        %v664 = vld [vmem:[%s514 + $0x4a8] sm:$0xff]
        %v665 = vld [vmem:[%s514 + $0x4b0] sm:$0xff]
        %v666 = vld [vmem:[%s514 + $0x4b8] sm:$0xff]
        %v667 = vld [vmem:[%s514 + $0x4c0] sm:$0xff]
        %v668 = vld [vmem:[%s514 + $0x4c8] sm:$0xff]
        %v669 = vld [vmem:[%s514 + $0x4d0] sm:$0xff]
        %v670 = vld [vmem:[%s514 + $0x4d8] sm:$0xff]
        %v671 = vld [vmem:[%s514 + $0x4e0] sm:$0xff]
        %v672 = vld [vmem:[%s514 + $0x4e8] sm:$0xff]
        %v673 = vld [vmem:[%s514 + $0x4f0] sm:$0xff]
        %v674 = vld [vmem:[%s514 + $0x4f8] sm:$0xff]
        %v675 = vld [vmem:[%s514 + $0x500] sm:$0xff]
        %v676 = vld [vmem:[%s514 + $0x508] sm:$0xff]
        %v677 = vld [vmem:[%s514 + $0x510] sm:$0xff]
        %v678 = vld [vmem:[%s514 + $0x518] sm:$0xff]
        %v679 = vld [vmem:[%s514 + $0x520] sm:$0xff]
        %v680 = vld [vmem:[%s514 + $0x528] sm:$0xff]
        %v681 = vld [vmem:[%s514 + $0x530] sm:$0xff]
        %v682 = vld [vmem:[%s514 + $0x538] sm:$0xff]
        %v683 = vld [vmem:[%s514 + $0x540] sm:$0xff]
        %v684 = vld [vmem:[%s514 + $0x548] sm:$0xff]
        %v685 = vld [vmem:[%s514 + $0x550] sm:$0xff]
        %v686 = vld [vmem:[%s514 + $0x558] sm:$0xff]
        %v687 = vld [vmem:[%s514 + $0x560] sm:$0xff]
        %v688 = vld [vmem:[%s514 + $0x568] sm:$0xff]
        %v689 = vld [vmem:[%s514 + $0x570] sm:$0xff]
        %v690 = vld [vmem:[%s514 + $0x578] sm:$0xff]
        %v691 = vld [vmem:[%s514 + $0x580] sm:$0xff]
        %v692 = vld [vmem:[%s514 + $0x588] sm:$0xff]
        %v693 = vld [vmem:[%s514 + $0x590] sm:$0xff]
        %v694 = vld [vmem:[%s514 + $0x598] sm:$0xff]
        %v695 = vld [vmem:[%s514 + $0x5a0] sm:$0xff]
        %v696 = vld [vmem:[%s514 + $0x5a8] sm:$0xff]
        %v697 = vld [vmem:[%s514 + $0x5b0] sm:$0xff]
        %v698 = vld [vmem:[%s514 + $0x5b8] sm:$0xff]
        %v699 = vld [vmem:[%s514 + $0x5c0] sm:$0xff]
        %v700 = vld [vmem:[%s514 + $0x5c8] sm:$0xff]
        %v701 = vld [vmem:[%s514 + $0x5d0] sm:$0xff]
        %v702 = vld [vmem:[%s514 + $0x5d8] sm:$0xff]
        %v703 = vld [vmem:[%s514 + $0x5e0] sm:$0xff]
        %v704 = vld [vmem:[%s514 + $0x5e8] sm:$0xff]
        %v705 = vld [vmem:[%s514 + $0x5f0] sm:$0xff]
        %v706 = vld [vmem:[%s514 + $0x5f8] sm:$0xff]
        %v707 = vld [vmem:[%s514 + $0x600] sm:$0x77]
        %v708 = vld [vmem:[%s514 + $0x608] sm:$0x77]
        %v709 = vld [vmem:[%s514 + $0x610] sm:$0x77]
        %v710 = vld [vmem:[%s514 + $0x618] sm:$0x77]
        %v711 = vld [vmem:[%s514 + $0x620] sm:$0x77]
        %v712 = vld [vmem:[%s514 + $0x628] sm:$0x77]
        %v713 = vld [vmem:[%s514 + $0x630] sm:$0x77]
        %v714 = vld [vmem:[%s514 + $0x638] sm:$0x77]
        %v715 = vld [vmem:[%s514 + $0x640] sm:$0x77]
        %v716 = vld [vmem:[%s514 + $0x648] sm:$0x77]
        %v717 = vld [vmem:[%s514 + $0x650] sm:$0x77]
        %v718 = vld [vmem:[%s514 + $0x658] sm:$0x77]
        %v719 = vld [vmem:[%s514 + $0x660] sm:$0x77]
        %v720 = vld [vmem:[%s514 + $0x668] sm:$0x77]
        %v721 = vld [vmem:[%s514 + $0x670] sm:$0x77]
        %v722 = vld [vmem:[%s514 + $0x678] sm:$0x77]
        %v726 = vunpack.c.l.b16 %v303
        %v727 = vunpack.c.l.b16 %v304
        %v728 = vunpack.c.l.b16 %v305
        %v729 = vpack.c.b16 %v727, %v726
        %v730 = vpack.c.b16 %v728, %v728
        %vm731 = vsmask.f32 7424
        %v733 = vshrl.u32 %v729, 16
        %v735 = vshll.u32 %v729, 16
        %v737 = vrot.slane %v735, 1
        %v738 = vor.u32 %v733, %v737
        %v740 = vshll.u32 %v730, 16
        %v742 = vrot.slane %v740, 1
        %v743 = vsel %vm731, %v738, %v742
        %v952 = vunpack.c.l.b16 %v515
        %v953 = vunpack.c.h.b16 %v515
        %v954 = vunpack.c.l.b16 %v516
        %v955 = vunpack.c.h.b16 %v516
        %v956 = vunpack.c.l.b16 %v517
        %v957 = vunpack.c.h.b16 %v517
        %v958 = vunpack.c.l.b16 %v518
        %v959 = vunpack.c.h.b16 %v518
        %v960 = vunpack.c.l.b16 %v519
        %v961 = vunpack.c.h.b16 %v519
        %v962 = vunpack.c.l.b16 %v520
        %v963 = vunpack.c.h.b16 %v520
        %v964 = vunpack.c.l.b16 %v521
        %v965 = vunpack.c.h.b16 %v521
        %v966 = vunpack.c.l.b16 %v522
        %v967 = vunpack.c.h.b16 %v522
        %v968 = vunpack.c.l.b16 %v523
        %v969 = vunpack.c.h.b16 %v523
        %v970 = vunpack.c.l.b16 %v524
        %v971 = vunpack.c.h.b16 %v524
        %v972 = vunpack.c.l.b16 %v525
        %v973 = vunpack.c.h.b16 %v525
        %v974 = vunpack.c.l.b16 %v526
        %v975 = vunpack.c.h.b16 %v526
        %v976 = vunpack.c.l.b16 %v527
        %v977 = vunpack.c.h.b16 %v527
        %v978 = vunpack.c.l.b16 %v528
        %v979 = vunpack.c.h.b16 %v528
        %v980 = vunpack.c.l.b16 %v529
        %v981 = vunpack.c.h.b16 %v529
        %v982 = vunpack.c.l.b16 %v530
        %v983 = vunpack.c.h.b16 %v530
        %v984 = vunpack.c.l.b16 %v531
        %v985 = vunpack.c.h.b16 %v531
        %v986 = vunpack.c.l.b16 %v532
        %v987 = vunpack.c.h.b16 %v532
        %v988 = vunpack.c.l.b16 %v533
        %v989 = vunpack.c.h.b16 %v533
        %v990 = vunpack.c.l.b16 %v534
        %v991 = vunpack.c.h.b16 %v534
        %v992 = vunpack.c.l.b16 %v535
        %v993 = vunpack.c.h.b16 %v535
        %v994 = vunpack.c.l.b16 %v536
        %v995 = vunpack.c.h.b16 %v536
        %v996 = vunpack.c.l.b16 %v537
        %v997 = vunpack.c.h.b16 %v537
        %v998 = vunpack.c.l.b16 %v538
        %v999 = vunpack.c.h.b16 %v538
        %v1000 = vunpack.c.l.b16 %v539
        %v1001 = vunpack.c.h.b16 %v539
        %v1002 = vunpack.c.l.b16 %v540
        %v1003 = vunpack.c.h.b16 %v540
        %v1004 = vunpack.c.l.b16 %v541
        %v1005 = vunpack.c.h.b16 %v541
        %v1006 = vunpack.c.l.b16 %v542
        %v1007 = vunpack.c.h.b16 %v542
        %v1008 = vunpack.c.l.b16 %v543
        %v1009 = vunpack.c.h.b16 %v543
        %v1010 = vunpack.c.l.b16 %v544
        %v1011 = vunpack.c.h.b16 %v544
        %v1012 = vunpack.c.l.b16 %v545
        %v1013 = vunpack.c.h.b16 %v545
        %v1014 = vunpack.c.l.b16 %v546
        %v1015 = vunpack.c.h.b16 %v546
        %v1016 = vunpack.c.l.b16 %v547
        %v1017 = vunpack.c.h.b16 %v547
        %v1018 = vunpack.c.l.b16 %v548
        %v1019 = vunpack.c.h.b16 %v548
        %v1020 = vunpack.c.l.b16 %v549
        %v1021 = vunpack.c.h.b16 %v549
        %v1022 = vunpack.c.l.b16 %v550
        %v1023 = vunpack.c.h.b16 %v550
        %v1024 = vunpack.c.l.b16 %v551
        %v1025 = vunpack.c.h.b16 %v551
        %v1026 = vunpack.c.l.b16 %v552
        %v1027 = vunpack.c.h.b16 %v552
        %v1028 = vunpack.c.l.b16 %v553
        %v1029 = vunpack.c.h.b16 %v553
        %v1030 = vunpack.c.l.b16 %v554
        %v1031 = vunpack.c.h.b16 %v554
        %v1032 = vunpack.c.l.b16 %v555
        %v1033 = vunpack.c.h.b16 %v555
        %v1034 = vunpack.c.l.b16 %v556
        %v1035 = vunpack.c.h.b16 %v556
        %v1036 = vunpack.c.l.b16 %v557
        %v1037 = vunpack.c.h.b16 %v557
        %v1038 = vunpack.c.l.b16 %v558
        %v1039 = vunpack.c.h.b16 %v558
        %v1040 = vunpack.c.l.b16 %v559
        %v1041 = vunpack.c.h.b16 %v559
        %v1042 = vunpack.c.l.b16 %v560
        %v1043 = vunpack.c.h.b16 %v560
        %v1044 = vunpack.c.l.b16 %v561
        %v1045 = vunpack.c.h.b16 %v561
        %v1046 = vunpack.c.l.b16 %v562
        %v1047 = vunpack.c.h.b16 %v562
        %v1048 = vunpack.c.l.b16 %v563
        %v1049 = vunpack.c.h.b16 %v563
        %v1050 = vunpack.c.l.b16 %v564
        %v1051 = vunpack.c.h.b16 %v564
        %v1052 = vunpack.c.l.b16 %v565
        %v1053 = vunpack.c.h.b16 %v565
        %v1054 = vunpack.c.l.b16 %v566
        %v1055 = vunpack.c.h.b16 %v566
        %v1056 = vunpack.c.l.b16 %v567
        %v1057 = vunpack.c.h.b16 %v567
        %v1058 = vunpack.c.l.b16 %v568
        %v1059 = vunpack.c.h.b16 %v568
        %v1060 = vunpack.c.l.b16 %v569
        %v1061 = vunpack.c.h.b16 %v569
        %v1062 = vunpack.c.l.b16 %v570
        %v1063 = vunpack.c.h.b16 %v570
        %v1064 = vunpack.c.l.b16 %v571
        %v1065 = vunpack.c.h.b16 %v571
        %v1066 = vunpack.c.l.b16 %v572
        %v1067 = vunpack.c.h.b16 %v572
        %v1068 = vunpack.c.l.b16 %v573
        %v1069 = vunpack.c.h.b16 %v573
        %v1070 = vunpack.c.l.b16 %v574
        %v1071 = vunpack.c.h.b16 %v574
        %v1072 = vunpack.c.l.b16 %v575
        %v1073 = vunpack.c.h.b16 %v575
        %v1074 = vunpack.c.l.b16 %v576
        %v1075 = vunpack.c.h.b16 %v576
        %v1076 = vunpack.c.l.b16 %v577
        %v1077 = vunpack.c.h.b16 %v577
        %v1078 = vunpack.c.l.b16 %v578
        %v1079 = vunpack.c.h.b16 %v578
        %v1080 = vunpack.c.l.b16 %v579
        %v1081 = vunpack.c.h.b16 %v579
        %v1082 = vunpack.c.l.b16 %v580
        %v1083 = vunpack.c.h.b16 %v580
        %v1084 = vunpack.c.l.b16 %v581
        %v1085 = vunpack.c.h.b16 %v581
        %v1086 = vunpack.c.l.b16 %v582
        %v1087 = vunpack.c.h.b16 %v582
        %v1088 = vunpack.c.l.b16 %v583
        %v1089 = vunpack.c.h.b16 %v583
        %v1090 = vunpack.c.l.b16 %v584
        %v1091 = vunpack.c.h.b16 %v584
        %v1092 = vunpack.c.l.b16 %v585
        %v1093 = vunpack.c.h.b16 %v585
        %v1094 = vunpack.c.l.b16 %v586
        %v1095 = vunpack.c.h.b16 %v586
        %v1096 = vunpack.c.l.b16 %v587
        %v1097 = vunpack.c.h.b16 %v587
        %v1098 = vunpack.c.l.b16 %v588
        %v1099 = vunpack.c.h.b16 %v588
        %v1100 = vunpack.c.l.b16 %v589
        %v1101 = vunpack.c.h.b16 %v589
        %v1102 = vunpack.c.l.b16 %v590
        %v1103 = vunpack.c.h.b16 %v590
        %v1104 = vunpack.c.l.b16 %v591
        %v1105 = vunpack.c.h.b16 %v591
        %v1106 = vunpack.c.l.b16 %v592
        %v1107 = vunpack.c.h.b16 %v592
        %v1108 = vunpack.c.l.b16 %v593
        %v1109 = vunpack.c.h.b16 %v593
        %v1110 = vunpack.c.l.b16 %v594
        %v1111 = vunpack.c.h.b16 %v594
        %v1112 = vunpack.c.l.b16 %v595
        %v1113 = vunpack.c.h.b16 %v595
        %v1114 = vunpack.c.l.b16 %v596
        %v1115 = vunpack.c.h.b16 %v596
        %v1116 = vunpack.c.l.b16 %v597
        %v1117 = vunpack.c.h.b16 %v597
        %v1118 = vunpack.c.l.b16 %v598
        %v1119 = vunpack.c.h.b16 %v598
        %v1120 = vunpack.c.l.b16 %v599
        %v1121 = vunpack.c.h.b16 %v599
        %v1122 = vunpack.c.l.b16 %v600
        %v1123 = vunpack.c.h.b16 %v600
        %v1124 = vunpack.c.l.b16 %v601
        %v1125 = vunpack.c.h.b16 %v601
        %v1126 = vunpack.c.l.b16 %v602
        %v1127 = vunpack.c.h.b16 %v602
        %v1128 = vunpack.c.l.b16 %v603
        %v1129 = vunpack.c.h.b16 %v603
        %v1130 = vunpack.c.l.b16 %v604
        %v1131 = vunpack.c.h.b16 %v604
        %v1132 = vunpack.c.l.b16 %v605
        %v1133 = vunpack.c.h.b16 %v605
        %v1134 = vunpack.c.l.b16 %v606
        %v1135 = vunpack.c.h.b16 %v606
        %v1136 = vunpack.c.l.b16 %v607
        %v1137 = vunpack.c.h.b16 %v607
        %v1138 = vunpack.c.l.b16 %v608
        %v1139 = vunpack.c.h.b16 %v608
        %v1140 = vunpack.c.l.b16 %v609
        %v1141 = vunpack.c.h.b16 %v609
        %v1142 = vunpack.c.l.b16 %v610
        %v1143 = vunpack.c.h.b16 %v610
        %v1144 = vunpack.c.l.b16 %v611
        %v1145 = vunpack.c.h.b16 %v611
        %v1146 = vunpack.c.l.b16 %v612
        %v1147 = vunpack.c.h.b16 %v612
        %v1148 = vunpack.c.l.b16 %v613
        %v1149 = vunpack.c.h.b16 %v613
        %v1150 = vunpack.c.l.b16 %v614
        %v1151 = vunpack.c.h.b16 %v614
        %v1152 = vunpack.c.l.b16 %v615
        %v1153 = vunpack.c.h.b16 %v615
        %v1154 = vunpack.c.l.b16 %v616
        %v1155 = vunpack.c.h.b16 %v616
        %v1156 = vunpack.c.l.b16 %v617
        %v1157 = vunpack.c.h.b16 %v617
        %v1158 = vunpack.c.l.b16 %v618
        %v1159 = vunpack.c.h.b16 %v618
        %v1160 = vunpack.c.l.b16 %v619
        %v1161 = vunpack.c.h.b16 %v619
        %v1162 = vunpack.c.l.b16 %v620
        %v1163 = vunpack.c.h.b16 %v620
        %v1164 = vunpack.c.l.b16 %v621
        %v1165 = vunpack.c.h.b16 %v621
        %v1166 = vunpack.c.l.b16 %v622
        %v1167 = vunpack.c.h.b16 %v622
        %v1168 = vunpack.c.l.b16 %v623
        %v1169 = vunpack.c.h.b16 %v623
        %v1170 = vunpack.c.l.b16 %v624
        %v1171 = vunpack.c.h.b16 %v624
        %v1172 = vunpack.c.l.b16 %v625
        %v1173 = vunpack.c.h.b16 %v625
        %v1174 = vunpack.c.l.b16 %v626
        %v1175 = vunpack.c.h.b16 %v626
        %v1176 = vunpack.c.l.b16 %v627
        %v1177 = vunpack.c.h.b16 %v627
        %v1178 = vunpack.c.l.b16 %v628
        %v1179 = vunpack.c.h.b16 %v628
        %v1180 = vunpack.c.l.b16 %v629
        %v1181 = vunpack.c.h.b16 %v629
        %v1182 = vunpack.c.l.b16 %v630
        %v1183 = vunpack.c.h.b16 %v630
        %v1184 = vunpack.c.l.b16 %v631
        %v1185 = vunpack.c.h.b16 %v631
        %v1186 = vunpack.c.l.b16 %v632
        %v1187 = vunpack.c.h.b16 %v632
        %v1188 = vunpack.c.l.b16 %v633
        %v1189 = vunpack.c.h.b16 %v633
        %v1190 = vunpack.c.l.b16 %v634
        %v1191 = vunpack.c.h.b16 %v634
        %v1192 = vunpack.c.l.b16 %v635
        %v1193 = vunpack.c.h.b16 %v635
        %v1194 = vunpack.c.l.b16 %v636
        %v1195 = vunpack.c.h.b16 %v636
        %v1196 = vunpack.c.l.b16 %v637
        %v1197 = vunpack.c.h.b16 %v637
        %v1198 = vunpack.c.l.b16 %v638
        %v1199 = vunpack.c.h.b16 %v638
        %v1200 = vunpack.c.l.b16 %v639
        %v1201 = vunpack.c.h.b16 %v639
        %v1202 = vunpack.c.l.b16 %v640
        %v1203 = vunpack.c.h.b16 %v640
        %v1204 = vunpack.c.l.b16 %v641
        %v1205 = vunpack.c.h.b16 %v641
        %v1206 = vunpack.c.l.b16 %v642
        %v1207 = vunpack.c.h.b16 %v642
        %v1208 = vunpack.c.l.b16 %v643
        %v1209 = vunpack.c.h.b16 %v643
        %v1210 = vunpack.c.l.b16 %v644
        %v1211 = vunpack.c.h.b16 %v644
        %v1212 = vunpack.c.l.b16 %v645
        %v1213 = vunpack.c.h.b16 %v645
        %v1214 = vunpack.c.l.b16 %v646
        %v1215 = vunpack.c.h.b16 %v646
        %v1216 = vunpack.c.l.b16 %v647
        %v1217 = vunpack.c.h.b16 %v647
        %v1218 = vunpack.c.l.b16 %v648
        %v1219 = vunpack.c.h.b16 %v648
        %v1220 = vunpack.c.l.b16 %v649
        %v1221 = vunpack.c.h.b16 %v649
        %v1222 = vunpack.c.l.b16 %v650
        %v1223 = vunpack.c.h.b16 %v650
        %v1224 = vunpack.c.l.b16 %v651
        %v1225 = vunpack.c.h.b16 %v651
        %v1226 = vunpack.c.l.b16 %v652
        %v1227 = vunpack.c.h.b16 %v652
        %v1228 = vunpack.c.l.b16 %v653
        %v1229 = vunpack.c.h.b16 %v653
        %v1230 = vunpack.c.l.b16 %v654
        %v1231 = vunpack.c.h.b16 %v654
        %v1232 = vunpack.c.l.b16 %v655
        %v1233 = vunpack.c.h.b16 %v655
        %v1234 = vunpack.c.l.b16 %v656
        %v1235 = vunpack.c.h.b16 %v656
        %v1236 = vunpack.c.l.b16 %v657
        %v1237 = vunpack.c.h.b16 %v657
        %v1238 = vunpack.c.l.b16 %v658
        %v1239 = vunpack.c.h.b16 %v658
        %v1240 = vunpack.c.l.b16 %v659
        %v1241 = vunpack.c.h.b16 %v659
        %v1242 = vunpack.c.l.b16 %v660
        %v1243 = vunpack.c.h.b16 %v660
        %v1244 = vunpack.c.l.b16 %v661
        %v1245 = vunpack.c.h.b16 %v661
        %v1246 = vunpack.c.l.b16 %v662
        %v1247 = vunpack.c.h.b16 %v662
        %v1248 = vunpack.c.l.b16 %v663
        %v1249 = vunpack.c.h.b16 %v663
        %v1250 = vunpack.c.l.b16 %v664
        %v1251 = vunpack.c.h.b16 %v664
        %v1252 = vunpack.c.l.b16 %v665
        %v1253 = vunpack.c.h.b16 %v665
        %v1254 = vunpack.c.l.b16 %v666
        %v1255 = vunpack.c.h.b16 %v666
        %v1256 = vunpack.c.l.b16 %v667
        %v1257 = vunpack.c.h.b16 %v667
        %v1258 = vunpack.c.l.b16 %v668
        %v1259 = vunpack.c.h.b16 %v668
        %v1260 = vunpack.c.l.b16 %v669
        %v1261 = vunpack.c.h.b16 %v669
        %v1262 = vunpack.c.l.b16 %v670
        %v1263 = vunpack.c.h.b16 %v670
        %v1264 = vunpack.c.l.b16 %v671
        %v1265 = vunpack.c.h.b16 %v671
        %v1266 = vunpack.c.l.b16 %v672
        %v1267 = vunpack.c.h.b16 %v672
        %v1268 = vunpack.c.l.b16 %v673
        %v1269 = vunpack.c.h.b16 %v673
        %v1270 = vunpack.c.l.b16 %v674
        %v1271 = vunpack.c.h.b16 %v674
        %v1272 = vunpack.c.l.b16 %v675
        %v1273 = vunpack.c.h.b16 %v675
        %v1274 = vunpack.c.l.b16 %v676
        %v1275 = vunpack.c.h.b16 %v676
        %v1276 = vunpack.c.l.b16 %v677
        %v1277 = vunpack.c.h.b16 %v677
        %v1278 = vunpack.c.l.b16 %v678
        %v1279 = vunpack.c.h.b16 %v678
        %v1280 = vunpack.c.l.b16 %v679
        %v1281 = vunpack.c.h.b16 %v679
        %v1282 = vunpack.c.l.b16 %v680
        %v1283 = vunpack.c.h.b16 %v680
        %v1284 = vunpack.c.l.b16 %v681
        %v1285 = vunpack.c.h.b16 %v681
        %v1286 = vunpack.c.l.b16 %v682
        %v1287 = vunpack.c.h.b16 %v682
        %v1288 = vunpack.c.l.b16 %v683
        %v1289 = vunpack.c.h.b16 %v683
        %v1290 = vunpack.c.l.b16 %v684
        %v1291 = vunpack.c.h.b16 %v684
        %v1292 = vunpack.c.l.b16 %v685
        %v1293 = vunpack.c.h.b16 %v685
        %v1294 = vunpack.c.l.b16 %v686
        %v1295 = vunpack.c.h.b16 %v686
        %v1296 = vunpack.c.l.b16 %v687
        %v1297 = vunpack.c.h.b16 %v687
        %v1298 = vunpack.c.l.b16 %v688
        %v1299 = vunpack.c.h.b16 %v688
        %v1300 = vunpack.c.l.b16 %v689
        %v1301 = vunpack.c.h.b16 %v689
        %v1302 = vunpack.c.l.b16 %v690
        %v1303 = vunpack.c.h.b16 %v690
        %v1304 = vunpack.c.l.b16 %v691
        %v1305 = vunpack.c.h.b16 %v691
        %v1306 = vunpack.c.l.b16 %v692
        %v1307 = vunpack.c.h.b16 %v692
        %v1308 = vunpack.c.l.b16 %v693
        %v1309 = vunpack.c.h.b16 %v693
        %v1310 = vunpack.c.l.b16 %v694
        %v1311 = vunpack.c.h.b16 %v694
        %v1312 = vunpack.c.l.b16 %v695
        %v1313 = vunpack.c.h.b16 %v695
        %v1314 = vunpack.c.l.b16 %v696
        %v1315 = vunpack.c.h.b16 %v696
        %v1316 = vunpack.c.l.b16 %v697
        %v1317 = vunpack.c.h.b16 %v697
        %v1318 = vunpack.c.l.b16 %v698
        %v1319 = vunpack.c.h.b16 %v698
        %v1320 = vunpack.c.l.b16 %v699
        %v1321 = vunpack.c.h.b16 %v699
        %v1322 = vunpack.c.l.b16 %v700
        %v1323 = vunpack.c.h.b16 %v700
        %v1324 = vunpack.c.l.b16 %v701
        %v1325 = vunpack.c.h.b16 %v701
        %v1326 = vunpack.c.l.b16 %v702
        %v1327 = vunpack.c.h.b16 %v702
        %v1328 = vunpack.c.l.b16 %v703
        %v1329 = vunpack.c.h.b16 %v703
        %v1330 = vunpack.c.l.b16 %v704
        %v1331 = vunpack.c.h.b16 %v704
        %v1332 = vunpack.c.l.b16 %v705
        %v1333 = vunpack.c.h.b16 %v705
        %v1334 = vunpack.c.l.b16 %v706
        %v1335 = vunpack.c.h.b16 %v706
        %v1336 = vunpack.c.l.b16 %v707
        %v1337 = vunpack.c.h.b16 %v707
        %v1338 = vunpack.c.l.b16 %v708
        %v1339 = vunpack.c.h.b16 %v708
        %v1340 = vunpack.c.l.b16 %v709
        %v1341 = vunpack.c.h.b16 %v709
        %v1342 = vunpack.c.l.b16 %v710
        %v1343 = vunpack.c.h.b16 %v710
        %v1344 = vunpack.c.l.b16 %v711
        %v1345 = vunpack.c.h.b16 %v711
        %v1346 = vunpack.c.l.b16 %v712
        %v1347 = vunpack.c.h.b16 %v712
        %v1348 = vunpack.c.l.b16 %v713
        %v1349 = vunpack.c.h.b16 %v713
        %v1350 = vunpack.c.l.b16 %v714
        %v1351 = vunpack.c.h.b16 %v714
        %v1352 = vunpack.c.l.b16 %v715
        %v1353 = vunpack.c.h.b16 %v715
        %v1354 = vunpack.c.l.b16 %v716
        %v1355 = vunpack.c.h.b16 %v716
        %v1356 = vunpack.c.l.b16 %v717
        %v1357 = vunpack.c.h.b16 %v717
        %v1358 = vunpack.c.l.b16 %v718
        %v1359 = vunpack.c.h.b16 %v718
        %v1360 = vunpack.c.l.b16 %v719
        %v1361 = vunpack.c.h.b16 %v719
        %v1362 = vunpack.c.l.b16 %v720
        %v1363 = vunpack.c.h.b16 %v720
        %v1364 = vunpack.c.l.b16 %v721
        %v1365 = vunpack.c.h.b16 %v721
        %v1366 = vunpack.c.l.b16 %v722
        %v1367 = vunpack.c.h.b16 %v722
        %v1368 = vpack.c.b16 %v984, %v952
        %v1369 = vpack.c.b16 %v985, %v953
        %v1370 = vpack.c.b16 %v986, %v954
        %v1371 = vpack.c.b16 %v987, %v955
        %v1372 = vpack.c.b16 %v988, %v956
        %v1373 = vpack.c.b16 %v989, %v957
        %v1374 = vpack.c.b16 %v990, %v958
        %v1375 = vpack.c.b16 %v991, %v959
        %v1376 = vpack.c.b16 %v992, %v960
        %v1377 = vpack.c.b16 %v993, %v961
        %v1378 = vpack.c.b16 %v994, %v962
        %v1379 = vpack.c.b16 %v995, %v963
        %v1380 = vpack.c.b16 %v996, %v964
        %v1381 = vpack.c.b16 %v997, %v965
        %v1382 = vpack.c.b16 %v998, %v966
        %v1383 = vpack.c.b16 %v999, %v967
        %v1384 = vpack.c.b16 %v1000, %v968
        %v1385 = vpack.c.b16 %v1001, %v969
        %v1386 = vpack.c.b16 %v1002, %v970
        %v1387 = vpack.c.b16 %v1003, %v971
        %v1388 = vpack.c.b16 %v1004, %v972
        %v1389 = vpack.c.b16 %v1005, %v973
        %v1390 = vpack.c.b16 %v1006, %v974
        %v1391 = vpack.c.b16 %v1007, %v975
        %v1392 = vpack.c.b16 %v1008, %v976
        %v1393 = vpack.c.b16 %v1009, %v977
        %v1394 = vpack.c.b16 %v1010, %v978
        %v1395 = vpack.c.b16 %v1011, %v979
        %v1396 = vpack.c.b16 %v1012, %v980
        %v1397 = vpack.c.b16 %v1013, %v981
        %v1398 = vpack.c.b16 %v1014, %v982
        %v1399 = vpack.c.b16 %v1015, %v983
        %v1400 = vpack.c.b16 %v1048, %v1016
        %v1401 = vpack.c.b16 %v1049, %v1017
        %v1402 = vpack.c.b16 %v1050, %v1018
        %v1403 = vpack.c.b16 %v1051, %v1019
        %v1404 = vpack.c.b16 %v1052, %v1020
        %v1405 = vpack.c.b16 %v1053, %v1021
        %v1406 = vpack.c.b16 %v1054, %v1022
        %v1407 = vpack.c.b16 %v1055, %v1023
        %v1408 = vpack.c.b16 %v1056, %v1024
        %v1409 = vpack.c.b16 %v1057, %v1025
        %v1410 = vpack.c.b16 %v1058, %v1026
        %v1411 = vpack.c.b16 %v1059, %v1027
        %v1412 = vpack.c.b16 %v1060, %v1028
        %v1413 = vpack.c.b16 %v1061, %v1029
        %v1414 = vpack.c.b16 %v1062, %v1030
        %v1415 = vpack.c.b16 %v1063, %v1031
        %v1416 = vpack.c.b16 %v1064, %v1032
        %v1417 = vpack.c.b16 %v1065, %v1033
        %v1418 = vpack.c.b16 %v1066, %v1034
        %v1419 = vpack.c.b16 %v1067, %v1035
        %v1420 = vpack.c.b16 %v1068, %v1036
        %v1421 = vpack.c.b16 %v1069, %v1037
        %v1422 = vpack.c.b16 %v1070, %v1038
        %v1423 = vpack.c.b16 %v1071, %v1039
        %v1424 = vpack.c.b16 %v1072, %v1040
        %v1425 = vpack.c.b16 %v1073, %v1041
        %v1426 = vpack.c.b16 %v1074, %v1042
        %v1427 = vpack.c.b16 %v1075, %v1043
        %v1428 = vpack.c.b16 %v1076, %v1044
        %v1429 = vpack.c.b16 %v1077, %v1045
        %v1430 = vpack.c.b16 %v1078, %v1046
        %v1431 = vpack.c.b16 %v1079, %v1047
        %v1432 = vpack.c.b16 %v1112, %v1080
        %v1433 = vpack.c.b16 %v1113, %v1081
        %v1434 = vpack.c.b16 %v1114, %v1082
        %v1435 = vpack.c.b16 %v1115, %v1083
        %v1436 = vpack.c.b16 %v1116, %v1084
        %v1437 = vpack.c.b16 %v1117, %v1085
        %v1438 = vpack.c.b16 %v1118, %v1086
        %v1439 = vpack.c.b16 %v1119, %v1087
        %v1440 = vpack.c.b16 %v1120, %v1088
        %v1441 = vpack.c.b16 %v1121, %v1089
        %v1442 = vpack.c.b16 %v1122, %v1090
        %v1443 = vpack.c.b16 %v1123, %v1091
        %v1444 = vpack.c.b16 %v1124, %v1092
        %v1445 = vpack.c.b16 %v1125, %v1093
        %v1446 = vpack.c.b16 %v1126, %v1094
        %v1447 = vpack.c.b16 %v1127, %v1095
        %v1448 = vpack.c.b16 %v1128, %v1096
        %v1449 = vpack.c.b16 %v1129, %v1097
        %v1450 = vpack.c.b16 %v1130, %v1098
        %v1451 = vpack.c.b16 %v1131, %v1099
        %v1452 = vpack.c.b16 %v1132, %v1100
        %v1453 = vpack.c.b16 %v1133, %v1101
        %v1454 = vpack.c.b16 %v1134, %v1102
        %v1455 = vpack.c.b16 %v1135, %v1103
        %v1456 = vpack.c.b16 %v1136, %v1104
        %v1457 = vpack.c.b16 %v1137, %v1105
        %v1458 = vpack.c.b16 %v1138, %v1106
        %v1459 = vpack.c.b16 %v1139, %v1107
        %v1460 = vpack.c.b16 %v1140, %v1108
        %v1461 = vpack.c.b16 %v1141, %v1109
        %v1462 = vpack.c.b16 %v1142, %v1110
        %v1463 = vpack.c.b16 %v1143, %v1111
        %v1464 = vpack.c.b16 %v1176, %v1144
        %v1465 = vpack.c.b16 %v1177, %v1145
        %v1466 = vpack.c.b16 %v1178, %v1146
        %v1467 = vpack.c.b16 %v1179, %v1147
        %v1468 = vpack.c.b16 %v1180, %v1148
        %v1469 = vpack.c.b16 %v1181, %v1149
        %v1470 = vpack.c.b16 %v1182, %v1150
        %v1471 = vpack.c.b16 %v1183, %v1151
        %v1472 = vpack.c.b16 %v1184, %v1152
        %v1473 = vpack.c.b16 %v1185, %v1153
        %v1474 = vpack.c.b16 %v1186, %v1154
        %v1475 = vpack.c.b16 %v1187, %v1155
        %v1476 = vpack.c.b16 %v1188, %v1156
        %v1477 = vpack.c.b16 %v1189, %v1157
        %v1478 = vpack.c.b16 %v1190, %v1158
        %v1479 = vpack.c.b16 %v1191, %v1159
        %v1480 = vpack.c.b16 %v1192, %v1160
        %v1481 = vpack.c.b16 %v1193, %v1161
        %v1482 = vpack.c.b16 %v1194, %v1162
        %v1483 = vpack.c.b16 %v1195, %v1163
        %v1484 = vpack.c.b16 %v1196, %v1164
        %v1485 = vpack.c.b16 %v1197, %v1165
        %v1486 = vpack.c.b16 %v1198, %v1166
        %v1487 = vpack.c.b16 %v1199, %v1167
        %v1488 = vpack.c.b16 %v1200, %v1168
        %v1489 = vpack.c.b16 %v1201, %v1169
        %v1490 = vpack.c.b16 %v1202, %v1170
        %v1491 = vpack.c.b16 %v1203, %v1171
        %v1492 = vpack.c.b16 %v1204, %v1172
        %v1493 = vpack.c.b16 %v1205, %v1173
        %v1494 = vpack.c.b16 %v1206, %v1174
        %v1495 = vpack.c.b16 %v1207, %v1175
        %v1496 = vpack.c.b16 %v1240, %v1208
        %v1497 = vpack.c.b16 %v1241, %v1209
        %v1498 = vpack.c.b16 %v1242, %v1210
        %v1499 = vpack.c.b16 %v1243, %v1211
        %v1500 = vpack.c.b16 %v1244, %v1212
        %v1501 = vpack.c.b16 %v1245, %v1213
        %v1502 = vpack.c.b16 %v1246, %v1214
        %v1503 = vpack.c.b16 %v1247, %v1215
        %v1504 = vpack.c.b16 %v1248, %v1216
        %v1505 = vpack.c.b16 %v1249, %v1217
        %v1506 = vpack.c.b16 %v1250, %v1218
        %v1507 = vpack.c.b16 %v1251, %v1219
        %v1508 = vpack.c.b16 %v1252, %v1220
        %v1509 = vpack.c.b16 %v1253, %v1221
        %v1510 = vpack.c.b16 %v1254, %v1222
        %v1511 = vpack.c.b16 %v1255, %v1223
        %v1512 = vpack.c.b16 %v1256, %v1224
        %v1513 = vpack.c.b16 %v1257, %v1225
        %v1514 = vpack.c.b16 %v1258, %v1226
        %v1515 = vpack.c.b16 %v1259, %v1227
        %v1516 = vpack.c.b16 %v1260, %v1228
        %v1517 = vpack.c.b16 %v1261, %v1229
        %v1518 = vpack.c.b16 %v1262, %v1230
        %v1519 = vpack.c.b16 %v1263, %v1231
        %v1520 = vpack.c.b16 %v1264, %v1232
        %v1521 = vpack.c.b16 %v1265, %v1233
        %v1522 = vpack.c.b16 %v1266, %v1234
        %v1523 = vpack.c.b16 %v1267, %v1235
        %v1524 = vpack.c.b16 %v1268, %v1236
        %v1525 = vpack.c.b16 %v1269, %v1237
        %v1526 = vpack.c.b16 %v1270, %v1238
        %v1527 = vpack.c.b16 %v1271, %v1239
        %v1528 = vpack.c.b16 %v1304, %v1272
        %v1529 = vpack.c.b16 %v1305, %v1273
        %v1530 = vpack.c.b16 %v1306, %v1274
        %v1531 = vpack.c.b16 %v1307, %v1275
        %v1532 = vpack.c.b16 %v1308, %v1276
        %v1533 = vpack.c.b16 %v1309, %v1277
        %v1534 = vpack.c.b16 %v1310, %v1278
        %v1535 = vpack.c.b16 %v1311, %v1279
        %v1536 = vpack.c.b16 %v1312, %v1280
        %v1537 = vpack.c.b16 %v1313, %v1281
        %v1538 = vpack.c.b16 %v1314, %v1282
        %v1539 = vpack.c.b16 %v1315, %v1283
        %v1540 = vpack.c.b16 %v1316, %v1284
        %v1541 = vpack.c.b16 %v1317, %v1285
        %v1542 = vpack.c.b16 %v1318, %v1286
        %v1543 = vpack.c.b16 %v1319, %v1287
        %v1544 = vpack.c.b16 %v1320, %v1288
        %v1545 = vpack.c.b16 %v1321, %v1289
        %v1546 = vpack.c.b16 %v1322, %v1290
        %v1547 = vpack.c.b16 %v1323, %v1291
        %v1548 = vpack.c.b16 %v1324, %v1292
        %v1549 = vpack.c.b16 %v1325, %v1293
        %v1550 = vpack.c.b16 %v1326, %v1294
        %v1551 = vpack.c.b16 %v1327, %v1295
        %v1552 = vpack.c.b16 %v1328, %v1296
        %v1553 = vpack.c.b16 %v1329, %v1297
        %v1554 = vpack.c.b16 %v1330, %v1298
        %v1555 = vpack.c.b16 %v1331, %v1299
        %v1556 = vpack.c.b16 %v1332, %v1300
        %v1557 = vpack.c.b16 %v1333, %v1301
        %v1558 = vpack.c.b16 %v1334, %v1302
        %v1559 = vpack.c.b16 %v1335, %v1303
        %v1560 = vpack.c.b16 %v1336, %v1336
        %v1561 = vpack.c.b16 %v1337, %v1337
        %v1562 = vpack.c.b16 %v1338, %v1338
        %v1563 = vpack.c.b16 %v1339, %v1339
        %v1564 = vpack.c.b16 %v1340, %v1340
        %v1565 = vpack.c.b16 %v1341, %v1341
        %v1566 = vpack.c.b16 %v1342, %v1342
        %v1567 = vpack.c.b16 %v1343, %v1343
        %v1568 = vpack.c.b16 %v1344, %v1344
        %v1569 = vpack.c.b16 %v1345, %v1345
        %v1570 = vpack.c.b16 %v1346, %v1346
        %v1571 = vpack.c.b16 %v1347, %v1347
        %v1572 = vpack.c.b16 %v1348, %v1348
        %v1573 = vpack.c.b16 %v1349, %v1349
        %v1574 = vpack.c.b16 %v1350, %v1350
        %v1575 = vpack.c.b16 %v1351, %v1351
        %v1576 = vpack.c.b16 %v1352, %v1352
        %v1577 = vpack.c.b16 %v1353, %v1353
        %v1578 = vpack.c.b16 %v1354, %v1354
        %v1579 = vpack.c.b16 %v1355, %v1355
        %v1580 = vpack.c.b16 %v1356, %v1356
        %v1581 = vpack.c.b16 %v1357, %v1357
        %v1582 = vpack.c.b16 %v1358, %v1358
        %v1583 = vpack.c.b16 %v1359, %v1359
        %v1584 = vpack.c.b16 %v1360, %v1360
        %v1585 = vpack.c.b16 %v1361, %v1361
        %v1586 = vpack.c.b16 %v1362, %v1362
        %v1587 = vpack.c.b16 %v1363, %v1363
        %v1588 = vpack.c.b16 %v1364, %v1364
        %v1589 = vpack.c.b16 %v1365, %v1365
        %v1590 = vpack.c.b16 %v1366, %v1366
        %v1591 = vpack.c.b16 %v1367, %v1367
        %vm1784 = vcmask 834560
        %v1786 = vsel %vm1784, %v743, 0
        %vm1788 = vcmask 1042432
        %v1790 = vsel %vm1788, %v1560, 0
        %v1793 = vsel %vm1788, %v1561, 0
        %v1796 = vsel %vm1788, %v1562, 0
        %v1799 = vsel %vm1788, %v1563, 0
        %v1802 = vsel %vm1788, %v1564, 0
        %v1805 = vsel %vm1788, %v1565, 0
        %v1808 = vsel %vm1788, %v1566, 0
        %v1811 = vsel %vm1788, %v1567, 0
        %v1814 = vsel %vm1788, %v1568, 0
        %v1817 = vsel %vm1788, %v1569, 0
        %v1820 = vsel %vm1788, %v1570, 0
        %v1823 = vsel %vm1788, %v1571, 0
        %v1826 = vsel %vm1788, %v1572, 0
        %v1829 = vsel %vm1788, %v1573, 0
        %v1832 = vsel %vm1788, %v1574, 0
        %v1835 = vsel %vm1788, %v1575, 0
        %v1838 = vsel %vm1788, %v1576, 0
        %v1841 = vsel %vm1788, %v1577, 0
        %v1844 = vsel %vm1788, %v1578, 0
        %v1847 = vsel %vm1788, %v1579, 0
        %v1850 = vsel %vm1788, %v1580, 0
        %v1853 = vsel %vm1788, %v1581, 0
        %v1856 = vsel %vm1788, %v1582, 0
        %v1859 = vsel %vm1788, %v1583, 0
        %v1862 = vsel %vm1788, %v1584, 0
        %v1865 = vsel %vm1788, %v1585, 0
        %v1868 = vsel %vm1788, %v1586, 0
        %v1871 = vsel %vm1788, %v1587, 0
        %v1874 = vsel %vm1788, %v1588, 0
        %v1877 = vsel %vm1788, %v1589, 0
        %v1880 = vsel %vm1788, %v1590, 0
        %v1883 = vsel %vm1788, %v1591, 0
        %1885 = vmatprep.subr.bf16.mxu0 0
        %1886 = vmatpush1.bf16.msra.mxu0 0
        %1887 = vmatprep.subr.bf16.mxu0 %v1793
        %1888 = vmatpush1.bf16.msra.mxu0 %v1790
        %1889 = vmatprep.subr.bf16.mxu0 %v1529
        %1890 = vmatpush1.bf16.msra.mxu0 %v1528
        %1891 = vmatprep.subr.bf16.mxu0 %v1497
        %1892 = vmatpush1.bf16.msra.mxu0 %v1496
        %1893 = vmatprep.subr.bf16.mxu0 %v1465
        %1894 = vmatpush1.bf16.msra.mxu0 %v1464
        %1895 = vmatprep.subr.bf16.mxu0 %v1433
        %1896 = vmatpush1.bf16.msra.mxu0 %v1432
        %1897 = vmatprep.subr.bf16.mxu0 %v1401
        %1898 = vmatpush1.bf16.msra.mxu0 %v1400
        %1899 = vmatprep.subr.bf16.mxu0 %v1369
        %1900 = vmatpush1.bf16.msra.mxu0 %v1368
        %1901 = vmatprep.subr.bf16.mxu0 0
        %1902 = vmatpush2.bf16.msra.mxu0 0
        %1903 = vmatprep.subr.bf16.mxu0 0
        %1904 = vmatpush2.bf16.msra.mxu0 0
        %1905 = vmatprep.subr.bf16.mxu0 0
        %1906 = vmatpush2.bf16.msra.mxu0 0
        %1907 = vmatprep.subr.bf16.mxu0 0
        %1908 = vmatpush2.bf16.msra.mxu0 0
        %1909 = vmatprep.subr.bf16.mxu0 0
        %1910 = vmatpush2.bf16.msra.mxu0 0
        %1911 = vmatprep.subr.bf16.mxu0 0
        %1912 = vmatpush2.bf16.msra.mxu0 0
        %1913 = vmatprep.subr.bf16.mxu0 0
        %1914 = vmatpush2.bf16.msra.mxu0 0
        %1915 = vmatprep.subr.bf16.mxu0 0
        %1916 = vmatpush2.bf16.msra.mxu0 0
        %1917 = vmatprep.mubr.bf16.mxu0 0
        %1918 = vmatmul.mubr.bf16.gmra.mxu0 %v1786
        %v1919 = vpop.f32.mrf.mxu0
        %v1920 = vadd.f32 0.0, %v1919
        %v1921 = vpop.f32.mrf.mxu0
        %v1922 = vadd.f32 0.0, %v1921
        %v1923 = vpop.f32.mrf.mxu0
        %v1924 = vadd.f32 0.0, %v1923
        %v1925 = vpop.f32.mrf.mxu0
        %v1926 = vadd.f32 0.0, %v1925
        %1927 = vdwg.mxu0
        %1928 = vmatprep.subr.bf16.mxu0 0
        %1929 = vmatpush1.bf16.msra.mxu0 0
        %1930 = vmatprep.subr.bf16.mxu0 %v1799
        %1931 = vmatpush1.bf16.msra.mxu0 %v1796
        %1932 = vmatprep.subr.bf16.mxu0 %v1531
        %1933 = vmatpush1.bf16.msra.mxu0 %v1530
        %1934 = vmatprep.subr.bf16.mxu0 %v1499
        %1935 = vmatpush1.bf16.msra.mxu0 %v1498
        %1936 = vmatprep.subr.bf16.mxu0 %v1467
        %1937 = vmatpush1.bf16.msra.mxu0 %v1466
        %1938 = vmatprep.subr.bf16.mxu0 %v1435
        %1939 = vmatpush1.bf16.msra.mxu0 %v1434
        %1940 = vmatprep.subr.bf16.mxu0 %v1403
        %1941 = vmatpush1.bf16.msra.mxu0 %v1402
        %1942 = vmatprep.subr.bf16.mxu0 %v1371
        %1943 = vmatpush1.bf16.msra.mxu0 %v1370
        %1944 = vmatprep.subr.bf16.mxu0 0
        %1945 = vmatpush2.bf16.msra.mxu0 0
        %1946 = vmatprep.subr.bf16.mxu0 0
        %1947 = vmatpush2.bf16.msra.mxu0 0
        %1948 = vmatprep.subr.bf16.mxu0 0
        %1949 = vmatpush2.bf16.msra.mxu0 0
        %1950 = vmatprep.subr.bf16.mxu0 0
        %1951 = vmatpush2.bf16.msra.mxu0 0
        %1952 = vmatprep.subr.bf16.mxu0 0
        %1953 = vmatpush2.bf16.msra.mxu0 0
        %1954 = vmatprep.subr.bf16.mxu0 0
        %1955 = vmatpush2.bf16.msra.mxu0 0
        %1956 = vmatprep.subr.bf16.mxu0 0
        %1957 = vmatpush2.bf16.msra.mxu0 0
        %1958 = vmatprep.subr.bf16.mxu0 0
        %1959 = vmatpush2.bf16.msra.mxu0 0
        %1960 = vmatprep.mubr.bf16.mxu0 0
        %1961 = vmatmul.mubr.bf16.gmra.mxu0 %v1786
        %v1962 = vpop.f32.mrf.mxu0
        %v1963 = vadd.f32 0.0, %v1962
        %v1964 = vpop.f32.mrf.mxu0
        %v1965 = vadd.f32 0.0, %v1964
        %v1966 = vpop.f32.mrf.mxu0
        %v1967 = vadd.f32 0.0, %v1966
        %v1968 = vpop.f32.mrf.mxu0
        %v1969 = vadd.f32 0.0, %v1968
        %1970 = vdwg.mxu0
        %1971 = vmatprep.subr.bf16.mxu0 0
        %1972 = vmatpush1.bf16.msra.mxu0 0
        %1973 = vmatprep.subr.bf16.mxu0 %v1805
        %1974 = vmatpush1.bf16.msra.mxu0 %v1802
        %1975 = vmatprep.subr.bf16.mxu0 %v1533
        %1976 = vmatpush1.bf16.msra.mxu0 %v1532
        %1977 = vmatprep.subr.bf16.mxu0 %v1501
        %1978 = vmatpush1.bf16.msra.mxu0 %v1500
        %1979 = vmatprep.subr.bf16.mxu0 %v1469
        %1980 = vmatpush1.bf16.msra.mxu0 %v1468
        %1981 = vmatprep.subr.bf16.mxu0 %v1437
        %1982 = vmatpush1.bf16.msra.mxu0 %v1436
        %1983 = vmatprep.subr.bf16.mxu0 %v1405
        %1984 = vmatpush1.bf16.msra.mxu0 %v1404
        %1985 = vmatprep.subr.bf16.mxu0 %v1373
        %1986 = vmatpush1.bf16.msra.mxu0 %v1372
        %1987 = vmatprep.subr.bf16.mxu0 0
        %1988 = vmatpush2.bf16.msra.mxu0 0
        %1989 = vmatprep.subr.bf16.mxu0 0
        %1990 = vmatpush2.bf16.msra.mxu0 0
        %1991 = vmatprep.subr.bf16.mxu0 0
        %1992 = vmatpush2.bf16.msra.mxu0 0
        %1993 = vmatprep.subr.bf16.mxu0 0
        %1994 = vmatpush2.bf16.msra.mxu0 0
        %1995 = vmatprep.subr.bf16.mxu0 0
        %1996 = vmatpush2.bf16.msra.mxu0 0
        %1997 = vmatprep.subr.bf16.mxu0 0
        %1998 = vmatpush2.bf16.msra.mxu0 0
        %1999 = vmatprep.subr.bf16.mxu0 0
        %2000 = vmatpush2.bf16.msra.mxu0 0
        %2001 = vmatprep.subr.bf16.mxu0 0
        %2002 = vmatpush2.bf16.msra.mxu0 0
        %2003 = vmatprep.mubr.bf16.mxu0 0
        %2004 = vmatmul.mubr.bf16.gmra.mxu0 %v1786
        %v2005 = vpop.f32.mrf.mxu0
        %v2006 = vadd.f32 0.0, %v2005
        %v2007 = vpop.f32.mrf.mxu0
        %v2008 = vadd.f32 0.0, %v2007
        %v2009 = vpop.f32.mrf.mxu0
        %v2010 = vadd.f32 0.0, %v2009
        %v2011 = vpop.f32.mrf.mxu0
        %v2012 = vadd.f32 0.0, %v2011
        %2013 = vdwg.mxu0
        %2014 = vmatprep.subr.bf16.mxu0 0
        %2015 = vmatpush1.bf16.msra.mxu0 0
        %2016 = vmatprep.subr.bf16.mxu0 %v1811
        %2017 = vmatpush1.bf16.msra.mxu0 %v1808
        %2018 = vmatprep.subr.bf16.mxu0 %v1535
        %2019 = vmatpush1.bf16.msra.mxu0 %v1534
        %2020 = vmatprep.subr.bf16.mxu0 %v1503
        %2021 = vmatpush1.bf16.msra.mxu0 %v1502
        %2022 = vmatprep.subr.bf16.mxu0 %v1471
        %2023 = vmatpush1.bf16.msra.mxu0 %v1470
        %2024 = vmatprep.subr.bf16.mxu0 %v1439
        %2025 = vmatpush1.bf16.msra.mxu0 %v1438
        %2026 = vmatprep.subr.bf16.mxu0 %v1407
        %2027 = vmatpush1.bf16.msra.mxu0 %v1406
        %2028 = vmatprep.subr.bf16.mxu0 %v1375
        %2029 = vmatpush1.bf16.msra.mxu0 %v1374
        %2030 = vmatprep.subr.bf16.mxu0 0
        %2031 = vmatpush2.bf16.msra.mxu0 0
        %2032 = vmatprep.subr.bf16.mxu0 0
        %2033 = vmatpush2.bf16.msra.mxu0 0
        %2034 = vmatprep.subr.bf16.mxu0 0
        %2035 = vmatpush2.bf16.msra.mxu0 0
        %2036 = vmatprep.subr.bf16.mxu0 0
        %2037 = vmatpush2.bf16.msra.mxu0 0
        %2038 = vmatprep.subr.bf16.mxu0 0
        %2039 = vmatpush2.bf16.msra.mxu0 0
        %2040 = vmatprep.subr.bf16.mxu0 0
        %2041 = vmatpush2.bf16.msra.mxu0 0
        %2042 = vmatprep.subr.bf16.mxu0 0
        %2043 = vmatpush2.bf16.msra.mxu0 0
        %2044 = vmatprep.subr.bf16.mxu0 0
        %2045 = vmatpush2.bf16.msra.mxu0 0
        %2046 = vmatprep.mubr.bf16.mxu0 0
        %2047 = vmatmul.mubr.bf16.gmra.mxu0 %v1786
        %v2048 = vpop.f32.mrf.mxu0
        %v2049 = vadd.f32 0.0, %v2048
        %v2050 = vpop.f32.mrf.mxu0
        %v2051 = vadd.f32 0.0, %v2050
        %v2052 = vpop.f32.mrf.mxu0
        %v2053 = vadd.f32 0.0, %v2052
        %v2054 = vpop.f32.mrf.mxu0
        %v2055 = vadd.f32 0.0, %v2054
        %2056 = vdwg.mxu0
        %2057 = vmatprep.subr.bf16.mxu0 0
        %2058 = vmatpush1.bf16.msra.mxu0 0
        %2059 = vmatprep.subr.bf16.mxu0 %v1817
        %2060 = vmatpush1.bf16.msra.mxu0 %v1814
        %2061 = vmatprep.subr.bf16.mxu0 %v1537
        %2062 = vmatpush1.bf16.msra.mxu0 %v1536
        %2063 = vmatprep.subr.bf16.mxu0 %v1505
        %2064 = vmatpush1.bf16.msra.mxu0 %v1504
        %2065 = vmatprep.subr.bf16.mxu0 %v1473
        %2066 = vmatpush1.bf16.msra.mxu0 %v1472
        %2067 = vmatprep.subr.bf16.mxu0 %v1441
        %2068 = vmatpush1.bf16.msra.mxu0 %v1440
        %2069 = vmatprep.subr.bf16.mxu0 %v1409
        %2070 = vmatpush1.bf16.msra.mxu0 %v1408
        %2071 = vmatprep.subr.bf16.mxu0 %v1377
        %2072 = vmatpush1.bf16.msra.mxu0 %v1376
        %2073 = vmatprep.subr.bf16.mxu0 0
        %2074 = vmatpush2.bf16.msra.mxu0 0
        %2075 = vmatprep.subr.bf16.mxu0 0
        %2076 = vmatpush2.bf16.msra.mxu0 0
        %2077 = vmatprep.subr.bf16.mxu0 0
        %2078 = vmatpush2.bf16.msra.mxu0 0
        %2079 = vmatprep.subr.bf16.mxu0 0
        %2080 = vmatpush2.bf16.msra.mxu0 0
        %2081 = vmatprep.subr.bf16.mxu0 0
        %2082 = vmatpush2.bf16.msra.mxu0 0
        %2083 = vmatprep.subr.bf16.mxu0 0
        %2084 = vmatpush2.bf16.msra.mxu0 0
        %2085 = vmatprep.subr.bf16.mxu0 0
        %2086 = vmatpush2.bf16.msra.mxu0 0
        %2087 = vmatprep.subr.bf16.mxu0 0
        %2088 = vmatpush2.bf16.msra.mxu0 0
        %2089 = vmatprep.mubr.bf16.mxu0 0
        %2090 = vmatmul.mubr.bf16.gmra.mxu0 %v1786
        %v2091 = vpop.f32.mrf.mxu0
        %v2092 = vadd.f32 0.0, %v2091
        %v2093 = vpop.f32.mrf.mxu0
        %v2094 = vadd.f32 0.0, %v2093
        %v2095 = vpop.f32.mrf.mxu0
        %v2096 = vadd.f32 0.0, %v2095
        %v2097 = vpop.f32.mrf.mxu0
        %v2098 = vadd.f32 0.0, %v2097
        %2099 = vdwg.mxu0
        %2100 = vmatprep.subr.bf16.mxu0 0
        %2101 = vmatpush1.bf16.msra.mxu0 0
        %2102 = vmatprep.subr.bf16.mxu0 %v1823
        %2103 = vmatpush1.bf16.msra.mxu0 %v1820
        %2104 = vmatprep.subr.bf16.mxu0 %v1539
        %2105 = vmatpush1.bf16.msra.mxu0 %v1538
        %2106 = vmatprep.subr.bf16.mxu0 %v1507
        %2107 = vmatpush1.bf16.msra.mxu0 %v1506
        %2108 = vmatprep.subr.bf16.mxu0 %v1475
        %2109 = vmatpush1.bf16.msra.mxu0 %v1474
        %2110 = vmatprep.subr.bf16.mxu0 %v1443
        %2111 = vmatpush1.bf16.msra.mxu0 %v1442
        %2112 = vmatprep.subr.bf16.mxu0 %v1411
        %2113 = vmatpush1.bf16.msra.mxu0 %v1410
        %2114 = vmatprep.subr.bf16.mxu0 %v1379
        %2115 = vmatpush1.bf16.msra.mxu0 %v1378
        %2116 = vmatprep.subr.bf16.mxu0 0
        %2117 = vmatpush2.bf16.msra.mxu0 0
        %2118 = vmatprep.subr.bf16.mxu0 0
        %2119 = vmatpush2.bf16.msra.mxu0 0
        %2120 = vmatprep.subr.bf16.mxu0 0
        %2121 = vmatpush2.bf16.msra.mxu0 0
        %2122 = vmatprep.subr.bf16.mxu0 0
        %2123 = vmatpush2.bf16.msra.mxu0 0
        %2124 = vmatprep.subr.bf16.mxu0 0
        %2125 = vmatpush2.bf16.msra.mxu0 0
        %2126 = vmatprep.subr.bf16.mxu0 0
        %2127 = vmatpush2.bf16.msra.mxu0 0
        %2128 = vmatprep.subr.bf16.mxu0 0
        %2129 = vmatpush2.bf16.msra.mxu0 0
        %2130 = vmatprep.subr.bf16.mxu0 0
        %2131 = vmatpush2.bf16.msra.mxu0 0
        %2132 = vmatprep.mubr.bf16.mxu0 0
        %2133 = vmatmul.mubr.bf16.gmra.mxu0 %v1786
        %v2134 = vpop.f32.mrf.mxu0
        %v2135 = vadd.f32 0.0, %v2134
        %v2136 = vpop.f32.mrf.mxu0
        %v2137 = vadd.f32 0.0, %v2136
        %v2138 = vpop.f32.mrf.mxu0
        %v2139 = vadd.f32 0.0, %v2138
        %v2140 = vpop.f32.mrf.mxu0
        %v2141 = vadd.f32 0.0, %v2140
        %2142 = vdwg.mxu0
        %2143 = vmatprep.subr.bf16.mxu0 0
        %2144 = vmatpush1.bf16.msra.mxu0 0
        %2145 = vmatprep.subr.bf16.mxu0 %v1829
        %2146 = vmatpush1.bf16.msra.mxu0 %v1826
        %2147 = vmatprep.subr.bf16.mxu0 %v1541
        %2148 = vmatpush1.bf16.msra.mxu0 %v1540
        %2149 = vmatprep.subr.bf16.mxu0 %v1509
        %2150 = vmatpush1.bf16.msra.mxu0 %v1508
        %2151 = vmatprep.subr.bf16.mxu0 %v1477
        %2152 = vmatpush1.bf16.msra.mxu0 %v1476
        %2153 = vmatprep.subr.bf16.mxu0 %v1445
        %2154 = vmatpush1.bf16.msra.mxu0 %v1444
        %2155 = vmatprep.subr.bf16.mxu0 %v1413
        %2156 = vmatpush1.bf16.msra.mxu0 %v1412
        %2157 = vmatprep.subr.bf16.mxu0 %v1381
        %2158 = vmatpush1.bf16.msra.mxu0 %v1380
        %2159 = vmatprep.subr.bf16.mxu0 0
        %2160 = vmatpush2.bf16.msra.mxu0 0
        %2161 = vmatprep.subr.bf16.mxu0 0
        %2162 = vmatpush2.bf16.msra.mxu0 0
        %2163 = vmatprep.subr.bf16.mxu0 0
        %2164 = vmatpush2.bf16.msra.mxu0 0
        %2165 = vmatprep.subr.bf16.mxu0 0
        %2166 = vmatpush2.bf16.msra.mxu0 0
        %2167 = vmatprep.subr.bf16.mxu0 0
        %2168 = vmatpush2.bf16.msra.mxu0 0
        %2169 = vmatprep.subr.bf16.mxu0 0
        %2170 = vmatpush2.bf16.msra.mxu0 0
        %2171 = vmatprep.subr.bf16.mxu0 0
        %2172 = vmatpush2.bf16.msra.mxu0 0
        %2173 = vmatprep.subr.bf16.mxu0 0
        %2174 = vmatpush2.bf16.msra.mxu0 0
        %2175 = vmatprep.mubr.bf16.mxu0 0
        %2176 = vmatmul.mubr.bf16.gmra.mxu0 %v1786
        %v2177 = vpop.f32.mrf.mxu0
        %v2178 = vadd.f32 0.0, %v2177
        %v2179 = vpop.f32.mrf.mxu0
        %v2180 = vadd.f32 0.0, %v2179
        %v2181 = vpop.f32.mrf.mxu0
        %v2182 = vadd.f32 0.0, %v2181
        %v2183 = vpop.f32.mrf.mxu0
        %v2184 = vadd.f32 0.0, %v2183
        %2185 = vdwg.mxu0
        %2186 = vmatprep.subr.bf16.mxu0 0
        %2187 = vmatpush1.bf16.msra.mxu0 0
        %2188 = vmatprep.subr.bf16.mxu0 %v1835
        %2189 = vmatpush1.bf16.msra.mxu0 %v1832
        %2190 = vmatprep.subr.bf16.mxu0 %v1543
        %2191 = vmatpush1.bf16.msra.mxu0 %v1542
        %2192 = vmatprep.subr.bf16.mxu0 %v1511
        %2193 = vmatpush1.bf16.msra.mxu0 %v1510
        %2194 = vmatprep.subr.bf16.mxu0 %v1479
        %2195 = vmatpush1.bf16.msra.mxu0 %v1478
        %2196 = vmatprep.subr.bf16.mxu0 %v1447
        %2197 = vmatpush1.bf16.msra.mxu0 %v1446
        %2198 = vmatprep.subr.bf16.mxu0 %v1415
        %2199 = vmatpush1.bf16.msra.mxu0 %v1414
        %2200 = vmatprep.subr.bf16.mxu0 %v1383
        %2201 = vmatpush1.bf16.msra.mxu0 %v1382
        %2202 = vmatprep.subr.bf16.mxu0 0
        %2203 = vmatpush2.bf16.msra.mxu0 0
        %2204 = vmatprep.subr.bf16.mxu0 0
        %2205 = vmatpush2.bf16.msra.mxu0 0
        %2206 = vmatprep.subr.bf16.mxu0 0
        %2207 = vmatpush2.bf16.msra.mxu0 0
        %2208 = vmatprep.subr.bf16.mxu0 0
        %2209 = vmatpush2.bf16.msra.mxu0 0
        %2210 = vmatprep.subr.bf16.mxu0 0
        %2211 = vmatpush2.bf16.msra.mxu0 0
        %2212 = vmatprep.subr.bf16.mxu0 0
        %2213 = vmatpush2.bf16.msra.mxu0 0
        %2214 = vmatprep.subr.bf16.mxu0 0
        %2215 = vmatpush2.bf16.msra.mxu0 0
        %2216 = vmatprep.subr.bf16.mxu0 0
        %2217 = vmatpush2.bf16.msra.mxu0 0
        %2218 = vmatprep.mubr.bf16.mxu0 0
        %2219 = vmatmul.mubr.bf16.gmra.mxu0 %v1786
        %v2220 = vpop.f32.mrf.mxu0
        %v2221 = vadd.f32 0.0, %v2220
        %v2222 = vpop.f32.mrf.mxu0
        %v2223 = vadd.f32 0.0, %v2222
        %v2224 = vpop.f32.mrf.mxu0
        %v2225 = vadd.f32 0.0, %v2224
        %v2226 = vpop.f32.mrf.mxu0
        %v2227 = vadd.f32 0.0, %v2226
        %2228 = vdwg.mxu0
        %2229 = vmatprep.subr.bf16.mxu0 0
        %2230 = vmatpush1.bf16.msra.mxu0 0
        %2231 = vmatprep.subr.bf16.mxu0 %v1841
        %2232 = vmatpush1.bf16.msra.mxu0 %v1838
        %2233 = vmatprep.subr.bf16.mxu0 %v1545
        %2234 = vmatpush1.bf16.msra.mxu0 %v1544
        %2235 = vmatprep.subr.bf16.mxu0 %v1513
        %2236 = vmatpush1.bf16.msra.mxu0 %v1512
        %2237 = vmatprep.subr.bf16.mxu0 %v1481
        %2238 = vmatpush1.bf16.msra.mxu0 %v1480
        %2239 = vmatprep.subr.bf16.mxu0 %v1449
        %2240 = vmatpush1.bf16.msra.mxu0 %v1448
        %2241 = vmatprep.subr.bf16.mxu0 %v1417
        %2242 = vmatpush1.bf16.msra.mxu0 %v1416
        %2243 = vmatprep.subr.bf16.mxu0 %v1385
        %2244 = vmatpush1.bf16.msra.mxu0 %v1384
        %2245 = vmatprep.subr.bf16.mxu0 0
        %2246 = vmatpush2.bf16.msra.mxu0 0
        %2247 = vmatprep.subr.bf16.mxu0 0
        %2248 = vmatpush2.bf16.msra.mxu0 0
        %2249 = vmatprep.subr.bf16.mxu0 0
        %2250 = vmatpush2.bf16.msra.mxu0 0
        %2251 = vmatprep.subr.bf16.mxu0 0
        %2252 = vmatpush2.bf16.msra.mxu0 0
        %2253 = vmatprep.subr.bf16.mxu0 0
        %2254 = vmatpush2.bf16.msra.mxu0 0
        %2255 = vmatprep.subr.bf16.mxu0 0
        %2256 = vmatpush2.bf16.msra.mxu0 0
        %2257 = vmatprep.subr.bf16.mxu0 0
        %2258 = vmatpush2.bf16.msra.mxu0 0
        %2259 = vmatprep.subr.bf16.mxu0 0
        %2260 = vmatpush2.bf16.msra.mxu0 0
        %2261 = vmatprep.mubr.bf16.mxu0 0
        %2262 = vmatmul.mubr.bf16.gmra.mxu0 %v1786
        %v2263 = vpop.f32.mrf.mxu0
        %v2264 = vadd.f32 0.0, %v2263
        %v2265 = vpop.f32.mrf.mxu0
        %v2266 = vadd.f32 0.0, %v2265
        %v2267 = vpop.f32.mrf.mxu0
        %v2268 = vadd.f32 0.0, %v2267
        %v2269 = vpop.f32.mrf.mxu0
        %v2270 = vadd.f32 0.0, %v2269
        %2271 = vdwg.mxu0
        %2272 = vmatprep.subr.bf16.mxu0 0
        %2273 = vmatpush1.bf16.msra.mxu0 0
        %2274 = vmatprep.subr.bf16.mxu0 %v1847
        %2275 = vmatpush1.bf16.msra.mxu0 %v1844
        %2276 = vmatprep.subr.bf16.mxu0 %v1547
        %2277 = vmatpush1.bf16.msra.mxu0 %v1546
        %2278 = vmatprep.subr.bf16.mxu0 %v1515
        %2279 = vmatpush1.bf16.msra.mxu0 %v1514
        %2280 = vmatprep.subr.bf16.mxu0 %v1483
        %2281 = vmatpush1.bf16.msra.mxu0 %v1482
        %2282 = vmatprep.subr.bf16.mxu0 %v1451
        %2283 = vmatpush1.bf16.msra.mxu0 %v1450
        %2284 = vmatprep.subr.bf16.mxu0 %v1419
        %2285 = vmatpush1.bf16.msra.mxu0 %v1418
        %2286 = vmatprep.subr.bf16.mxu0 %v1387
        %2287 = vmatpush1.bf16.msra.mxu0 %v1386
        %2288 = vmatprep.subr.bf16.mxu0 0
        %2289 = vmatpush2.bf16.msra.mxu0 0
        %2290 = vmatprep.subr.bf16.mxu0 0
        %2291 = vmatpush2.bf16.msra.mxu0 0
        %2292 = vmatprep.subr.bf16.mxu0 0
        %2293 = vmatpush2.bf16.msra.mxu0 0
        %2294 = vmatprep.subr.bf16.mxu0 0
        %2295 = vmatpush2.bf16.msra.mxu0 0
        %2296 = vmatprep.subr.bf16.mxu0 0
        %2297 = vmatpush2.bf16.msra.mxu0 0
        %2298 = vmatprep.subr.bf16.mxu0 0
        %2299 = vmatpush2.bf16.msra.mxu0 0
        %2300 = vmatprep.subr.bf16.mxu0 0
        %2301 = vmatpush2.bf16.msra.mxu0 0
        %2302 = vmatprep.subr.bf16.mxu0 0
        %2303 = vmatpush2.bf16.msra.mxu0 0
        %2304 = vmatprep.mubr.bf16.mxu0 0
        %2305 = vmatmul.mubr.bf16.gmra.mxu0 %v1786
        %v2306 = vpop.f32.mrf.mxu0
        %v2307 = vadd.f32 0.0, %v2306
        %v2308 = vpop.f32.mrf.mxu0
        %v2309 = vadd.f32 0.0, %v2308
        %v2310 = vpop.f32.mrf.mxu0
        %v2311 = vadd.f32 0.0, %v2310
        %v2312 = vpop.f32.mrf.mxu0
        %v2313 = vadd.f32 0.0, %v2312
        %2314 = vdwg.mxu0
        %2315 = vmatprep.subr.bf16.mxu0 0
        %2316 = vmatpush1.bf16.msra.mxu0 0
        %2317 = vmatprep.subr.bf16.mxu0 %v1853
        %2318 = vmatpush1.bf16.msra.mxu0 %v1850
        %2319 = vmatprep.subr.bf16.mxu0 %v1549
        %2320 = vmatpush1.bf16.msra.mxu0 %v1548
        %2321 = vmatprep.subr.bf16.mxu0 %v1517
        %2322 = vmatpush1.bf16.msra.mxu0 %v1516
        %2323 = vmatprep.subr.bf16.mxu0 %v1485
        %2324 = vmatpush1.bf16.msra.mxu0 %v1484
        %2325 = vmatprep.subr.bf16.mxu0 %v1453
        %2326 = vmatpush1.bf16.msra.mxu0 %v1452
        %2327 = vmatprep.subr.bf16.mxu0 %v1421
        %2328 = vmatpush1.bf16.msra.mxu0 %v1420
        %2329 = vmatprep.subr.bf16.mxu0 %v1389
        %2330 = vmatpush1.bf16.msra.mxu0 %v1388
        %2331 = vmatprep.subr.bf16.mxu0 0
        %2332 = vmatpush2.bf16.msra.mxu0 0
        %2333 = vmatprep.subr.bf16.mxu0 0
        %2334 = vmatpush2.bf16.msra.mxu0 0
        %2335 = vmatprep.subr.bf16.mxu0 0
        %2336 = vmatpush2.bf16.msra.mxu0 0
        %2337 = vmatprep.subr.bf16.mxu0 0
        %2338 = vmatpush2.bf16.msra.mxu0 0
        %2339 = vmatprep.subr.bf16.mxu0 0
        %2340 = vmatpush2.bf16.msra.mxu0 0
        %2341 = vmatprep.subr.bf16.mxu0 0
        %2342 = vmatpush2.bf16.msra.mxu0 0
        %2343 = vmatprep.subr.bf16.mxu0 0
        %2344 = vmatpush2.bf16.msra.mxu0 0
        %2345 = vmatprep.subr.bf16.mxu0 0
        %2346 = vmatpush2.bf16.msra.mxu0 0
        %2347 = vmatprep.mubr.bf16.mxu0 0
        %2348 = vmatmul.mubr.bf16.gmra.mxu0 %v1786
        %v2349 = vpop.f32.mrf.mxu0
        %v2350 = vadd.f32 0.0, %v2349
        %v2351 = vpop.f32.mrf.mxu0
        %v2352 = vadd.f32 0.0, %v2351
        %v2353 = vpop.f32.mrf.mxu0
        %v2354 = vadd.f32 0.0, %v2353
        %v2355 = vpop.f32.mrf.mxu0
        %v2356 = vadd.f32 0.0, %v2355
        %2357 = vdwg.mxu0
        %2358 = vmatprep.subr.bf16.mxu0 0
        %2359 = vmatpush1.bf16.msra.mxu0 0
        %2360 = vmatprep.subr.bf16.mxu0 %v1859
        %2361 = vmatpush1.bf16.msra.mxu0 %v1856
        %2362 = vmatprep.subr.bf16.mxu0 %v1551
        %2363 = vmatpush1.bf16.msra.mxu0 %v1550
        %2364 = vmatprep.subr.bf16.mxu0 %v1519
        %2365 = vmatpush1.bf16.msra.mxu0 %v1518
        %2366 = vmatprep.subr.bf16.mxu0 %v1487
        %2367 = vmatpush1.bf16.msra.mxu0 %v1486
        %2368 = vmatprep.subr.bf16.mxu0 %v1455
        %2369 = vmatpush1.bf16.msra.mxu0 %v1454
        %2370 = vmatprep.subr.bf16.mxu0 %v1423
        %2371 = vmatpush1.bf16.msra.mxu0 %v1422
        %2372 = vmatprep.subr.bf16.mxu0 %v1391
        %2373 = vmatpush1.bf16.msra.mxu0 %v1390
        %2374 = vmatprep.subr.bf16.mxu0 0
        %2375 = vmatpush2.bf16.msra.mxu0 0
        %2376 = vmatprep.subr.bf16.mxu0 0
        %2377 = vmatpush2.bf16.msra.mxu0 0
        %2378 = vmatprep.subr.bf16.mxu0 0
        %2379 = vmatpush2.bf16.msra.mxu0 0
        %2380 = vmatprep.subr.bf16.mxu0 0
        %2381 = vmatpush2.bf16.msra.mxu0 0
        %2382 = vmatprep.subr.bf16.mxu0 0
        %2383 = vmatpush2.bf16.msra.mxu0 0
        %2384 = vmatprep.subr.bf16.mxu0 0
        %2385 = vmatpush2.bf16.msra.mxu0 0
        %2386 = vmatprep.subr.bf16.mxu0 0
        %2387 = vmatpush2.bf16.msra.mxu0 0
        %2388 = vmatprep.subr.bf16.mxu0 0
        %2389 = vmatpush2.bf16.msra.mxu0 0
        %2390 = vmatprep.mubr.bf16.mxu0 0
        %2391 = vmatmul.mubr.bf16.gmra.mxu0 %v1786
        %v2392 = vpop.f32.mrf.mxu0
        %v2393 = vadd.f32 0.0, %v2392
        %v2394 = vpop.f32.mrf.mxu0
        %v2395 = vadd.f32 0.0, %v2394
        %v2396 = vpop.f32.mrf.mxu0
        %v2397 = vadd.f32 0.0, %v2396
        %v2398 = vpop.f32.mrf.mxu0
        %v2399 = vadd.f32 0.0, %v2398
        %2400 = vdwg.mxu0
        %2401 = vmatprep.subr.bf16.mxu0 0
        %2402 = vmatpush1.bf16.msra.mxu0 0
        %2403 = vmatprep.subr.bf16.mxu0 %v1865
        %2404 = vmatpush1.bf16.msra.mxu0 %v1862
        %2405 = vmatprep.subr.bf16.mxu0 %v1553
        %2406 = vmatpush1.bf16.msra.mxu0 %v1552
        %2407 = vmatprep.subr.bf16.mxu0 %v1521
        %2408 = vmatpush1.bf16.msra.mxu0 %v1520
        %2409 = vmatprep.subr.bf16.mxu0 %v1489
        %2410 = vmatpush1.bf16.msra.mxu0 %v1488
        %2411 = vmatprep.subr.bf16.mxu0 %v1457
        %2412 = vmatpush1.bf16.msra.mxu0 %v1456
        %2413 = vmatprep.subr.bf16.mxu0 %v1425
        %2414 = vmatpush1.bf16.msra.mxu0 %v1424
        %2415 = vmatprep.subr.bf16.mxu0 %v1393
        %2416 = vmatpush1.bf16.msra.mxu0 %v1392
        %2417 = vmatprep.subr.bf16.mxu0 0
        %2418 = vmatpush2.bf16.msra.mxu0 0
        %2419 = vmatprep.subr.bf16.mxu0 0
        %2420 = vmatpush2.bf16.msra.mxu0 0
        %2421 = vmatprep.subr.bf16.mxu0 0
        %2422 = vmatpush2.bf16.msra.mxu0 0
        %2423 = vmatprep.subr.bf16.mxu0 0
        %2424 = vmatpush2.bf16.msra.mxu0 0
        %2425 = vmatprep.subr.bf16.mxu0 0
        %2426 = vmatpush2.bf16.msra.mxu0 0
        %2427 = vmatprep.subr.bf16.mxu0 0
        %2428 = vmatpush2.bf16.msra.mxu0 0
        %2429 = vmatprep.subr.bf16.mxu0 0
        %2430 = vmatpush2.bf16.msra.mxu0 0
        %2431 = vmatprep.subr.bf16.mxu0 0
        %2432 = vmatpush2.bf16.msra.mxu0 0
        %2433 = vmatprep.mubr.bf16.mxu0 0
        %2434 = vmatmul.mubr.bf16.gmra.mxu0 %v1786
        %v2435 = vpop.f32.mrf.mxu0
        %v2436 = vadd.f32 0.0, %v2435
        %v2437 = vpop.f32.mrf.mxu0
        %v2438 = vadd.f32 0.0, %v2437
        %v2439 = vpop.f32.mrf.mxu0
        %v2440 = vadd.f32 0.0, %v2439
        %v2441 = vpop.f32.mrf.mxu0
        %v2442 = vadd.f32 0.0, %v2441
        %2443 = vdwg.mxu0
        %2444 = vmatprep.subr.bf16.mxu0 0
        %2445 = vmatpush1.bf16.msra.mxu0 0
        %2446 = vmatprep.subr.bf16.mxu0 %v1871
        %2447 = vmatpush1.bf16.msra.mxu0 %v1868
        %2448 = vmatprep.subr.bf16.mxu0 %v1555
        %2449 = vmatpush1.bf16.msra.mxu0 %v1554
        %2450 = vmatprep.subr.bf16.mxu0 %v1523
        %2451 = vmatpush1.bf16.msra.mxu0 %v1522
        %2452 = vmatprep.subr.bf16.mxu0 %v1491
        %2453 = vmatpush1.bf16.msra.mxu0 %v1490
        %2454 = vmatprep.subr.bf16.mxu0 %v1459
        %2455 = vmatpush1.bf16.msra.mxu0 %v1458
        %2456 = vmatprep.subr.bf16.mxu0 %v1427
        %2457 = vmatpush1.bf16.msra.mxu0 %v1426
        %2458 = vmatprep.subr.bf16.mxu0 %v1395
        %2459 = vmatpush1.bf16.msra.mxu0 %v1394
        %2460 = vmatprep.subr.bf16.mxu0 0
        %2461 = vmatpush2.bf16.msra.mxu0 0
        %2462 = vmatprep.subr.bf16.mxu0 0
        %2463 = vmatpush2.bf16.msra.mxu0 0
        %2464 = vmatprep.subr.bf16.mxu0 0
        %2465 = vmatpush2.bf16.msra.mxu0 0
        %2466 = vmatprep.subr.bf16.mxu0 0
        %2467 = vmatpush2.bf16.msra.mxu0 0
        %2468 = vmatprep.subr.bf16.mxu0 0
        %2469 = vmatpush2.bf16.msra.mxu0 0
        %2470 = vmatprep.subr.bf16.mxu0 0
        %2471 = vmatpush2.bf16.msra.mxu0 0
        %2472 = vmatprep.subr.bf16.mxu0 0
        %2473 = vmatpush2.bf16.msra.mxu0 0
        %2474 = vmatprep.subr.bf16.mxu0 0
        %2475 = vmatpush2.bf16.msra.mxu0 0
        %2476 = vmatprep.mubr.bf16.mxu0 0
        %2477 = vmatmul.mubr.bf16.gmra.mxu0 %v1786
        %v2478 = vpop.f32.mrf.mxu0
        %v2479 = vadd.f32 0.0, %v2478
        %v2480 = vpop.f32.mrf.mxu0
        %v2481 = vadd.f32 0.0, %v2480
        %v2482 = vpop.f32.mrf.mxu0
        %v2483 = vadd.f32 0.0, %v2482
        %v2484 = vpop.f32.mrf.mxu0
        %v2485 = vadd.f32 0.0, %v2484
        %2486 = vdwg.mxu0
        %2487 = vmatprep.subr.bf16.mxu0 0
        %2488 = vmatpush1.bf16.msra.mxu0 0
        %2489 = vmatprep.subr.bf16.mxu0 %v1877
        %2490 = vmatpush1.bf16.msra.mxu0 %v1874
        %2491 = vmatprep.subr.bf16.mxu0 %v1557
        %2492 = vmatpush1.bf16.msra.mxu0 %v1556
        %2493 = vmatprep.subr.bf16.mxu0 %v1525
        %2494 = vmatpush1.bf16.msra.mxu0 %v1524
        %2495 = vmatprep.subr.bf16.mxu0 %v1493
        %2496 = vmatpush1.bf16.msra.mxu0 %v1492
        %2497 = vmatprep.subr.bf16.mxu0 %v1461
        %2498 = vmatpush1.bf16.msra.mxu0 %v1460
        %2499 = vmatprep.subr.bf16.mxu0 %v1429
        %2500 = vmatpush1.bf16.msra.mxu0 %v1428
        %2501 = vmatprep.subr.bf16.mxu0 %v1397
        %2502 = vmatpush1.bf16.msra.mxu0 %v1396
        %2503 = vmatprep.subr.bf16.mxu0 0
        %2504 = vmatpush2.bf16.msra.mxu0 0
        %2505 = vmatprep.subr.bf16.mxu0 0
        %2506 = vmatpush2.bf16.msra.mxu0 0
        %2507 = vmatprep.subr.bf16.mxu0 0
        %2508 = vmatpush2.bf16.msra.mxu0 0
        %2509 = vmatprep.subr.bf16.mxu0 0
        %2510 = vmatpush2.bf16.msra.mxu0 0
        %2511 = vmatprep.subr.bf16.mxu0 0
        %2512 = vmatpush2.bf16.msra.mxu0 0
        %2513 = vmatprep.subr.bf16.mxu0 0
        %2514 = vmatpush2.bf16.msra.mxu0 0
        %2515 = vmatprep.subr.bf16.mxu0 0
        %2516 = vmatpush2.bf16.msra.mxu0 0
        %2517 = vmatprep.subr.bf16.mxu0 0
        %2518 = vmatpush2.bf16.msra.mxu0 0
        %2519 = vmatprep.mubr.bf16.mxu0 0
        %2520 = vmatmul.mubr.bf16.gmra.mxu0 %v1786
        %v2521 = vpop.f32.mrf.mxu0
        %v2522 = vadd.f32 0.0, %v2521
        %v2523 = vpop.f32.mrf.mxu0
        %v2524 = vadd.f32 0.0, %v2523
        %v2525 = vpop.f32.mrf.mxu0
        %v2526 = vadd.f32 0.0, %v2525
        %v2527 = vpop.f32.mrf.mxu0
        %v2528 = vadd.f32 0.0, %v2527
        %2529 = vdwg.mxu0
        %2530 = vmatprep.subr.bf16.mxu0 0
        %2531 = vmatpush1.bf16.msra.mxu0 0
        %2532 = vmatprep.subr.bf16.mxu0 %v1883
        %2533 = vmatpush1.bf16.msra.mxu0 %v1880
        %2534 = vmatprep.subr.bf16.mxu0 %v1559
        %2535 = vmatpush1.bf16.msra.mxu0 %v1558
        %2536 = vmatprep.subr.bf16.mxu0 %v1527
        %2537 = vmatpush1.bf16.msra.mxu0 %v1526
        %2538 = vmatprep.subr.bf16.mxu0 %v1495
        %2539 = vmatpush1.bf16.msra.mxu0 %v1494
        %2540 = vmatprep.subr.bf16.mxu0 %v1463
        %2541 = vmatpush1.bf16.msra.mxu0 %v1462
        %2542 = vmatprep.subr.bf16.mxu0 %v1431
        %2543 = vmatpush1.bf16.msra.mxu0 %v1430
        %2544 = vmatprep.subr.bf16.mxu0 %v1399
        %2545 = vmatpush1.bf16.msra.mxu0 %v1398
        %2546 = vmatprep.subr.bf16.mxu0 0
        %2547 = vmatpush2.bf16.msra.mxu0 0
        %2548 = vmatprep.subr.bf16.mxu0 0
        %2549 = vmatpush2.bf16.msra.mxu0 0
        %2550 = vmatprep.subr.bf16.mxu0 0
        %2551 = vmatpush2.bf16.msra.mxu0 0
        %2552 = vmatprep.subr.bf16.mxu0 0
        %2553 = vmatpush2.bf16.msra.mxu0 0
        %2554 = vmatprep.subr.bf16.mxu0 0
        %2555 = vmatpush2.bf16.msra.mxu0 0
        %2556 = vmatprep.subr.bf16.mxu0 0
        %2557 = vmatpush2.bf16.msra.mxu0 0
        %2558 = vmatprep.subr.bf16.mxu0 0
        %2559 = vmatpush2.bf16.msra.mxu0 0
        %2560 = vmatprep.subr.bf16.mxu0 0
        %2561 = vmatpush2.bf16.msra.mxu0 0
        %2562 = vmatprep.mubr.bf16.mxu0 0
        %2563 = vmatmul.mubr.bf16.gmra.mxu0 %v1786
        %v2564 = vpop.f32.mrf.mxu0
        %v2565 = vadd.f32 0.0, %v2564
        %v2566 = vpop.f32.mrf.mxu0
        %v2567 = vadd.f32 0.0, %v2566
        %v2568 = vpop.f32.mrf.mxu0
        %v2569 = vadd.f32 0.0, %v2568
        %v2570 = vpop.f32.mrf.mxu0
        %v2571 = vadd.f32 0.0, %v2570
        %2572 = vdwg.mxu0
        %v2781 = vunpack.c.l.b16 %v306
        %v2782 = vunpack.c.h.b16 %v306
        %v2783 = vunpack.c.l.b16 %v307
        %v2784 = vunpack.c.h.b16 %v307
        %v2785 = vunpack.c.l.b16 %v308
        %v2786 = vunpack.c.h.b16 %v308
        %v2787 = vunpack.c.l.b16 %v309
        %v2788 = vunpack.c.h.b16 %v309
        %v2789 = vunpack.c.l.b16 %v310
        %v2790 = vunpack.c.h.b16 %v310
        %v2791 = vunpack.c.l.b16 %v311
        %v2792 = vunpack.c.h.b16 %v311
        %v2793 = vunpack.c.l.b16 %v312
        %v2794 = vunpack.c.h.b16 %v312
        %v2795 = vunpack.c.l.b16 %v313
        %v2796 = vunpack.c.h.b16 %v313
        %v2797 = vunpack.c.l.b16 %v314
        %v2798 = vunpack.c.h.b16 %v314
        %v2799 = vunpack.c.l.b16 %v315
        %v2800 = vunpack.c.h.b16 %v315
        %v2801 = vunpack.c.l.b16 %v316
        %v2802 = vunpack.c.h.b16 %v316
        %v2803 = vunpack.c.l.b16 %v317
        %v2804 = vunpack.c.h.b16 %v317
        %v2805 = vunpack.c.l.b16 %v318
        %v2806 = vunpack.c.h.b16 %v318
        %v2807 = vunpack.c.l.b16 %v319
        %v2808 = vunpack.c.h.b16 %v319
        %v2809 = vunpack.c.l.b16 %v320
        %v2810 = vunpack.c.h.b16 %v320
        %v2811 = vunpack.c.l.b16 %v321
        %v2812 = vunpack.c.h.b16 %v321
        %v2813 = vunpack.c.l.b16 %v322
        %v2814 = vunpack.c.h.b16 %v322
        %v2815 = vunpack.c.l.b16 %v323
        %v2816 = vunpack.c.h.b16 %v323
        %v2817 = vunpack.c.l.b16 %v324
        %v2818 = vunpack.c.h.b16 %v324
        %v2819 = vunpack.c.l.b16 %v325
        %v2820 = vunpack.c.h.b16 %v325
        %v2821 = vunpack.c.l.b16 %v326
        %v2822 = vunpack.c.h.b16 %v326
        %v2823 = vunpack.c.l.b16 %v327
        %v2824 = vunpack.c.h.b16 %v327
        %v2825 = vunpack.c.l.b16 %v328
        %v2826 = vunpack.c.h.b16 %v328
        %v2827 = vunpack.c.l.b16 %v329
        %v2828 = vunpack.c.h.b16 %v329
        %v2829 = vunpack.c.l.b16 %v330
        %v2830 = vunpack.c.h.b16 %v330
        %v2831 = vunpack.c.l.b16 %v331
        %v2832 = vunpack.c.h.b16 %v331
        %v2833 = vunpack.c.l.b16 %v332
        %v2834 = vunpack.c.h.b16 %v332
        %v2835 = vunpack.c.l.b16 %v333
        %v2836 = vunpack.c.h.b16 %v333
        %v2837 = vunpack.c.l.b16 %v334
        %v2838 = vunpack.c.h.b16 %v334
        %v2839 = vunpack.c.l.b16 %v335
        %v2840 = vunpack.c.h.b16 %v335
        %v2841 = vunpack.c.l.b16 %v336
        %v2842 = vunpack.c.h.b16 %v336
        %v2843 = vunpack.c.l.b16 %v337
        %v2844 = vunpack.c.h.b16 %v337
        %v2845 = vunpack.c.l.b16 %v338
        %v2846 = vunpack.c.h.b16 %v338
        %v2847 = vunpack.c.l.b16 %v339
        %v2848 = vunpack.c.h.b16 %v339
        %v2849 = vunpack.c.l.b16 %v340
        %v2850 = vunpack.c.h.b16 %v340
        %v2851 = vunpack.c.l.b16 %v341
        %v2852 = vunpack.c.h.b16 %v341
        %v2853 = vunpack.c.l.b16 %v342
        %v2854 = vunpack.c.h.b16 %v342
        %v2855 = vunpack.c.l.b16 %v343
        %v2856 = vunpack.c.h.b16 %v343
        %v2857 = vunpack.c.l.b16 %v344
        %v2858 = vunpack.c.h.b16 %v344
        %v2859 = vunpack.c.l.b16 %v345
        %v2860 = vunpack.c.h.b16 %v345
        %v2861 = vunpack.c.l.b16 %v346
        %v2862 = vunpack.c.h.b16 %v346
        %v2863 = vunpack.c.l.b16 %v347
        %v2864 = vunpack.c.h.b16 %v347
        %v2865 = vunpack.c.l.b16 %v348
        %v2866 = vunpack.c.h.b16 %v348
        %v2867 = vunpack.c.l.b16 %v349
        %v2868 = vunpack.c.h.b16 %v349
        %v2869 = vunpack.c.l.b16 %v350
        %v2870 = vunpack.c.h.b16 %v350
        %v2871 = vunpack.c.l.b16 %v351
        %v2872 = vunpack.c.h.b16 %v351
        %v2873 = vunpack.c.l.b16 %v352
        %v2874 = vunpack.c.h.b16 %v352
        %v2875 = vunpack.c.l.b16 %v353
        %v2876 = vunpack.c.h.b16 %v353
        %v2877 = vunpack.c.l.b16 %v354
        %v2878 = vunpack.c.h.b16 %v354
        %v2879 = vunpack.c.l.b16 %v355
        %v2880 = vunpack.c.h.b16 %v355
        %v2881 = vunpack.c.l.b16 %v356
        %v2882 = vunpack.c.h.b16 %v356
        %v2883 = vunpack.c.l.b16 %v357
        %v2884 = vunpack.c.h.b16 %v357
        %v2885 = vunpack.c.l.b16 %v358
        %v2886 = vunpack.c.h.b16 %v358
        %v2887 = vunpack.c.l.b16 %v359
        %v2888 = vunpack.c.h.b16 %v359
        %v2889 = vunpack.c.l.b16 %v360
        %v2890 = vunpack.c.h.b16 %v360
        %v2891 = vunpack.c.l.b16 %v361
        %v2892 = vunpack.c.h.b16 %v361
        %v2893 = vunpack.c.l.b16 %v362
        %v2894 = vunpack.c.h.b16 %v362
        %v2895 = vunpack.c.l.b16 %v363
        %v2896 = vunpack.c.h.b16 %v363
        %v2897 = vunpack.c.l.b16 %v364
        %v2898 = vunpack.c.h.b16 %v364
        %v2899 = vunpack.c.l.b16 %v365
        %v2900 = vunpack.c.h.b16 %v365
        %v2901 = vunpack.c.l.b16 %v366
        %v2902 = vunpack.c.h.b16 %v366
        %v2903 = vunpack.c.l.b16 %v367
        %v2904 = vunpack.c.h.b16 %v367
        %v2905 = vunpack.c.l.b16 %v368
        %v2906 = vunpack.c.h.b16 %v368
        %v2907 = vunpack.c.l.b16 %v369
        %v2908 = vunpack.c.h.b16 %v369
        %v2909 = vunpack.c.l.b16 %v370
        %v2910 = vunpack.c.h.b16 %v370
        %v2911 = vunpack.c.l.b16 %v371
        %v2912 = vunpack.c.h.b16 %v371
        %v2913 = vunpack.c.l.b16 %v372
        %v2914 = vunpack.c.h.b16 %v372
        %v2915 = vunpack.c.l.b16 %v373
        %v2916 = vunpack.c.h.b16 %v373
        %v2917 = vunpack.c.l.b16 %v374
        %v2918 = vunpack.c.h.b16 %v374
        %v2919 = vunpack.c.l.b16 %v375
        %v2920 = vunpack.c.h.b16 %v375
        %v2921 = vunpack.c.l.b16 %v376
        %v2922 = vunpack.c.h.b16 %v376
        %v2923 = vunpack.c.l.b16 %v377
        %v2924 = vunpack.c.h.b16 %v377
        %v2925 = vunpack.c.l.b16 %v378
        %v2926 = vunpack.c.h.b16 %v378
        %v2927 = vunpack.c.l.b16 %v379
        %v2928 = vunpack.c.h.b16 %v379
        %v2929 = vunpack.c.l.b16 %v380
        %v2930 = vunpack.c.h.b16 %v380
        %v2931 = vunpack.c.l.b16 %v381
        %v2932 = vunpack.c.h.b16 %v381
        %v2933 = vunpack.c.l.b16 %v382
        %v2934 = vunpack.c.h.b16 %v382
        %v2935 = vunpack.c.l.b16 %v383
        %v2936 = vunpack.c.h.b16 %v383
        %v2937 = vunpack.c.l.b16 %v384
        %v2938 = vunpack.c.h.b16 %v384
        %v2939 = vunpack.c.l.b16 %v385
        %v2940 = vunpack.c.h.b16 %v385
        %v2941 = vunpack.c.l.b16 %v386
        %v2942 = vunpack.c.h.b16 %v386
        %v2943 = vunpack.c.l.b16 %v387
        %v2944 = vunpack.c.h.b16 %v387
        %v2945 = vunpack.c.l.b16 %v388
        %v2946 = vunpack.c.h.b16 %v388
        %v2947 = vunpack.c.l.b16 %v389
        %v2948 = vunpack.c.h.b16 %v389
        %v2949 = vunpack.c.l.b16 %v390
        %v2950 = vunpack.c.h.b16 %v390
        %v2951 = vunpack.c.l.b16 %v391
        %v2952 = vunpack.c.h.b16 %v391
        %v2953 = vunpack.c.l.b16 %v392
        %v2954 = vunpack.c.h.b16 %v392
        %v2955 = vunpack.c.l.b16 %v393
        %v2956 = vunpack.c.h.b16 %v393
        %v2957 = vunpack.c.l.b16 %v394
        %v2958 = vunpack.c.h.b16 %v394
        %v2959 = vunpack.c.l.b16 %v395
        %v2960 = vunpack.c.h.b16 %v395
        %v2961 = vunpack.c.l.b16 %v396
        %v2962 = vunpack.c.h.b16 %v396
        %v2963 = vunpack.c.l.b16 %v397
        %v2964 = vunpack.c.h.b16 %v397
        %v2965 = vunpack.c.l.b16 %v398
        %v2966 = vunpack.c.h.b16 %v398
        %v2967 = vunpack.c.l.b16 %v399
        %v2968 = vunpack.c.h.b16 %v399
        %v2969 = vunpack.c.l.b16 %v400
        %v2970 = vunpack.c.h.b16 %v400
        %v2971 = vunpack.c.l.b16 %v401
        %v2972 = vunpack.c.h.b16 %v401
        %v2973 = vunpack.c.l.b16 %v402
        %v2974 = vunpack.c.h.b16 %v402
        %v2975 = vunpack.c.l.b16 %v403
        %v2976 = vunpack.c.h.b16 %v403
        %v2977 = vunpack.c.l.b16 %v404
        %v2978 = vunpack.c.h.b16 %v404
        %v2979 = vunpack.c.l.b16 %v405
        %v2980 = vunpack.c.h.b16 %v405
        %v2981 = vunpack.c.l.b16 %v406
        %v2982 = vunpack.c.h.b16 %v406
        %v2983 = vunpack.c.l.b16 %v407
        %v2984 = vunpack.c.h.b16 %v407
        %v2985 = vunpack.c.l.b16 %v408
        %v2986 = vunpack.c.h.b16 %v408
        %v2987 = vunpack.c.l.b16 %v409
        %v2988 = vunpack.c.h.b16 %v409
        %v2989 = vunpack.c.l.b16 %v410
        %v2990 = vunpack.c.h.b16 %v410
        %v2991 = vunpack.c.l.b16 %v411
        %v2992 = vunpack.c.h.b16 %v411
        %v2993 = vunpack.c.l.b16 %v412
        %v2994 = vunpack.c.h.b16 %v412
        %v2995 = vunpack.c.l.b16 %v413
        %v2996 = vunpack.c.h.b16 %v413
        %v2997 = vunpack.c.l.b16 %v414
        %v2998 = vunpack.c.h.b16 %v414
        %v2999 = vunpack.c.l.b16 %v415
        %v3000 = vunpack.c.h.b16 %v415
        %v3001 = vunpack.c.l.b16 %v416
        %v3002 = vunpack.c.h.b16 %v416
        %v3003 = vunpack.c.l.b16 %v417
        %v3004 = vunpack.c.h.b16 %v417
        %v3005 = vunpack.c.l.b16 %v418
        %v3006 = vunpack.c.h.b16 %v418
        %v3007 = vunpack.c.l.b16 %v419
        %v3008 = vunpack.c.h.b16 %v419
        %v3009 = vunpack.c.l.b16 %v420
        %v3010 = vunpack.c.h.b16 %v420
        %v3011 = vunpack.c.l.b16 %v421
        %v3012 = vunpack.c.h.b16 %v421
        %v3013 = vunpack.c.l.b16 %v422
        %v3014 = vunpack.c.h.b16 %v422
        %v3015 = vunpack.c.l.b16 %v423
        %v3016 = vunpack.c.h.b16 %v423
        %v3017 = vunpack.c.l.b16 %v424
        %v3018 = vunpack.c.h.b16 %v424
        %v3019 = vunpack.c.l.b16 %v425
        %v3020 = vunpack.c.h.b16 %v425
        %v3021 = vunpack.c.l.b16 %v426
        %v3022 = vunpack.c.h.b16 %v426
        %v3023 = vunpack.c.l.b16 %v427
        %v3024 = vunpack.c.h.b16 %v427
        %v3025 = vunpack.c.l.b16 %v428
        %v3026 = vunpack.c.h.b16 %v428
        %v3027 = vunpack.c.l.b16 %v429
        %v3028 = vunpack.c.h.b16 %v429
        %v3029 = vunpack.c.l.b16 %v430
        %v3030 = vunpack.c.h.b16 %v430
        %v3031 = vunpack.c.l.b16 %v431
        %v3032 = vunpack.c.h.b16 %v431
        %v3033 = vunpack.c.l.b16 %v432
        %v3034 = vunpack.c.h.b16 %v432
        %v3035 = vunpack.c.l.b16 %v433
        %v3036 = vunpack.c.h.b16 %v433
        %v3037 = vunpack.c.l.b16 %v434
        %v3038 = vunpack.c.h.b16 %v434
        %v3039 = vunpack.c.l.b16 %v435
        %v3040 = vunpack.c.h.b16 %v435
        %v3041 = vunpack.c.l.b16 %v436
        %v3042 = vunpack.c.h.b16 %v436
        %v3043 = vunpack.c.l.b16 %v437
        %v3044 = vunpack.c.h.b16 %v437
        %v3045 = vunpack.c.l.b16 %v438
        %v3046 = vunpack.c.h.b16 %v438
        %v3047 = vunpack.c.l.b16 %v439
        %v3048 = vunpack.c.h.b16 %v439
        %v3049 = vunpack.c.l.b16 %v440
        %v3050 = vunpack.c.h.b16 %v440
        %v3051 = vunpack.c.l.b16 %v441
        %v3052 = vunpack.c.h.b16 %v441
        %v3053 = vunpack.c.l.b16 %v442
        %v3054 = vunpack.c.h.b16 %v442
        %v3055 = vunpack.c.l.b16 %v443
        %v3056 = vunpack.c.h.b16 %v443
        %v3057 = vunpack.c.l.b16 %v444
        %v3058 = vunpack.c.h.b16 %v444
        %v3059 = vunpack.c.l.b16 %v445
        %v3060 = vunpack.c.h.b16 %v445
        %v3061 = vunpack.c.l.b16 %v446
        %v3062 = vunpack.c.h.b16 %v446
        %v3063 = vunpack.c.l.b16 %v447
        %v3064 = vunpack.c.h.b16 %v447
        %v3065 = vunpack.c.l.b16 %v448
        %v3066 = vunpack.c.h.b16 %v448
        %v3067 = vunpack.c.l.b16 %v449
        %v3068 = vunpack.c.h.b16 %v449
        %v3069 = vunpack.c.l.b16 %v450
        %v3070 = vunpack.c.h.b16 %v450
        %v3071 = vunpack.c.l.b16 %v451
        %v3072 = vunpack.c.h.b16 %v451
        %v3073 = vunpack.c.l.b16 %v452
        %v3074 = vunpack.c.h.b16 %v452
        %v3075 = vunpack.c.l.b16 %v453
        %v3076 = vunpack.c.h.b16 %v453
        %v3077 = vunpack.c.l.b16 %v454
        %v3078 = vunpack.c.h.b16 %v454
        %v3079 = vunpack.c.l.b16 %v455
        %v3080 = vunpack.c.h.b16 %v455
        %v3081 = vunpack.c.l.b16 %v456
        %v3082 = vunpack.c.h.b16 %v456
        %v3083 = vunpack.c.l.b16 %v457
        %v3084 = vunpack.c.h.b16 %v457
        %v3085 = vunpack.c.l.b16 %v458
        %v3086 = vunpack.c.h.b16 %v458
        %v3087 = vunpack.c.l.b16 %v459
        %v3088 = vunpack.c.h.b16 %v459
        %v3089 = vunpack.c.l.b16 %v460
        %v3090 = vunpack.c.h.b16 %v460
        %v3091 = vunpack.c.l.b16 %v461
        %v3092 = vunpack.c.h.b16 %v461
        %v3093 = vunpack.c.l.b16 %v462
        %v3094 = vunpack.c.h.b16 %v462
        %v3095 = vunpack.c.l.b16 %v463
        %v3096 = vunpack.c.h.b16 %v463
        %v3097 = vunpack.c.l.b16 %v464
        %v3098 = vunpack.c.h.b16 %v464
        %v3099 = vunpack.c.l.b16 %v465
        %v3100 = vunpack.c.h.b16 %v465
        %v3101 = vunpack.c.l.b16 %v466
        %v3102 = vunpack.c.h.b16 %v466
        %v3103 = vunpack.c.l.b16 %v467
        %v3104 = vunpack.c.h.b16 %v467
        %v3105 = vunpack.c.l.b16 %v468
        %v3106 = vunpack.c.h.b16 %v468
        %v3107 = vunpack.c.l.b16 %v469
        %v3108 = vunpack.c.h.b16 %v469
        %v3109 = vunpack.c.l.b16 %v470
        %v3110 = vunpack.c.h.b16 %v470
        %v3111 = vunpack.c.l.b16 %v471
        %v3112 = vunpack.c.h.b16 %v471
        %v3113 = vunpack.c.l.b16 %v472
        %v3114 = vunpack.c.h.b16 %v472
        %v3115 = vunpack.c.l.b16 %v473
        %v3116 = vunpack.c.h.b16 %v473
        %v3117 = vunpack.c.l.b16 %v474
        %v3118 = vunpack.c.h.b16 %v474
        %v3119 = vunpack.c.l.b16 %v475
        %v3120 = vunpack.c.h.b16 %v475
        %v3121 = vunpack.c.l.b16 %v476
        %v3122 = vunpack.c.h.b16 %v476
        %v3123 = vunpack.c.l.b16 %v477
        %v3124 = vunpack.c.h.b16 %v477
        %v3125 = vunpack.c.l.b16 %v478
        %v3126 = vunpack.c.h.b16 %v478
        %v3127 = vunpack.c.l.b16 %v479
        %v3128 = vunpack.c.h.b16 %v479
        %v3129 = vunpack.c.l.b16 %v480
        %v3130 = vunpack.c.h.b16 %v480
        %v3131 = vunpack.c.l.b16 %v481
        %v3132 = vunpack.c.h.b16 %v481
        %v3133 = vunpack.c.l.b16 %v482
        %v3134 = vunpack.c.h.b16 %v482
        %v3135 = vunpack.c.l.b16 %v483
        %v3136 = vunpack.c.h.b16 %v483
        %v3137 = vunpack.c.l.b16 %v484
        %v3138 = vunpack.c.h.b16 %v484
        %v3139 = vunpack.c.l.b16 %v485
        %v3140 = vunpack.c.h.b16 %v485
        %v3141 = vunpack.c.l.b16 %v486
        %v3142 = vunpack.c.h.b16 %v486
        %v3143 = vunpack.c.l.b16 %v487
        %v3144 = vunpack.c.h.b16 %v487
        %v3145 = vunpack.c.l.b16 %v488
        %v3146 = vunpack.c.h.b16 %v488
        %v3147 = vunpack.c.l.b16 %v489
        %v3148 = vunpack.c.h.b16 %v489
        %v3149 = vunpack.c.l.b16 %v490
        %v3150 = vunpack.c.h.b16 %v490
        %v3151 = vunpack.c.l.b16 %v491
        %v3152 = vunpack.c.h.b16 %v491
        %v3153 = vunpack.c.l.b16 %v492
        %v3154 = vunpack.c.h.b16 %v492
        %v3155 = vunpack.c.l.b16 %v493
        %v3156 = vunpack.c.h.b16 %v493
        %v3157 = vunpack.c.l.b16 %v494
        %v3158 = vunpack.c.h.b16 %v494
        %v3159 = vunpack.c.l.b16 %v495
        %v3160 = vunpack.c.h.b16 %v495
        %v3161 = vunpack.c.l.b16 %v496
        %v3162 = vunpack.c.h.b16 %v496
        %v3163 = vunpack.c.l.b16 %v497
        %v3164 = vunpack.c.h.b16 %v497
        %v3165 = vunpack.c.l.b16 %v498
        %v3166 = vunpack.c.h.b16 %v498
        %v3167 = vunpack.c.l.b16 %v499
        %v3168 = vunpack.c.h.b16 %v499
        %v3169 = vunpack.c.l.b16 %v500
        %v3170 = vunpack.c.h.b16 %v500
        %v3171 = vunpack.c.l.b16 %v501
        %v3172 = vunpack.c.h.b16 %v501
        %v3173 = vunpack.c.l.b16 %v502
        %v3174 = vunpack.c.h.b16 %v502
        %v3175 = vunpack.c.l.b16 %v503
        %v3176 = vunpack.c.h.b16 %v503
        %v3177 = vunpack.c.l.b16 %v504
        %v3178 = vunpack.c.h.b16 %v504
        %v3179 = vunpack.c.l.b16 %v505
        %v3180 = vunpack.c.h.b16 %v505
        %v3181 = vunpack.c.l.b16 %v506
        %v3182 = vunpack.c.h.b16 %v506
        %v3183 = vunpack.c.l.b16 %v507
        %v3184 = vunpack.c.h.b16 %v507
        %v3185 = vunpack.c.l.b16 %v508
        %v3186 = vunpack.c.h.b16 %v508
        %v3187 = vunpack.c.l.b16 %v509
        %v3188 = vunpack.c.h.b16 %v509
        %v3189 = vunpack.c.l.b16 %v510
        %v3190 = vunpack.c.h.b16 %v510
        %v3191 = vunpack.c.l.b16 %v511
        %v3192 = vunpack.c.h.b16 %v511
        %v3193 = vunpack.c.l.b16 %v512
        %v3194 = vunpack.c.h.b16 %v512
        %v3195 = vunpack.c.l.b16 %v513
        %v3196 = vunpack.c.h.b16 %v513
        %v3197 = vpack.c.b16 %v2813, %v2781
        %v3198 = vpack.c.b16 %v2814, %v2782
        %v3199 = vpack.c.b16 %v2815, %v2783
        %v3200 = vpack.c.b16 %v2816, %v2784
        %v3201 = vpack.c.b16 %v2817, %v2785
        %v3202 = vpack.c.b16 %v2818, %v2786
        %v3203 = vpack.c.b16 %v2819, %v2787
        %v3204 = vpack.c.b16 %v2820, %v2788
        %v3205 = vpack.c.b16 %v2821, %v2789
        %v3206 = vpack.c.b16 %v2822, %v2790
        %v3207 = vpack.c.b16 %v2823, %v2791
        %v3208 = vpack.c.b16 %v2824, %v2792
        %v3209 = vpack.c.b16 %v2825, %v2793
        %v3210 = vpack.c.b16 %v2826, %v2794
        %v3211 = vpack.c.b16 %v2827, %v2795
        %v3212 = vpack.c.b16 %v2828, %v2796
        %v3213 = vpack.c.b16 %v2829, %v2797
        %v3214 = vpack.c.b16 %v2830, %v2798
        %v3215 = vpack.c.b16 %v2831, %v2799
        %v3216 = vpack.c.b16 %v2832, %v2800
        %v3217 = vpack.c.b16 %v2833, %v2801
        %v3218 = vpack.c.b16 %v2834, %v2802
        %v3219 = vpack.c.b16 %v2835, %v2803
        %v3220 = vpack.c.b16 %v2836, %v2804
        %v3221 = vpack.c.b16 %v2837, %v2805
        %v3222 = vpack.c.b16 %v2838, %v2806
        %v3223 = vpack.c.b16 %v2839, %v2807
        %v3224 = vpack.c.b16 %v2840, %v2808
        %v3225 = vpack.c.b16 %v2841, %v2809
        %v3226 = vpack.c.b16 %v2842, %v2810
        %v3227 = vpack.c.b16 %v2843, %v2811
        %v3228 = vpack.c.b16 %v2844, %v2812
        %v3229 = vpack.c.b16 %v2877, %v2845
        %v3230 = vpack.c.b16 %v2878, %v2846
        %v3231 = vpack.c.b16 %v2879, %v2847
        %v3232 = vpack.c.b16 %v2880, %v2848
        %v3233 = vpack.c.b16 %v2881, %v2849
        %v3234 = vpack.c.b16 %v2882, %v2850
        %v3235 = vpack.c.b16 %v2883, %v2851
        %v3236 = vpack.c.b16 %v2884, %v2852
        %v3237 = vpack.c.b16 %v2885, %v2853
        %v3238 = vpack.c.b16 %v2886, %v2854
        %v3239 = vpack.c.b16 %v2887, %v2855
        %v3240 = vpack.c.b16 %v2888, %v2856
        %v3241 = vpack.c.b16 %v2889, %v2857
        %v3242 = vpack.c.b16 %v2890, %v2858
        %v3243 = vpack.c.b16 %v2891, %v2859
        %v3244 = vpack.c.b16 %v2892, %v2860
        %v3245 = vpack.c.b16 %v2893, %v2861
        %v3246 = vpack.c.b16 %v2894, %v2862
        %v3247 = vpack.c.b16 %v2895, %v2863
        %v3248 = vpack.c.b16 %v2896, %v2864
        %v3249 = vpack.c.b16 %v2897, %v2865
        %v3250 = vpack.c.b16 %v2898, %v2866
        %v3251 = vpack.c.b16 %v2899, %v2867
        %v3252 = vpack.c.b16 %v2900, %v2868
        %v3253 = vpack.c.b16 %v2901, %v2869
        %v3254 = vpack.c.b16 %v2902, %v2870
        %v3255 = vpack.c.b16 %v2903, %v2871
        %v3256 = vpack.c.b16 %v2904, %v2872
        %v3257 = vpack.c.b16 %v2905, %v2873
        %v3258 = vpack.c.b16 %v2906, %v2874
        %v3259 = vpack.c.b16 %v2907, %v2875
        %v3260 = vpack.c.b16 %v2908, %v2876
        %v3261 = vpack.c.b16 %v2941, %v2909
        %v3262 = vpack.c.b16 %v2942, %v2910
        %v3263 = vpack.c.b16 %v2943, %v2911
        %v3264 = vpack.c.b16 %v2944, %v2912
        %v3265 = vpack.c.b16 %v2945, %v2913
        %v3266 = vpack.c.b16 %v2946, %v2914
        %v3267 = vpack.c.b16 %v2947, %v2915
        %v3268 = vpack.c.b16 %v2948, %v2916
        %v3269 = vpack.c.b16 %v2949, %v2917
        %v3270 = vpack.c.b16 %v2950, %v2918
        %v3271 = vpack.c.b16 %v2951, %v2919
        %v3272 = vpack.c.b16 %v2952, %v2920
        %v3273 = vpack.c.b16 %v2953, %v2921
        %v3274 = vpack.c.b16 %v2954, %v2922
        %v3275 = vpack.c.b16 %v2955, %v2923
        %v3276 = vpack.c.b16 %v2956, %v2924
        %v3277 = vpack.c.b16 %v2957, %v2925
        %v3278 = vpack.c.b16 %v2958, %v2926
        %v3279 = vpack.c.b16 %v2959, %v2927
        %v3280 = vpack.c.b16 %v2960, %v2928
        %v3281 = vpack.c.b16 %v2961, %v2929
        %v3282 = vpack.c.b16 %v2962, %v2930
        %v3283 = vpack.c.b16 %v2963, %v2931
        %v3284 = vpack.c.b16 %v2964, %v2932
        %v3285 = vpack.c.b16 %v2965, %v2933
        %v3286 = vpack.c.b16 %v2966, %v2934
        %v3287 = vpack.c.b16 %v2967, %v2935
        %v3288 = vpack.c.b16 %v2968, %v2936
        %v3289 = vpack.c.b16 %v2969, %v2937
        %v3290 = vpack.c.b16 %v2970, %v2938
        %v3291 = vpack.c.b16 %v2971, %v2939
        %v3292 = vpack.c.b16 %v2972, %v2940
        %v3293 = vpack.c.b16 %v3005, %v2973
        %v3294 = vpack.c.b16 %v3006, %v2974
        %v3295 = vpack.c.b16 %v3007, %v2975
        %v3296 = vpack.c.b16 %v3008, %v2976
        %v3297 = vpack.c.b16 %v3009, %v2977
        %v3298 = vpack.c.b16 %v3010, %v2978
        %v3299 = vpack.c.b16 %v3011, %v2979
        %v3300 = vpack.c.b16 %v3012, %v2980
        %v3301 = vpack.c.b16 %v3013, %v2981
        %v3302 = vpack.c.b16 %v3014, %v2982
        %v3303 = vpack.c.b16 %v3015, %v2983
        %v3304 = vpack.c.b16 %v3016, %v2984
        %v3305 = vpack.c.b16 %v3017, %v2985
        %v3306 = vpack.c.b16 %v3018, %v2986
        %v3307 = vpack.c.b16 %v3019, %v2987
        %v3308 = vpack.c.b16 %v3020, %v2988
        %v3309 = vpack.c.b16 %v3021, %v2989
        %v3310 = vpack.c.b16 %v3022, %v2990
        %v3311 = vpack.c.b16 %v3023, %v2991
        %v3312 = vpack.c.b16 %v3024, %v2992
        %v3313 = vpack.c.b16 %v3025, %v2993
        %v3314 = vpack.c.b16 %v3026, %v2994
        %v3315 = vpack.c.b16 %v3027, %v2995
        %v3316 = vpack.c.b16 %v3028, %v2996
        %v3317 = vpack.c.b16 %v3029, %v2997
        %v3318 = vpack.c.b16 %v3030, %v2998
        %v3319 = vpack.c.b16 %v3031, %v2999
        %v3320 = vpack.c.b16 %v3032, %v3000
        %v3321 = vpack.c.b16 %v3033, %v3001
        %v3322 = vpack.c.b16 %v3034, %v3002
        %v3323 = vpack.c.b16 %v3035, %v3003
        %v3324 = vpack.c.b16 %v3036, %v3004
        %v3325 = vpack.c.b16 %v3069, %v3037
        %v3326 = vpack.c.b16 %v3070, %v3038
        %v3327 = vpack.c.b16 %v3071, %v3039
        %v3328 = vpack.c.b16 %v3072, %v3040
        %v3329 = vpack.c.b16 %v3073, %v3041
        %v3330 = vpack.c.b16 %v3074, %v3042
        %v3331 = vpack.c.b16 %v3075, %v3043
        %v3332 = vpack.c.b16 %v3076, %v3044
        %v3333 = vpack.c.b16 %v3077, %v3045
        %v3334 = vpack.c.b16 %v3078, %v3046
        %v3335 = vpack.c.b16 %v3079, %v3047
        %v3336 = vpack.c.b16 %v3080, %v3048
        %v3337 = vpack.c.b16 %v3081, %v3049
        %v3338 = vpack.c.b16 %v3082, %v3050
        %v3339 = vpack.c.b16 %v3083, %v3051
        %v3340 = vpack.c.b16 %v3084, %v3052
        %v3341 = vpack.c.b16 %v3085, %v3053
        %v3342 = vpack.c.b16 %v3086, %v3054
        %v3343 = vpack.c.b16 %v3087, %v3055
        %v3344 = vpack.c.b16 %v3088, %v3056
        %v3345 = vpack.c.b16 %v3089, %v3057
        %v3346 = vpack.c.b16 %v3090, %v3058
        %v3347 = vpack.c.b16 %v3091, %v3059
        %v3348 = vpack.c.b16 %v3092, %v3060
        %v3349 = vpack.c.b16 %v3093, %v3061
        %v3350 = vpack.c.b16 %v3094, %v3062
        %v3351 = vpack.c.b16 %v3095, %v3063
        %v3352 = vpack.c.b16 %v3096, %v3064
        %v3353 = vpack.c.b16 %v3097, %v3065
        %v3354 = vpack.c.b16 %v3098, %v3066
        %v3355 = vpack.c.b16 %v3099, %v3067
        %v3356 = vpack.c.b16 %v3100, %v3068
        %v3357 = vpack.c.b16 %v3133, %v3101
        %v3358 = vpack.c.b16 %v3134, %v3102
        %v3359 = vpack.c.b16 %v3135, %v3103
        %v3360 = vpack.c.b16 %v3136, %v3104
        %v3361 = vpack.c.b16 %v3137, %v3105
        %v3362 = vpack.c.b16 %v3138, %v3106
        %v3363 = vpack.c.b16 %v3139, %v3107
        %v3364 = vpack.c.b16 %v3140, %v3108
        %v3365 = vpack.c.b16 %v3141, %v3109
        %v3366 = vpack.c.b16 %v3142, %v3110
        %v3367 = vpack.c.b16 %v3143, %v3111
        %v3368 = vpack.c.b16 %v3144, %v3112
        %v3369 = vpack.c.b16 %v3145, %v3113
        %v3370 = vpack.c.b16 %v3146, %v3114
        %v3371 = vpack.c.b16 %v3147, %v3115
        %v3372 = vpack.c.b16 %v3148, %v3116
        %v3373 = vpack.c.b16 %v3149, %v3117
        %v3374 = vpack.c.b16 %v3150, %v3118
        %v3375 = vpack.c.b16 %v3151, %v3119
        %v3376 = vpack.c.b16 %v3152, %v3120
        %v3377 = vpack.c.b16 %v3153, %v3121
        %v3378 = vpack.c.b16 %v3154, %v3122
        %v3379 = vpack.c.b16 %v3155, %v3123
        %v3380 = vpack.c.b16 %v3156, %v3124
        %v3381 = vpack.c.b16 %v3157, %v3125
        %v3382 = vpack.c.b16 %v3158, %v3126
        %v3383 = vpack.c.b16 %v3159, %v3127
        %v3384 = vpack.c.b16 %v3160, %v3128
        %v3385 = vpack.c.b16 %v3161, %v3129
        %v3386 = vpack.c.b16 %v3162, %v3130
        %v3387 = vpack.c.b16 %v3163, %v3131
        %v3388 = vpack.c.b16 %v3164, %v3132
        %v3389 = vpack.c.b16 %v3165, %v3165
        %v3390 = vpack.c.b16 %v3166, %v3166
        %v3391 = vpack.c.b16 %v3167, %v3167
        %v3392 = vpack.c.b16 %v3168, %v3168
        %v3393 = vpack.c.b16 %v3169, %v3169
        %v3394 = vpack.c.b16 %v3170, %v3170
        %v3395 = vpack.c.b16 %v3171, %v3171
        %v3396 = vpack.c.b16 %v3172, %v3172
        %v3397 = vpack.c.b16 %v3173, %v3173
        %v3398 = vpack.c.b16 %v3174, %v3174
        %v3399 = vpack.c.b16 %v3175, %v3175
        %v3400 = vpack.c.b16 %v3176, %v3176
        %v3401 = vpack.c.b16 %v3177, %v3177
        %v3402 = vpack.c.b16 %v3178, %v3178
        %v3403 = vpack.c.b16 %v3179, %v3179
        %v3404 = vpack.c.b16 %v3180, %v3180
        %v3405 = vpack.c.b16 %v3181, %v3181
        %v3406 = vpack.c.b16 %v3182, %v3182
        %v3407 = vpack.c.b16 %v3183, %v3183
        %v3408 = vpack.c.b16 %v3184, %v3184
        %v3409 = vpack.c.b16 %v3185, %v3185
        %v3410 = vpack.c.b16 %v3186, %v3186
        %v3411 = vpack.c.b16 %v3187, %v3187
        %v3412 = vpack.c.b16 %v3188, %v3188
        %v3413 = vpack.c.b16 %v3189, %v3189
        %v3414 = vpack.c.b16 %v3190, %v3190
        %v3415 = vpack.c.b16 %v3191, %v3191
        %v3416 = vpack.c.b16 %v3192, %v3192
        %v3417 = vpack.c.b16 %v3193, %v3193
        %v3418 = vpack.c.b16 %v3194, %v3194
        %v3419 = vpack.c.b16 %v3195, %v3195
        %v3420 = vpack.c.b16 %v3196, %v3196
        %v3613 = vsel %vm1784, %v729, 0
        %v3616 = vsel %vm1788, %v3389, 0
        %v3619 = vsel %vm1788, %v3390, 0
        %v3622 = vsel %vm1788, %v3391, 0
        %v3625 = vsel %vm1788, %v3392, 0
        %v3628 = vsel %vm1788, %v3393, 0
        %v3631 = vsel %vm1788, %v3394, 0
        %v3634 = vsel %vm1788, %v3395, 0
        %v3637 = vsel %vm1788, %v3396, 0
        %v3640 = vsel %vm1788, %v3397, 0
        %v3643 = vsel %vm1788, %v3398, 0
        %v3646 = vsel %vm1788, %v3399, 0
        %v3649 = vsel %vm1788, %v3400, 0
        %v3652 = vsel %vm1788, %v3401, 0
        %v3655 = vsel %vm1788, %v3402, 0
        %v3658 = vsel %vm1788, %v3403, 0
        %v3661 = vsel %vm1788, %v3404, 0
        %v3664 = vsel %vm1788, %v3405, 0
        %v3667 = vsel %vm1788, %v3406, 0
        %v3670 = vsel %vm1788, %v3407, 0
        %v3673 = vsel %vm1788, %v3408, 0
        %v3676 = vsel %vm1788, %v3409, 0
        %v3679 = vsel %vm1788, %v3410, 0
        %v3682 = vsel %vm1788, %v3411, 0
        %v3685 = vsel %vm1788, %v3412, 0
        %v3688 = vsel %vm1788, %v3413, 0
        %v3691 = vsel %vm1788, %v3414, 0
        %v3694 = vsel %vm1788, %v3415, 0
        %v3697 = vsel %vm1788, %v3416, 0
        %v3700 = vsel %vm1788, %v3417, 0
        %v3703 = vsel %vm1788, %v3418, 0
        %v3706 = vsel %vm1788, %v3419, 0
        %v3709 = vsel %vm1788, %v3420, 0
        %3711 = vmatprep.subr.bf16.mxu0 0
        %3712 = vmatpush1.bf16.msra.mxu0 0
        %3713 = vmatprep.subr.bf16.mxu0 %v3619
        %3714 = vmatpush1.bf16.msra.mxu0 %v3616
        %3715 = vmatprep.subr.bf16.mxu0 %v3358
        %3716 = vmatpush1.bf16.msra.mxu0 %v3357
        %3717 = vmatprep.subr.bf16.mxu0 %v3326
        %3718 = vmatpush1.bf16.msra.mxu0 %v3325
        %3719 = vmatprep.subr.bf16.mxu0 %v3294
        %3720 = vmatpush1.bf16.msra.mxu0 %v3293
        %3721 = vmatprep.subr.bf16.mxu0 %v3262
        %3722 = vmatpush1.bf16.msra.mxu0 %v3261
        %3723 = vmatprep.subr.bf16.mxu0 %v3230
        %3724 = vmatpush1.bf16.msra.mxu0 %v3229
        %3725 = vmatprep.subr.bf16.mxu0 %v3198
        %3726 = vmatpush1.bf16.msra.mxu0 %v3197
        %3727 = vmatprep.subr.bf16.mxu0 0
        %3728 = vmatpush2.bf16.msra.mxu0 0
        %3729 = vmatprep.subr.bf16.mxu0 0
        %3730 = vmatpush2.bf16.msra.mxu0 0
        %3731 = vmatprep.subr.bf16.mxu0 0
        %3732 = vmatpush2.bf16.msra.mxu0 0
        %3733 = vmatprep.subr.bf16.mxu0 0
        %3734 = vmatpush2.bf16.msra.mxu0 0
        %3735 = vmatprep.subr.bf16.mxu0 0
        %3736 = vmatpush2.bf16.msra.mxu0 0
        %3737 = vmatprep.subr.bf16.mxu0 0
        %3738 = vmatpush2.bf16.msra.mxu0 0
        %3739 = vmatprep.subr.bf16.mxu0 0
        %3740 = vmatpush2.bf16.msra.mxu0 0
        %3741 = vmatprep.subr.bf16.mxu0 0
        %3742 = vmatpush2.bf16.msra.mxu0 0
        %3743 = vmatprep.mubr.bf16.mxu0 0
        %3744 = vmatmul.mubr.bf16.gmra.mxu0 %v3613
        %v3745 = vpop.f32.mrf.mxu0
        %v3746 = vadd.f32 %v1920, %v3745
        %v3747 = vpop.f32.mrf.mxu0
        %v3748 = vadd.f32 %v1922, %v3747
        %v3749 = vpop.f32.mrf.mxu0
        %v3750 = vadd.f32 %v1924, %v3749
        %v3751 = vpop.f32.mrf.mxu0
        %v3752 = vadd.f32 %v1926, %v3751
        %3753 = vdwg.mxu0
        %3754 = vmatprep.subr.bf16.mxu0 0
        %3755 = vmatpush1.bf16.msra.mxu0 0
        %3756 = vmatprep.subr.bf16.mxu0 %v3625
        %3757 = vmatpush1.bf16.msra.mxu0 %v3622
        %3758 = vmatprep.subr.bf16.mxu0 %v3360
        %3759 = vmatpush1.bf16.msra.mxu0 %v3359
        %3760 = vmatprep.subr.bf16.mxu0 %v3328
        %3761 = vmatpush1.bf16.msra.mxu0 %v3327
        %3762 = vmatprep.subr.bf16.mxu0 %v3296
        %3763 = vmatpush1.bf16.msra.mxu0 %v3295
        %3764 = vmatprep.subr.bf16.mxu0 %v3264
        %3765 = vmatpush1.bf16.msra.mxu0 %v3263
        %3766 = vmatprep.subr.bf16.mxu0 %v3232
        %3767 = vmatpush1.bf16.msra.mxu0 %v3231
        %3768 = vmatprep.subr.bf16.mxu0 %v3200
        %3769 = vmatpush1.bf16.msra.mxu0 %v3199
        %3770 = vmatprep.subr.bf16.mxu0 0
        %3771 = vmatpush2.bf16.msra.mxu0 0
        %3772 = vmatprep.subr.bf16.mxu0 0
        %3773 = vmatpush2.bf16.msra.mxu0 0
        %3774 = vmatprep.subr.bf16.mxu0 0
        %3775 = vmatpush2.bf16.msra.mxu0 0
        %3776 = vmatprep.subr.bf16.mxu0 0
        %3777 = vmatpush2.bf16.msra.mxu0 0
        %3778 = vmatprep.subr.bf16.mxu0 0
        %3779 = vmatpush2.bf16.msra.mxu0 0
        %3780 = vmatprep.subr.bf16.mxu0 0
        %3781 = vmatpush2.bf16.msra.mxu0 0
        %3782 = vmatprep.subr.bf16.mxu0 0
        %3783 = vmatpush2.bf16.msra.mxu0 0
        %3784 = vmatprep.subr.bf16.mxu0 0
        %3785 = vmatpush2.bf16.msra.mxu0 0
        %3786 = vmatprep.mubr.bf16.mxu0 0
        %3787 = vmatmul.mubr.bf16.gmra.mxu0 %v3613
        %v3788 = vpop.f32.mrf.mxu0
        %v3789 = vadd.f32 %v1963, %v3788
        %v3790 = vpop.f32.mrf.mxu0
        %v3791 = vadd.f32 %v1965, %v3790
        %v3792 = vpop.f32.mrf.mxu0
        %v3793 = vadd.f32 %v1967, %v3792
        %v3794 = vpop.f32.mrf.mxu0
        %v3795 = vadd.f32 %v1969, %v3794
        %3796 = vdwg.mxu0
        %3797 = vmatprep.subr.bf16.mxu0 0
        %3798 = vmatpush1.bf16.msra.mxu0 0
        %3799 = vmatprep.subr.bf16.mxu0 %v3631
        %3800 = vmatpush1.bf16.msra.mxu0 %v3628
        %3801 = vmatprep.subr.bf16.mxu0 %v3362
        %3802 = vmatpush1.bf16.msra.mxu0 %v3361
        %3803 = vmatprep.subr.bf16.mxu0 %v3330
        %3804 = vmatpush1.bf16.msra.mxu0 %v3329
        %3805 = vmatprep.subr.bf16.mxu0 %v3298
        %3806 = vmatpush1.bf16.msra.mxu0 %v3297
        %3807 = vmatprep.subr.bf16.mxu0 %v3266
        %3808 = vmatpush1.bf16.msra.mxu0 %v3265
        %3809 = vmatprep.subr.bf16.mxu0 %v3234
        %3810 = vmatpush1.bf16.msra.mxu0 %v3233
        %3811 = vmatprep.subr.bf16.mxu0 %v3202
        %3812 = vmatpush1.bf16.msra.mxu0 %v3201
        %3813 = vmatprep.subr.bf16.mxu0 0
        %3814 = vmatpush2.bf16.msra.mxu0 0
        %3815 = vmatprep.subr.bf16.mxu0 0
        %3816 = vmatpush2.bf16.msra.mxu0 0
        %3817 = vmatprep.subr.bf16.mxu0 0
        %3818 = vmatpush2.bf16.msra.mxu0 0
        %3819 = vmatprep.subr.bf16.mxu0 0
        %3820 = vmatpush2.bf16.msra.mxu0 0
        %3821 = vmatprep.subr.bf16.mxu0 0
        %3822 = vmatpush2.bf16.msra.mxu0 0
        %3823 = vmatprep.subr.bf16.mxu0 0
        %3824 = vmatpush2.bf16.msra.mxu0 0
        %3825 = vmatprep.subr.bf16.mxu0 0
        %3826 = vmatpush2.bf16.msra.mxu0 0
        %3827 = vmatprep.subr.bf16.mxu0 0
        %3828 = vmatpush2.bf16.msra.mxu0 0
        %3829 = vmatprep.mubr.bf16.mxu0 0
        %3830 = vmatmul.mubr.bf16.gmra.mxu0 %v3613
        %v3831 = vpop.f32.mrf.mxu0
        %v3832 = vadd.f32 %v2006, %v3831
        %v3833 = vpop.f32.mrf.mxu0
        %v3834 = vadd.f32 %v2008, %v3833
        %v3835 = vpop.f32.mrf.mxu0
        %v3836 = vadd.f32 %v2010, %v3835
        %v3837 = vpop.f32.mrf.mxu0
        %v3838 = vadd.f32 %v2012, %v3837
        %3839 = vdwg.mxu0
        %3840 = vmatprep.subr.bf16.mxu0 0
        %3841 = vmatpush1.bf16.msra.mxu0 0
        %3842 = vmatprep.subr.bf16.mxu0 %v3637
        %3843 = vmatpush1.bf16.msra.mxu0 %v3634
        %3844 = vmatprep.subr.bf16.mxu0 %v3364
        %3845 = vmatpush1.bf16.msra.mxu0 %v3363
        %3846 = vmatprep.subr.bf16.mxu0 %v3332
        %3847 = vmatpush1.bf16.msra.mxu0 %v3331
        %3848 = vmatprep.subr.bf16.mxu0 %v3300
        %3849 = vmatpush1.bf16.msra.mxu0 %v3299
        %3850 = vmatprep.subr.bf16.mxu0 %v3268
        %3851 = vmatpush1.bf16.msra.mxu0 %v3267
        %3852 = vmatprep.subr.bf16.mxu0 %v3236
        %3853 = vmatpush1.bf16.msra.mxu0 %v3235
        %3854 = vmatprep.subr.bf16.mxu0 %v3204
        %3855 = vmatpush1.bf16.msra.mxu0 %v3203
        %3856 = vmatprep.subr.bf16.mxu0 0
        %3857 = vmatpush2.bf16.msra.mxu0 0
        %3858 = vmatprep.subr.bf16.mxu0 0
        %3859 = vmatpush2.bf16.msra.mxu0 0
        %3860 = vmatprep.subr.bf16.mxu0 0
        %3861 = vmatpush2.bf16.msra.mxu0 0
        %3862 = vmatprep.subr.bf16.mxu0 0
        %3863 = vmatpush2.bf16.msra.mxu0 0
        %3864 = vmatprep.subr.bf16.mxu0 0
        %3865 = vmatpush2.bf16.msra.mxu0 0
        %3866 = vmatprep.subr.bf16.mxu0 0
        %3867 = vmatpush2.bf16.msra.mxu0 0
        %3868 = vmatprep.subr.bf16.mxu0 0
        %3869 = vmatpush2.bf16.msra.mxu0 0
        %3870 = vmatprep.subr.bf16.mxu0 0
        %3871 = vmatpush2.bf16.msra.mxu0 0
        %3872 = vmatprep.mubr.bf16.mxu0 0
        %3873 = vmatmul.mubr.bf16.gmra.mxu0 %v3613
        %v3874 = vpop.f32.mrf.mxu0
        %v3875 = vadd.f32 %v2049, %v3874
        %v3876 = vpop.f32.mrf.mxu0
        %v3877 = vadd.f32 %v2051, %v3876
        %v3878 = vpop.f32.mrf.mxu0
        %v3879 = vadd.f32 %v2053, %v3878
        %v3880 = vpop.f32.mrf.mxu0
        %v3881 = vadd.f32 %v2055, %v3880
        %3882 = vdwg.mxu0
        %3883 = vmatprep.subr.bf16.mxu0 0
        %3884 = vmatpush1.bf16.msra.mxu0 0
        %3885 = vmatprep.subr.bf16.mxu0 %v3643
        %3886 = vmatpush1.bf16.msra.mxu0 %v3640
        %3887 = vmatprep.subr.bf16.mxu0 %v3366
        %3888 = vmatpush1.bf16.msra.mxu0 %v3365
        %3889 = vmatprep.subr.bf16.mxu0 %v3334
        %3890 = vmatpush1.bf16.msra.mxu0 %v3333
        %3891 = vmatprep.subr.bf16.mxu0 %v3302
        %3892 = vmatpush1.bf16.msra.mxu0 %v3301
        %3893 = vmatprep.subr.bf16.mxu0 %v3270
        %3894 = vmatpush1.bf16.msra.mxu0 %v3269
        %3895 = vmatprep.subr.bf16.mxu0 %v3238
        %3896 = vmatpush1.bf16.msra.mxu0 %v3237
        %3897 = vmatprep.subr.bf16.mxu0 %v3206
        %3898 = vmatpush1.bf16.msra.mxu0 %v3205
        %3899 = vmatprep.subr.bf16.mxu0 0
        %3900 = vmatpush2.bf16.msra.mxu0 0
        %3901 = vmatprep.subr.bf16.mxu0 0
        %3902 = vmatpush2.bf16.msra.mxu0 0
        %3903 = vmatprep.subr.bf16.mxu0 0
        %3904 = vmatpush2.bf16.msra.mxu0 0
        %3905 = vmatprep.subr.bf16.mxu0 0
        %3906 = vmatpush2.bf16.msra.mxu0 0
        %3907 = vmatprep.subr.bf16.mxu0 0
        %3908 = vmatpush2.bf16.msra.mxu0 0
        %3909 = vmatprep.subr.bf16.mxu0 0
        %3910 = vmatpush2.bf16.msra.mxu0 0
        %3911 = vmatprep.subr.bf16.mxu0 0
        %3912 = vmatpush2.bf16.msra.mxu0 0
        %3913 = vmatprep.subr.bf16.mxu0 0
        %3914 = vmatpush2.bf16.msra.mxu0 0
        %3915 = vmatprep.mubr.bf16.mxu0 0
        %3916 = vmatmul.mubr.bf16.gmra.mxu0 %v3613
        %v3917 = vpop.f32.mrf.mxu0
        %v3918 = vadd.f32 %v2092, %v3917
        %v3919 = vpop.f32.mrf.mxu0
        %v3920 = vadd.f32 %v2094, %v3919
        %v3921 = vpop.f32.mrf.mxu0
        %v3922 = vadd.f32 %v2096, %v3921
        %v3923 = vpop.f32.mrf.mxu0
        %v3924 = vadd.f32 %v2098, %v3923
        %3925 = vdwg.mxu0
        %3926 = vmatprep.subr.bf16.mxu0 0
        %3927 = vmatpush1.bf16.msra.mxu0 0
        %3928 = vmatprep.subr.bf16.mxu0 %v3649
        %3929 = vmatpush1.bf16.msra.mxu0 %v3646
        %3930 = vmatprep.subr.bf16.mxu0 %v3368
        %3931 = vmatpush1.bf16.msra.mxu0 %v3367
        %3932 = vmatprep.subr.bf16.mxu0 %v3336
        %3933 = vmatpush1.bf16.msra.mxu0 %v3335
        %3934 = vmatprep.subr.bf16.mxu0 %v3304
        %3935 = vmatpush1.bf16.msra.mxu0 %v3303
        %3936 = vmatprep.subr.bf16.mxu0 %v3272
        %3937 = vmatpush1.bf16.msra.mxu0 %v3271
        %3938 = vmatprep.subr.bf16.mxu0 %v3240
        %3939 = vmatpush1.bf16.msra.mxu0 %v3239
        %3940 = vmatprep.subr.bf16.mxu0 %v3208
        %3941 = vmatpush1.bf16.msra.mxu0 %v3207
        %3942 = vmatprep.subr.bf16.mxu0 0
        %3943 = vmatpush2.bf16.msra.mxu0 0
        %3944 = vmatprep.subr.bf16.mxu0 0
        %3945 = vmatpush2.bf16.msra.mxu0 0
        %3946 = vmatprep.subr.bf16.mxu0 0
        %3947 = vmatpush2.bf16.msra.mxu0 0
        %3948 = vmatprep.subr.bf16.mxu0 0
        %3949 = vmatpush2.bf16.msra.mxu0 0
        %3950 = vmatprep.subr.bf16.mxu0 0
        %3951 = vmatpush2.bf16.msra.mxu0 0
        %3952 = vmatprep.subr.bf16.mxu0 0
        %3953 = vmatpush2.bf16.msra.mxu0 0
        %3954 = vmatprep.subr.bf16.mxu0 0
        %3955 = vmatpush2.bf16.msra.mxu0 0
        %3956 = vmatprep.subr.bf16.mxu0 0
        %3957 = vmatpush2.bf16.msra.mxu0 0
        %3958 = vmatprep.mubr.bf16.mxu0 0
        %3959 = vmatmul.mubr.bf16.gmra.mxu0 %v3613
        %v3960 = vpop.f32.mrf.mxu0
        %v3961 = vadd.f32 %v2135, %v3960
        %v3962 = vpop.f32.mrf.mxu0
        %v3963 = vadd.f32 %v2137, %v3962
        %v3964 = vpop.f32.mrf.mxu0
        %v3965 = vadd.f32 %v2139, %v3964
        %v3966 = vpop.f32.mrf.mxu0
        %v3967 = vadd.f32 %v2141, %v3966
        %3968 = vdwg.mxu0
        %3969 = vmatprep.subr.bf16.mxu0 0
        %3970 = vmatpush1.bf16.msra.mxu0 0
        %3971 = vmatprep.subr.bf16.mxu0 %v3655
        %3972 = vmatpush1.bf16.msra.mxu0 %v3652
        %3973 = vmatprep.subr.bf16.mxu0 %v3370
        %3974 = vmatpush1.bf16.msra.mxu0 %v3369
        %3975 = vmatprep.subr.bf16.mxu0 %v3338
        %3976 = vmatpush1.bf16.msra.mxu0 %v3337
        %3977 = vmatprep.subr.bf16.mxu0 %v3306
        %3978 = vmatpush1.bf16.msra.mxu0 %v3305
        %3979 = vmatprep.subr.bf16.mxu0 %v3274
        %3980 = vmatpush1.bf16.msra.mxu0 %v3273
        %3981 = vmatprep.subr.bf16.mxu0 %v3242
        %3982 = vmatpush1.bf16.msra.mxu0 %v3241
        %3983 = vmatprep.subr.bf16.mxu0 %v3210
        %3984 = vmatpush1.bf16.msra.mxu0 %v3209
        %3985 = vmatprep.subr.bf16.mxu0 0
        %3986 = vmatpush2.bf16.msra.mxu0 0
        %3987 = vmatprep.subr.bf16.mxu0 0
        %3988 = vmatpush2.bf16.msra.mxu0 0
        %3989 = vmatprep.subr.bf16.mxu0 0
        %3990 = vmatpush2.bf16.msra.mxu0 0
        %3991 = vmatprep.subr.bf16.mxu0 0
        %3992 = vmatpush2.bf16.msra.mxu0 0
        %3993 = vmatprep.subr.bf16.mxu0 0
        %3994 = vmatpush2.bf16.msra.mxu0 0
        %3995 = vmatprep.subr.bf16.mxu0 0
        %3996 = vmatpush2.bf16.msra.mxu0 0
        %3997 = vmatprep.subr.bf16.mxu0 0
        %3998 = vmatpush2.bf16.msra.mxu0 0
        %3999 = vmatprep.subr.bf16.mxu0 0
        %4000 = vmatpush2.bf16.msra.mxu0 0
        %4001 = vmatprep.mubr.bf16.mxu0 0
        %4002 = vmatmul.mubr.bf16.gmra.mxu0 %v3613
        %v4003 = vpop.f32.mrf.mxu0
        %v4004 = vadd.f32 %v2178, %v4003
        %v4005 = vpop.f32.mrf.mxu0
        %v4006 = vadd.f32 %v2180, %v4005
        %v4007 = vpop.f32.mrf.mxu0
        %v4008 = vadd.f32 %v2182, %v4007
        %v4009 = vpop.f32.mrf.mxu0
        %v4010 = vadd.f32 %v2184, %v4009
        %4011 = vdwg.mxu0
        %4012 = vmatprep.subr.bf16.mxu0 0
        %4013 = vmatpush1.bf16.msra.mxu0 0
        %4014 = vmatprep.subr.bf16.mxu0 %v3661
        %4015 = vmatpush1.bf16.msra.mxu0 %v3658
        %4016 = vmatprep.subr.bf16.mxu0 %v3372
        %4017 = vmatpush1.bf16.msra.mxu0 %v3371
        %4018 = vmatprep.subr.bf16.mxu0 %v3340
        %4019 = vmatpush1.bf16.msra.mxu0 %v3339
        %4020 = vmatprep.subr.bf16.mxu0 %v3308
        %4021 = vmatpush1.bf16.msra.mxu0 %v3307
        %4022 = vmatprep.subr.bf16.mxu0 %v3276
        %4023 = vmatpush1.bf16.msra.mxu0 %v3275
        %4024 = vmatprep.subr.bf16.mxu0 %v3244
        %4025 = vmatpush1.bf16.msra.mxu0 %v3243
        %4026 = vmatprep.subr.bf16.mxu0 %v3212
        %4027 = vmatpush1.bf16.msra.mxu0 %v3211
        %4028 = vmatprep.subr.bf16.mxu0 0
        %4029 = vmatpush2.bf16.msra.mxu0 0
        %4030 = vmatprep.subr.bf16.mxu0 0
        %4031 = vmatpush2.bf16.msra.mxu0 0
        %4032 = vmatprep.subr.bf16.mxu0 0
        %4033 = vmatpush2.bf16.msra.mxu0 0
        %4034 = vmatprep.subr.bf16.mxu0 0
        %4035 = vmatpush2.bf16.msra.mxu0 0
        %4036 = vmatprep.subr.bf16.mxu0 0
        %4037 = vmatpush2.bf16.msra.mxu0 0
        %4038 = vmatprep.subr.bf16.mxu0 0
        %4039 = vmatpush2.bf16.msra.mxu0 0
        %4040 = vmatprep.subr.bf16.mxu0 0
        %4041 = vmatpush2.bf16.msra.mxu0 0
        %4042 = vmatprep.subr.bf16.mxu0 0
        %4043 = vmatpush2.bf16.msra.mxu0 0
        %4044 = vmatprep.mubr.bf16.mxu0 0
        %4045 = vmatmul.mubr.bf16.gmra.mxu0 %v3613
        %v4046 = vpop.f32.mrf.mxu0
        %v4047 = vadd.f32 %v2221, %v4046
        %v4048 = vpop.f32.mrf.mxu0
        %v4049 = vadd.f32 %v2223, %v4048
        %v4050 = vpop.f32.mrf.mxu0
        %v4051 = vadd.f32 %v2225, %v4050
        %v4052 = vpop.f32.mrf.mxu0
        %v4053 = vadd.f32 %v2227, %v4052
        %4054 = vdwg.mxu0
        %4055 = vmatprep.subr.bf16.mxu0 0
        %4056 = vmatpush1.bf16.msra.mxu0 0
        %4057 = vmatprep.subr.bf16.mxu0 %v3667
        %4058 = vmatpush1.bf16.msra.mxu0 %v3664
        %4059 = vmatprep.subr.bf16.mxu0 %v3374
        %4060 = vmatpush1.bf16.msra.mxu0 %v3373
        %4061 = vmatprep.subr.bf16.mxu0 %v3342
        %4062 = vmatpush1.bf16.msra.mxu0 %v3341
        %4063 = vmatprep.subr.bf16.mxu0 %v3310
        %4064 = vmatpush1.bf16.msra.mxu0 %v3309
        %4065 = vmatprep.subr.bf16.mxu0 %v3278
        %4066 = vmatpush1.bf16.msra.mxu0 %v3277
        %4067 = vmatprep.subr.bf16.mxu0 %v3246
        %4068 = vmatpush1.bf16.msra.mxu0 %v3245
        %4069 = vmatprep.subr.bf16.mxu0 %v3214
        %4070 = vmatpush1.bf16.msra.mxu0 %v3213
        %4071 = vmatprep.subr.bf16.mxu0 0
        %4072 = vmatpush2.bf16.msra.mxu0 0
        %4073 = vmatprep.subr.bf16.mxu0 0
        %4074 = vmatpush2.bf16.msra.mxu0 0
        %4075 = vmatprep.subr.bf16.mxu0 0
        %4076 = vmatpush2.bf16.msra.mxu0 0
        %4077 = vmatprep.subr.bf16.mxu0 0
        %4078 = vmatpush2.bf16.msra.mxu0 0
        %4079 = vmatprep.subr.bf16.mxu0 0
        %4080 = vmatpush2.bf16.msra.mxu0 0
        %4081 = vmatprep.subr.bf16.mxu0 0
        %4082 = vmatpush2.bf16.msra.mxu0 0
        %4083 = vmatprep.subr.bf16.mxu0 0
        %4084 = vmatpush2.bf16.msra.mxu0 0
        %4085 = vmatprep.subr.bf16.mxu0 0
        %4086 = vmatpush2.bf16.msra.mxu0 0
        %4087 = vmatprep.mubr.bf16.mxu0 0
        %4088 = vmatmul.mubr.bf16.gmra.mxu0 %v3613
        %v4089 = vpop.f32.mrf.mxu0
        %v4090 = vadd.f32 %v2264, %v4089
        %v4091 = vpop.f32.mrf.mxu0
        %v4092 = vadd.f32 %v2266, %v4091
        %v4093 = vpop.f32.mrf.mxu0
        %v4094 = vadd.f32 %v2268, %v4093
        %v4095 = vpop.f32.mrf.mxu0
        %v4096 = vadd.f32 %v2270, %v4095
        %4097 = vdwg.mxu0
        %4098 = vmatprep.subr.bf16.mxu0 0
        %4099 = vmatpush1.bf16.msra.mxu0 0
        %4100 = vmatprep.subr.bf16.mxu0 %v3673
        %4101 = vmatpush1.bf16.msra.mxu0 %v3670
        %4102 = vmatprep.subr.bf16.mxu0 %v3376
        %4103 = vmatpush1.bf16.msra.mxu0 %v3375
        %4104 = vmatprep.subr.bf16.mxu0 %v3344
        %4105 = vmatpush1.bf16.msra.mxu0 %v3343
        %4106 = vmatprep.subr.bf16.mxu0 %v3312
        %4107 = vmatpush1.bf16.msra.mxu0 %v3311
        %4108 = vmatprep.subr.bf16.mxu0 %v3280
        %4109 = vmatpush1.bf16.msra.mxu0 %v3279
        %4110 = vmatprep.subr.bf16.mxu0 %v3248
        %4111 = vmatpush1.bf16.msra.mxu0 %v3247
        %4112 = vmatprep.subr.bf16.mxu0 %v3216
        %4113 = vmatpush1.bf16.msra.mxu0 %v3215
        %4114 = vmatprep.subr.bf16.mxu0 0
        %4115 = vmatpush2.bf16.msra.mxu0 0
        %4116 = vmatprep.subr.bf16.mxu0 0
        %4117 = vmatpush2.bf16.msra.mxu0 0
        %4118 = vmatprep.subr.bf16.mxu0 0
        %4119 = vmatpush2.bf16.msra.mxu0 0
        %4120 = vmatprep.subr.bf16.mxu0 0
        %4121 = vmatpush2.bf16.msra.mxu0 0
        %4122 = vmatprep.subr.bf16.mxu0 0
        %4123 = vmatpush2.bf16.msra.mxu0 0
        %4124 = vmatprep.subr.bf16.mxu0 0
        %4125 = vmatpush2.bf16.msra.mxu0 0
        %4126 = vmatprep.subr.bf16.mxu0 0
        %4127 = vmatpush2.bf16.msra.mxu0 0
        %4128 = vmatprep.subr.bf16.mxu0 0
        %4129 = vmatpush2.bf16.msra.mxu0 0
        %4130 = vmatprep.mubr.bf16.mxu0 0
        %4131 = vmatmul.mubr.bf16.gmra.mxu0 %v3613
        %v4132 = vpop.f32.mrf.mxu0
        %v4133 = vadd.f32 %v2307, %v4132
        %v4134 = vpop.f32.mrf.mxu0
        %v4135 = vadd.f32 %v2309, %v4134
        %v4136 = vpop.f32.mrf.mxu0
        %v4137 = vadd.f32 %v2311, %v4136
        %v4138 = vpop.f32.mrf.mxu0
        %v4139 = vadd.f32 %v2313, %v4138
        %4140 = vdwg.mxu0
        %4141 = vmatprep.subr.bf16.mxu0 0
        %4142 = vmatpush1.bf16.msra.mxu0 0
        %4143 = vmatprep.subr.bf16.mxu0 %v3679
        %4144 = vmatpush1.bf16.msra.mxu0 %v3676
        %4145 = vmatprep.subr.bf16.mxu0 %v3378
        %4146 = vmatpush1.bf16.msra.mxu0 %v3377
        %4147 = vmatprep.subr.bf16.mxu0 %v3346
        %4148 = vmatpush1.bf16.msra.mxu0 %v3345
        %4149 = vmatprep.subr.bf16.mxu0 %v3314
        %4150 = vmatpush1.bf16.msra.mxu0 %v3313
        %4151 = vmatprep.subr.bf16.mxu0 %v3282
        %4152 = vmatpush1.bf16.msra.mxu0 %v3281
        %4153 = vmatprep.subr.bf16.mxu0 %v3250
        %4154 = vmatpush1.bf16.msra.mxu0 %v3249
        %4155 = vmatprep.subr.bf16.mxu0 %v3218
        %4156 = vmatpush1.bf16.msra.mxu0 %v3217
        %4157 = vmatprep.subr.bf16.mxu0 0
        %4158 = vmatpush2.bf16.msra.mxu0 0
        %4159 = vmatprep.subr.bf16.mxu0 0
        %4160 = vmatpush2.bf16.msra.mxu0 0
        %4161 = vmatprep.subr.bf16.mxu0 0
        %4162 = vmatpush2.bf16.msra.mxu0 0
        %4163 = vmatprep.subr.bf16.mxu0 0
        %4164 = vmatpush2.bf16.msra.mxu0 0
        %4165 = vmatprep.subr.bf16.mxu0 0
        %4166 = vmatpush2.bf16.msra.mxu0 0
        %4167 = vmatprep.subr.bf16.mxu0 0
        %4168 = vmatpush2.bf16.msra.mxu0 0
        %4169 = vmatprep.subr.bf16.mxu0 0
        %4170 = vmatpush2.bf16.msra.mxu0 0
        %4171 = vmatprep.subr.bf16.mxu0 0
        %4172 = vmatpush2.bf16.msra.mxu0 0
        %4173 = vmatprep.mubr.bf16.mxu0 0
        %4174 = vmatmul.mubr.bf16.gmra.mxu0 %v3613
        %v4175 = vpop.f32.mrf.mxu0
        %v4176 = vadd.f32 %v2350, %v4175
        %v4177 = vpop.f32.mrf.mxu0
        %v4178 = vadd.f32 %v2352, %v4177
        %v4179 = vpop.f32.mrf.mxu0
        %v4180 = vadd.f32 %v2354, %v4179
        %v4181 = vpop.f32.mrf.mxu0
        %v4182 = vadd.f32 %v2356, %v4181
        %4183 = vdwg.mxu0
        %4184 = vmatprep.subr.bf16.mxu0 0
        %4185 = vmatpush1.bf16.msra.mxu0 0
        %4186 = vmatprep.subr.bf16.mxu0 %v3685
        %4187 = vmatpush1.bf16.msra.mxu0 %v3682
        %4188 = vmatprep.subr.bf16.mxu0 %v3380
        %4189 = vmatpush1.bf16.msra.mxu0 %v3379
        %4190 = vmatprep.subr.bf16.mxu0 %v3348
        %4191 = vmatpush1.bf16.msra.mxu0 %v3347
        %4192 = vmatprep.subr.bf16.mxu0 %v3316
        %4193 = vmatpush1.bf16.msra.mxu0 %v3315
        %4194 = vmatprep.subr.bf16.mxu0 %v3284
        %4195 = vmatpush1.bf16.msra.mxu0 %v3283
        %4196 = vmatprep.subr.bf16.mxu0 %v3252
        %4197 = vmatpush1.bf16.msra.mxu0 %v3251
        %4198 = vmatprep.subr.bf16.mxu0 %v3220
        %4199 = vmatpush1.bf16.msra.mxu0 %v3219
        %4200 = vmatprep.subr.bf16.mxu0 0
        %4201 = vmatpush2.bf16.msra.mxu0 0
        %4202 = vmatprep.subr.bf16.mxu0 0
        %4203 = vmatpush2.bf16.msra.mxu0 0
        %4204 = vmatprep.subr.bf16.mxu0 0
        %4205 = vmatpush2.bf16.msra.mxu0 0
        %4206 = vmatprep.subr.bf16.mxu0 0
        %4207 = vmatpush2.bf16.msra.mxu0 0
        %4208 = vmatprep.subr.bf16.mxu0 0
        %4209 = vmatpush2.bf16.msra.mxu0 0
        %4210 = vmatprep.subr.bf16.mxu0 0
        %4211 = vmatpush2.bf16.msra.mxu0 0
        %4212 = vmatprep.subr.bf16.mxu0 0
        %4213 = vmatpush2.bf16.msra.mxu0 0
        %4214 = vmatprep.subr.bf16.mxu0 0
        %4215 = vmatpush2.bf16.msra.mxu0 0
        %4216 = vmatprep.mubr.bf16.mxu0 0
        %4217 = vmatmul.mubr.bf16.gmra.mxu0 %v3613
        %v4218 = vpop.f32.mrf.mxu0
        %v4219 = vadd.f32 %v2393, %v4218
        %v4220 = vpop.f32.mrf.mxu0
        %v4221 = vadd.f32 %v2395, %v4220
        %v4222 = vpop.f32.mrf.mxu0
        %v4223 = vadd.f32 %v2397, %v4222
        %v4224 = vpop.f32.mrf.mxu0
        %v4225 = vadd.f32 %v2399, %v4224
        %4226 = vdwg.mxu0
        %4227 = vmatprep.subr.bf16.mxu0 0
        %4228 = vmatpush1.bf16.msra.mxu0 0
        %4229 = vmatprep.subr.bf16.mxu0 %v3691
        %4230 = vmatpush1.bf16.msra.mxu0 %v3688
        %4231 = vmatprep.subr.bf16.mxu0 %v3382
        %4232 = vmatpush1.bf16.msra.mxu0 %v3381
        %4233 = vmatprep.subr.bf16.mxu0 %v3350
        %4234 = vmatpush1.bf16.msra.mxu0 %v3349
        %4235 = vmatprep.subr.bf16.mxu0 %v3318
        %4236 = vmatpush1.bf16.msra.mxu0 %v3317
        %4237 = vmatprep.subr.bf16.mxu0 %v3286
        %4238 = vmatpush1.bf16.msra.mxu0 %v3285
        %4239 = vmatprep.subr.bf16.mxu0 %v3254
        %4240 = vmatpush1.bf16.msra.mxu0 %v3253
        %4241 = vmatprep.subr.bf16.mxu0 %v3222
        %4242 = vmatpush1.bf16.msra.mxu0 %v3221
        %4243 = vmatprep.subr.bf16.mxu0 0
        %4244 = vmatpush2.bf16.msra.mxu0 0
        %4245 = vmatprep.subr.bf16.mxu0 0
        %4246 = vmatpush2.bf16.msra.mxu0 0
        %4247 = vmatprep.subr.bf16.mxu0 0
        %4248 = vmatpush2.bf16.msra.mxu0 0
        %4249 = vmatprep.subr.bf16.mxu0 0
        %4250 = vmatpush2.bf16.msra.mxu0 0
        %4251 = vmatprep.subr.bf16.mxu0 0
        %4252 = vmatpush2.bf16.msra.mxu0 0
        %4253 = vmatprep.subr.bf16.mxu0 0
        %4254 = vmatpush2.bf16.msra.mxu0 0
        %4255 = vmatprep.subr.bf16.mxu0 0
        %4256 = vmatpush2.bf16.msra.mxu0 0
        %4257 = vmatprep.subr.bf16.mxu0 0
        %4258 = vmatpush2.bf16.msra.mxu0 0
        %4259 = vmatprep.mubr.bf16.mxu0 0
        %4260 = vmatmul.mubr.bf16.gmra.mxu0 %v3613
        %v4261 = vpop.f32.mrf.mxu0
        %v4262 = vadd.f32 %v2436, %v4261
        %v4263 = vpop.f32.mrf.mxu0
        %v4264 = vadd.f32 %v2438, %v4263
        %v4265 = vpop.f32.mrf.mxu0
        %v4266 = vadd.f32 %v2440, %v4265
        %v4267 = vpop.f32.mrf.mxu0
        %v4268 = vadd.f32 %v2442, %v4267
        %4269 = vdwg.mxu0
        %4270 = vmatprep.subr.bf16.mxu0 0
        %4271 = vmatpush1.bf16.msra.mxu0 0
        %4272 = vmatprep.subr.bf16.mxu0 %v3697
        %4273 = vmatpush1.bf16.msra.mxu0 %v3694
        %4274 = vmatprep.subr.bf16.mxu0 %v3384
        %4275 = vmatpush1.bf16.msra.mxu0 %v3383
        %4276 = vmatprep.subr.bf16.mxu0 %v3352
        %4277 = vmatpush1.bf16.msra.mxu0 %v3351
        %4278 = vmatprep.subr.bf16.mxu0 %v3320
        %4279 = vmatpush1.bf16.msra.mxu0 %v3319
        %4280 = vmatprep.subr.bf16.mxu0 %v3288
        %4281 = vmatpush1.bf16.msra.mxu0 %v3287
        %4282 = vmatprep.subr.bf16.mxu0 %v3256
        %4283 = vmatpush1.bf16.msra.mxu0 %v3255
        %4284 = vmatprep.subr.bf16.mxu0 %v3224
        %4285 = vmatpush1.bf16.msra.mxu0 %v3223
        %4286 = vmatprep.subr.bf16.mxu0 0
        %4287 = vmatpush2.bf16.msra.mxu0 0
        %4288 = vmatprep.subr.bf16.mxu0 0
        %4289 = vmatpush2.bf16.msra.mxu0 0
        %4290 = vmatprep.subr.bf16.mxu0 0
        %4291 = vmatpush2.bf16.msra.mxu0 0
        %4292 = vmatprep.subr.bf16.mxu0 0
        %4293 = vmatpush2.bf16.msra.mxu0 0
        %4294 = vmatprep.subr.bf16.mxu0 0
        %4295 = vmatpush2.bf16.msra.mxu0 0
        %4296 = vmatprep.subr.bf16.mxu0 0
        %4297 = vmatpush2.bf16.msra.mxu0 0
        %4298 = vmatprep.subr.bf16.mxu0 0
        %4299 = vmatpush2.bf16.msra.mxu0 0
        %4300 = vmatprep.subr.bf16.mxu0 0
        %4301 = vmatpush2.bf16.msra.mxu0 0
        %4302 = vmatprep.mubr.bf16.mxu0 0
        %4303 = vmatmul.mubr.bf16.gmra.mxu0 %v3613
        %v4304 = vpop.f32.mrf.mxu0
        %v4305 = vadd.f32 %v2479, %v4304
        %v4306 = vpop.f32.mrf.mxu0
        %v4307 = vadd.f32 %v2481, %v4306
        %v4308 = vpop.f32.mrf.mxu0
        %v4309 = vadd.f32 %v2483, %v4308
        %v4310 = vpop.f32.mrf.mxu0
        %v4311 = vadd.f32 %v2485, %v4310
        %4312 = vdwg.mxu0
        %4313 = vmatprep.subr.bf16.mxu0 0
        %4314 = vmatpush1.bf16.msra.mxu0 0
        %4315 = vmatprep.subr.bf16.mxu0 %v3703
        %4316 = vmatpush1.bf16.msra.mxu0 %v3700
        %4317 = vmatprep.subr.bf16.mxu0 %v3386
        %4318 = vmatpush1.bf16.msra.mxu0 %v3385
        %4319 = vmatprep.subr.bf16.mxu0 %v3354
        %4320 = vmatpush1.bf16.msra.mxu0 %v3353
        %4321 = vmatprep.subr.bf16.mxu0 %v3322
        %4322 = vmatpush1.bf16.msra.mxu0 %v3321
        %4323 = vmatprep.subr.bf16.mxu0 %v3290
        %4324 = vmatpush1.bf16.msra.mxu0 %v3289
        %4325 = vmatprep.subr.bf16.mxu0 %v3258
        %4326 = vmatpush1.bf16.msra.mxu0 %v3257
        %4327 = vmatprep.subr.bf16.mxu0 %v3226
        %4328 = vmatpush1.bf16.msra.mxu0 %v3225
        %4329 = vmatprep.subr.bf16.mxu0 0
        %4330 = vmatpush2.bf16.msra.mxu0 0
        %4331 = vmatprep.subr.bf16.mxu0 0
        %4332 = vmatpush2.bf16.msra.mxu0 0
        %4333 = vmatprep.subr.bf16.mxu0 0
        %4334 = vmatpush2.bf16.msra.mxu0 0
        %4335 = vmatprep.subr.bf16.mxu0 0
        %4336 = vmatpush2.bf16.msra.mxu0 0
        %4337 = vmatprep.subr.bf16.mxu0 0
        %4338 = vmatpush2.bf16.msra.mxu0 0
        %4339 = vmatprep.subr.bf16.mxu0 0
        %4340 = vmatpush2.bf16.msra.mxu0 0
        %4341 = vmatprep.subr.bf16.mxu0 0
        %4342 = vmatpush2.bf16.msra.mxu0 0
        %4343 = vmatprep.subr.bf16.mxu0 0
        %4344 = vmatpush2.bf16.msra.mxu0 0
        %4345 = vmatprep.mubr.bf16.mxu0 0
        %4346 = vmatmul.mubr.bf16.gmra.mxu0 %v3613
        %v4347 = vpop.f32.mrf.mxu0
        %v4348 = vadd.f32 %v2522, %v4347
        %v4349 = vpop.f32.mrf.mxu0
        %v4350 = vadd.f32 %v2524, %v4349
        %v4351 = vpop.f32.mrf.mxu0
        %v4352 = vadd.f32 %v2526, %v4351
        %v4353 = vpop.f32.mrf.mxu0
        %v4354 = vadd.f32 %v2528, %v4353
        %4355 = vdwg.mxu0
        %4356 = vmatprep.subr.bf16.mxu0 0
        %4357 = vmatpush1.bf16.msra.mxu0 0
        %4358 = vmatprep.subr.bf16.mxu0 %v3709
        %4359 = vmatpush1.bf16.msra.mxu0 %v3706
        %4360 = vmatprep.subr.bf16.mxu0 %v3388
        %4361 = vmatpush1.bf16.msra.mxu0 %v3387
        %4362 = vmatprep.subr.bf16.mxu0 %v3356
        %4363 = vmatpush1.bf16.msra.mxu0 %v3355
        %4364 = vmatprep.subr.bf16.mxu0 %v3324
        %4365 = vmatpush1.bf16.msra.mxu0 %v3323
        %4366 = vmatprep.subr.bf16.mxu0 %v3292
        %4367 = vmatpush1.bf16.msra.mxu0 %v3291
        %4368 = vmatprep.subr.bf16.mxu0 %v3260
        %4369 = vmatpush1.bf16.msra.mxu0 %v3259
        %4370 = vmatprep.subr.bf16.mxu0 %v3228
        %4371 = vmatpush1.bf16.msra.mxu0 %v3227
        %4372 = vmatprep.subr.bf16.mxu0 0
        %4373 = vmatpush2.bf16.msra.mxu0 0
        %4374 = vmatprep.subr.bf16.mxu0 0
        %4375 = vmatpush2.bf16.msra.mxu0 0
        %4376 = vmatprep.subr.bf16.mxu0 0
        %4377 = vmatpush2.bf16.msra.mxu0 0
        %4378 = vmatprep.subr.bf16.mxu0 0
        %4379 = vmatpush2.bf16.msra.mxu0 0
        %4380 = vmatprep.subr.bf16.mxu0 0
        %4381 = vmatpush2.bf16.msra.mxu0 0
        %4382 = vmatprep.subr.bf16.mxu0 0
        %4383 = vmatpush2.bf16.msra.mxu0 0
        %4384 = vmatprep.subr.bf16.mxu0 0
        %4385 = vmatpush2.bf16.msra.mxu0 0
        %4386 = vmatprep.subr.bf16.mxu0 0
        %4387 = vmatpush2.bf16.msra.mxu0 0
        %4388 = vmatprep.mubr.bf16.mxu0 0
        %4389 = vmatmul.mubr.bf16.gmra.mxu0 %v3613
        %v4390 = vpop.f32.mrf.mxu0
        %v4391 = vadd.f32 %v2565, %v4390
        %v4392 = vpop.f32.mrf.mxu0
        %v4393 = vadd.f32 %v2567, %v4392
        %v4394 = vpop.f32.mrf.mxu0
        %v4395 = vadd.f32 %v2569, %v4394
        %v4396 = vpop.f32.mrf.mxu0
        %v4397 = vadd.f32 %v2571, %v4396
        %4398 = vdwg.mxu0
        %s4399 = scalar_lea.vmem [#allocation3], 3328
        %v4400 = vld [vmem:[%s4399] sm:$0xff]
        %v4401 = vld [vmem:[%s4399 + $0x8] sm:$0xff]
        %v4402 = vld [vmem:[%s4399 + $0x10] sm:$0xff]
        %v4403 = vld [vmem:[%s4399 + $0x18] sm:$0xff]
        %v4404 = vld [vmem:[%s4399 + $0x20] sm:$0xff]
        %v4405 = vld [vmem:[%s4399 + $0x28] sm:$0xff]
        %v4406 = vld [vmem:[%s4399 + $0x30] sm:$0xff]
        %v4407 = vld [vmem:[%s4399 + $0x38] sm:$0xff]
        %v4408 = vld [vmem:[%s4399 + $0x40] sm:$0xff]
        %v4409 = vld [vmem:[%s4399 + $0x48] sm:$0xff]
        %v4410 = vld [vmem:[%s4399 + $0x50] sm:$0xff]
        %v4411 = vld [vmem:[%s4399 + $0x58] sm:$0xff]
        %v4412 = vld [vmem:[%s4399 + $0x60] sm:$0xff]
        %v4413 = vld [vmem:[%s4399 + $0x68] sm:$0xff]
        %v4414 = vld [vmem:[%s4399 + $0x70] sm:$0xff]
        %v4415 = vld [vmem:[%s4399 + $0x78] sm:$0xff]
        %v4416 = vld [vmem:[%s4399 + $0x80] sm:$0xff]
        %v4417 = vld [vmem:[%s4399 + $0x88] sm:$0xff]
        %v4418 = vld [vmem:[%s4399 + $0x90] sm:$0xff]
        %v4419 = vld [vmem:[%s4399 + $0x98] sm:$0xff]
        %v4420 = vld [vmem:[%s4399 + $0xa0] sm:$0xff]
        %v4421 = vld [vmem:[%s4399 + $0xa8] sm:$0xff]
        %v4422 = vld [vmem:[%s4399 + $0xb0] sm:$0xff]
        %v4423 = vld [vmem:[%s4399 + $0xb8] sm:$0xff]
        %v4424 = vld [vmem:[%s4399 + $0xc0] sm:$0xff]
        %v4425 = vld [vmem:[%s4399 + $0xc8] sm:$0xff]
        %v4426 = vld [vmem:[%s4399 + $0xd0] sm:$0xff]
        %v4427 = vld [vmem:[%s4399 + $0xd8] sm:$0xff]
        %v4428 = vld [vmem:[%s4399 + $0xe0] sm:$0xff]
        %v4429 = vld [vmem:[%s4399 + $0xe8] sm:$0xff]
        %v4430 = vld [vmem:[%s4399 + $0xf0] sm:$0xff]
        %v4431 = vld [vmem:[%s4399 + $0xf8] sm:$0xff]
        %v4432 = vld [vmem:[%s4399 + $0x100] sm:$0xff]
        %v4433 = vld [vmem:[%s4399 + $0x108] sm:$0xff]
        %v4434 = vld [vmem:[%s4399 + $0x110] sm:$0xff]
        %v4435 = vld [vmem:[%s4399 + $0x118] sm:$0xff]
        %v4436 = vld [vmem:[%s4399 + $0x120] sm:$0xff]
        %v4437 = vld [vmem:[%s4399 + $0x128] sm:$0xff]
        %v4438 = vld [vmem:[%s4399 + $0x130] sm:$0xff]
        %v4439 = vld [vmem:[%s4399 + $0x138] sm:$0xff]
        %v4440 = vld [vmem:[%s4399 + $0x140] sm:$0xff]
        %v4441 = vld [vmem:[%s4399 + $0x148] sm:$0xff]
        %v4442 = vld [vmem:[%s4399 + $0x150] sm:$0xff]
        %v4443 = vld [vmem:[%s4399 + $0x158] sm:$0xff]
        %v4444 = vld [vmem:[%s4399 + $0x160] sm:$0xff]
        %v4445 = vld [vmem:[%s4399 + $0x168] sm:$0xff]
        %v4446 = vld [vmem:[%s4399 + $0x170] sm:$0xff]
        %v4447 = vld [vmem:[%s4399 + $0x178] sm:$0xff]
        %v4448 = vld [vmem:[%s4399 + $0x180] sm:$0xff]
        %v4449 = vld [vmem:[%s4399 + $0x188] sm:$0xff]
        %v4450 = vld [vmem:[%s4399 + $0x190] sm:$0xff]
        %v4451 = vld [vmem:[%s4399 + $0x198] sm:$0xff]
        %v4452 = vld [vmem:[%s4399 + $0x1a0] sm:$0xff]
        %v4453 = vld [vmem:[%s4399 + $0x1a8] sm:$0xff]
        %v4454 = vld [vmem:[%s4399 + $0x1b0] sm:$0xff]
        %v4455 = vld [vmem:[%s4399 + $0x1b8] sm:$0xff]
        %v4456 = vld [vmem:[%s4399 + $0x1c0] sm:$0xff]
        %v4457 = vld [vmem:[%s4399 + $0x1c8] sm:$0xff]
        %v4458 = vld [vmem:[%s4399 + $0x1d0] sm:$0xff]
        %v4459 = vld [vmem:[%s4399 + $0x1d8] sm:$0xff]
        %v4460 = vld [vmem:[%s4399 + $0x1e0] sm:$0xff]
        %v4461 = vld [vmem:[%s4399 + $0x1e8] sm:$0xff]
        %v4462 = vld [vmem:[%s4399 + $0x1f0] sm:$0xff]
        %v4463 = vld [vmem:[%s4399 + $0x1f8] sm:$0xff]
        %v4464 = vld [vmem:[%s4399 + $0x200] sm:$0xff]
        %v4465 = vld [vmem:[%s4399 + $0x208] sm:$0xff]
        %v4466 = vld [vmem:[%s4399 + $0x210] sm:$0xff]
        %v4467 = vld [vmem:[%s4399 + $0x218] sm:$0xff]
        %v4468 = vld [vmem:[%s4399 + $0x220] sm:$0xff]
        %v4469 = vld [vmem:[%s4399 + $0x228] sm:$0xff]
        %v4470 = vld [vmem:[%s4399 + $0x230] sm:$0xff]
        %v4471 = vld [vmem:[%s4399 + $0x238] sm:$0xff]
        %v4472 = vld [vmem:[%s4399 + $0x240] sm:$0xff]
        %v4473 = vld [vmem:[%s4399 + $0x248] sm:$0xff]
        %v4474 = vld [vmem:[%s4399 + $0x250] sm:$0xff]
        %v4475 = vld [vmem:[%s4399 + $0x258] sm:$0xff]
        %v4476 = vld [vmem:[%s4399 + $0x260] sm:$0xff]
        %v4477 = vld [vmem:[%s4399 + $0x268] sm:$0xff]
        %v4478 = vld [vmem:[%s4399 + $0x270] sm:$0xff]
        %v4479 = vld [vmem:[%s4399 + $0x278] sm:$0xff]
        %v4480 = vld [vmem:[%s4399 + $0x280] sm:$0xff]
        %v4481 = vld [vmem:[%s4399 + $0x288] sm:$0xff]
        %v4482 = vld [vmem:[%s4399 + $0x290] sm:$0xff]
        %v4483 = vld [vmem:[%s4399 + $0x298] sm:$0xff]
        %v4484 = vld [vmem:[%s4399 + $0x2a0] sm:$0xff]
        %v4485 = vld [vmem:[%s4399 + $0x2a8] sm:$0xff]
        %v4486 = vld [vmem:[%s4399 + $0x2b0] sm:$0xff]
        %v4487 = vld [vmem:[%s4399 + $0x2b8] sm:$0xff]
        %v4488 = vld [vmem:[%s4399 + $0x2c0] sm:$0xff]
        %v4489 = vld [vmem:[%s4399 + $0x2c8] sm:$0xff]
        %v4490 = vld [vmem:[%s4399 + $0x2d0] sm:$0xff]
        %v4491 = vld [vmem:[%s4399 + $0x2d8] sm:$0xff]
        %v4492 = vld [vmem:[%s4399 + $0x2e0] sm:$0xff]
        %v4493 = vld [vmem:[%s4399 + $0x2e8] sm:$0xff]
        %v4494 = vld [vmem:[%s4399 + $0x2f0] sm:$0xff]
        %v4495 = vld [vmem:[%s4399 + $0x2f8] sm:$0xff]
        %v4496 = vld [vmem:[%s4399 + $0x300] sm:$0xff]
        %v4497 = vld [vmem:[%s4399 + $0x308] sm:$0xff]
        %v4498 = vld [vmem:[%s4399 + $0x310] sm:$0xff]
        %v4499 = vld [vmem:[%s4399 + $0x318] sm:$0xff]
        %v4500 = vld [vmem:[%s4399 + $0x320] sm:$0xff]
        %v4501 = vld [vmem:[%s4399 + $0x328] sm:$0xff]
        %v4502 = vld [vmem:[%s4399 + $0x330] sm:$0xff]
        %v4503 = vld [vmem:[%s4399 + $0x338] sm:$0xff]
        %v4504 = vld [vmem:[%s4399 + $0x340] sm:$0xff]
        %v4505 = vld [vmem:[%s4399 + $0x348] sm:$0xff]
        %v4506 = vld [vmem:[%s4399 + $0x350] sm:$0xff]
        %v4507 = vld [vmem:[%s4399 + $0x358] sm:$0xff]
        %v4508 = vld [vmem:[%s4399 + $0x360] sm:$0xff]
        %v4509 = vld [vmem:[%s4399 + $0x368] sm:$0xff]
        %v4510 = vld [vmem:[%s4399 + $0x370] sm:$0xff]
        %v4511 = vld [vmem:[%s4399 + $0x378] sm:$0xff]
        %v4512 = vld [vmem:[%s4399 + $0x380] sm:$0xff]
        %v4513 = vld [vmem:[%s4399 + $0x388] sm:$0xff]
        %v4514 = vld [vmem:[%s4399 + $0x390] sm:$0xff]
        %v4515 = vld [vmem:[%s4399 + $0x398] sm:$0xff]
        %v4516 = vld [vmem:[%s4399 + $0x3a0] sm:$0xff]
        %v4517 = vld [vmem:[%s4399 + $0x3a8] sm:$0xff]
        %v4518 = vld [vmem:[%s4399 + $0x3b0] sm:$0xff]
        %v4519 = vld [vmem:[%s4399 + $0x3b8] sm:$0xff]
        %v4520 = vld [vmem:[%s4399 + $0x3c0] sm:$0xff]
        %v4521 = vld [vmem:[%s4399 + $0x3c8] sm:$0xff]
        %v4522 = vld [vmem:[%s4399 + $0x3d0] sm:$0xff]
        %v4523 = vld [vmem:[%s4399 + $0x3d8] sm:$0xff]
        %v4524 = vld [vmem:[%s4399 + $0x3e0] sm:$0xff]
        %v4525 = vld [vmem:[%s4399 + $0x3e8] sm:$0xff]
        %v4526 = vld [vmem:[%s4399 + $0x3f0] sm:$0xff]
        %v4527 = vld [vmem:[%s4399 + $0x3f8] sm:$0xff]
        %v4528 = vld [vmem:[%s4399 + $0x400] sm:$0xff]
        %v4529 = vld [vmem:[%s4399 + $0x408] sm:$0xff]
        %v4530 = vld [vmem:[%s4399 + $0x410] sm:$0xff]
        %v4531 = vld [vmem:[%s4399 + $0x418] sm:$0xff]
        %v4532 = vld [vmem:[%s4399 + $0x420] sm:$0xff]
        %v4533 = vld [vmem:[%s4399 + $0x428] sm:$0xff]
        %v4534 = vld [vmem:[%s4399 + $0x430] sm:$0xff]
        %v4535 = vld [vmem:[%s4399 + $0x438] sm:$0xff]
        %v4536 = vld [vmem:[%s4399 + $0x440] sm:$0xff]
        %v4537 = vld [vmem:[%s4399 + $0x448] sm:$0xff]
        %v4538 = vld [vmem:[%s4399 + $0x450] sm:$0xff]
        %v4539 = vld [vmem:[%s4399 + $0x458] sm:$0xff]
        %v4540 = vld [vmem:[%s4399 + $0x460] sm:$0xff]
        %v4541 = vld [vmem:[%s4399 + $0x468] sm:$0xff]
        %v4542 = vld [vmem:[%s4399 + $0x470] sm:$0xff]
        %v4543 = vld [vmem:[%s4399 + $0x478] sm:$0xff]
        %v4544 = vld [vmem:[%s4399 + $0x480] sm:$0xff]
        %v4545 = vld [vmem:[%s4399 + $0x488] sm:$0xff]
        %v4546 = vld [vmem:[%s4399 + $0x490] sm:$0xff]
        %v4547 = vld [vmem:[%s4399 + $0x498] sm:$0xff]
        %v4548 = vld [vmem:[%s4399 + $0x4a0] sm:$0xff]
        %v4549 = vld [vmem:[%s4399 + $0x4a8] sm:$0xff]
        %v4550 = vld [vmem:[%s4399 + $0x4b0] sm:$0xff]
        %v4551 = vld [vmem:[%s4399 + $0x4b8] sm:$0xff]
        %v4552 = vld [vmem:[%s4399 + $0x4c0] sm:$0xff]
        %v4553 = vld [vmem:[%s4399 + $0x4c8] sm:$0xff]
        %v4554 = vld [vmem:[%s4399 + $0x4d0] sm:$0xff]
        %v4555 = vld [vmem:[%s4399 + $0x4d8] sm:$0xff]
        %v4556 = vld [vmem:[%s4399 + $0x4e0] sm:$0xff]
        %v4557 = vld [vmem:[%s4399 + $0x4e8] sm:$0xff]
        %v4558 = vld [vmem:[%s4399 + $0x4f0] sm:$0xff]
        %v4559 = vld [vmem:[%s4399 + $0x4f8] sm:$0xff]
        %v4560 = vld [vmem:[%s4399 + $0x500] sm:$0xff]
        %v4561 = vld [vmem:[%s4399 + $0x508] sm:$0xff]
        %v4562 = vld [vmem:[%s4399 + $0x510] sm:$0xff]
        %v4563 = vld [vmem:[%s4399 + $0x518] sm:$0xff]
        %v4564 = vld [vmem:[%s4399 + $0x520] sm:$0xff]
        %v4565 = vld [vmem:[%s4399 + $0x528] sm:$0xff]
        %v4566 = vld [vmem:[%s4399 + $0x530] sm:$0xff]
        %v4567 = vld [vmem:[%s4399 + $0x538] sm:$0xff]
        %v4568 = vld [vmem:[%s4399 + $0x540] sm:$0xff]
        %v4569 = vld [vmem:[%s4399 + $0x548] sm:$0xff]
        %v4570 = vld [vmem:[%s4399 + $0x550] sm:$0xff]
        %v4571 = vld [vmem:[%s4399 + $0x558] sm:$0xff]
        %v4572 = vld [vmem:[%s4399 + $0x560] sm:$0xff]
        %v4573 = vld [vmem:[%s4399 + $0x568] sm:$0xff]
        %v4574 = vld [vmem:[%s4399 + $0x570] sm:$0xff]
        %v4575 = vld [vmem:[%s4399 + $0x578] sm:$0xff]
        %v4576 = vld [vmem:[%s4399 + $0x580] sm:$0xff]
        %v4577 = vld [vmem:[%s4399 + $0x588] sm:$0xff]
        %v4578 = vld [vmem:[%s4399 + $0x590] sm:$0xff]
        %v4579 = vld [vmem:[%s4399 + $0x598] sm:$0xff]
        %v4580 = vld [vmem:[%s4399 + $0x5a0] sm:$0xff]
        %v4581 = vld [vmem:[%s4399 + $0x5a8] sm:$0xff]
        %v4582 = vld [vmem:[%s4399 + $0x5b0] sm:$0xff]
        %v4583 = vld [vmem:[%s4399 + $0x5b8] sm:$0xff]
        %v4584 = vld [vmem:[%s4399 + $0x5c0] sm:$0xff]
        %v4585 = vld [vmem:[%s4399 + $0x5c8] sm:$0xff]
        %v4586 = vld [vmem:[%s4399 + $0x5d0] sm:$0xff]
        %v4587 = vld [vmem:[%s4399 + $0x5d8] sm:$0xff]
        %v4588 = vld [vmem:[%s4399 + $0x5e0] sm:$0xff]
        %v4589 = vld [vmem:[%s4399 + $0x5e8] sm:$0xff]
        %v4590 = vld [vmem:[%s4399 + $0x5f0] sm:$0xff]
        %v4591 = vld [vmem:[%s4399 + $0x5f8] sm:$0xff]
        %v4592 = vld [vmem:[%s4399 + $0x600] sm:$0x77]
        %v4593 = vld [vmem:[%s4399 + $0x608] sm:$0x77]
        %v4594 = vld [vmem:[%s4399 + $0x610] sm:$0x77]
        %v4595 = vld [vmem:[%s4399 + $0x618] sm:$0x77]
        %v4596 = vld [vmem:[%s4399 + $0x620] sm:$0x77]
        %v4597 = vld [vmem:[%s4399 + $0x628] sm:$0x77]
        %v4598 = vld [vmem:[%s4399 + $0x630] sm:$0x77]
        %v4599 = vld [vmem:[%s4399 + $0x638] sm:$0x77]
        %v4600 = vld [vmem:[%s4399 + $0x640] sm:$0x77]
        %v4601 = vld [vmem:[%s4399 + $0x648] sm:$0x77]
        %v4602 = vld [vmem:[%s4399 + $0x650] sm:$0x77]
        %v4603 = vld [vmem:[%s4399 + $0x658] sm:$0x77]
        %v4604 = vld [vmem:[%s4399 + $0x660] sm:$0x77]
        %v4605 = vld [vmem:[%s4399 + $0x668] sm:$0x77]
        %v4606 = vld [vmem:[%s4399 + $0x670] sm:$0x77]
        %v4607 = vld [vmem:[%s4399 + $0x678] sm:$0x77]
        %vm4608 = vcmask 1046528
        %v4609 = vrot.slane %v729, 1
        %v4610 = vrot.slane %v730, 1
        %v4611 = vsel %vm4608, %v4609, %v4610
        %v4820 = vunpack.c.l.b16 %v4400
        %v4821 = vunpack.c.h.b16 %v4400
        %v4822 = vunpack.c.l.b16 %v4401
        %v4823 = vunpack.c.h.b16 %v4401
        %v4824 = vunpack.c.l.b16 %v4402
        %v4825 = vunpack.c.h.b16 %v4402
        %v4826 = vunpack.c.l.b16 %v4403
        %v4827 = vunpack.c.h.b16 %v4403
        %v4828 = vunpack.c.l.b16 %v4404
        %v4829 = vunpack.c.h.b16 %v4404
        %v4830 = vunpack.c.l.b16 %v4405
        %v4831 = vunpack.c.h.b16 %v4405
        %v4832 = vunpack.c.l.b16 %v4406
        %v4833 = vunpack.c.h.b16 %v4406
        %v4834 = vunpack.c.l.b16 %v4407
        %v4835 = vunpack.c.h.b16 %v4407
        %v4836 = vunpack.c.l.b16 %v4408
        %v4837 = vunpack.c.h.b16 %v4408
        %v4838 = vunpack.c.l.b16 %v4409
        %v4839 = vunpack.c.h.b16 %v4409
        %v4840 = vunpack.c.l.b16 %v4410
        %v4841 = vunpack.c.h.b16 %v4410
        %v4842 = vunpack.c.l.b16 %v4411
        %v4843 = vunpack.c.h.b16 %v4411
        %v4844 = vunpack.c.l.b16 %v4412
        %v4845 = vunpack.c.h.b16 %v4412
        %v4846 = vunpack.c.l.b16 %v4413
        %v4847 = vunpack.c.h.b16 %v4413
        %v4848 = vunpack.c.l.b16 %v4414
        %v4849 = vunpack.c.h.b16 %v4414
        %v4850 = vunpack.c.l.b16 %v4415
        %v4851 = vunpack.c.h.b16 %v4415
        %v4852 = vunpack.c.l.b16 %v4416
        %v4853 = vunpack.c.h.b16 %v4416
        %v4854 = vunpack.c.l.b16 %v4417
        %v4855 = vunpack.c.h.b16 %v4417
        %v4856 = vunpack.c.l.b16 %v4418
        %v4857 = vunpack.c.h.b16 %v4418
        %v4858 = vunpack.c.l.b16 %v4419
        %v4859 = vunpack.c.h.b16 %v4419
        %v4860 = vunpack.c.l.b16 %v4420
        %v4861 = vunpack.c.h.b16 %v4420
        %v4862 = vunpack.c.l.b16 %v4421
        %v4863 = vunpack.c.h.b16 %v4421
        %v4864 = vunpack.c.l.b16 %v4422
        %v4865 = vunpack.c.h.b16 %v4422
        %v4866 = vunpack.c.l.b16 %v4423
        %v4867 = vunpack.c.h.b16 %v4423
        %v4868 = vunpack.c.l.b16 %v4424
        %v4869 = vunpack.c.h.b16 %v4424
        %v4870 = vunpack.c.l.b16 %v4425
        %v4871 = vunpack.c.h.b16 %v4425
        %v4872 = vunpack.c.l.b16 %v4426
        %v4873 = vunpack.c.h.b16 %v4426
        %v4874 = vunpack.c.l.b16 %v4427
        %v4875 = vunpack.c.h.b16 %v4427
        %v4876 = vunpack.c.l.b16 %v4428
        %v4877 = vunpack.c.h.b16 %v4428
        %v4878 = vunpack.c.l.b16 %v4429
        %v4879 = vunpack.c.h.b16 %v4429
        %v4880 = vunpack.c.l.b16 %v4430
        %v4881 = vunpack.c.h.b16 %v4430
        %v4882 = vunpack.c.l.b16 %v4431
        %v4883 = vunpack.c.h.b16 %v4431
        %v4884 = vunpack.c.l.b16 %v4432
        %v4885 = vunpack.c.h.b16 %v4432
        %v4886 = vunpack.c.l.b16 %v4433
        %v4887 = vunpack.c.h.b16 %v4433
        %v4888 = vunpack.c.l.b16 %v4434
        %v4889 = vunpack.c.h.b16 %v4434
        %v4890 = vunpack.c.l.b16 %v4435
        %v4891 = vunpack.c.h.b16 %v4435
        %v4892 = vunpack.c.l.b16 %v4436
        %v4893 = vunpack.c.h.b16 %v4436
        %v4894 = vunpack.c.l.b16 %v4437
        %v4895 = vunpack.c.h.b16 %v4437
        %v4896 = vunpack.c.l.b16 %v4438
        %v4897 = vunpack.c.h.b16 %v4438
        %v4898 = vunpack.c.l.b16 %v4439
        %v4899 = vunpack.c.h.b16 %v4439
        %v4900 = vunpack.c.l.b16 %v4440
        %v4901 = vunpack.c.h.b16 %v4440
        %v4902 = vunpack.c.l.b16 %v4441
        %v4903 = vunpack.c.h.b16 %v4441
        %v4904 = vunpack.c.l.b16 %v4442
        %v4905 = vunpack.c.h.b16 %v4442
        %v4906 = vunpack.c.l.b16 %v4443
        %v4907 = vunpack.c.h.b16 %v4443
        %v4908 = vunpack.c.l.b16 %v4444
        %v4909 = vunpack.c.h.b16 %v4444
        %v4910 = vunpack.c.l.b16 %v4445
        %v4911 = vunpack.c.h.b16 %v4445
        %v4912 = vunpack.c.l.b16 %v4446
        %v4913 = vunpack.c.h.b16 %v4446
        %v4914 = vunpack.c.l.b16 %v4447
        %v4915 = vunpack.c.h.b16 %v4447
        %v4916 = vunpack.c.l.b16 %v4448
        %v4917 = vunpack.c.h.b16 %v4448
        %v4918 = vunpack.c.l.b16 %v4449
        %v4919 = vunpack.c.h.b16 %v4449
        %v4920 = vunpack.c.l.b16 %v4450
        %v4921 = vunpack.c.h.b16 %v4450
        %v4922 = vunpack.c.l.b16 %v4451
        %v4923 = vunpack.c.h.b16 %v4451
        %v4924 = vunpack.c.l.b16 %v4452
        %v4925 = vunpack.c.h.b16 %v4452
        %v4926 = vunpack.c.l.b16 %v4453
        %v4927 = vunpack.c.h.b16 %v4453
        %v4928 = vunpack.c.l.b16 %v4454
        %v4929 = vunpack.c.h.b16 %v4454
        %v4930 = vunpack.c.l.b16 %v4455
        %v4931 = vunpack.c.h.b16 %v4455
        %v4932 = vunpack.c.l.b16 %v4456
        %v4933 = vunpack.c.h.b16 %v4456
        %v4934 = vunpack.c.l.b16 %v4457
        %v4935 = vunpack.c.h.b16 %v4457
        %v4936 = vunpack.c.l.b16 %v4458
        %v4937 = vunpack.c.h.b16 %v4458
        %v4938 = vunpack.c.l.b16 %v4459
        %v4939 = vunpack.c.h.b16 %v4459
        %v4940 = vunpack.c.l.b16 %v4460
        %v4941 = vunpack.c.h.b16 %v4460
        %v4942 = vunpack.c.l.b16 %v4461
        %v4943 = vunpack.c.h.b16 %v4461
        %v4944 = vunpack.c.l.b16 %v4462
        %v4945 = vunpack.c.h.b16 %v4462
        %v4946 = vunpack.c.l.b16 %v4463
        %v4947 = vunpack.c.h.b16 %v4463
        %v4948 = vunpack.c.l.b16 %v4464
        %v4949 = vunpack.c.h.b16 %v4464
        %v4950 = vunpack.c.l.b16 %v4465
        %v4951 = vunpack.c.h.b16 %v4465
        %v4952 = vunpack.c.l.b16 %v4466
        %v4953 = vunpack.c.h.b16 %v4466
        %v4954 = vunpack.c.l.b16 %v4467
        %v4955 = vunpack.c.h.b16 %v4467
        %v4956 = vunpack.c.l.b16 %v4468
        %v4957 = vunpack.c.h.b16 %v4468
        %v4958 = vunpack.c.l.b16 %v4469
        %v4959 = vunpack.c.h.b16 %v4469
        %v4960 = vunpack.c.l.b16 %v4470
        %v4961 = vunpack.c.h.b16 %v4470
        %v4962 = vunpack.c.l.b16 %v4471
        %v4963 = vunpack.c.h.b16 %v4471
        %v4964 = vunpack.c.l.b16 %v4472
        %v4965 = vunpack.c.h.b16 %v4472
        %v4966 = vunpack.c.l.b16 %v4473
        %v4967 = vunpack.c.h.b16 %v4473
        %v4968 = vunpack.c.l.b16 %v4474
        %v4969 = vunpack.c.h.b16 %v4474
        %v4970 = vunpack.c.l.b16 %v4475
        %v4971 = vunpack.c.h.b16 %v4475
        %v4972 = vunpack.c.l.b16 %v4476
        %v4973 = vunpack.c.h.b16 %v4476
        %v4974 = vunpack.c.l.b16 %v4477
        %v4975 = vunpack.c.h.b16 %v4477
        %v4976 = vunpack.c.l.b16 %v4478
        %v4977 = vunpack.c.h.b16 %v4478
        %v4978 = vunpack.c.l.b16 %v4479
        %v4979 = vunpack.c.h.b16 %v4479
        %v4980 = vunpack.c.l.b16 %v4480
        %v4981 = vunpack.c.h.b16 %v4480
        %v4982 = vunpack.c.l.b16 %v4481
        %v4983 = vunpack.c.h.b16 %v4481
        %v4984 = vunpack.c.l.b16 %v4482
        %v4985 = vunpack.c.h.b16 %v4482
        %v4986 = vunpack.c.l.b16 %v4483
        %v4987 = vunpack.c.h.b16 %v4483
        %v4988 = vunpack.c.l.b16 %v4484
        %v4989 = vunpack.c.h.b16 %v4484
        %v4990 = vunpack.c.l.b16 %v4485
        %v4991 = vunpack.c.h.b16 %v4485
        %v4992 = vunpack.c.l.b16 %v4486
        %v4993 = vunpack.c.h.b16 %v4486
        %v4994 = vunpack.c.l.b16 %v4487
        %v4995 = vunpack.c.h.b16 %v4487
        %v4996 = vunpack.c.l.b16 %v4488
        %v4997 = vunpack.c.h.b16 %v4488
        %v4998 = vunpack.c.l.b16 %v4489
        %v4999 = vunpack.c.h.b16 %v4489
        %v5000 = vunpack.c.l.b16 %v4490
        %v5001 = vunpack.c.h.b16 %v4490
        %v5002 = vunpack.c.l.b16 %v4491
        %v5003 = vunpack.c.h.b16 %v4491
        %v5004 = vunpack.c.l.b16 %v4492
        %v5005 = vunpack.c.h.b16 %v4492
        %v5006 = vunpack.c.l.b16 %v4493
        %v5007 = vunpack.c.h.b16 %v4493
        %v5008 = vunpack.c.l.b16 %v4494
        %v5009 = vunpack.c.h.b16 %v4494
        %v5010 = vunpack.c.l.b16 %v4495
        %v5011 = vunpack.c.h.b16 %v4495
        %v5012 = vunpack.c.l.b16 %v4496
        %v5013 = vunpack.c.h.b16 %v4496
        %v5014 = vunpack.c.l.b16 %v4497
        %v5015 = vunpack.c.h.b16 %v4497
        %v5016 = vunpack.c.l.b16 %v4498
        %v5017 = vunpack.c.h.b16 %v4498
        %v5018 = vunpack.c.l.b16 %v4499
        %v5019 = vunpack.c.h.b16 %v4499
        %v5020 = vunpack.c.l.b16 %v4500
        %v5021 = vunpack.c.h.b16 %v4500
        %v5022 = vunpack.c.l.b16 %v4501
        %v5023 = vunpack.c.h.b16 %v4501
        %v5024 = vunpack.c.l.b16 %v4502
        %v5025 = vunpack.c.h.b16 %v4502
        %v5026 = vunpack.c.l.b16 %v4503
        %v5027 = vunpack.c.h.b16 %v4503
        %v5028 = vunpack.c.l.b16 %v4504
        %v5029 = vunpack.c.h.b16 %v4504
        %v5030 = vunpack.c.l.b16 %v4505
        %v5031 = vunpack.c.h.b16 %v4505
        %v5032 = vunpack.c.l.b16 %v4506
        %v5033 = vunpack.c.h.b16 %v4506
        %v5034 = vunpack.c.l.b16 %v4507
        %v5035 = vunpack.c.h.b16 %v4507
        %v5036 = vunpack.c.l.b16 %v4508
        %v5037 = vunpack.c.h.b16 %v4508
        %v5038 = vunpack.c.l.b16 %v4509
        %v5039 = vunpack.c.h.b16 %v4509
        %v5040 = vunpack.c.l.b16 %v4510
        %v5041 = vunpack.c.h.b16 %v4510
        %v5042 = vunpack.c.l.b16 %v4511
        %v5043 = vunpack.c.h.b16 %v4511
        %v5044 = vunpack.c.l.b16 %v4512
        %v5045 = vunpack.c.h.b16 %v4512
        %v5046 = vunpack.c.l.b16 %v4513
        %v5047 = vunpack.c.h.b16 %v4513
        %v5048 = vunpack.c.l.b16 %v4514
        %v5049 = vunpack.c.h.b16 %v4514
        %v5050 = vunpack.c.l.b16 %v4515
        %v5051 = vunpack.c.h.b16 %v4515
        %v5052 = vunpack.c.l.b16 %v4516
        %v5053 = vunpack.c.h.b16 %v4516
        %v5054 = vunpack.c.l.b16 %v4517
        %v5055 = vunpack.c.h.b16 %v4517
        %v5056 = vunpack.c.l.b16 %v4518
        %v5057 = vunpack.c.h.b16 %v4518
        %v5058 = vunpack.c.l.b16 %v4519
        %v5059 = vunpack.c.h.b16 %v4519
        %v5060 = vunpack.c.l.b16 %v4520
        %v5061 = vunpack.c.h.b16 %v4520
        %v5062 = vunpack.c.l.b16 %v4521
        %v5063 = vunpack.c.h.b16 %v4521
        %v5064 = vunpack.c.l.b16 %v4522
        %v5065 = vunpack.c.h.b16 %v4522
        %v5066 = vunpack.c.l.b16 %v4523
        %v5067 = vunpack.c.h.b16 %v4523
        %v5068 = vunpack.c.l.b16 %v4524
        %v5069 = vunpack.c.h.b16 %v4524
        %v5070 = vunpack.c.l.b16 %v4525
        %v5071 = vunpack.c.h.b16 %v4525
        %v5072 = vunpack.c.l.b16 %v4526
        %v5073 = vunpack.c.h.b16 %v4526
        %v5074 = vunpack.c.l.b16 %v4527
        %v5075 = vunpack.c.h.b16 %v4527
        %v5076 = vunpack.c.l.b16 %v4528
        %v5077 = vunpack.c.h.b16 %v4528
        %v5078 = vunpack.c.l.b16 %v4529
        %v5079 = vunpack.c.h.b16 %v4529
        %v5080 = vunpack.c.l.b16 %v4530
        %v5081 = vunpack.c.h.b16 %v4530
        %v5082 = vunpack.c.l.b16 %v4531
        %v5083 = vunpack.c.h.b16 %v4531
        %v5084 = vunpack.c.l.b16 %v4532
        %v5085 = vunpack.c.h.b16 %v4532
        %v5086 = vunpack.c.l.b16 %v4533
        %v5087 = vunpack.c.h.b16 %v4533
        %v5088 = vunpack.c.l.b16 %v4534
        %v5089 = vunpack.c.h.b16 %v4534
        %v5090 = vunpack.c.l.b16 %v4535
        %v5091 = vunpack.c.h.b16 %v4535
        %v5092 = vunpack.c.l.b16 %v4536
        %v5093 = vunpack.c.h.b16 %v4536
        %v5094 = vunpack.c.l.b16 %v4537
        %v5095 = vunpack.c.h.b16 %v4537
        %v5096 = vunpack.c.l.b16 %v4538
        %v5097 = vunpack.c.h.b16 %v4538
        %v5098 = vunpack.c.l.b16 %v4539
        %v5099 = vunpack.c.h.b16 %v4539
        %v5100 = vunpack.c.l.b16 %v4540
        %v5101 = vunpack.c.h.b16 %v4540
        %v5102 = vunpack.c.l.b16 %v4541
        %v5103 = vunpack.c.h.b16 %v4541
        %v5104 = vunpack.c.l.b16 %v4542
        %v5105 = vunpack.c.h.b16 %v4542
        %v5106 = vunpack.c.l.b16 %v4543
        %v5107 = vunpack.c.h.b16 %v4543
        %v5108 = vunpack.c.l.b16 %v4544
        %v5109 = vunpack.c.h.b16 %v4544
        %v5110 = vunpack.c.l.b16 %v4545
        %v5111 = vunpack.c.h.b16 %v4545
        %v5112 = vunpack.c.l.b16 %v4546
        %v5113 = vunpack.c.h.b16 %v4546
        %v5114 = vunpack.c.l.b16 %v4547
        %v5115 = vunpack.c.h.b16 %v4547
        %v5116 = vunpack.c.l.b16 %v4548
        %v5117 = vunpack.c.h.b16 %v4548
        %v5118 = vunpack.c.l.b16 %v4549
        %v5119 = vunpack.c.h.b16 %v4549
        %v5120 = vunpack.c.l.b16 %v4550
        %v5121 = vunpack.c.h.b16 %v4550
        %v5122 = vunpack.c.l.b16 %v4551
        %v5123 = vunpack.c.h.b16 %v4551
        %v5124 = vunpack.c.l.b16 %v4552
        %v5125 = vunpack.c.h.b16 %v4552
        %v5126 = vunpack.c.l.b16 %v4553
        %v5127 = vunpack.c.h.b16 %v4553
        %v5128 = vunpack.c.l.b16 %v4554
        %v5129 = vunpack.c.h.b16 %v4554
        %v5130 = vunpack.c.l.b16 %v4555
        %v5131 = vunpack.c.h.b16 %v4555
        %v5132 = vunpack.c.l.b16 %v4556
        %v5133 = vunpack.c.h.b16 %v4556
        %v5134 = vunpack.c.l.b16 %v4557
        %v5135 = vunpack.c.h.b16 %v4557
        %v5136 = vunpack.c.l.b16 %v4558
        %v5137 = vunpack.c.h.b16 %v4558
        %v5138 = vunpack.c.l.b16 %v4559
        %v5139 = vunpack.c.h.b16 %v4559
        %v5140 = vunpack.c.l.b16 %v4560
        %v5141 = vunpack.c.h.b16 %v4560
        %v5142 = vunpack.c.l.b16 %v4561
        %v5143 = vunpack.c.h.b16 %v4561
        %v5144 = vunpack.c.l.b16 %v4562
        %v5145 = vunpack.c.h.b16 %v4562
        %v5146 = vunpack.c.l.b16 %v4563
        %v5147 = vunpack.c.h.b16 %v4563
        %v5148 = vunpack.c.l.b16 %v4564
        %v5149 = vunpack.c.h.b16 %v4564
        %v5150 = vunpack.c.l.b16 %v4565
        %v5151 = vunpack.c.h.b16 %v4565
        %v5152 = vunpack.c.l.b16 %v4566
        %v5153 = vunpack.c.h.b16 %v4566
        %v5154 = vunpack.c.l.b16 %v4567
        %v5155 = vunpack.c.h.b16 %v4567
        %v5156 = vunpack.c.l.b16 %v4568
        %v5157 = vunpack.c.h.b16 %v4568
        %v5158 = vunpack.c.l.b16 %v4569
        %v5159 = vunpack.c.h.b16 %v4569
        %v5160 = vunpack.c.l.b16 %v4570
        %v5161 = vunpack.c.h.b16 %v4570
        %v5162 = vunpack.c.l.b16 %v4571
        %v5163 = vunpack.c.h.b16 %v4571
        %v5164 = vunpack.c.l.b16 %v4572
        %v5165 = vunpack.c.h.b16 %v4572
        %v5166 = vunpack.c.l.b16 %v4573
        %v5167 = vunpack.c.h.b16 %v4573
        %v5168 = vunpack.c.l.b16 %v4574
        %v5169 = vunpack.c.h.b16 %v4574
        %v5170 = vunpack.c.l.b16 %v4575
        %v5171 = vunpack.c.h.b16 %v4575
        %v5172 = vunpack.c.l.b16 %v4576
        %v5173 = vunpack.c.h.b16 %v4576
        %v5174 = vunpack.c.l.b16 %v4577
        %v5175 = vunpack.c.h.b16 %v4577
        %v5176 = vunpack.c.l.b16 %v4578
        %v5177 = vunpack.c.h.b16 %v4578
        %v5178 = vunpack.c.l.b16 %v4579
        %v5179 = vunpack.c.h.b16 %v4579
        %v5180 = vunpack.c.l.b16 %v4580
        %v5181 = vunpack.c.h.b16 %v4580
        %v5182 = vunpack.c.l.b16 %v4581
        %v5183 = vunpack.c.h.b16 %v4581
        %v5184 = vunpack.c.l.b16 %v4582
        %v5185 = vunpack.c.h.b16 %v4582
        %v5186 = vunpack.c.l.b16 %v4583
        %v5187 = vunpack.c.h.b16 %v4583
        %v5188 = vunpack.c.l.b16 %v4584
        %v5189 = vunpack.c.h.b16 %v4584
        %v5190 = vunpack.c.l.b16 %v4585
        %v5191 = vunpack.c.h.b16 %v4585
        %v5192 = vunpack.c.l.b16 %v4586
        %v5193 = vunpack.c.h.b16 %v4586
        %v5194 = vunpack.c.l.b16 %v4587
        %v5195 = vunpack.c.h.b16 %v4587
        %v5196 = vunpack.c.l.b16 %v4588
        %v5197 = vunpack.c.h.b16 %v4588
        %v5198 = vunpack.c.l.b16 %v4589
        %v5199 = vunpack.c.h.b16 %v4589
        %v5200 = vunpack.c.l.b16 %v4590
        %v5201 = vunpack.c.h.b16 %v4590
        %v5202 = vunpack.c.l.b16 %v4591
        %v5203 = vunpack.c.h.b16 %v4591
        %v5204 = vunpack.c.l.b16 %v4592
        %v5205 = vunpack.c.h.b16 %v4592
        %v5206 = vunpack.c.l.b16 %v4593
        %v5207 = vunpack.c.h.b16 %v4593
        %v5208 = vunpack.c.l.b16 %v4594
        %v5209 = vunpack.c.h.b16 %v4594
        %v5210 = vunpack.c.l.b16 %v4595
        %v5211 = vunpack.c.h.b16 %v4595
        %v5212 = vunpack.c.l.b16 %v4596
        %v5213 = vunpack.c.h.b16 %v4596
        %v5214 = vunpack.c.l.b16 %v4597
        %v5215 = vunpack.c.h.b16 %v4597
        %v5216 = vunpack.c.l.b16 %v4598
        %v5217 = vunpack.c.h.b16 %v4598
        %v5218 = vunpack.c.l.b16 %v4599
        %v5219 = vunpack.c.h.b16 %v4599
        %v5220 = vunpack.c.l.b16 %v4600
        %v5221 = vunpack.c.h.b16 %v4600
        %v5222 = vunpack.c.l.b16 %v4601
        %v5223 = vunpack.c.h.b16 %v4601
        %v5224 = vunpack.c.l.b16 %v4602
        %v5225 = vunpack.c.h.b16 %v4602
        %v5226 = vunpack.c.l.b16 %v4603
        %v5227 = vunpack.c.h.b16 %v4603
        %v5228 = vunpack.c.l.b16 %v4604
        %v5229 = vunpack.c.h.b16 %v4604
        %v5230 = vunpack.c.l.b16 %v4605
        %v5231 = vunpack.c.h.b16 %v4605
        %v5232 = vunpack.c.l.b16 %v4606
        %v5233 = vunpack.c.h.b16 %v4606
        %v5234 = vunpack.c.l.b16 %v4607
        %v5235 = vunpack.c.h.b16 %v4607
        %v5236 = vpack.c.b16 %v4852, %v4820
        %v5237 = vpack.c.b16 %v4853, %v4821
        %v5238 = vpack.c.b16 %v4854, %v4822
        %v5239 = vpack.c.b16 %v4855, %v4823
        %v5240 = vpack.c.b16 %v4856, %v4824
        %v5241 = vpack.c.b16 %v4857, %v4825
        %v5242 = vpack.c.b16 %v4858, %v4826
        %v5243 = vpack.c.b16 %v4859, %v4827
        %v5244 = vpack.c.b16 %v4860, %v4828
        %v5245 = vpack.c.b16 %v4861, %v4829
        %v5246 = vpack.c.b16 %v4862, %v4830
        %v5247 = vpack.c.b16 %v4863, %v4831
        %v5248 = vpack.c.b16 %v4864, %v4832
        %v5249 = vpack.c.b16 %v4865, %v4833
        %v5250 = vpack.c.b16 %v4866, %v4834
        %v5251 = vpack.c.b16 %v4867, %v4835
        %v5252 = vpack.c.b16 %v4868, %v4836
        %v5253 = vpack.c.b16 %v4869, %v4837
        %v5254 = vpack.c.b16 %v4870, %v4838
        %v5255 = vpack.c.b16 %v4871, %v4839
        %v5256 = vpack.c.b16 %v4872, %v4840
        %v5257 = vpack.c.b16 %v4873, %v4841
        %v5258 = vpack.c.b16 %v4874, %v4842
        %v5259 = vpack.c.b16 %v4875, %v4843
        %v5260 = vpack.c.b16 %v4876, %v4844
        %v5261 = vpack.c.b16 %v4877, %v4845
        %v5262 = vpack.c.b16 %v4878, %v4846
        %v5263 = vpack.c.b16 %v4879, %v4847
        %v5264 = vpack.c.b16 %v4880, %v4848
        %v5265 = vpack.c.b16 %v4881, %v4849
        %v5266 = vpack.c.b16 %v4882, %v4850
        %v5267 = vpack.c.b16 %v4883, %v4851
        %v5268 = vpack.c.b16 %v4916, %v4884
        %v5269 = vpack.c.b16 %v4917, %v4885
        %v5270 = vpack.c.b16 %v4918, %v4886
        %v5271 = vpack.c.b16 %v4919, %v4887
        %v5272 = vpack.c.b16 %v4920, %v4888
        %v5273 = vpack.c.b16 %v4921, %v4889
        %v5274 = vpack.c.b16 %v4922, %v4890
        %v5275 = vpack.c.b16 %v4923, %v4891
        %v5276 = vpack.c.b16 %v4924, %v4892
        %v5277 = vpack.c.b16 %v4925, %v4893
        %v5278 = vpack.c.b16 %v4926, %v4894
        %v5279 = vpack.c.b16 %v4927, %v4895
        %v5280 = vpack.c.b16 %v4928, %v4896
        %v5281 = vpack.c.b16 %v4929, %v4897
        %v5282 = vpack.c.b16 %v4930, %v4898
        %v5283 = vpack.c.b16 %v4931, %v4899
        %v5284 = vpack.c.b16 %v4932, %v4900
        %v5285 = vpack.c.b16 %v4933, %v4901
        %v5286 = vpack.c.b16 %v4934, %v4902
        %v5287 = vpack.c.b16 %v4935, %v4903
        %v5288 = vpack.c.b16 %v4936, %v4904
        %v5289 = vpack.c.b16 %v4937, %v4905
        %v5290 = vpack.c.b16 %v4938, %v4906
        %v5291 = vpack.c.b16 %v4939, %v4907
        %v5292 = vpack.c.b16 %v4940, %v4908
        %v5293 = vpack.c.b16 %v4941, %v4909
        %v5294 = vpack.c.b16 %v4942, %v4910
        %v5295 = vpack.c.b16 %v4943, %v4911
        %v5296 = vpack.c.b16 %v4944, %v4912
        %v5297 = vpack.c.b16 %v4945, %v4913
        %v5298 = vpack.c.b16 %v4946, %v4914
        %v5299 = vpack.c.b16 %v4947, %v4915
        %v5300 = vpack.c.b16 %v4980, %v4948
        %v5301 = vpack.c.b16 %v4981, %v4949
        %v5302 = vpack.c.b16 %v4982, %v4950
        %v5303 = vpack.c.b16 %v4983, %v4951
        %v5304 = vpack.c.b16 %v4984, %v4952
        %v5305 = vpack.c.b16 %v4985, %v4953
        %v5306 = vpack.c.b16 %v4986, %v4954
        %v5307 = vpack.c.b16 %v4987, %v4955
        %v5308 = vpack.c.b16 %v4988, %v4956
        %v5309 = vpack.c.b16 %v4989, %v4957
        %v5310 = vpack.c.b16 %v4990, %v4958
        %v5311 = vpack.c.b16 %v4991, %v4959
        %v5312 = vpack.c.b16 %v4992, %v4960
        %v5313 = vpack.c.b16 %v4993, %v4961
        %v5314 = vpack.c.b16 %v4994, %v4962
        %v5315 = vpack.c.b16 %v4995, %v4963
        %v5316 = vpack.c.b16 %v4996, %v4964
        %v5317 = vpack.c.b16 %v4997, %v4965
        %v5318 = vpack.c.b16 %v4998, %v4966
        %v5319 = vpack.c.b16 %v4999, %v4967
        %v5320 = vpack.c.b16 %v5000, %v4968
        %v5321 = vpack.c.b16 %v5001, %v4969
        %v5322 = vpack.c.b16 %v5002, %v4970
        %v5323 = vpack.c.b16 %v5003, %v4971
        %v5324 = vpack.c.b16 %v5004, %v4972
        %v5325 = vpack.c.b16 %v5005, %v4973
        %v5326 = vpack.c.b16 %v5006, %v4974
        %v5327 = vpack.c.b16 %v5007, %v4975
        %v5328 = vpack.c.b16 %v5008, %v4976
        %v5329 = vpack.c.b16 %v5009, %v4977
        %v5330 = vpack.c.b16 %v5010, %v4978
        %v5331 = vpack.c.b16 %v5011, %v4979
        %v5332 = vpack.c.b16 %v5044, %v5012
        %v5333 = vpack.c.b16 %v5045, %v5013
        %v5334 = vpack.c.b16 %v5046, %v5014
        %v5335 = vpack.c.b16 %v5047, %v5015
        %v5336 = vpack.c.b16 %v5048, %v5016
        %v5337 = vpack.c.b16 %v5049, %v5017
        %v5338 = vpack.c.b16 %v5050, %v5018
        %v5339 = vpack.c.b16 %v5051, %v5019
        %v5340 = vpack.c.b16 %v5052, %v5020
        %v5341 = vpack.c.b16 %v5053, %v5021
        %v5342 = vpack.c.b16 %v5054, %v5022
        %v5343 = vpack.c.b16 %v5055, %v5023
        %v5344 = vpack.c.b16 %v5056, %v5024
        %v5345 = vpack.c.b16 %v5057, %v5025
        %v5346 = vpack.c.b16 %v5058, %v5026
        %v5347 = vpack.c.b16 %v5059, %v5027
        %v5348 = vpack.c.b16 %v5060, %v5028
        %v5349 = vpack.c.b16 %v5061, %v5029
        %v5350 = vpack.c.b16 %v5062, %v5030
        %v5351 = vpack.c.b16 %v5063, %v5031
        %v5352 = vpack.c.b16 %v5064, %v5032
        %v5353 = vpack.c.b16 %v5065, %v5033
        %v5354 = vpack.c.b16 %v5066, %v5034
        %v5355 = vpack.c.b16 %v5067, %v5035
        %v5356 = vpack.c.b16 %v5068, %v5036
        %v5357 = vpack.c.b16 %v5069, %v5037
        %v5358 = vpack.c.b16 %v5070, %v5038
        %v5359 = vpack.c.b16 %v5071, %v5039
        %v5360 = vpack.c.b16 %v5072, %v5040
        %v5361 = vpack.c.b16 %v5073, %v5041
        %v5362 = vpack.c.b16 %v5074, %v5042
        %v5363 = vpack.c.b16 %v5075, %v5043
        %v5364 = vpack.c.b16 %v5108, %v5076
        %v5365 = vpack.c.b16 %v5109, %v5077
        %v5366 = vpack.c.b16 %v5110, %v5078
        %v5367 = vpack.c.b16 %v5111, %v5079
        %v5368 = vpack.c.b16 %v5112, %v5080
        %v5369 = vpack.c.b16 %v5113, %v5081
        %v5370 = vpack.c.b16 %v5114, %v5082
        %v5371 = vpack.c.b16 %v5115, %v5083
        %v5372 = vpack.c.b16 %v5116, %v5084
        %v5373 = vpack.c.b16 %v5117, %v5085
        %v5374 = vpack.c.b16 %v5118, %v5086
        %v5375 = vpack.c.b16 %v5119, %v5087
        %v5376 = vpack.c.b16 %v5120, %v5088
        %v5377 = vpack.c.b16 %v5121, %v5089
        %v5378 = vpack.c.b16 %v5122, %v5090
        %v5379 = vpack.c.b16 %v5123, %v5091
        %v5380 = vpack.c.b16 %v5124, %v5092
        %v5381 = vpack.c.b16 %v5125, %v5093
        %v5382 = vpack.c.b16 %v5126, %v5094
        %v5383 = vpack.c.b16 %v5127, %v5095
        %v5384 = vpack.c.b16 %v5128, %v5096
        %v5385 = vpack.c.b16 %v5129, %v5097
        %v5386 = vpack.c.b16 %v5130, %v5098
        %v5387 = vpack.c.b16 %v5131, %v5099
        %v5388 = vpack.c.b16 %v5132, %v5100
        %v5389 = vpack.c.b16 %v5133, %v5101
        %v5390 = vpack.c.b16 %v5134, %v5102
        %v5391 = vpack.c.b16 %v5135, %v5103
        %v5392 = vpack.c.b16 %v5136, %v5104
        %v5393 = vpack.c.b16 %v5137, %v5105
        %v5394 = vpack.c.b16 %v5138, %v5106
        %v5395 = vpack.c.b16 %v5139, %v5107
        %v5396 = vpack.c.b16 %v5172, %v5140
        %v5397 = vpack.c.b16 %v5173, %v5141
        %v5398 = vpack.c.b16 %v5174, %v5142
        %v5399 = vpack.c.b16 %v5175, %v5143
        %v5400 = vpack.c.b16 %v5176, %v5144
        %v5401 = vpack.c.b16 %v5177, %v5145
        %v5402 = vpack.c.b16 %v5178, %v5146
        %v5403 = vpack.c.b16 %v5179, %v5147
        %v5404 = vpack.c.b16 %v5180, %v5148
        %v5405 = vpack.c.b16 %v5181, %v5149
        %v5406 = vpack.c.b16 %v5182, %v5150
        %v5407 = vpack.c.b16 %v5183, %v5151
        %v5408 = vpack.c.b16 %v5184, %v5152
        %v5409 = vpack.c.b16 %v5185, %v5153
        %v5410 = vpack.c.b16 %v5186, %v5154
        %v5411 = vpack.c.b16 %v5187, %v5155
        %v5412 = vpack.c.b16 %v5188, %v5156
        %v5413 = vpack.c.b16 %v5189, %v5157
        %v5414 = vpack.c.b16 %v5190, %v5158
        %v5415 = vpack.c.b16 %v5191, %v5159
        %v5416 = vpack.c.b16 %v5192, %v5160
        %v5417 = vpack.c.b16 %v5193, %v5161
        %v5418 = vpack.c.b16 %v5194, %v5162
        %v5419 = vpack.c.b16 %v5195, %v5163
        %v5420 = vpack.c.b16 %v5196, %v5164
        %v5421 = vpack.c.b16 %v5197, %v5165
        %v5422 = vpack.c.b16 %v5198, %v5166
        %v5423 = vpack.c.b16 %v5199, %v5167
        %v5424 = vpack.c.b16 %v5200, %v5168
        %v5425 = vpack.c.b16 %v5201, %v5169
        %v5426 = vpack.c.b16 %v5202, %v5170
        %v5427 = vpack.c.b16 %v5203, %v5171
        %v5428 = vpack.c.b16 %v5204, %v5204
        %v5429 = vpack.c.b16 %v5205, %v5205
        %v5430 = vpack.c.b16 %v5206, %v5206
        %v5431 = vpack.c.b16 %v5207, %v5207
        %v5432 = vpack.c.b16 %v5208, %v5208
        %v5433 = vpack.c.b16 %v5209, %v5209
        %v5434 = vpack.c.b16 %v5210, %v5210
        %v5435 = vpack.c.b16 %v5211, %v5211
        %v5436 = vpack.c.b16 %v5212, %v5212
        %v5437 = vpack.c.b16 %v5213, %v5213
        %v5438 = vpack.c.b16 %v5214, %v5214
        %v5439 = vpack.c.b16 %v5215, %v5215
        %v5440 = vpack.c.b16 %v5216, %v5216
        %v5441 = vpack.c.b16 %v5217, %v5217
        %v5442 = vpack.c.b16 %v5218, %v5218
        %v5443 = vpack.c.b16 %v5219, %v5219
        %v5444 = vpack.c.b16 %v5220, %v5220
        %v5445 = vpack.c.b16 %v5221, %v5221
        %v5446 = vpack.c.b16 %v5222, %v5222
        %v5447 = vpack.c.b16 %v5223, %v5223
        %v5448 = vpack.c.b16 %v5224, %v5224
        %v5449 = vpack.c.b16 %v5225, %v5225
        %v5450 = vpack.c.b16 %v5226, %v5226
        %v5451 = vpack.c.b16 %v5227, %v5227
        %v5452 = vpack.c.b16 %v5228, %v5228
        %v5453 = vpack.c.b16 %v5229, %v5229
        %v5454 = vpack.c.b16 %v5230, %v5230
        %v5455 = vpack.c.b16 %v5231, %v5231
        %v5456 = vpack.c.b16 %v5232, %v5232
        %v5457 = vpack.c.b16 %v5233, %v5233
        %v5458 = vpack.c.b16 %v5234, %v5234
        %v5459 = vpack.c.b16 %v5235, %v5235
        %v5653 = vsel %vm1784, %v4611, 0
        %v5656 = vsel %vm1788, %v5428, 0
        %v5659 = vsel %vm1788, %v5429, 0
        %v5662 = vsel %vm1788, %v5430, 0
        %v5665 = vsel %vm1788, %v5431, 0
        %v5668 = vsel %vm1788, %v5432, 0
        %v5671 = vsel %vm1788, %v5433, 0
        %v5674 = vsel %vm1788, %v5434, 0
        %v5677 = vsel %vm1788, %v5435, 0
        %v5680 = vsel %vm1788, %v5436, 0
        %v5683 = vsel %vm1788, %v5437, 0
        %v5686 = vsel %vm1788, %v5438, 0
        %v5689 = vsel %vm1788, %v5439, 0
        %v5692 = vsel %vm1788, %v5440, 0
        %v5695 = vsel %vm1788, %v5441, 0
        %v5698 = vsel %vm1788, %v5442, 0
        %v5701 = vsel %vm1788, %v5443, 0
        %v5704 = vsel %vm1788, %v5444, 0
        %v5707 = vsel %vm1788, %v5445, 0
        %v5710 = vsel %vm1788, %v5446, 0
        %v5713 = vsel %vm1788, %v5447, 0
        %v5716 = vsel %vm1788, %v5448, 0
        %v5719 = vsel %vm1788, %v5449, 0
        %v5722 = vsel %vm1788, %v5450, 0
        %v5725 = vsel %vm1788, %v5451, 0
        %v5728 = vsel %vm1788, %v5452, 0
        %v5731 = vsel %vm1788, %v5453, 0
        %v5734 = vsel %vm1788, %v5454, 0
        %v5737 = vsel %vm1788, %v5455, 0
        %v5740 = vsel %vm1788, %v5456, 0
        %v5743 = vsel %vm1788, %v5457, 0
        %v5746 = vsel %vm1788, %v5458, 0
        %v5749 = vsel %vm1788, %v5459, 0
        %5751 = vmatprep.subr.bf16.mxu0 0
        %5752 = vmatpush1.bf16.msra.mxu0 0
        %5753 = vmatprep.subr.bf16.mxu0 %v5659
        %5754 = vmatpush1.bf16.msra.mxu0 %v5656
        %5755 = vmatprep.subr.bf16.mxu0 %v5397
        %5756 = vmatpush1.bf16.msra.mxu0 %v5396
        %5757 = vmatprep.subr.bf16.mxu0 %v5365
        %5758 = vmatpush1.bf16.msra.mxu0 %v5364
        %5759 = vmatprep.subr.bf16.mxu0 %v5333
        %5760 = vmatpush1.bf16.msra.mxu0 %v5332
        %5761 = vmatprep.subr.bf16.mxu0 %v5301
        %5762 = vmatpush1.bf16.msra.mxu0 %v5300
        %5763 = vmatprep.subr.bf16.mxu0 %v5269
        %5764 = vmatpush1.bf16.msra.mxu0 %v5268
        %5765 = vmatprep.subr.bf16.mxu0 %v5237
        %5766 = vmatpush1.bf16.msra.mxu0 %v5236
        %5767 = vmatprep.subr.bf16.mxu0 0
        %5768 = vmatpush2.bf16.msra.mxu0 0
        %5769 = vmatprep.subr.bf16.mxu0 0
        %5770 = vmatpush2.bf16.msra.mxu0 0
        %5771 = vmatprep.subr.bf16.mxu0 0
        %5772 = vmatpush2.bf16.msra.mxu0 0
        %5773 = vmatprep.subr.bf16.mxu0 0
        %5774 = vmatpush2.bf16.msra.mxu0 0
        %5775 = vmatprep.subr.bf16.mxu0 0
        %5776 = vmatpush2.bf16.msra.mxu0 0
        %5777 = vmatprep.subr.bf16.mxu0 0
        %5778 = vmatpush2.bf16.msra.mxu0 0
        %5779 = vmatprep.subr.bf16.mxu0 0
        %5780 = vmatpush2.bf16.msra.mxu0 0
        %5781 = vmatprep.subr.bf16.mxu0 0
        %5782 = vmatpush2.bf16.msra.mxu0 0
        %5783 = vmatprep.mubr.bf16.mxu0 0
        %5784 = vmatmul.mubr.bf16.gmra.mxu0 %v5653
        %v5785 = vpop.f32.mrf.mxu0
        %v5786 = vadd.f32 0.0, %v5785
        %v5787 = vpop.f32.mrf.mxu0
        %v5788 = vadd.f32 0.0, %v5787
        %v5789 = vpop.f32.mrf.mxu0
        %v5790 = vadd.f32 0.0, %v5789
        %v5791 = vpop.f32.mrf.mxu0
        %v5792 = vadd.f32 0.0, %v5791
        %5793 = vdwg.mxu0
        %5794 = vmatprep.subr.bf16.mxu0 0
        %5795 = vmatpush1.bf16.msra.mxu0 0
        %5796 = vmatprep.subr.bf16.mxu0 %v5665
        %5797 = vmatpush1.bf16.msra.mxu0 %v5662
        %5798 = vmatprep.subr.bf16.mxu0 %v5399
        %5799 = vmatpush1.bf16.msra.mxu0 %v5398
        %5800 = vmatprep.subr.bf16.mxu0 %v5367
        %5801 = vmatpush1.bf16.msra.mxu0 %v5366
        %5802 = vmatprep.subr.bf16.mxu0 %v5335
        %5803 = vmatpush1.bf16.msra.mxu0 %v5334
        %5804 = vmatprep.subr.bf16.mxu0 %v5303
        %5805 = vmatpush1.bf16.msra.mxu0 %v5302
        %5806 = vmatprep.subr.bf16.mxu0 %v5271
        %5807 = vmatpush1.bf16.msra.mxu0 %v5270
        %5808 = vmatprep.subr.bf16.mxu0 %v5239
        %5809 = vmatpush1.bf16.msra.mxu0 %v5238
        %5810 = vmatprep.subr.bf16.mxu0 0
        %5811 = vmatpush2.bf16.msra.mxu0 0
        %5812 = vmatprep.subr.bf16.mxu0 0
        %5813 = vmatpush2.bf16.msra.mxu0 0
        %5814 = vmatprep.subr.bf16.mxu0 0
        %5815 = vmatpush2.bf16.msra.mxu0 0
        %5816 = vmatprep.subr.bf16.mxu0 0
        %5817 = vmatpush2.bf16.msra.mxu0 0
        %5818 = vmatprep.subr.bf16.mxu0 0
        %5819 = vmatpush2.bf16.msra.mxu0 0
        %5820 = vmatprep.subr.bf16.mxu0 0
        %5821 = vmatpush2.bf16.msra.mxu0 0
        %5822 = vmatprep.subr.bf16.mxu0 0
        %5823 = vmatpush2.bf16.msra.mxu0 0
        %5824 = vmatprep.subr.bf16.mxu0 0
        %5825 = vmatpush2.bf16.msra.mxu0 0
        %5826 = vmatprep.mubr.bf16.mxu0 0
        %5827 = vmatmul.mubr.bf16.gmra.mxu0 %v5653
        %v5828 = vpop.f32.mrf.mxu0
        %v5829 = vadd.f32 0.0, %v5828
        %v5830 = vpop.f32.mrf.mxu0
        %v5831 = vadd.f32 0.0, %v5830
        %v5832 = vpop.f32.mrf.mxu0
        %v5833 = vadd.f32 0.0, %v5832
        %v5834 = vpop.f32.mrf.mxu0
        %v5835 = vadd.f32 0.0, %v5834
        %5836 = vdwg.mxu0
        %5837 = vmatprep.subr.bf16.mxu0 0
        %5838 = vmatpush1.bf16.msra.mxu0 0
        %5839 = vmatprep.subr.bf16.mxu0 %v5671
        %5840 = vmatpush1.bf16.msra.mxu0 %v5668
        %5841 = vmatprep.subr.bf16.mxu0 %v5401
        %5842 = vmatpush1.bf16.msra.mxu0 %v5400
        %5843 = vmatprep.subr.bf16.mxu0 %v5369
        %5844 = vmatpush1.bf16.msra.mxu0 %v5368
        %5845 = vmatprep.subr.bf16.mxu0 %v5337
        %5846 = vmatpush1.bf16.msra.mxu0 %v5336
        %5847 = vmatprep.subr.bf16.mxu0 %v5305
        %5848 = vmatpush1.bf16.msra.mxu0 %v5304
        %5849 = vmatprep.subr.bf16.mxu0 %v5273
        %5850 = vmatpush1.bf16.msra.mxu0 %v5272
        %5851 = vmatprep.subr.bf16.mxu0 %v5241
        %5852 = vmatpush1.bf16.msra.mxu0 %v5240
        %5853 = vmatprep.subr.bf16.mxu0 0
        %5854 = vmatpush2.bf16.msra.mxu0 0
        %5855 = vmatprep.subr.bf16.mxu0 0
        %5856 = vmatpush2.bf16.msra.mxu0 0
        %5857 = vmatprep.subr.bf16.mxu0 0
        %5858 = vmatpush2.bf16.msra.mxu0 0
        %5859 = vmatprep.subr.bf16.mxu0 0
        %5860 = vmatpush2.bf16.msra.mxu0 0
        %5861 = vmatprep.subr.bf16.mxu0 0
        %5862 = vmatpush2.bf16.msra.mxu0 0
        %5863 = vmatprep.subr.bf16.mxu0 0
        %5864 = vmatpush2.bf16.msra.mxu0 0
        %5865 = vmatprep.subr.bf16.mxu0 0
        %5866 = vmatpush2.bf16.msra.mxu0 0
        %5867 = vmatprep.subr.bf16.mxu0 0
        %5868 = vmatpush2.bf16.msra.mxu0 0
        %5869 = vmatprep.mubr.bf16.mxu0 0
        %5870 = vmatmul.mubr.bf16.gmra.mxu0 %v5653
        %v5871 = vpop.f32.mrf.mxu0
        %v5872 = vadd.f32 0.0, %v5871
        %v5873 = vpop.f32.mrf.mxu0
        %v5874 = vadd.f32 0.0, %v5873
        %v5875 = vpop.f32.mrf.mxu0
        %v5876 = vadd.f32 0.0, %v5875
        %v5877 = vpop.f32.mrf.mxu0
        %v5878 = vadd.f32 0.0, %v5877
        %5879 = vdwg.mxu0
        %5880 = vmatprep.subr.bf16.mxu0 0
        %5881 = vmatpush1.bf16.msra.mxu0 0
        %5882 = vmatprep.subr.bf16.mxu0 %v5677
        %5883 = vmatpush1.bf16.msra.mxu0 %v5674
        %5884 = vmatprep.subr.bf16.mxu0 %v5403
        %5885 = vmatpush1.bf16.msra.mxu0 %v5402
        %5886 = vmatprep.subr.bf16.mxu0 %v5371
        %5887 = vmatpush1.bf16.msra.mxu0 %v5370
        %5888 = vmatprep.subr.bf16.mxu0 %v5339
        %5889 = vmatpush1.bf16.msra.mxu0 %v5338
        %5890 = vmatprep.subr.bf16.mxu0 %v5307
        %5891 = vmatpush1.bf16.msra.mxu0 %v5306
        %5892 = vmatprep.subr.bf16.mxu0 %v5275
        %5893 = vmatpush1.bf16.msra.mxu0 %v5274
        %5894 = vmatprep.subr.bf16.mxu0 %v5243
        %5895 = vmatpush1.bf16.msra.mxu0 %v5242
        %5896 = vmatprep.subr.bf16.mxu0 0
        %5897 = vmatpush2.bf16.msra.mxu0 0
        %5898 = vmatprep.subr.bf16.mxu0 0
        %5899 = vmatpush2.bf16.msra.mxu0 0
        %5900 = vmatprep.subr.bf16.mxu0 0
        %5901 = vmatpush2.bf16.msra.mxu0 0
        %5902 = vmatprep.subr.bf16.mxu0 0
        %5903 = vmatpush2.bf16.msra.mxu0 0
        %5904 = vmatprep.subr.bf16.mxu0 0
        %5905 = vmatpush2.bf16.msra.mxu0 0
        %5906 = vmatprep.subr.bf16.mxu0 0
        %5907 = vmatpush2.bf16.msra.mxu0 0
        %5908 = vmatprep.subr.bf16.mxu0 0
        %5909 = vmatpush2.bf16.msra.mxu0 0
        %5910 = vmatprep.subr.bf16.mxu0 0
        %5911 = vmatpush2.bf16.msra.mxu0 0
        %5912 = vmatprep.mubr.bf16.mxu0 0
        %5913 = vmatmul.mubr.bf16.gmra.mxu0 %v5653
        %v5914 = vpop.f32.mrf.mxu0
        %v5915 = vadd.f32 0.0, %v5914
        %v5916 = vpop.f32.mrf.mxu0
        %v5917 = vadd.f32 0.0, %v5916
        %v5918 = vpop.f32.mrf.mxu0
        %v5919 = vadd.f32 0.0, %v5918
        %v5920 = vpop.f32.mrf.mxu0
        %v5921 = vadd.f32 0.0, %v5920
        %5922 = vdwg.mxu0
        %5923 = vmatprep.subr.bf16.mxu0 0
        %5924 = vmatpush1.bf16.msra.mxu0 0
        %5925 = vmatprep.subr.bf16.mxu0 %v5683
        %5926 = vmatpush1.bf16.msra.mxu0 %v5680
        %5927 = vmatprep.subr.bf16.mxu0 %v5405
        %5928 = vmatpush1.bf16.msra.mxu0 %v5404
        %5929 = vmatprep.subr.bf16.mxu0 %v5373
        %5930 = vmatpush1.bf16.msra.mxu0 %v5372
        %5931 = vmatprep.subr.bf16.mxu0 %v5341
        %5932 = vmatpush1.bf16.msra.mxu0 %v5340
        %5933 = vmatprep.subr.bf16.mxu0 %v5309
        %5934 = vmatpush1.bf16.msra.mxu0 %v5308
        %5935 = vmatprep.subr.bf16.mxu0 %v5277
        %5936 = vmatpush1.bf16.msra.mxu0 %v5276
        %5937 = vmatprep.subr.bf16.mxu0 %v5245
        %5938 = vmatpush1.bf16.msra.mxu0 %v5244
        %5939 = vmatprep.subr.bf16.mxu0 0
        %5940 = vmatpush2.bf16.msra.mxu0 0
        %5941 = vmatprep.subr.bf16.mxu0 0
        %5942 = vmatpush2.bf16.msra.mxu0 0
        %5943 = vmatprep.subr.bf16.mxu0 0
        %5944 = vmatpush2.bf16.msra.mxu0 0
        %5945 = vmatprep.subr.bf16.mxu0 0
        %5946 = vmatpush2.bf16.msra.mxu0 0
        %5947 = vmatprep.subr.bf16.mxu0 0
        %5948 = vmatpush2.bf16.msra.mxu0 0
        %5949 = vmatprep.subr.bf16.mxu0 0
        %5950 = vmatpush2.bf16.msra.mxu0 0
        %5951 = vmatprep.subr.bf16.mxu0 0
        %5952 = vmatpush2.bf16.msra.mxu0 0
        %5953 = vmatprep.subr.bf16.mxu0 0
        %5954 = vmatpush2.bf16.msra.mxu0 0
        %5955 = vmatprep.mubr.bf16.mxu0 0
        %5956 = vmatmul.mubr.bf16.gmra.mxu0 %v5653
        %v5957 = vpop.f32.mrf.mxu0
        %v5958 = vadd.f32 0.0, %v5957
        %v5959 = vpop.f32.mrf.mxu0
        %v5960 = vadd.f32 0.0, %v5959
        %v5961 = vpop.f32.mrf.mxu0
        %v5962 = vadd.f32 0.0, %v5961
        %v5963 = vpop.f32.mrf.mxu0
        %v5964 = vadd.f32 0.0, %v5963
        %5965 = vdwg.mxu0
        %5966 = vmatprep.subr.bf16.mxu0 0
        %5967 = vmatpush1.bf16.msra.mxu0 0
        %5968 = vmatprep.subr.bf16.mxu0 %v5689
        %5969 = vmatpush1.bf16.msra.mxu0 %v5686
        %5970 = vmatprep.subr.bf16.mxu0 %v5407
        %5971 = vmatpush1.bf16.msra.mxu0 %v5406
        %5972 = vmatprep.subr.bf16.mxu0 %v5375
        %5973 = vmatpush1.bf16.msra.mxu0 %v5374
        %5974 = vmatprep.subr.bf16.mxu0 %v5343
        %5975 = vmatpush1.bf16.msra.mxu0 %v5342
        %5976 = vmatprep.subr.bf16.mxu0 %v5311
        %5977 = vmatpush1.bf16.msra.mxu0 %v5310
        %5978 = vmatprep.subr.bf16.mxu0 %v5279
        %5979 = vmatpush1.bf16.msra.mxu0 %v5278
        %5980 = vmatprep.subr.bf16.mxu0 %v5247
        %5981 = vmatpush1.bf16.msra.mxu0 %v5246
        %5982 = vmatprep.subr.bf16.mxu0 0
        %5983 = vmatpush2.bf16.msra.mxu0 0
        %5984 = vmatprep.subr.bf16.mxu0 0
        %5985 = vmatpush2.bf16.msra.mxu0 0
        %5986 = vmatprep.subr.bf16.mxu0 0
        %5987 = vmatpush2.bf16.msra.mxu0 0
        %5988 = vmatprep.subr.bf16.mxu0 0
        %5989 = vmatpush2.bf16.msra.mxu0 0
        %5990 = vmatprep.subr.bf16.mxu0 0
        %5991 = vmatpush2.bf16.msra.mxu0 0
        %5992 = vmatprep.subr.bf16.mxu0 0
        %5993 = vmatpush2.bf16.msra.mxu0 0
        %5994 = vmatprep.subr.bf16.mxu0 0
        %5995 = vmatpush2.bf16.msra.mxu0 0
        %5996 = vmatprep.subr.bf16.mxu0 0
        %5997 = vmatpush2.bf16.msra.mxu0 0
        %5998 = vmatprep.mubr.bf16.mxu0 0
        %5999 = vmatmul.mubr.bf16.gmra.mxu0 %v5653
        %v6000 = vpop.f32.mrf.mxu0
        %v6001 = vadd.f32 0.0, %v6000
        %v6002 = vpop.f32.mrf.mxu0
        %v6003 = vadd.f32 0.0, %v6002
        %v6004 = vpop.f32.mrf.mxu0
        %v6005 = vadd.f32 0.0, %v6004
        %v6006 = vpop.f32.mrf.mxu0
        %v6007 = vadd.f32 0.0, %v6006
        %6008 = vdwg.mxu0
        %6009 = vmatprep.subr.bf16.mxu0 0
        %6010 = vmatpush1.bf16.msra.mxu0 0
        %6011 = vmatprep.subr.bf16.mxu0 %v5695
        %6012 = vmatpush1.bf16.msra.mxu0 %v5692
        %6013 = vmatprep.subr.bf16.mxu0 %v5409
        %6014 = vmatpush1.bf16.msra.mxu0 %v5408
        %6015 = vmatprep.subr.bf16.mxu0 %v5377
        %6016 = vmatpush1.bf16.msra.mxu0 %v5376
        %6017 = vmatprep.subr.bf16.mxu0 %v5345
        %6018 = vmatpush1.bf16.msra.mxu0 %v5344
        %6019 = vmatprep.subr.bf16.mxu0 %v5313
        %6020 = vmatpush1.bf16.msra.mxu0 %v5312
        %6021 = vmatprep.subr.bf16.mxu0 %v5281
        %6022 = vmatpush1.bf16.msra.mxu0 %v5280
        %6023 = vmatprep.subr.bf16.mxu0 %v5249
        %6024 = vmatpush1.bf16.msra.mxu0 %v5248
        %6025 = vmatprep.subr.bf16.mxu0 0
        %6026 = vmatpush2.bf16.msra.mxu0 0
        %6027 = vmatprep.subr.bf16.mxu0 0
        %6028 = vmatpush2.bf16.msra.mxu0 0
        %6029 = vmatprep.subr.bf16.mxu0 0
        %6030 = vmatpush2.bf16.msra.mxu0 0
        %6031 = vmatprep.subr.bf16.mxu0 0
        %6032 = vmatpush2.bf16.msra.mxu0 0
        %6033 = vmatprep.subr.bf16.mxu0 0
        %6034 = vmatpush2.bf16.msra.mxu0 0
        %6035 = vmatprep.subr.bf16.mxu0 0
        %6036 = vmatpush2.bf16.msra.mxu0 0
        %6037 = vmatprep.subr.bf16.mxu0 0
        %6038 = vmatpush2.bf16.msra.mxu0 0
        %6039 = vmatprep.subr.bf16.mxu0 0
        %6040 = vmatpush2.bf16.msra.mxu0 0
        %6041 = vmatprep.mubr.bf16.mxu0 0
        %6042 = vmatmul.mubr.bf16.gmra.mxu0 %v5653
        %v6043 = vpop.f32.mrf.mxu0
        %v6044 = vadd.f32 0.0, %v6043
        %v6045 = vpop.f32.mrf.mxu0
        %v6046 = vadd.f32 0.0, %v6045
        %v6047 = vpop.f32.mrf.mxu0
        %v6048 = vadd.f32 0.0, %v6047
        %v6049 = vpop.f32.mrf.mxu0
        %v6050 = vadd.f32 0.0, %v6049
        %6051 = vdwg.mxu0
        %6052 = vmatprep.subr.bf16.mxu0 0
        %6053 = vmatpush1.bf16.msra.mxu0 0
        %6054 = vmatprep.subr.bf16.mxu0 %v5701
        %6055 = vmatpush1.bf16.msra.mxu0 %v5698
        %6056 = vmatprep.subr.bf16.mxu0 %v5411
        %6057 = vmatpush1.bf16.msra.mxu0 %v5410
        %6058 = vmatprep.subr.bf16.mxu0 %v5379
        %6059 = vmatpush1.bf16.msra.mxu0 %v5378
        %6060 = vmatprep.subr.bf16.mxu0 %v5347
        %6061 = vmatpush1.bf16.msra.mxu0 %v5346
        %6062 = vmatprep.subr.bf16.mxu0 %v5315
        %6063 = vmatpush1.bf16.msra.mxu0 %v5314
        %6064 = vmatprep.subr.bf16.mxu0 %v5283
        %6065 = vmatpush1.bf16.msra.mxu0 %v5282
        %6066 = vmatprep.subr.bf16.mxu0 %v5251
        %6067 = vmatpush1.bf16.msra.mxu0 %v5250
        %6068 = vmatprep.subr.bf16.mxu0 0
        %6069 = vmatpush2.bf16.msra.mxu0 0
        %6070 = vmatprep.subr.bf16.mxu0 0
        %6071 = vmatpush2.bf16.msra.mxu0 0
        %6072 = vmatprep.subr.bf16.mxu0 0
        %6073 = vmatpush2.bf16.msra.mxu0 0
        %6074 = vmatprep.subr.bf16.mxu0 0
        %6075 = vmatpush2.bf16.msra.mxu0 0
        %6076 = vmatprep.subr.bf16.mxu0 0
        %6077 = vmatpush2.bf16.msra.mxu0 0
        %6078 = vmatprep.subr.bf16.mxu0 0
        %6079 = vmatpush2.bf16.msra.mxu0 0
        %6080 = vmatprep.subr.bf16.mxu0 0
        %6081 = vmatpush2.bf16.msra.mxu0 0
        %6082 = vmatprep.subr.bf16.mxu0 0
        %6083 = vmatpush2.bf16.msra.mxu0 0
        %6084 = vmatprep.mubr.bf16.mxu0 0
        %6085 = vmatmul.mubr.bf16.gmra.mxu0 %v5653
        %v6086 = vpop.f32.mrf.mxu0
        %v6087 = vadd.f32 0.0, %v6086
        %v6088 = vpop.f32.mrf.mxu0
        %v6089 = vadd.f32 0.0, %v6088
        %v6090 = vpop.f32.mrf.mxu0
        %v6091 = vadd.f32 0.0, %v6090
        %v6092 = vpop.f32.mrf.mxu0
        %v6093 = vadd.f32 0.0, %v6092
        %6094 = vdwg.mxu0
        %6095 = vmatprep.subr.bf16.mxu0 0
        %6096 = vmatpush1.bf16.msra.mxu0 0
        %6097 = vmatprep.subr.bf16.mxu0 %v5707
        %6098 = vmatpush1.bf16.msra.mxu0 %v5704
        %6099 = vmatprep.subr.bf16.mxu0 %v5413
        %6100 = vmatpush1.bf16.msra.mxu0 %v5412
        %6101 = vmatprep.subr.bf16.mxu0 %v5381
        %6102 = vmatpush1.bf16.msra.mxu0 %v5380
        %6103 = vmatprep.subr.bf16.mxu0 %v5349
        %6104 = vmatpush1.bf16.msra.mxu0 %v5348
        %6105 = vmatprep.subr.bf16.mxu0 %v5317
        %6106 = vmatpush1.bf16.msra.mxu0 %v5316
        %6107 = vmatprep.subr.bf16.mxu0 %v5285
        %6108 = vmatpush1.bf16.msra.mxu0 %v5284
        %6109 = vmatprep.subr.bf16.mxu0 %v5253
        %6110 = vmatpush1.bf16.msra.mxu0 %v5252
        %6111 = vmatprep.subr.bf16.mxu0 0
        %6112 = vmatpush2.bf16.msra.mxu0 0
        %6113 = vmatprep.subr.bf16.mxu0 0
        %6114 = vmatpush2.bf16.msra.mxu0 0
        %6115 = vmatprep.subr.bf16.mxu0 0
        %6116 = vmatpush2.bf16.msra.mxu0 0
        %6117 = vmatprep.subr.bf16.mxu0 0
        %6118 = vmatpush2.bf16.msra.mxu0 0
        %6119 = vmatprep.subr.bf16.mxu0 0
        %6120 = vmatpush2.bf16.msra.mxu0 0
        %6121 = vmatprep.subr.bf16.mxu0 0
        %6122 = vmatpush2.bf16.msra.mxu0 0
        %6123 = vmatprep.subr.bf16.mxu0 0
        %6124 = vmatpush2.bf16.msra.mxu0 0
        %6125 = vmatprep.subr.bf16.mxu0 0
        %6126 = vmatpush2.bf16.msra.mxu0 0
        %6127 = vmatprep.mubr.bf16.mxu0 0
        %6128 = vmatmul.mubr.bf16.gmra.mxu0 %v5653
        %v6129 = vpop.f32.mrf.mxu0
        %v6130 = vadd.f32 0.0, %v6129
        %v6131 = vpop.f32.mrf.mxu0
        %v6132 = vadd.f32 0.0, %v6131
        %v6133 = vpop.f32.mrf.mxu0
        %v6134 = vadd.f32 0.0, %v6133
        %v6135 = vpop.f32.mrf.mxu0
        %v6136 = vadd.f32 0.0, %v6135
        %6137 = vdwg.mxu0
        %6138 = vmatprep.subr.bf16.mxu0 0
        %6139 = vmatpush1.bf16.msra.mxu0 0
        %6140 = vmatprep.subr.bf16.mxu0 %v5713
        %6141 = vmatpush1.bf16.msra.mxu0 %v5710
        %6142 = vmatprep.subr.bf16.mxu0 %v5415
        %6143 = vmatpush1.bf16.msra.mxu0 %v5414
        %6144 = vmatprep.subr.bf16.mxu0 %v5383
        %6145 = vmatpush1.bf16.msra.mxu0 %v5382
        %6146 = vmatprep.subr.bf16.mxu0 %v5351
        %6147 = vmatpush1.bf16.msra.mxu0 %v5350
        %6148 = vmatprep.subr.bf16.mxu0 %v5319
        %6149 = vmatpush1.bf16.msra.mxu0 %v5318
        %6150 = vmatprep.subr.bf16.mxu0 %v5287
        %6151 = vmatpush1.bf16.msra.mxu0 %v5286
        %6152 = vmatprep.subr.bf16.mxu0 %v5255
        %6153 = vmatpush1.bf16.msra.mxu0 %v5254
        %6154 = vmatprep.subr.bf16.mxu0 0
        %6155 = vmatpush2.bf16.msra.mxu0 0
        %6156 = vmatprep.subr.bf16.mxu0 0
        %6157 = vmatpush2.bf16.msra.mxu0 0
        %6158 = vmatprep.subr.bf16.mxu0 0
        %6159 = vmatpush2.bf16.msra.mxu0 0
        %6160 = vmatprep.subr.bf16.mxu0 0
        %6161 = vmatpush2.bf16.msra.mxu0 0
        %6162 = vmatprep.subr.bf16.mxu0 0
        %6163 = vmatpush2.bf16.msra.mxu0 0
        %6164 = vmatprep.subr.bf16.mxu0 0
        %6165 = vmatpush2.bf16.msra.mxu0 0
        %6166 = vmatprep.subr.bf16.mxu0 0
        %6167 = vmatpush2.bf16.msra.mxu0 0
        %6168 = vmatprep.subr.bf16.mxu0 0
        %6169 = vmatpush2.bf16.msra.mxu0 0
        %6170 = vmatprep.mubr.bf16.mxu0 0
        %6171 = vmatmul.mubr.bf16.gmra.mxu0 %v5653
        %v6172 = vpop.f32.mrf.mxu0
        %v6173 = vadd.f32 0.0, %v6172
        %v6174 = vpop.f32.mrf.mxu0
        %v6175 = vadd.f32 0.0, %v6174
        %v6176 = vpop.f32.mrf.mxu0
        %v6177 = vadd.f32 0.0, %v6176
        %v6178 = vpop.f32.mrf.mxu0
        %v6179 = vadd.f32 0.0, %v6178
        %6180 = vdwg.mxu0
        %6181 = vmatprep.subr.bf16.mxu0 0
        %6182 = vmatpush1.bf16.msra.mxu0 0
        %6183 = vmatprep.subr.bf16.mxu0 %v5719
        %6184 = vmatpush1.bf16.msra.mxu0 %v5716
        %6185 = vmatprep.subr.bf16.mxu0 %v5417
        %6186 = vmatpush1.bf16.msra.mxu0 %v5416
        %6187 = vmatprep.subr.bf16.mxu0 %v5385
        %6188 = vmatpush1.bf16.msra.mxu0 %v5384
        %6189 = vmatprep.subr.bf16.mxu0 %v5353
        %6190 = vmatpush1.bf16.msra.mxu0 %v5352
        %6191 = vmatprep.subr.bf16.mxu0 %v5321
        %6192 = vmatpush1.bf16.msra.mxu0 %v5320
        %6193 = vmatprep.subr.bf16.mxu0 %v5289
        %6194 = vmatpush1.bf16.msra.mxu0 %v5288
        %6195 = vmatprep.subr.bf16.mxu0 %v5257
        %6196 = vmatpush1.bf16.msra.mxu0 %v5256
        %6197 = vmatprep.subr.bf16.mxu0 0
        %6198 = vmatpush2.bf16.msra.mxu0 0
        %6199 = vmatprep.subr.bf16.mxu0 0
        %6200 = vmatpush2.bf16.msra.mxu0 0
        %6201 = vmatprep.subr.bf16.mxu0 0
        %6202 = vmatpush2.bf16.msra.mxu0 0
        %6203 = vmatprep.subr.bf16.mxu0 0
        %6204 = vmatpush2.bf16.msra.mxu0 0
        %6205 = vmatprep.subr.bf16.mxu0 0
        %6206 = vmatpush2.bf16.msra.mxu0 0
        %6207 = vmatprep.subr.bf16.mxu0 0
        %6208 = vmatpush2.bf16.msra.mxu0 0
        %6209 = vmatprep.subr.bf16.mxu0 0
        %6210 = vmatpush2.bf16.msra.mxu0 0
        %6211 = vmatprep.subr.bf16.mxu0 0
        %6212 = vmatpush2.bf16.msra.mxu0 0
        %6213 = vmatprep.mubr.bf16.mxu0 0
        %6214 = vmatmul.mubr.bf16.gmra.mxu0 %v5653
        %v6215 = vpop.f32.mrf.mxu0
        %v6216 = vadd.f32 0.0, %v6215
        %v6217 = vpop.f32.mrf.mxu0
        %v6218 = vadd.f32 0.0, %v6217
        %v6219 = vpop.f32.mrf.mxu0
        %v6220 = vadd.f32 0.0, %v6219
        %v6221 = vpop.f32.mrf.mxu0
        %v6222 = vadd.f32 0.0, %v6221
        %6223 = vdwg.mxu0
        %6224 = vmatprep.subr.bf16.mxu0 0
        %6225 = vmatpush1.bf16.msra.mxu0 0
        %6226 = vmatprep.subr.bf16.mxu0 %v5725
        %6227 = vmatpush1.bf16.msra.mxu0 %v5722
        %6228 = vmatprep.subr.bf16.mxu0 %v5419
        %6229 = vmatpush1.bf16.msra.mxu0 %v5418
        %6230 = vmatprep.subr.bf16.mxu0 %v5387
        %6231 = vmatpush1.bf16.msra.mxu0 %v5386
        %6232 = vmatprep.subr.bf16.mxu0 %v5355
        %6233 = vmatpush1.bf16.msra.mxu0 %v5354
        %6234 = vmatprep.subr.bf16.mxu0 %v5323
        %6235 = vmatpush1.bf16.msra.mxu0 %v5322
        %6236 = vmatprep.subr.bf16.mxu0 %v5291
        %6237 = vmatpush1.bf16.msra.mxu0 %v5290
        %6238 = vmatprep.subr.bf16.mxu0 %v5259
        %6239 = vmatpush1.bf16.msra.mxu0 %v5258
        %6240 = vmatprep.subr.bf16.mxu0 0
        %6241 = vmatpush2.bf16.msra.mxu0 0
        %6242 = vmatprep.subr.bf16.mxu0 0
        %6243 = vmatpush2.bf16.msra.mxu0 0
        %6244 = vmatprep.subr.bf16.mxu0 0
        %6245 = vmatpush2.bf16.msra.mxu0 0
        %6246 = vmatprep.subr.bf16.mxu0 0
        %6247 = vmatpush2.bf16.msra.mxu0 0
        %6248 = vmatprep.subr.bf16.mxu0 0
        %6249 = vmatpush2.bf16.msra.mxu0 0
        %6250 = vmatprep.subr.bf16.mxu0 0
        %6251 = vmatpush2.bf16.msra.mxu0 0
        %6252 = vmatprep.subr.bf16.mxu0 0
        %6253 = vmatpush2.bf16.msra.mxu0 0
        %6254 = vmatprep.subr.bf16.mxu0 0
        %6255 = vmatpush2.bf16.msra.mxu0 0
        %6256 = vmatprep.mubr.bf16.mxu0 0
        %6257 = vmatmul.mubr.bf16.gmra.mxu0 %v5653
        %v6258 = vpop.f32.mrf.mxu0
        %v6259 = vadd.f32 0.0, %v6258
        %v6260 = vpop.f32.mrf.mxu0
        %v6261 = vadd.f32 0.0, %v6260
        %v6262 = vpop.f32.mrf.mxu0
        %v6263 = vadd.f32 0.0, %v6262
        %v6264 = vpop.f32.mrf.mxu0
        %v6265 = vadd.f32 0.0, %v6264
        %6266 = vdwg.mxu0
        %6267 = vmatprep.subr.bf16.mxu0 0
        %6268 = vmatpush1.bf16.msra.mxu0 0
        %6269 = vmatprep.subr.bf16.mxu0 %v5731
        %6270 = vmatpush1.bf16.msra.mxu0 %v5728
        %6271 = vmatprep.subr.bf16.mxu0 %v5421
        %6272 = vmatpush1.bf16.msra.mxu0 %v5420
        %6273 = vmatprep.subr.bf16.mxu0 %v5389
        %6274 = vmatpush1.bf16.msra.mxu0 %v5388
        %6275 = vmatprep.subr.bf16.mxu0 %v5357
        %6276 = vmatpush1.bf16.msra.mxu0 %v5356
        %6277 = vmatprep.subr.bf16.mxu0 %v5325
        %6278 = vmatpush1.bf16.msra.mxu0 %v5324
        %6279 = vmatprep.subr.bf16.mxu0 %v5293
        %6280 = vmatpush1.bf16.msra.mxu0 %v5292
        %6281 = vmatprep.subr.bf16.mxu0 %v5261
        %6282 = vmatpush1.bf16.msra.mxu0 %v5260
        %6283 = vmatprep.subr.bf16.mxu0 0
        %6284 = vmatpush2.bf16.msra.mxu0 0
        %6285 = vmatprep.subr.bf16.mxu0 0
        %6286 = vmatpush2.bf16.msra.mxu0 0
        %6287 = vmatprep.subr.bf16.mxu0 0
        %6288 = vmatpush2.bf16.msra.mxu0 0
        %6289 = vmatprep.subr.bf16.mxu0 0
        %6290 = vmatpush2.bf16.msra.mxu0 0
        %6291 = vmatprep.subr.bf16.mxu0 0
        %6292 = vmatpush2.bf16.msra.mxu0 0
        %6293 = vmatprep.subr.bf16.mxu0 0
        %6294 = vmatpush2.bf16.msra.mxu0 0
        %6295 = vmatprep.subr.bf16.mxu0 0
        %6296 = vmatpush2.bf16.msra.mxu0 0
        %6297 = vmatprep.subr.bf16.mxu0 0
        %6298 = vmatpush2.bf16.msra.mxu0 0
        %6299 = vmatprep.mubr.bf16.mxu0 0
        %6300 = vmatmul.mubr.bf16.gmra.mxu0 %v5653
        %v6301 = vpop.f32.mrf.mxu0
        %v6302 = vadd.f32 0.0, %v6301
        %v6303 = vpop.f32.mrf.mxu0
        %v6304 = vadd.f32 0.0, %v6303
        %v6305 = vpop.f32.mrf.mxu0
        %v6306 = vadd.f32 0.0, %v6305
        %v6307 = vpop.f32.mrf.mxu0
        %v6308 = vadd.f32 0.0, %v6307
        %6309 = vdwg.mxu0
        %6310 = vmatprep.subr.bf16.mxu0 0
        %6311 = vmatpush1.bf16.msra.mxu0 0
        %6312 = vmatprep.subr.bf16.mxu0 %v5737
        %6313 = vmatpush1.bf16.msra.mxu0 %v5734
        %6314 = vmatprep.subr.bf16.mxu0 %v5423
        %6315 = vmatpush1.bf16.msra.mxu0 %v5422
        %6316 = vmatprep.subr.bf16.mxu0 %v5391
        %6317 = vmatpush1.bf16.msra.mxu0 %v5390
        %6318 = vmatprep.subr.bf16.mxu0 %v5359
        %6319 = vmatpush1.bf16.msra.mxu0 %v5358
        %6320 = vmatprep.subr.bf16.mxu0 %v5327
        %6321 = vmatpush1.bf16.msra.mxu0 %v5326
        %6322 = vmatprep.subr.bf16.mxu0 %v5295
        %6323 = vmatpush1.bf16.msra.mxu0 %v5294
        %6324 = vmatprep.subr.bf16.mxu0 %v5263
        %6325 = vmatpush1.bf16.msra.mxu0 %v5262
        %6326 = vmatprep.subr.bf16.mxu0 0
        %6327 = vmatpush2.bf16.msra.mxu0 0
        %6328 = vmatprep.subr.bf16.mxu0 0
        %6329 = vmatpush2.bf16.msra.mxu0 0
        %6330 = vmatprep.subr.bf16.mxu0 0
        %6331 = vmatpush2.bf16.msra.mxu0 0
        %6332 = vmatprep.subr.bf16.mxu0 0
        %6333 = vmatpush2.bf16.msra.mxu0 0
        %6334 = vmatprep.subr.bf16.mxu0 0
        %6335 = vmatpush2.bf16.msra.mxu0 0
        %6336 = vmatprep.subr.bf16.mxu0 0
        %6337 = vmatpush2.bf16.msra.mxu0 0
        %6338 = vmatprep.subr.bf16.mxu0 0
        %6339 = vmatpush2.bf16.msra.mxu0 0
        %6340 = vmatprep.subr.bf16.mxu0 0
        %6341 = vmatpush2.bf16.msra.mxu0 0
        %6342 = vmatprep.mubr.bf16.mxu0 0
        %6343 = vmatmul.mubr.bf16.gmra.mxu0 %v5653
        %v6344 = vpop.f32.mrf.mxu0
        %v6345 = vadd.f32 0.0, %v6344
        %v6346 = vpop.f32.mrf.mxu0
        %v6347 = vadd.f32 0.0, %v6346
        %v6348 = vpop.f32.mrf.mxu0
        %v6349 = vadd.f32 0.0, %v6348
        %v6350 = vpop.f32.mrf.mxu0
        %v6351 = vadd.f32 0.0, %v6350
        %6352 = vdwg.mxu0
        %6353 = vmatprep.subr.bf16.mxu0 0
        %6354 = vmatpush1.bf16.msra.mxu0 0
        %6355 = vmatprep.subr.bf16.mxu0 %v5743
        %6356 = vmatpush1.bf16.msra.mxu0 %v5740
        %6357 = vmatprep.subr.bf16.mxu0 %v5425
        %6358 = vmatpush1.bf16.msra.mxu0 %v5424
        %6359 = vmatprep.subr.bf16.mxu0 %v5393
        %6360 = vmatpush1.bf16.msra.mxu0 %v5392
        %6361 = vmatprep.subr.bf16.mxu0 %v5361
        %6362 = vmatpush1.bf16.msra.mxu0 %v5360
        %6363 = vmatprep.subr.bf16.mxu0 %v5329
        %6364 = vmatpush1.bf16.msra.mxu0 %v5328
        %6365 = vmatprep.subr.bf16.mxu0 %v5297
        %6366 = vmatpush1.bf16.msra.mxu0 %v5296
        %6367 = vmatprep.subr.bf16.mxu0 %v5265
        %6368 = vmatpush1.bf16.msra.mxu0 %v5264
        %6369 = vmatprep.subr.bf16.mxu0 0
        %6370 = vmatpush2.bf16.msra.mxu0 0
        %6371 = vmatprep.subr.bf16.mxu0 0
        %6372 = vmatpush2.bf16.msra.mxu0 0
        %6373 = vmatprep.subr.bf16.mxu0 0
        %6374 = vmatpush2.bf16.msra.mxu0 0
        %6375 = vmatprep.subr.bf16.mxu0 0
        %6376 = vmatpush2.bf16.msra.mxu0 0
        %6377 = vmatprep.subr.bf16.mxu0 0
        %6378 = vmatpush2.bf16.msra.mxu0 0
        %6379 = vmatprep.subr.bf16.mxu0 0
        %6380 = vmatpush2.bf16.msra.mxu0 0
        %6381 = vmatprep.subr.bf16.mxu0 0
        %6382 = vmatpush2.bf16.msra.mxu0 0
        %6383 = vmatprep.subr.bf16.mxu0 0
        %6384 = vmatpush2.bf16.msra.mxu0 0
        %6385 = vmatprep.mubr.bf16.mxu0 0
        %6386 = vmatmul.mubr.bf16.gmra.mxu0 %v5653
        %v6387 = vpop.f32.mrf.mxu0
        %v6388 = vadd.f32 0.0, %v6387
        %v6389 = vpop.f32.mrf.mxu0
        %v6390 = vadd.f32 0.0, %v6389
        %v6391 = vpop.f32.mrf.mxu0
        %v6392 = vadd.f32 0.0, %v6391
        %v6393 = vpop.f32.mrf.mxu0
        %v6394 = vadd.f32 0.0, %v6393
        %6395 = vdwg.mxu0
        %6396 = vmatprep.subr.bf16.mxu0 0
        %6397 = vmatpush1.bf16.msra.mxu0 0
        %6398 = vmatprep.subr.bf16.mxu0 %v5749
        %6399 = vmatpush1.bf16.msra.mxu0 %v5746
        %6400 = vmatprep.subr.bf16.mxu0 %v5427
        %6401 = vmatpush1.bf16.msra.mxu0 %v5426
        %6402 = vmatprep.subr.bf16.mxu0 %v5395
        %6403 = vmatpush1.bf16.msra.mxu0 %v5394
        %6404 = vmatprep.subr.bf16.mxu0 %v5363
        %6405 = vmatpush1.bf16.msra.mxu0 %v5362
        %6406 = vmatprep.subr.bf16.mxu0 %v5331
        %6407 = vmatpush1.bf16.msra.mxu0 %v5330
        %6408 = vmatprep.subr.bf16.mxu0 %v5299
        %6409 = vmatpush1.bf16.msra.mxu0 %v5298
        %6410 = vmatprep.subr.bf16.mxu0 %v5267
        %6411 = vmatpush1.bf16.msra.mxu0 %v5266
        %6412 = vmatprep.subr.bf16.mxu0 0
        %6413 = vmatpush2.bf16.msra.mxu0 0
        %6414 = vmatprep.subr.bf16.mxu0 0
        %6415 = vmatpush2.bf16.msra.mxu0 0
        %6416 = vmatprep.subr.bf16.mxu0 0
        %6417 = vmatpush2.bf16.msra.mxu0 0
        %6418 = vmatprep.subr.bf16.mxu0 0
        %6419 = vmatpush2.bf16.msra.mxu0 0
        %6420 = vmatprep.subr.bf16.mxu0 0
        %6421 = vmatpush2.bf16.msra.mxu0 0
        %6422 = vmatprep.subr.bf16.mxu0 0
        %6423 = vmatpush2.bf16.msra.mxu0 0
        %6424 = vmatprep.subr.bf16.mxu0 0
        %6425 = vmatpush2.bf16.msra.mxu0 0
        %6426 = vmatprep.subr.bf16.mxu0 0
        %6427 = vmatpush2.bf16.msra.mxu0 0
        %6428 = vmatprep.mubr.bf16.mxu0 0
        %6429 = vmatmul.mubr.bf16.gmra.mxu0 %v5653
        %v6430 = vpop.f32.mrf.mxu0
        %v6431 = vadd.f32 0.0, %v6430
        %v6432 = vpop.f32.mrf.mxu0
        %v6433 = vadd.f32 0.0, %v6432
        %v6434 = vpop.f32.mrf.mxu0
        %v6435 = vadd.f32 0.0, %v6434
        %v6436 = vpop.f32.mrf.mxu0
        %v6437 = vadd.f32 0.0, %v6436
        %6438 = vdwg.mxu0
        %v6439 = vadd.f32 %v3746, %v5786
        %v6440 = vadd.f32 %v3748, %v5788
        %v6441 = vadd.f32 %v3789, %v5829
        %v6442 = vadd.f32 %v3791, %v5831
        %v6443 = vadd.f32 %v3832, %v5872
        %v6444 = vadd.f32 %v3834, %v5874
        %v6445 = vadd.f32 %v3875, %v5915
        %v6446 = vadd.f32 %v3877, %v5917
        %v6447 = vadd.f32 %v3918, %v5958
        %v6448 = vadd.f32 %v3920, %v5960
        %v6449 = vadd.f32 %v3961, %v6001
        %v6450 = vadd.f32 %v3963, %v6003
        %v6451 = vadd.f32 %v4004, %v6044
        %v6452 = vadd.f32 %v4006, %v6046
        %v6453 = vadd.f32 %v4047, %v6087
        %v6454 = vadd.f32 %v4049, %v6089
        %v6455 = vadd.f32 %v4090, %v6130
        %v6456 = vadd.f32 %v4092, %v6132
        %v6457 = vadd.f32 %v4133, %v6173
        %v6458 = vadd.f32 %v4135, %v6175
        %v6459 = vadd.f32 %v4176, %v6216
        %v6460 = vadd.f32 %v4178, %v6218
        %v6461 = vadd.f32 %v4219, %v6259
        %v6462 = vadd.f32 %v4221, %v6261
        %v6463 = vadd.f32 %v4262, %v6302
        %v6464 = vadd.f32 %v4264, %v6304
        %v6465 = vadd.f32 %v4305, %v6345
        %v6466 = vadd.f32 %v4307, %v6347
        %v6467 = vadd.f32 %v4348, %v6388
        %v6468 = vadd.f32 %v4350, %v6390
        %v6469 = vadd.f32 %v4391, %v6431
        %v6470 = vadd.f32 %v4393, %v6433
        %v6471 = vadd.f32 %v3750, %v5790
        %v6472 = vadd.f32 %v3752, %v5792
        %v6473 = vadd.f32 %v3793, %v5833
        %v6474 = vadd.f32 %v3795, %v5835
        %v6475 = vadd.f32 %v3836, %v5876
        %v6476 = vadd.f32 %v3838, %v5878
        %v6477 = vadd.f32 %v3879, %v5919
        %v6478 = vadd.f32 %v3881, %v5921
        %v6479 = vadd.f32 %v3922, %v5962
        %v6480 = vadd.f32 %v3924, %v5964
        %v6481 = vadd.f32 %v3965, %v6005
        %v6482 = vadd.f32 %v3967, %v6007
        %v6483 = vadd.f32 %v4008, %v6048
        %v6484 = vadd.f32 %v4010, %v6050
        %v6485 = vadd.f32 %v4051, %v6091
        %v6486 = vadd.f32 %v4053, %v6093
        %v6487 = vadd.f32 %v4094, %v6134
        %v6488 = vadd.f32 %v4096, %v6136
        %v6489 = vadd.f32 %v4137, %v6177
        %v6490 = vadd.f32 %v4139, %v6179
        %v6491 = vadd.f32 %v4180, %v6220
        %v6492 = vadd.f32 %v4182, %v6222
        %v6493 = vadd.f32 %v4223, %v6263
        %v6494 = vadd.f32 %v4225, %v6265
        %v6495 = vadd.f32 %v4266, %v6306
        %v6496 = vadd.f32 %v4268, %v6308
        %v6497 = vadd.f32 %v4309, %v6349
        %v6498 = vadd.f32 %v4311, %v6351
        %v6499 = vadd.f32 %v4352, %v6392
        %v6500 = vadd.f32 %v4354, %v6394
        %v6501 = vadd.f32 %v4395, %v6435
        %v6502 = vadd.f32 %v4397, %v6437
        %v6503 = vld [vmem:[#allocation6] sm:$0xff]
        %v6504 = vld [vmem:[#allocation6 + $0x8] sm:$0xff]
        %v6505 = vld [vmem:[#allocation6 + $0x10] sm:$0xff]
        %v6506 = vld [vmem:[#allocation6 + $0x18] sm:$0xff]
        %v6511 = vlaneseq
        %v6512 = vshrl.u32 %v6511, 7
        %v6513 = vsub.s32 0, %v6512
        %v6514 = vrot.slane %v6503, %v6513
        %v6515 = vlaneseq
        %v6516 = vshrl.u32 %v6515, 7
        %v6517 = vsub.s32 1, %v6516
        %v6518 = vrot.slane %v6503, %v6517
        %v6519 = vlaneseq
        %v6520 = vshrl.u32 %v6519, 7
        %v6521 = vsub.s32 2, %v6520
        %v6522 = vrot.slane %v6503, %v6521
        %v6523 = vlaneseq
        %v6524 = vshrl.u32 %v6523, 7
        %v6525 = vsub.s32 3, %v6524
        %v6526 = vrot.slane %v6503, %v6525
        %v6527 = vlaneseq
        %v6528 = vshrl.u32 %v6527, 7
        %v6529 = vsub.s32 4, %v6528
        %v6530 = vrot.slane %v6503, %v6529
        %v6531 = vlaneseq
        %v6532 = vshrl.u32 %v6531, 7
        %v6533 = vsub.s32 5, %v6532
        %v6534 = vrot.slane %v6503, %v6533
        %v6535 = vlaneseq
        %v6536 = vshrl.u32 %v6535, 7
        %v6537 = vsub.s32 6, %v6536
        %v6538 = vrot.slane %v6503, %v6537
        %v6539 = vlaneseq
        %v6540 = vshrl.u32 %v6539, 7
        %v6541 = vsub.s32 7, %v6540
        %v6542 = vrot.slane %v6503, %v6541
        %v6543 = vlaneseq
        %v6544 = vshrl.u32 %v6543, 7
        %v6545 = vsub.s32 0, %v6544
        %v6546 = vrot.slane %v6504, %v6545
        %v6547 = vlaneseq
        %v6548 = vshrl.u32 %v6547, 7
        %v6549 = vsub.s32 1, %v6548
        %v6550 = vrot.slane %v6504, %v6549
        %v6551 = vlaneseq
        %v6552 = vshrl.u32 %v6551, 7
        %v6553 = vsub.s32 2, %v6552
        %v6554 = vrot.slane %v6504, %v6553
        %v6555 = vlaneseq
        %v6556 = vshrl.u32 %v6555, 7
        %v6557 = vsub.s32 3, %v6556
        %v6558 = vrot.slane %v6504, %v6557
        %v6559 = vlaneseq
        %v6560 = vshrl.u32 %v6559, 7
        %v6561 = vsub.s32 4, %v6560
        %v6562 = vrot.slane %v6504, %v6561
        %v6563 = vlaneseq
        %v6564 = vshrl.u32 %v6563, 7
        %v6565 = vsub.s32 5, %v6564
        %v6566 = vrot.slane %v6504, %v6565
        %v6567 = vlaneseq
        %v6568 = vshrl.u32 %v6567, 7
        %v6569 = vsub.s32 6, %v6568
        %v6570 = vrot.slane %v6504, %v6569
        %v6571 = vlaneseq
        %v6572 = vshrl.u32 %v6571, 7
        %v6573 = vsub.s32 7, %v6572
        %v6574 = vrot.slane %v6504, %v6573
        %v6575 = vlaneseq
        %v6576 = vshrl.u32 %v6575, 7
        %v6577 = vsub.s32 0, %v6576
        %v6578 = vrot.slane %v6505, %v6577
        %v6579 = vlaneseq
        %v6580 = vshrl.u32 %v6579, 7
        %v6581 = vsub.s32 1, %v6580
        %v6582 = vrot.slane %v6505, %v6581
        %v6583 = vlaneseq
        %v6584 = vshrl.u32 %v6583, 7
        %v6585 = vsub.s32 2, %v6584
        %v6586 = vrot.slane %v6505, %v6585
        %v6587 = vlaneseq
        %v6588 = vshrl.u32 %v6587, 7
        %v6589 = vsub.s32 3, %v6588
        %v6590 = vrot.slane %v6505, %v6589
        %v6591 = vlaneseq
        %v6592 = vshrl.u32 %v6591, 7
        %v6593 = vsub.s32 4, %v6592
        %v6594 = vrot.slane %v6505, %v6593
        %v6595 = vlaneseq
        %v6596 = vshrl.u32 %v6595, 7
        %v6597 = vsub.s32 5, %v6596
        %v6598 = vrot.slane %v6505, %v6597
        %v6599 = vlaneseq
        %v6600 = vshrl.u32 %v6599, 7
        %v6601 = vsub.s32 6, %v6600
        %v6602 = vrot.slane %v6505, %v6601
        %v6603 = vlaneseq
        %v6604 = vshrl.u32 %v6603, 7
        %v6605 = vsub.s32 7, %v6604
        %v6606 = vrot.slane %v6505, %v6605
        %v6607 = vlaneseq
        %v6608 = vshrl.u32 %v6607, 7
        %v6609 = vsub.s32 0, %v6608
        %v6610 = vrot.slane %v6506, %v6609
        %v6611 = vlaneseq
        %v6612 = vshrl.u32 %v6611, 7
        %v6613 = vsub.s32 1, %v6612
        %v6614 = vrot.slane %v6506, %v6613
        %v6615 = vlaneseq
        %v6616 = vshrl.u32 %v6615, 7
        %v6617 = vsub.s32 2, %v6616
        %v6618 = vrot.slane %v6506, %v6617
        %v6619 = vlaneseq
        %v6620 = vshrl.u32 %v6619, 7
        %v6621 = vsub.s32 3, %v6620
        %v6622 = vrot.slane %v6506, %v6621
        %v6623 = vlaneseq
        %v6624 = vshrl.u32 %v6623, 7
        %v6625 = vsub.s32 4, %v6624
        %v6626 = vrot.slane %v6506, %v6625
        %v6627 = vlaneseq
        %v6628 = vshrl.u32 %v6627, 7
        %v6629 = vsub.s32 5, %v6628
        %v6630 = vrot.slane %v6506, %v6629
        %v6631 = vlaneseq
        %v6632 = vshrl.u32 %v6631, 7
        %v6633 = vsub.s32 6, %v6632
        %v6634 = vrot.slane %v6506, %v6633
        %v6635 = vlaneseq
        %v6636 = vshrl.u32 %v6635, 7
        %v6637 = vsub.s32 7, %v6636
        %v6638 = vrot.slane %v6506, %v6637
        %v6671 = vadd.f32 %v6439, %v6514
        %v6672 = vadd.f32 %v6440, %v6518
        %v6673 = vadd.f32 %v6441, %v6522
        %v6674 = vadd.f32 %v6442, %v6526
        %v6675 = vadd.f32 %v6443, %v6530
        %v6676 = vadd.f32 %v6444, %v6534
        %v6677 = vadd.f32 %v6445, %v6538
        %v6678 = vadd.f32 %v6446, %v6542
        %v6679 = vadd.f32 %v6447, %v6546
        %v6680 = vadd.f32 %v6448, %v6550
        %v6681 = vadd.f32 %v6449, %v6554
        %v6682 = vadd.f32 %v6450, %v6558
        %v6683 = vadd.f32 %v6451, %v6562
        %v6684 = vadd.f32 %v6452, %v6566
        %v6685 = vadd.f32 %v6453, %v6570
        %v6686 = vadd.f32 %v6454, %v6574
        %v6687 = vadd.f32 %v6455, %v6578
        %v6688 = vadd.f32 %v6456, %v6582
        %v6689 = vadd.f32 %v6457, %v6586
        %v6690 = vadd.f32 %v6458, %v6590
        %v6691 = vadd.f32 %v6459, %v6594
        %v6692 = vadd.f32 %v6460, %v6598
        %v6693 = vadd.f32 %v6461, %v6602
        %v6694 = vadd.f32 %v6462, %v6606
        %v6695 = vadd.f32 %v6463, %v6610
        %v6696 = vadd.f32 %v6464, %v6614
        %v6697 = vadd.f32 %v6465, %v6618
        %v6698 = vadd.f32 %v6466, %v6622
        %v6699 = vadd.f32 %v6467, %v6626
        %v6700 = vadd.f32 %v6468, %v6630
        %v6701 = vadd.f32 %v6469, %v6634
        %v6702 = vadd.f32 %v6470, %v6638
        %v6703 = vadd.f32 %v6471, %v6514
        %v6704 = vadd.f32 %v6472, %v6518
        %v6705 = vadd.f32 %v6473, %v6522
        %v6706 = vadd.f32 %v6474, %v6526
        %v6707 = vadd.f32 %v6475, %v6530
        %v6708 = vadd.f32 %v6476, %v6534
        %v6709 = vadd.f32 %v6477, %v6538
        %v6710 = vadd.f32 %v6478, %v6542
        %v6711 = vadd.f32 %v6479, %v6546
        %v6712 = vadd.f32 %v6480, %v6550
        %v6713 = vadd.f32 %v6481, %v6554
        %v6714 = vadd.f32 %v6482, %v6558
        %v6715 = vadd.f32 %v6483, %v6562
        %v6716 = vadd.f32 %v6484, %v6566
        %v6717 = vadd.f32 %v6485, %v6570
        %v6718 = vadd.f32 %v6486, %v6574
        %v6719 = vadd.f32 %v6487, %v6578
        %v6720 = vadd.f32 %v6488, %v6582
        %v6721 = vadd.f32 %v6489, %v6586
        %v6722 = vadd.f32 %v6490, %v6590
        %v6723 = vadd.f32 %v6491, %v6594
        %v6724 = vadd.f32 %v6492, %v6598
        %v6725 = vadd.f32 %v6493, %v6602
        %v6726 = vadd.f32 %v6494, %v6606
        %v6727 = vadd.f32 %v6495, %v6610
        %v6728 = vadd.f32 %v6496, %v6614
        %v6729 = vadd.f32 %v6497, %v6618
        %v6730 = vadd.f32 %v6498, %v6622
        %v6731 = vadd.f32 %v6499, %v6626
        %v6732 = vadd.f32 %v6500, %v6630
        %v6733 = vadd.f32 %v6501, %v6634
        %v6734 = vadd.f32 %v6502, %v6638
        %v6735 = vmax.f32 %v6671, 0.0
        %v6736 = vmax.f32 %v6672, 0.0
        %v6737 = vmax.f32 %v6673, 0.0
        %v6738 = vmax.f32 %v6674, 0.0
        %v6739 = vmax.f32 %v6675, 0.0
        %v6740 = vmax.f32 %v6676, 0.0
        %v6741 = vmax.f32 %v6677, 0.0
        %v6742 = vmax.f32 %v6678, 0.0
        %v6743 = vmax.f32 %v6679, 0.0
        %v6744 = vmax.f32 %v6680, 0.0
        %v6745 = vmax.f32 %v6681, 0.0
        %v6746 = vmax.f32 %v6682, 0.0
        %v6747 = vmax.f32 %v6683, 0.0
        %v6748 = vmax.f32 %v6684, 0.0
        %v6749 = vmax.f32 %v6685, 0.0
        %v6750 = vmax.f32 %v6686, 0.0
        %v6751 = vmax.f32 %v6687, 0.0
        %v6752 = vmax.f32 %v6688, 0.0
        %v6753 = vmax.f32 %v6689, 0.0
        %v6754 = vmax.f32 %v6690, 0.0
        %v6755 = vmax.f32 %v6691, 0.0
        %v6756 = vmax.f32 %v6692, 0.0
        %v6757 = vmax.f32 %v6693, 0.0
        %v6758 = vmax.f32 %v6694, 0.0
        %v6759 = vmax.f32 %v6695, 0.0
        %v6760 = vmax.f32 %v6696, 0.0
        %v6761 = vmax.f32 %v6697, 0.0
        %v6762 = vmax.f32 %v6698, 0.0
        %v6763 = vmax.f32 %v6699, 0.0
        %v6764 = vmax.f32 %v6700, 0.0
        %v6765 = vmax.f32 %v6701, 0.0
        %v6766 = vmax.f32 %v6702, 0.0
        %v6767 = vmax.f32 %v6703, 0.0
        %v6768 = vmax.f32 %v6704, 0.0
        %v6769 = vmax.f32 %v6705, 0.0
        %v6770 = vmax.f32 %v6706, 0.0
        %v6771 = vmax.f32 %v6707, 0.0
        %v6772 = vmax.f32 %v6708, 0.0
        %v6773 = vmax.f32 %v6709, 0.0
        %v6774 = vmax.f32 %v6710, 0.0
        %v6775 = vmax.f32 %v6711, 0.0
        %v6776 = vmax.f32 %v6712, 0.0
        %v6777 = vmax.f32 %v6713, 0.0
        %v6778 = vmax.f32 %v6714, 0.0
        %v6779 = vmax.f32 %v6715, 0.0
        %v6780 = vmax.f32 %v6716, 0.0
        %v6781 = vmax.f32 %v6717, 0.0
        %v6782 = vmax.f32 %v6718, 0.0
        %v6783 = vmax.f32 %v6719, 0.0
        %v6784 = vmax.f32 %v6720, 0.0
        %v6785 = vmax.f32 %v6721, 0.0
        %v6786 = vmax.f32 %v6722, 0.0
        %v6787 = vmax.f32 %v6723, 0.0
        %v6788 = vmax.f32 %v6724, 0.0
        %v6789 = vmax.f32 %v6725, 0.0
        %v6790 = vmax.f32 %v6726, 0.0
        %v6791 = vmax.f32 %v6727, 0.0
        %v6792 = vmax.f32 %v6728, 0.0
        %v6793 = vmax.f32 %v6729, 0.0
        %v6794 = vmax.f32 %v6730, 0.0
        %v6795 = vmax.f32 %v6731, 0.0
        %v6796 = vmax.f32 %v6732, 0.0
        %v6797 = vmax.f32 %v6733, 0.0
        %v6798 = vmax.f32 %v6734, 0.0
        %v6799 = vld [vmem:[#allocation2] sm:$0xff]
        %v6800 = vld [vmem:[#allocation2 + $0x8] sm:$0xff]
        %v6801 = vld [vmem:[#allocation2 + $0x10] sm:$0xff]
        %v6802 = vld [vmem:[#allocation2 + $0x18] sm:$0xff]
        %v6803 = vadd.f32 %v6735, %v6767
        %v6804 = vrot.slane %v6803, 4
        %v6805 = vadd.f32 %v6803, %v6804
        %v6806 = vrot.slane %v6805, 2
        %v6807 = vadd.f32 %v6805, %v6806
        %v6808 = vrot.slane %v6807, 1
        %v6809 = vadd.f32 %v6807, %v6808
        %v6810 = vadd.f32 %v6736, %v6768
        %v6811 = vrot.slane %v6810, 4
        %v6812 = vadd.f32 %v6810, %v6811
        %v6813 = vrot.slane %v6812, 2
        %v6814 = vadd.f32 %v6812, %v6813
        %v6815 = vrot.slane %v6814, 1
        %v6816 = vadd.f32 %v6814, %v6815
        %v6817 = vadd.f32 %v6737, %v6769
        %v6818 = vrot.slane %v6817, 4
        %v6819 = vadd.f32 %v6817, %v6818
        %v6820 = vrot.slane %v6819, 2
        %v6821 = vadd.f32 %v6819, %v6820
        %v6822 = vrot.slane %v6821, 1
        %v6823 = vadd.f32 %v6821, %v6822
        %v6824 = vadd.f32 %v6738, %v6770
        %v6825 = vrot.slane %v6824, 4
        %v6826 = vadd.f32 %v6824, %v6825
        %v6827 = vrot.slane %v6826, 2
        %v6828 = vadd.f32 %v6826, %v6827
        %v6829 = vrot.slane %v6828, 1
        %v6830 = vadd.f32 %v6828, %v6829
        %v6831 = vadd.f32 %v6739, %v6771
        %v6832 = vrot.slane %v6831, 4
        %v6833 = vadd.f32 %v6831, %v6832
        %v6834 = vrot.slane %v6833, 2
        %v6835 = vadd.f32 %v6833, %v6834
        %v6836 = vrot.slane %v6835, 1
        %v6837 = vadd.f32 %v6835, %v6836
        %v6838 = vadd.f32 %v6740, %v6772
        %v6839 = vrot.slane %v6838, 4
        %v6840 = vadd.f32 %v6838, %v6839
        %v6841 = vrot.slane %v6840, 2
        %v6842 = vadd.f32 %v6840, %v6841
        %v6843 = vrot.slane %v6842, 1
        %v6844 = vadd.f32 %v6842, %v6843
        %v6845 = vadd.f32 %v6741, %v6773
        %v6846 = vrot.slane %v6845, 4
        %v6847 = vadd.f32 %v6845, %v6846
        %v6848 = vrot.slane %v6847, 2
        %v6849 = vadd.f32 %v6847, %v6848
        %v6850 = vrot.slane %v6849, 1
        %v6851 = vadd.f32 %v6849, %v6850
        %v6852 = vadd.f32 %v6742, %v6774
        %v6853 = vrot.slane %v6852, 4
        %v6854 = vadd.f32 %v6852, %v6853
        %v6855 = vrot.slane %v6854, 2
        %v6856 = vadd.f32 %v6854, %v6855
        %v6857 = vrot.slane %v6856, 1
        %v6858 = vadd.f32 %v6856, %v6857
        %v6859 = vadd.f32 %v6743, %v6775
        %v6860 = vrot.slane %v6859, 4
        %v6861 = vadd.f32 %v6859, %v6860
        %v6862 = vrot.slane %v6861, 2
        %v6863 = vadd.f32 %v6861, %v6862
        %v6864 = vrot.slane %v6863, 1
        %v6865 = vadd.f32 %v6863, %v6864
        %v6866 = vadd.f32 %v6744, %v6776
        %v6867 = vrot.slane %v6866, 4
        %v6868 = vadd.f32 %v6866, %v6867
        %v6869 = vrot.slane %v6868, 2
        %v6870 = vadd.f32 %v6868, %v6869
        %v6871 = vrot.slane %v6870, 1
        %v6872 = vadd.f32 %v6870, %v6871
        %v6873 = vadd.f32 %v6745, %v6777
        %v6874 = vrot.slane %v6873, 4
        %v6875 = vadd.f32 %v6873, %v6874
        %v6876 = vrot.slane %v6875, 2
        %v6877 = vadd.f32 %v6875, %v6876
        %v6878 = vrot.slane %v6877, 1
        %v6879 = vadd.f32 %v6877, %v6878
        %v6880 = vadd.f32 %v6746, %v6778
        %v6881 = vrot.slane %v6880, 4
        %v6882 = vadd.f32 %v6880, %v6881
        %v6883 = vrot.slane %v6882, 2
        %v6884 = vadd.f32 %v6882, %v6883
        %v6885 = vrot.slane %v6884, 1
        %v6886 = vadd.f32 %v6884, %v6885
        %v6887 = vadd.f32 %v6747, %v6779
        %v6888 = vrot.slane %v6887, 4
        %v6889 = vadd.f32 %v6887, %v6888
        %v6890 = vrot.slane %v6889, 2
        %v6891 = vadd.f32 %v6889, %v6890
        %v6892 = vrot.slane %v6891, 1
        %v6893 = vadd.f32 %v6891, %v6892
        %v6894 = vadd.f32 %v6748, %v6780
        %v6895 = vrot.slane %v6894, 4
        %v6896 = vadd.f32 %v6894, %v6895
        %v6897 = vrot.slane %v6896, 2
        %v6898 = vadd.f32 %v6896, %v6897
        %v6899 = vrot.slane %v6898, 1
        %v6900 = vadd.f32 %v6898, %v6899
        %v6901 = vadd.f32 %v6749, %v6781
        %v6902 = vrot.slane %v6901, 4
        %v6903 = vadd.f32 %v6901, %v6902
        %v6904 = vrot.slane %v6903, 2
        %v6905 = vadd.f32 %v6903, %v6904
        %v6906 = vrot.slane %v6905, 1
        %v6907 = vadd.f32 %v6905, %v6906
        %v6908 = vadd.f32 %v6750, %v6782
        %v6909 = vrot.slane %v6908, 4
        %v6910 = vadd.f32 %v6908, %v6909
        %v6911 = vrot.slane %v6910, 2
        %v6912 = vadd.f32 %v6910, %v6911
        %v6913 = vrot.slane %v6912, 1
        %v6914 = vadd.f32 %v6912, %v6913
        %v6915 = vadd.f32 %v6751, %v6783
        %v6916 = vrot.slane %v6915, 4
        %v6917 = vadd.f32 %v6915, %v6916
        %v6918 = vrot.slane %v6917, 2
        %v6919 = vadd.f32 %v6917, %v6918
        %v6920 = vrot.slane %v6919, 1
        %v6921 = vadd.f32 %v6919, %v6920
        %v6922 = vadd.f32 %v6752, %v6784
        %v6923 = vrot.slane %v6922, 4
        %v6924 = vadd.f32 %v6922, %v6923
        %v6925 = vrot.slane %v6924, 2
        %v6926 = vadd.f32 %v6924, %v6925
        %v6927 = vrot.slane %v6926, 1
        %v6928 = vadd.f32 %v6926, %v6927
        %v6929 = vadd.f32 %v6753, %v6785
        %v6930 = vrot.slane %v6929, 4
        %v6931 = vadd.f32 %v6929, %v6930
        %v6932 = vrot.slane %v6931, 2
        %v6933 = vadd.f32 %v6931, %v6932
        %v6934 = vrot.slane %v6933, 1
        %v6935 = vadd.f32 %v6933, %v6934
        %v6936 = vadd.f32 %v6754, %v6786
        %v6937 = vrot.slane %v6936, 4
        %v6938 = vadd.f32 %v6936, %v6937
        %v6939 = vrot.slane %v6938, 2
        %v6940 = vadd.f32 %v6938, %v6939
        %v6941 = vrot.slane %v6940, 1
        %v6942 = vadd.f32 %v6940, %v6941
        %v6943 = vadd.f32 %v6755, %v6787
        %v6944 = vrot.slane %v6943, 4
        %v6945 = vadd.f32 %v6943, %v6944
        %v6946 = vrot.slane %v6945, 2
        %v6947 = vadd.f32 %v6945, %v6946
        %v6948 = vrot.slane %v6947, 1
        %v6949 = vadd.f32 %v6947, %v6948
        %v6950 = vadd.f32 %v6756, %v6788
        %v6951 = vrot.slane %v6950, 4
        %v6952 = vadd.f32 %v6950, %v6951
        %v6953 = vrot.slane %v6952, 2
        %v6954 = vadd.f32 %v6952, %v6953
        %v6955 = vrot.slane %v6954, 1
        %v6956 = vadd.f32 %v6954, %v6955
        %v6957 = vadd.f32 %v6757, %v6789
        %v6958 = vrot.slane %v6957, 4
        %v6959 = vadd.f32 %v6957, %v6958
        %v6960 = vrot.slane %v6959, 2
        %v6961 = vadd.f32 %v6959, %v6960
        %v6962 = vrot.slane %v6961, 1
        %v6963 = vadd.f32 %v6961, %v6962
        %v6964 = vadd.f32 %v6758, %v6790
        %v6965 = vrot.slane %v6964, 4
        %v6966 = vadd.f32 %v6964, %v6965
        %v6967 = vrot.slane %v6966, 2
        %v6968 = vadd.f32 %v6966, %v6967
        %v6969 = vrot.slane %v6968, 1
        %v6970 = vadd.f32 %v6968, %v6969
        %v6971 = vadd.f32 %v6759, %v6791
        %v6972 = vrot.slane %v6971, 4
        %v6973 = vadd.f32 %v6971, %v6972
        %v6974 = vrot.slane %v6973, 2
        %v6975 = vadd.f32 %v6973, %v6974
        %v6976 = vrot.slane %v6975, 1
        %v6977 = vadd.f32 %v6975, %v6976
        %v6978 = vadd.f32 %v6760, %v6792
        %v6979 = vrot.slane %v6978, 4
        %v6980 = vadd.f32 %v6978, %v6979
        %v6981 = vrot.slane %v6980, 2
        %v6982 = vadd.f32 %v6980, %v6981
        %v6983 = vrot.slane %v6982, 1
        %v6984 = vadd.f32 %v6982, %v6983
        %v6985 = vadd.f32 %v6761, %v6793
        %v6986 = vrot.slane %v6985, 4
        %v6987 = vadd.f32 %v6985, %v6986
        %v6988 = vrot.slane %v6987, 2
        %v6989 = vadd.f32 %v6987, %v6988
        %v6990 = vrot.slane %v6989, 1
        %v6991 = vadd.f32 %v6989, %v6990
        %v6992 = vadd.f32 %v6762, %v6794
        %v6993 = vrot.slane %v6992, 4
        %v6994 = vadd.f32 %v6992, %v6993
        %v6995 = vrot.slane %v6994, 2
        %v6996 = vadd.f32 %v6994, %v6995
        %v6997 = vrot.slane %v6996, 1
        %v6998 = vadd.f32 %v6996, %v6997
        %v6999 = vadd.f32 %v6763, %v6795
        %v7000 = vrot.slane %v6999, 4
        %v7001 = vadd.f32 %v6999, %v7000
        %v7002 = vrot.slane %v7001, 2
        %v7003 = vadd.f32 %v7001, %v7002
        %v7004 = vrot.slane %v7003, 1
        %v7005 = vadd.f32 %v7003, %v7004
        %v7006 = vadd.f32 %v6764, %v6796
        %v7007 = vrot.slane %v7006, 4
        %v7008 = vadd.f32 %v7006, %v7007
        %v7009 = vrot.slane %v7008, 2
        %v7010 = vadd.f32 %v7008, %v7009
        %v7011 = vrot.slane %v7010, 1
        %v7012 = vadd.f32 %v7010, %v7011
        %v7013 = vadd.f32 %v6765, %v6797
        %v7014 = vrot.slane %v7013, 4
        %v7015 = vadd.f32 %v7013, %v7014
        %v7016 = vrot.slane %v7015, 2
        %v7017 = vadd.f32 %v7015, %v7016
        %v7018 = vrot.slane %v7017, 1
        %v7019 = vadd.f32 %v7017, %v7018
        %v7020 = vadd.f32 %v6766, %v6798
        %v7021 = vrot.slane %v7020, 4
        %v7022 = vadd.f32 %v7020, %v7021
        %v7023 = vrot.slane %v7022, 2
        %v7024 = vadd.f32 %v7022, %v7023
        %v7025 = vrot.slane %v7024, 1
        %v7026 = vadd.f32 %v7024, %v7025
        %v7059 = vcombine.low %v6809, %v6816
        %v7060 = vcombine.low %v6823, %v6830
        %v7061 = vcombine.low %v6837, %v6844
        %v7062 = vcombine.low %v6851, %v6858
        %v7064 = vunpack.c.l.s4 1966171168
        %v7065 = vunpack.c.0.s8 %v7064
        %v7066 = vlaneseq
        %v7067 = vshrl.u32 %v7066, 7
        %v7068 = vsub.s32 %v7065, %v7067
        %v7069 = vrot.slane %v7059, %v7068
        %v7071 = vunpack.c.l.s4 1966171168
        %v7072 = vunpack.c.0.s8 %v7071
        %v7073 = vlaneseq
        %v7074 = vshrl.u32 %v7073, 7
        %v7075 = vsub.s32 %v7072, %v7074
        %v7076 = vrot.slane %v7060, %v7075
        %v7078 = vunpack.c.l.s4 1966171168
        %v7079 = vunpack.c.0.s8 %v7078
        %v7080 = vlaneseq
        %v7081 = vshrl.u32 %v7080, 7
        %v7082 = vsub.s32 %v7079, %v7081
        %v7083 = vrot.slane %v7061, %v7082
        %v7085 = vunpack.c.l.s4 1966171168
        %v7086 = vunpack.c.0.s8 %v7085
        %v7087 = vlaneseq
        %v7088 = vshrl.u32 %v7087, 7
        %v7089 = vsub.s32 %v7086, %v7088
        %v7090 = vrot.slane %v7062, %v7089
        %v7091 = vcombine.low %v7069, %v7076
        %v7092 = vcombine.low %v7083, %v7090
        %v7094 = vunpack.c.l.s4 1966171168
        %v7095 = vunpack.c.0.s8 %v7094
        %v7096 = vlaneseq
        %v7097 = vshrl.u32 %v7096, 7
        %v7098 = vsub.s32 %v7095, %v7097
        %v7099 = vrot.slane %v7091, %v7098
        %v7101 = vunpack.c.l.s4 1966171168
        %v7102 = vunpack.c.0.s8 %v7101
        %v7103 = vlaneseq
        %v7104 = vshrl.u32 %v7103, 7
        %v7105 = vsub.s32 %v7102, %v7104
        %v7106 = vrot.slane %v7092, %v7105
        %v7107 = vcombine.low %v7099, %v7106
        %v7108 = vcombine.low %v6865, %v6872
        %v7109 = vcombine.low %v6879, %v6886
        %v7110 = vcombine.low %v6893, %v6900
        %v7111 = vcombine.low %v6907, %v6914
        %v7113 = vunpack.c.l.s4 1966171168
        %v7114 = vunpack.c.0.s8 %v7113
        %v7115 = vlaneseq
        %v7116 = vshrl.u32 %v7115, 7
        %v7117 = vsub.s32 %v7114, %v7116
        %v7118 = vrot.slane %v7108, %v7117
        %v7120 = vunpack.c.l.s4 1966171168
        %v7121 = vunpack.c.0.s8 %v7120
        %v7122 = vlaneseq
        %v7123 = vshrl.u32 %v7122, 7
        %v7124 = vsub.s32 %v7121, %v7123
        %v7125 = vrot.slane %v7109, %v7124
        %v7127 = vunpack.c.l.s4 1966171168
        %v7128 = vunpack.c.0.s8 %v7127
        %v7129 = vlaneseq
        %v7130 = vshrl.u32 %v7129, 7
        %v7131 = vsub.s32 %v7128, %v7130
        %v7132 = vrot.slane %v7110, %v7131
        %v7134 = vunpack.c.l.s4 1966171168
        %v7135 = vunpack.c.0.s8 %v7134
        %v7136 = vlaneseq
        %v7137 = vshrl.u32 %v7136, 7
        %v7138 = vsub.s32 %v7135, %v7137
        %v7139 = vrot.slane %v7111, %v7138
        %v7140 = vcombine.low %v7118, %v7125
        %v7141 = vcombine.low %v7132, %v7139
        %v7143 = vunpack.c.l.s4 1966171168
        %v7144 = vunpack.c.0.s8 %v7143
        %v7145 = vlaneseq
        %v7146 = vshrl.u32 %v7145, 7
        %v7147 = vsub.s32 %v7144, %v7146
        %v7148 = vrot.slane %v7140, %v7147
        %v7150 = vunpack.c.l.s4 1966171168
        %v7151 = vunpack.c.0.s8 %v7150
        %v7152 = vlaneseq
        %v7153 = vshrl.u32 %v7152, 7
        %v7154 = vsub.s32 %v7151, %v7153
        %v7155 = vrot.slane %v7141, %v7154
        %v7156 = vcombine.low %v7148, %v7155
        %v7157 = vcombine.low %v6921, %v6928
        %v7158 = vcombine.low %v6935, %v6942
        %v7159 = vcombine.low %v6949, %v6956
        %v7160 = vcombine.low %v6963, %v6970
        %v7162 = vunpack.c.l.s4 1966171168
        %v7163 = vunpack.c.0.s8 %v7162
        %v7164 = vlaneseq
        %v7165 = vshrl.u32 %v7164, 7
        %v7166 = vsub.s32 %v7163, %v7165
        %v7167 = vrot.slane %v7157, %v7166
        %v7169 = vunpack.c.l.s4 1966171168
        %v7170 = vunpack.c.0.s8 %v7169
        %v7171 = vlaneseq
        %v7172 = vshrl.u32 %v7171, 7
        %v7173 = vsub.s32 %v7170, %v7172
        %v7174 = vrot.slane %v7158, %v7173
        %v7176 = vunpack.c.l.s4 1966171168
        %v7177 = vunpack.c.0.s8 %v7176
        %v7178 = vlaneseq
        %v7179 = vshrl.u32 %v7178, 7
        %v7180 = vsub.s32 %v7177, %v7179
        %v7181 = vrot.slane %v7159, %v7180
        %v7183 = vunpack.c.l.s4 1966171168
        %v7184 = vunpack.c.0.s8 %v7183
        %v7185 = vlaneseq
        %v7186 = vshrl.u32 %v7185, 7
        %v7187 = vsub.s32 %v7184, %v7186
        %v7188 = vrot.slane %v7160, %v7187
        %v7189 = vcombine.low %v7167, %v7174
        %v7190 = vcombine.low %v7181, %v7188
        %v7192 = vunpack.c.l.s4 1966171168
        %v7193 = vunpack.c.0.s8 %v7192
        %v7194 = vlaneseq
        %v7195 = vshrl.u32 %v7194, 7
        %v7196 = vsub.s32 %v7193, %v7195
        %v7197 = vrot.slane %v7189, %v7196
        %v7199 = vunpack.c.l.s4 1966171168
        %v7200 = vunpack.c.0.s8 %v7199
        %v7201 = vlaneseq
        %v7202 = vshrl.u32 %v7201, 7
        %v7203 = vsub.s32 %v7200, %v7202
        %v7204 = vrot.slane %v7190, %v7203
        %v7205 = vcombine.low %v7197, %v7204
        %v7206 = vcombine.low %v6977, %v6984
        %v7207 = vcombine.low %v6991, %v6998
        %v7208 = vcombine.low %v7005, %v7012
        %v7209 = vcombine.low %v7019, %v7026
        %v7211 = vunpack.c.l.s4 1966171168
        %v7212 = vunpack.c.0.s8 %v7211
        %v7213 = vlaneseq
        %v7214 = vshrl.u32 %v7213, 7
        %v7215 = vsub.s32 %v7212, %v7214
        %v7216 = vrot.slane %v7206, %v7215
        %v7218 = vunpack.c.l.s4 1966171168
        %v7219 = vunpack.c.0.s8 %v7218
        %v7220 = vlaneseq
        %v7221 = vshrl.u32 %v7220, 7
        %v7222 = vsub.s32 %v7219, %v7221
        %v7223 = vrot.slane %v7207, %v7222
        %v7225 = vunpack.c.l.s4 1966171168
        %v7226 = vunpack.c.0.s8 %v7225
        %v7227 = vlaneseq
        %v7228 = vshrl.u32 %v7227, 7
        %v7229 = vsub.s32 %v7226, %v7228
        %v7230 = vrot.slane %v7208, %v7229
        %v7232 = vunpack.c.l.s4 1966171168
        %v7233 = vunpack.c.0.s8 %v7232
        %v7234 = vlaneseq
        %v7235 = vshrl.u32 %v7234, 7
        %v7236 = vsub.s32 %v7233, %v7235
        %v7237 = vrot.slane %v7209, %v7236
        %v7238 = vcombine.low %v7216, %v7223
        %v7239 = vcombine.low %v7230, %v7237
        %v7241 = vunpack.c.l.s4 1966171168
        %v7242 = vunpack.c.0.s8 %v7241
        %v7243 = vlaneseq
        %v7244 = vshrl.u32 %v7243, 7
        %v7245 = vsub.s32 %v7242, %v7244
        %v7246 = vrot.slane %v7238, %v7245
        %v7248 = vunpack.c.l.s4 1966171168
        %v7249 = vunpack.c.0.s8 %v7248
        %v7250 = vlaneseq
        %v7251 = vshrl.u32 %v7250, 7
        %v7252 = vsub.s32 %v7249, %v7251
        %v7253 = vrot.slane %v7239, %v7252
        %v7254 = vcombine.low %v7246, %v7253
        %v7259 = vadd.f32 %v6799, %v7107
        %v7260 = vadd.f32 %v6800, %v7156
        %v7261 = vadd.f32 %v6801, %v7205
        %v7262 = vadd.f32 %v6802, %v7254
        %7263 = vst [vmem:[#allocation2] sm:$0xff] %v7259
        %7264 = vst [vmem:[#allocation2 + $0x8] sm:$0xff] %v7260
        %7265 = vst [vmem:[#allocation2 + $0x10] sm:$0xff] %v7261
        %7266 = vst [vmem:[#allocation2 + $0x18] sm:$0xff] %v7262
        %p7267 = scmp.eq.s32.totalorder %s27, 1
        // Predicated region
        $region61: #{tpu_custom_call.1} parent=39 // pred_check
          %p7268 = pneg %p7267
        $region62: #{tpu_custom_call.1} parent=39 // pred_check_branch
          %7270 = sbr.rel (%p7268) target = $region64
        $region63: #{tpu_custom_call.1} parent=39 // pred_region
          %v7271 = vld [vmem:[#allocation8] sm:$0xf]
          %v7272 = vld [vmem:[#allocation8 + $0x4] sm:$0xf]
          %v7273 = vld [vmem:[#allocation8 + $0x8] sm:$0xf]
          %v7274 = vld [vmem:[#allocation8 + $0xc] sm:$0xf]
          %v7275 = vld [vmem:[#allocation8 + $0x10] sm:$0xf]
          %v7276 = vld [vmem:[#allocation8 + $0x14] sm:$0xf]
          %v7277 = vld [vmem:[#allocation8 + $0x18] sm:$0xf]
          %v7278 = vld [vmem:[#allocation8 + $0x1c] sm:$0xf]
          %v7279 = vld [vmem:[#allocation8 + $0x20] sm:$0xf]
          %v7280 = vld [vmem:[#allocation8 + $0x24] sm:$0xf]
          %v7281 = vld [vmem:[#allocation8 + $0x28] sm:$0xf]
          %v7282 = vld [vmem:[#allocation8 + $0x2c] sm:$0xf]
          %v7283 = vld [vmem:[#allocation8 + $0x30] sm:$0xf]
          %v7284 = vld [vmem:[#allocation8 + $0x34] sm:$0xf]
          %v7285 = vld [vmem:[#allocation8 + $0x38] sm:$0xf]
          %v7286 = vld [vmem:[#allocation8 + $0x3c] sm:$0xf]
          %v7287 = vld [vmem:[#allocation8 + $0x40] sm:$0xf]
          %v7288 = vld [vmem:[#allocation8 + $0x44] sm:$0xf]
          %v7289 = vld [vmem:[#allocation8 + $0x48] sm:$0xf]
          %v7290 = vld [vmem:[#allocation8 + $0x4c] sm:$0xf]
          %v7291 = vld [vmem:[#allocation8 + $0x50] sm:$0xf]
          %v7292 = vld [vmem:[#allocation8 + $0x54] sm:$0xf]
          %v7293 = vld [vmem:[#allocation8 + $0x58] sm:$0xf]
          %v7294 = vld [vmem:[#allocation8 + $0x5c] sm:$0xf]
          %v7295 = vld [vmem:[#allocation8 + $0x60] sm:$0xf]
          %v7296 = vld [vmem:[#allocation8 + $0x64] sm:$0xf]
          %v7297 = vld [vmem:[#allocation8 + $0x68] sm:$0xf]
          %v7298 = vld [vmem:[#allocation8 + $0x6c] sm:$0xf]
          %v7299 = vld [vmem:[#allocation8 + $0x70] sm:$0xf]
          %v7300 = vld [vmem:[#allocation8 + $0x74] sm:$0xf]
          %v7301 = vld [vmem:[#allocation8 + $0x78] sm:$0xf]
          %v7302 = vld [vmem:[#allocation8 + $0x7c] sm:$0xf]
          %v7303 = vld [vmem:[#allocation8 + $0x80] sm:$0xf]
          %v7304 = vld [vmem:[#allocation8 + $0x84] sm:$0xf]
          %v7305 = vld [vmem:[#allocation8 + $0x88] sm:$0xf]
          %v7306 = vld [vmem:[#allocation8 + $0x8c] sm:$0xf]
          %v7307 = vld [vmem:[#allocation8 + $0x90] sm:$0xf]
          %v7308 = vld [vmem:[#allocation8 + $0x94] sm:$0xf]
          %v7309 = vld [vmem:[#allocation8 + $0x98] sm:$0xf]
          %v7310 = vld [vmem:[#allocation8 + $0x9c] sm:$0xf]
          %v7311 = vld [vmem:[#allocation8 + $0xa0] sm:$0xf]
          %v7312 = vld [vmem:[#allocation8 + $0xa4] sm:$0xf]
          %v7313 = vld [vmem:[#allocation8 + $0xa8] sm:$0xf]
          %v7314 = vld [vmem:[#allocation8 + $0xac] sm:$0xf]
          %v7315 = vld [vmem:[#allocation8 + $0xb0] sm:$0xf]
          %v7316 = vld [vmem:[#allocation8 + $0xb4] sm:$0xf]
          %v7317 = vld [vmem:[#allocation8 + $0xb8] sm:$0xf]
          %v7318 = vld [vmem:[#allocation8 + $0xbc] sm:$0xf]
          %v7319 = vld [vmem:[#allocation8 + $0xc0] sm:$0xf]
          %v7320 = vld [vmem:[#allocation8 + $0xc4] sm:$0xf]
          %v7321 = vld [vmem:[#allocation8 + $0xc8] sm:$0xf]
          %v7322 = vld [vmem:[#allocation8 + $0xcc] sm:$0xf]
          %v7323 = vld [vmem:[#allocation8 + $0xd0] sm:$0xf]
          %v7324 = vld [vmem:[#allocation8 + $0xd4] sm:$0xf]
          %v7325 = vld [vmem:[#allocation8 + $0xd8] sm:$0xf]
          %v7326 = vld [vmem:[#allocation8 + $0xdc] sm:$0xf]
          %v7327 = vld [vmem:[#allocation8 + $0xe0] sm:$0xf]
          %v7328 = vld [vmem:[#allocation8 + $0xe4] sm:$0xf]
          %v7329 = vld [vmem:[#allocation8 + $0xe8] sm:$0xf]
          %v7330 = vld [vmem:[#allocation8 + $0xec] sm:$0xf]
          %v7331 = vld [vmem:[#allocation8 + $0xf0] sm:$0xf]
          %v7332 = vld [vmem:[#allocation8 + $0xf4] sm:$0xf]
          %v7333 = vld [vmem:[#allocation8 + $0xf8] sm:$0xf]
          %v7334 = vld [vmem:[#allocation8 + $0xfc] sm:$0xf]
          %v7335 = vld [vmem:[#allocation8 + $0x100] sm:$0xf]
          %v7336 = vld [vmem:[#allocation8 + $0x104] sm:$0xf]
          %v7337 = vld [vmem:[#allocation8 + $0x108] sm:$0xf]
          %v7338 = vld [vmem:[#allocation8 + $0x10c] sm:$0xf]
          %v7339 = vld [vmem:[#allocation8 + $0x110] sm:$0xf]
          %v7340 = vld [vmem:[#allocation8 + $0x114] sm:$0xf]
          %v7341 = vld [vmem:[#allocation8 + $0x118] sm:$0xf]
          %v7342 = vld [vmem:[#allocation8 + $0x11c] sm:$0xf]
          %v7343 = vld [vmem:[#allocation8 + $0x120] sm:$0xf]
          %v7344 = vld [vmem:[#allocation8 + $0x124] sm:$0xf]
          %v7345 = vld [vmem:[#allocation8 + $0x128] sm:$0xf]
          %v7346 = vld [vmem:[#allocation8 + $0x12c] sm:$0xf]
          %v7347 = vld [vmem:[#allocation8 + $0x130] sm:$0xf]
          %v7348 = vld [vmem:[#allocation8 + $0x134] sm:$0xf]
          %v7349 = vld [vmem:[#allocation8 + $0x138] sm:$0xf]
          %v7350 = vld [vmem:[#allocation8 + $0x13c] sm:$0xf]
          %v7351 = vld [vmem:[#allocation8 + $0x140] sm:$0xf]
          %v7352 = vld [vmem:[#allocation8 + $0x144] sm:$0xf]
          %v7353 = vld [vmem:[#allocation8 + $0x148] sm:$0xf]
          %v7354 = vld [vmem:[#allocation8 + $0x14c] sm:$0xf]
          %v7355 = vld [vmem:[#allocation8 + $0x150] sm:$0xf]
          %v7356 = vld [vmem:[#allocation8 + $0x154] sm:$0xf]
          %v7357 = vld [vmem:[#allocation8 + $0x158] sm:$0xf]
          %v7358 = vld [vmem:[#allocation8 + $0x15c] sm:$0xf]
          %v7359 = vld [vmem:[#allocation8 + $0x160] sm:$0xf]
          %v7360 = vld [vmem:[#allocation8 + $0x164] sm:$0xf]
          %v7361 = vld [vmem:[#allocation8 + $0x168] sm:$0xf]
          %v7362 = vld [vmem:[#allocation8 + $0x16c] sm:$0xf]
          %v7363 = vld [vmem:[#allocation8 + $0x170] sm:$0xf]
          %v7364 = vld [vmem:[#allocation8 + $0x174] sm:$0xf]
          %v7365 = vld [vmem:[#allocation8 + $0x178] sm:$0xf]
          %v7366 = vld [vmem:[#allocation8 + $0x17c] sm:$0xf]
          %v7367 = vld [vmem:[#allocation8 + $0x180] sm:$0xf]
          %v7368 = vld [vmem:[#allocation8 + $0x184] sm:$0xf]
          %v7369 = vld [vmem:[#allocation8 + $0x188] sm:$0xf]
          %v7370 = vld [vmem:[#allocation8 + $0x18c] sm:$0xf]
          %v7371 = vld [vmem:[#allocation8 + $0x190] sm:$0xf]
          %v7372 = vld [vmem:[#allocation8 + $0x194] sm:$0xf]
          %v7373 = vld [vmem:[#allocation8 + $0x198] sm:$0xf]
          %v7374 = vld [vmem:[#allocation8 + $0x19c] sm:$0xf]
          %v7375 = vld [vmem:[#allocation8 + $0x1a0] sm:$0xf]
          %v7376 = vld [vmem:[#allocation8 + $0x1a4] sm:$0xf]
          %v7377 = vld [vmem:[#allocation8 + $0x1a8] sm:$0xf]
          %v7378 = vld [vmem:[#allocation8 + $0x1ac] sm:$0xf]
          %v7379 = vld [vmem:[#allocation8 + $0x1b0] sm:$0xf]
          %v7380 = vld [vmem:[#allocation8 + $0x1b4] sm:$0xf]
          %v7381 = vld [vmem:[#allocation8 + $0x1b8] sm:$0xf]
          %v7382 = vld [vmem:[#allocation8 + $0x1bc] sm:$0xf]
          %v7383 = vld [vmem:[#allocation8 + $0x1c0] sm:$0xf]
          %v7384 = vld [vmem:[#allocation8 + $0x1c4] sm:$0xf]
          %v7385 = vld [vmem:[#allocation8 + $0x1c8] sm:$0xf]
          %v7386 = vld [vmem:[#allocation8 + $0x1cc] sm:$0xf]
          %v7387 = vld [vmem:[#allocation8 + $0x1d0] sm:$0xf]
          %v7388 = vld [vmem:[#allocation8 + $0x1d4] sm:$0xf]
          %v7389 = vld [vmem:[#allocation8 + $0x1d8] sm:$0xf]
          %v7390 = vld [vmem:[#allocation8 + $0x1dc] sm:$0xf]
          %v7391 = vld [vmem:[#allocation8 + $0x1e0] sm:$0xf]
          %v7392 = vld [vmem:[#allocation8 + $0x1e4] sm:$0xf]
          %v7393 = vld [vmem:[#allocation8 + $0x1e8] sm:$0xf]
          %v7394 = vld [vmem:[#allocation8 + $0x1ec] sm:$0xf]
          %v7395 = vld [vmem:[#allocation8 + $0x1f0] sm:$0xf]
          %v7396 = vld [vmem:[#allocation8 + $0x1f4] sm:$0xf]
          %v7397 = vld [vmem:[#allocation8 + $0x1f8] sm:$0xf]
          %v7398 = vld [vmem:[#allocation8 + $0x1fc] sm:$0xf]
          %v7399 = vld [vmem:[#allocation8 + $0x200] sm:$0xf]
          %v7400 = vld [vmem:[#allocation8 + $0x204] sm:$0xf]
          %v7401 = vld [vmem:[#allocation8 + $0x208] sm:$0xf]
          %v7402 = vld [vmem:[#allocation8 + $0x20c] sm:$0xf]
          %v7403 = vld [vmem:[#allocation8 + $0x210] sm:$0xf]
          %v7404 = vld [vmem:[#allocation8 + $0x214] sm:$0xf]
          %v7405 = vld [vmem:[#allocation8 + $0x218] sm:$0xf]
          %v7406 = vld [vmem:[#allocation8 + $0x21c] sm:$0xf]
          %v7407 = vld [vmem:[#allocation8 + $0x220] sm:$0xf]
          %v7408 = vld [vmem:[#allocation8 + $0x224] sm:$0xf]
          %v7409 = vld [vmem:[#allocation8 + $0x228] sm:$0xf]
          %v7410 = vld [vmem:[#allocation8 + $0x22c] sm:$0xf]
          %v7411 = vld [vmem:[#allocation8 + $0x230] sm:$0xf]
          %v7412 = vld [vmem:[#allocation8 + $0x234] sm:$0xf]
          %v7413 = vld [vmem:[#allocation8 + $0x238] sm:$0xf]
          %v7414 = vld [vmem:[#allocation8 + $0x23c] sm:$0xf]
          %v7415 = vld [vmem:[#allocation8 + $0x240] sm:$0xf]
          %v7416 = vld [vmem:[#allocation8 + $0x244] sm:$0xf]
          %v7417 = vld [vmem:[#allocation8 + $0x248] sm:$0xf]
          %v7418 = vld [vmem:[#allocation8 + $0x24c] sm:$0xf]
          %v7419 = vld [vmem:[#allocation8 + $0x250] sm:$0xf]
          %v7420 = vld [vmem:[#allocation8 + $0x254] sm:$0xf]
          %v7421 = vld [vmem:[#allocation8 + $0x258] sm:$0xf]
          %v7422 = vld [vmem:[#allocation8 + $0x25c] sm:$0xf]
          %v7423 = vld [vmem:[#allocation8 + $0x260] sm:$0xf]
          %v7424 = vld [vmem:[#allocation8 + $0x264] sm:$0xf]
          %v7425 = vld [vmem:[#allocation8 + $0x268] sm:$0xf]
          %v7426 = vld [vmem:[#allocation8 + $0x26c] sm:$0xf]
          %v7427 = vld [vmem:[#allocation8 + $0x270] sm:$0xf]
          %v7428 = vld [vmem:[#allocation8 + $0x274] sm:$0xf]
          %v7429 = vld [vmem:[#allocation8 + $0x278] sm:$0xf]
          %v7430 = vld [vmem:[#allocation8 + $0x27c] sm:$0xf]
          %v7431 = vld [vmem:[#allocation8 + $0x280] sm:$0xf]
          %v7432 = vld [vmem:[#allocation8 + $0x284] sm:$0xf]
          %v7433 = vld [vmem:[#allocation8 + $0x288] sm:$0xf]
          %v7434 = vld [vmem:[#allocation8 + $0x28c] sm:$0xf]
          %v7435 = vld [vmem:[#allocation8 + $0x290] sm:$0xf]
          %v7436 = vld [vmem:[#allocation8 + $0x294] sm:$0xf]
          %v7437 = vld [vmem:[#allocation8 + $0x298] sm:$0xf]
          %v7438 = vld [vmem:[#allocation8 + $0x29c] sm:$0xf]
          %v7439 = vld [vmem:[#allocation8 + $0x2a0] sm:$0xf]
          %v7440 = vld [vmem:[#allocation8 + $0x2a4] sm:$0xf]
          %v7441 = vld [vmem:[#allocation8 + $0x2a8] sm:$0xf]
          %v7442 = vld [vmem:[#allocation8 + $0x2ac] sm:$0xf]
          %v7443 = vld [vmem:[#allocation8 + $0x2b0] sm:$0xf]
          %v7444 = vld [vmem:[#allocation8 + $0x2b4] sm:$0xf]
          %v7445 = vld [vmem:[#allocation8 + $0x2b8] sm:$0xf]
          %v7446 = vld [vmem:[#allocation8 + $0x2bc] sm:$0xf]
          %v7447 = vld [vmem:[#allocation8 + $0x2c0] sm:$0xf]
          %v7448 = vld [vmem:[#allocation8 + $0x2c4] sm:$0xf]
          %v7449 = vld [vmem:[#allocation8 + $0x2c8] sm:$0xf]
          %v7450 = vld [vmem:[#allocation8 + $0x2cc] sm:$0xf]
          %v7451 = vld [vmem:[#allocation8 + $0x2d0] sm:$0xf]
          %v7452 = vld [vmem:[#allocation8 + $0x2d4] sm:$0xf]
          %v7453 = vld [vmem:[#allocation8 + $0x2d8] sm:$0xf]
          %v7454 = vld [vmem:[#allocation8 + $0x2dc] sm:$0xf]
          %v7455 = vld [vmem:[#allocation8 + $0x2e0] sm:$0xf]
          %v7456 = vld [vmem:[#allocation8 + $0x2e4] sm:$0xf]
          %v7457 = vld [vmem:[#allocation8 + $0x2e8] sm:$0xf]
          %v7458 = vld [vmem:[#allocation8 + $0x2ec] sm:$0xf]
          %v7459 = vld [vmem:[#allocation8 + $0x2f0] sm:$0xf]
          %v7460 = vld [vmem:[#allocation8 + $0x2f4] sm:$0xf]
          %v7461 = vld [vmem:[#allocation8 + $0x2f8] sm:$0xf]
          %v7462 = vld [vmem:[#allocation8 + $0x2fc] sm:$0xf]
          %v7463 = vld [vmem:[#allocation8 + $0x300] sm:$0xf]
          %v7464 = vld [vmem:[#allocation8 + $0x304] sm:$0xf]
          %v7465 = vld [vmem:[#allocation8 + $0x308] sm:$0xf]
          %v7466 = vld [vmem:[#allocation8 + $0x30c] sm:$0xf]
          %v7467 = vld [vmem:[#allocation8 + $0x310] sm:$0xf]
          %v7468 = vld [vmem:[#allocation8 + $0x314] sm:$0xf]
          %v7469 = vld [vmem:[#allocation8 + $0x318] sm:$0xf]
          %v7470 = vld [vmem:[#allocation8 + $0x31c] sm:$0xf]
          %v7471 = vld [vmem:[#allocation8 + $0x320] sm:$0xf]
          %v7472 = vld [vmem:[#allocation8 + $0x324] sm:$0xf]
          %v7473 = vld [vmem:[#allocation8 + $0x328] sm:$0xf]
          %v7474 = vld [vmem:[#allocation8 + $0x32c] sm:$0xf]
          %v7475 = vld [vmem:[#allocation8 + $0x330] sm:$0xf]
          %v7476 = vld [vmem:[#allocation8 + $0x334] sm:$0xf]
          %v7477 = vld [vmem:[#allocation8 + $0x338] sm:$0xf]
          %v7478 = vld [vmem:[#allocation8 + $0x33c] sm:$0xf]
          %v7479 = vld [vmem:[#allocation8 + $0x340] sm:$0xf]
          %v7480 = vld [vmem:[#allocation8 + $0x344] sm:$0xf]
          %v7481 = vld [vmem:[#allocation8 + $0x348] sm:$0xf]
          %v7482 = vld [vmem:[#allocation8 + $0x34c] sm:$0xf]
          %v7483 = vld [vmem:[#allocation8 + $0x350] sm:$0xf]
          %v7484 = vld [vmem:[#allocation8 + $0x354] sm:$0xf]
          %v7485 = vld [vmem:[#allocation8 + $0x358] sm:$0xf]
          %v7486 = vld [vmem:[#allocation8 + $0x35c] sm:$0xf]
          %v7487 = vld [vmem:[#allocation8 + $0x360] sm:$0xf]
          %v7488 = vld [vmem:[#allocation8 + $0x364] sm:$0xf]
          %v7489 = vld [vmem:[#allocation8 + $0x368] sm:$0xf]
          %v7490 = vld [vmem:[#allocation8 + $0x36c] sm:$0xf]
          %v7491 = vld [vmem:[#allocation8 + $0x370] sm:$0xf]
          %v7492 = vld [vmem:[#allocation8 + $0x374] sm:$0xf]
          %v7493 = vld [vmem:[#allocation8 + $0x378] sm:$0xf]
          %v7494 = vld [vmem:[#allocation8 + $0x37c] sm:$0xf]
          %v7495 = vld [vmem:[#allocation8 + $0x380] sm:$0xf]
          %v7496 = vld [vmem:[#allocation8 + $0x384] sm:$0xf]
          %v7497 = vld [vmem:[#allocation8 + $0x388] sm:$0xf]
          %v7498 = vld [vmem:[#allocation8 + $0x38c] sm:$0xf]
          %v7499 = vld [vmem:[#allocation8 + $0x390] sm:$0xf]
          %v7500 = vld [vmem:[#allocation8 + $0x394] sm:$0xf]
          %v7501 = vld [vmem:[#allocation8 + $0x398] sm:$0xf]
          %v7502 = vld [vmem:[#allocation8 + $0x39c] sm:$0xf]
          %v7503 = vld [vmem:[#allocation8 + $0x3a0] sm:$0xf]
          %v7504 = vld [vmem:[#allocation8 + $0x3a4] sm:$0xf]
          %v7505 = vld [vmem:[#allocation8 + $0x3a8] sm:$0xf]
          %v7506 = vld [vmem:[#allocation8 + $0x3ac] sm:$0xf]
          %v7507 = vld [vmem:[#allocation8 + $0x3b0] sm:$0xf]
          %v7508 = vld [vmem:[#allocation8 + $0x3b4] sm:$0xf]
          %v7509 = vld [vmem:[#allocation8 + $0x3b8] sm:$0xf]
          %v7510 = vld [vmem:[#allocation8 + $0x3bc] sm:$0xf]
          %v7511 = vld [vmem:[#allocation8 + $0x3c0] sm:$0xf]
          %v7512 = vld [vmem:[#allocation8 + $0x3c4] sm:$0xf]
          %v7513 = vld [vmem:[#allocation8 + $0x3c8] sm:$0xf]
          %v7514 = vld [vmem:[#allocation8 + $0x3cc] sm:$0xf]
          %v7515 = vld [vmem:[#allocation8 + $0x3d0] sm:$0xf]
          %v7516 = vld [vmem:[#allocation8 + $0x3d4] sm:$0xf]
          %v7517 = vld [vmem:[#allocation8 + $0x3d8] sm:$0xf]
          %v7518 = vld [vmem:[#allocation8 + $0x3dc] sm:$0xf]
          %v7519 = vld [vmem:[#allocation8 + $0x3e0] sm:$0xf]
          %v7520 = vld [vmem:[#allocation8 + $0x3e4] sm:$0xf]
          %v7521 = vld [vmem:[#allocation8 + $0x3e8] sm:$0xf]
          %v7522 = vld [vmem:[#allocation8 + $0x3ec] sm:$0xf]
          %v7523 = vld [vmem:[#allocation8 + $0x3f0] sm:$0xf]
          %v7524 = vld [vmem:[#allocation8 + $0x3f4] sm:$0xf]
          %v7525 = vld [vmem:[#allocation8 + $0x3f8] sm:$0xf]
          %v7526 = vld [vmem:[#allocation8 + $0x3fc] sm:$0xf]
          %v7527 = vld [vmem:[#allocation8 + $0x400] sm:$0xf]
          %v7528 = vld [vmem:[#allocation8 + $0x404] sm:$0xf]
          %v7529 = vld [vmem:[#allocation8 + $0x408] sm:$0xf]
          %v7530 = vld [vmem:[#allocation8 + $0x40c] sm:$0xf]
          %v7531 = vld [vmem:[#allocation8 + $0x410] sm:$0xf]
          %v7532 = vld [vmem:[#allocation8 + $0x414] sm:$0xf]
          %v7533 = vld [vmem:[#allocation8 + $0x418] sm:$0xf]
          %v7534 = vld [vmem:[#allocation8 + $0x41c] sm:$0xf]
          %v7535 = vld [vmem:[#allocation8 + $0x420] sm:$0xf]
          %v7536 = vld [vmem:[#allocation8 + $0x424] sm:$0xf]
          %v7537 = vld [vmem:[#allocation8 + $0x428] sm:$0xf]
          %v7538 = vld [vmem:[#allocation8 + $0x42c] sm:$0xf]
          %v7539 = vld [vmem:[#allocation8 + $0x430] sm:$0xf]
          %v7540 = vld [vmem:[#allocation8 + $0x434] sm:$0xf]
          %v7541 = vld [vmem:[#allocation8 + $0x438] sm:$0xf]
          %v7542 = vld [vmem:[#allocation8 + $0x43c] sm:$0xf]
          %v7543 = vld [vmem:[#allocation8 + $0x440] sm:$0xf]
          %v7544 = vld [vmem:[#allocation8 + $0x444] sm:$0xf]
          %v7545 = vld [vmem:[#allocation8 + $0x448] sm:$0xf]
          %v7546 = vld [vmem:[#allocation8 + $0x44c] sm:$0xf]
          %v7547 = vld [vmem:[#allocation8 + $0x450] sm:$0xf]
          %v7548 = vld [vmem:[#allocation8 + $0x454] sm:$0xf]
          %v7549 = vld [vmem:[#allocation8 + $0x458] sm:$0xf]
          %v7550 = vld [vmem:[#allocation8 + $0x45c] sm:$0xf]
          %v7551 = vld [vmem:[#allocation8 + $0x460] sm:$0xf]
          %v7552 = vld [vmem:[#allocation8 + $0x464] sm:$0xf]
          %v7553 = vld [vmem:[#allocation8 + $0x468] sm:$0xf]
          %v7554 = vld [vmem:[#allocation8 + $0x46c] sm:$0xf]
          %v7555 = vld [vmem:[#allocation8 + $0x470] sm:$0xf]
          %v7556 = vld [vmem:[#allocation8 + $0x474] sm:$0xf]
          %v7557 = vld [vmem:[#allocation8 + $0x478] sm:$0xf]
          %v7558 = vld [vmem:[#allocation8 + $0x47c] sm:$0xf]
          %v7559 = vld [vmem:[#allocation8 + $0x480] sm:$0xf]
          %v7560 = vld [vmem:[#allocation8 + $0x484] sm:$0xf]
          %v7561 = vld [vmem:[#allocation8 + $0x488] sm:$0xf]
          %v7562 = vld [vmem:[#allocation8 + $0x48c] sm:$0xf]
          %v7563 = vld [vmem:[#allocation8 + $0x490] sm:$0xf]
          %v7564 = vld [vmem:[#allocation8 + $0x494] sm:$0xf]
          %v7565 = vld [vmem:[#allocation8 + $0x498] sm:$0xf]
          %v7566 = vld [vmem:[#allocation8 + $0x49c] sm:$0xf]
          %v7567 = vld [vmem:[#allocation8 + $0x4a0] sm:$0xf]
          %v7568 = vld [vmem:[#allocation8 + $0x4a4] sm:$0xf]
          %v7569 = vld [vmem:[#allocation8 + $0x4a8] sm:$0xf]
          %v7570 = vld [vmem:[#allocation8 + $0x4ac] sm:$0xf]
          %v7571 = vld [vmem:[#allocation8 + $0x4b0] sm:$0xf]
          %v7572 = vld [vmem:[#allocation8 + $0x4b4] sm:$0xf]
          %v7573 = vld [vmem:[#allocation8 + $0x4b8] sm:$0xf]
          %v7574 = vld [vmem:[#allocation8 + $0x4bc] sm:$0xf]
          %v7575 = vld [vmem:[#allocation8 + $0x4c0] sm:$0xf]
          %v7576 = vld [vmem:[#allocation8 + $0x4c4] sm:$0xf]
          %v7577 = vld [vmem:[#allocation8 + $0x4c8] sm:$0xf]
          %v7578 = vld [vmem:[#allocation8 + $0x4cc] sm:$0xf]
          %v7579 = vld [vmem:[#allocation8 + $0x4d0] sm:$0xf]
          %v7580 = vld [vmem:[#allocation8 + $0x4d4] sm:$0xf]
          %v7581 = vld [vmem:[#allocation8 + $0x4d8] sm:$0xf]
          %v7582 = vld [vmem:[#allocation8 + $0x4dc] sm:$0xf]
          %v7583 = vld [vmem:[#allocation8 + $0x4e0] sm:$0xf]
          %v7584 = vld [vmem:[#allocation8 + $0x4e4] sm:$0xf]
          %v7585 = vld [vmem:[#allocation8 + $0x4e8] sm:$0xf]
          %v7586 = vld [vmem:[#allocation8 + $0x4ec] sm:$0xf]
          %v7587 = vld [vmem:[#allocation8 + $0x4f0] sm:$0xf]
          %v7588 = vld [vmem:[#allocation8 + $0x4f4] sm:$0xf]
          %v7589 = vld [vmem:[#allocation8 + $0x4f8] sm:$0xf]
          %v7590 = vld [vmem:[#allocation8 + $0x4fc] sm:$0xf]
          %v7591 = vld [vmem:[#allocation8 + $0x500] sm:$0xf]
          %v7592 = vld [vmem:[#allocation8 + $0x504] sm:$0xf]
          %v7593 = vld [vmem:[#allocation8 + $0x508] sm:$0xf]
          %v7594 = vld [vmem:[#allocation8 + $0x50c] sm:$0xf]
          %v7595 = vld [vmem:[#allocation8 + $0x510] sm:$0xf]
          %v7596 = vld [vmem:[#allocation8 + $0x514] sm:$0xf]
          %v7597 = vld [vmem:[#allocation8 + $0x518] sm:$0xf]
          %v7598 = vld [vmem:[#allocation8 + $0x51c] sm:$0xf]
          %v7599 = vld [vmem:[#allocation8 + $0x520] sm:$0xf]
          %v7600 = vld [vmem:[#allocation8 + $0x524] sm:$0xf]
          %v7601 = vld [vmem:[#allocation8 + $0x528] sm:$0xf]
          %v7602 = vld [vmem:[#allocation8 + $0x52c] sm:$0xf]
          %v7603 = vld [vmem:[#allocation8 + $0x530] sm:$0xf]
          %v7604 = vld [vmem:[#allocation8 + $0x534] sm:$0xf]
          %v7605 = vld [vmem:[#allocation8 + $0x538] sm:$0xf]
          %v7606 = vld [vmem:[#allocation8 + $0x53c] sm:$0xf]
          %v7607 = vld [vmem:[#allocation8 + $0x540] sm:$0xf]
          %v7608 = vld [vmem:[#allocation8 + $0x544] sm:$0xf]
          %v7609 = vld [vmem:[#allocation8 + $0x548] sm:$0xf]
          %v7610 = vld [vmem:[#allocation8 + $0x54c] sm:$0xf]
          %v7611 = vld [vmem:[#allocation8 + $0x550] sm:$0xf]
          %v7612 = vld [vmem:[#allocation8 + $0x554] sm:$0xf]
          %v7613 = vld [vmem:[#allocation8 + $0x558] sm:$0xf]
          %v7614 = vld [vmem:[#allocation8 + $0x55c] sm:$0xf]
          %v7615 = vld [vmem:[#allocation8 + $0x560] sm:$0xf]
          %v7616 = vld [vmem:[#allocation8 + $0x564] sm:$0xf]
          %v7617 = vld [vmem:[#allocation8 + $0x568] sm:$0xf]
          %v7618 = vld [vmem:[#allocation8 + $0x56c] sm:$0xf]
          %v7619 = vld [vmem:[#allocation8 + $0x570] sm:$0xf]
          %v7620 = vld [vmem:[#allocation8 + $0x574] sm:$0xf]
          %v7621 = vld [vmem:[#allocation8 + $0x578] sm:$0xf]
          %v7622 = vld [vmem:[#allocation8 + $0x57c] sm:$0xf]
          %v7623 = vld [vmem:[#allocation8 + $0x580] sm:$0xf]
          %v7624 = vld [vmem:[#allocation8 + $0x584] sm:$0xf]
          %v7625 = vld [vmem:[#allocation8 + $0x588] sm:$0xf]
          %v7626 = vld [vmem:[#allocation8 + $0x58c] sm:$0xf]
          %v7627 = vld [vmem:[#allocation8 + $0x590] sm:$0xf]
          %v7628 = vld [vmem:[#allocation8 + $0x594] sm:$0xf]
          %v7629 = vld [vmem:[#allocation8 + $0x598] sm:$0xf]
          %v7630 = vld [vmem:[#allocation8 + $0x59c] sm:$0xf]
          %v7631 = vld [vmem:[#allocation8 + $0x5a0] sm:$0xf]
          %v7632 = vld [vmem:[#allocation8 + $0x5a4] sm:$0xf]
          %v7633 = vld [vmem:[#allocation8 + $0x5a8] sm:$0xf]
          %v7634 = vld [vmem:[#allocation8 + $0x5ac] sm:$0xf]
          %v7635 = vld [vmem:[#allocation8 + $0x5b0] sm:$0xf]
          %v7636 = vld [vmem:[#allocation8 + $0x5b4] sm:$0xf]
          %v7637 = vld [vmem:[#allocation8 + $0x5b8] sm:$0xf]
          %v7638 = vld [vmem:[#allocation8 + $0x5bc] sm:$0xf]
          %v7639 = vld [vmem:[#allocation8 + $0x5c0] sm:$0xf]
          %v7640 = vld [vmem:[#allocation8 + $0x5c4] sm:$0xf]
          %v7641 = vld [vmem:[#allocation8 + $0x5c8] sm:$0xf]
          %v7642 = vld [vmem:[#allocation8 + $0x5cc] sm:$0xf]
          %v7643 = vld [vmem:[#allocation8 + $0x5d0] sm:$0xf]
          %v7644 = vld [vmem:[#allocation8 + $0x5d4] sm:$0xf]
          %v7645 = vld [vmem:[#allocation8 + $0x5d8] sm:$0xf]
          %v7646 = vld [vmem:[#allocation8 + $0x5dc] sm:$0xf]
          %v7647 = vld [vmem:[#allocation8 + $0x5e0] sm:$0xf]
          %v7648 = vld [vmem:[#allocation8 + $0x5e4] sm:$0xf]
          %v7649 = vld [vmem:[#allocation8 + $0x5e8] sm:$0xf]
          %v7650 = vld [vmem:[#allocation8 + $0x5ec] sm:$0xf]
          %v7651 = vld [vmem:[#allocation8 + $0x5f0] sm:$0xf]
          %v7652 = vld [vmem:[#allocation8 + $0x5f4] sm:$0xf]
          %v7653 = vld [vmem:[#allocation8 + $0x5f8] sm:$0xf]
          %v7654 = vld [vmem:[#allocation8 + $0x5fc] sm:$0xf]
          %v7655 = vld [vmem:[#allocation8 + $0x600] sm:$0xf]
          %v7656 = vld [vmem:[#allocation8 + $0x604] sm:$0xf]
          %v7657 = vld [vmem:[#allocation8 + $0x608] sm:$0xf]
          %v7658 = vld [vmem:[#allocation8 + $0x60c] sm:$0xf]
          %v7659 = vld [vmem:[#allocation8 + $0x610] sm:$0xf]
          %v7660 = vld [vmem:[#allocation8 + $0x614] sm:$0xf]
          %v7661 = vld [vmem:[#allocation8 + $0x618] sm:$0xf]
          %v7662 = vld [vmem:[#allocation8 + $0x61c] sm:$0xf]
          %v7663 = vld [vmem:[#allocation8 + $0x620] sm:$0xf]
          %v7664 = vld [vmem:[#allocation8 + $0x624] sm:$0xf]
          %v7665 = vld [vmem:[#allocation8 + $0x628] sm:$0xf]
          %v7666 = vld [vmem:[#allocation8 + $0x62c] sm:$0xf]
          %v7667 = vld [vmem:[#allocation8 + $0x630] sm:$0xf]
          %v7668 = vld [vmem:[#allocation8 + $0x634] sm:$0xf]
          %v7669 = vld [vmem:[#allocation8 + $0x638] sm:$0xf]
          %v7670 = vld [vmem:[#allocation8 + $0x63c] sm:$0xf]
          %v7671 = vld [vmem:[#allocation8 + $0x640] sm:$0xf]
          %v7672 = vld [vmem:[#allocation8 + $0x644] sm:$0xf]
          %v7673 = vld [vmem:[#allocation8 + $0x648] sm:$0xf]
          %v7674 = vld [vmem:[#allocation8 + $0x64c] sm:$0xf]
          %v7675 = vld [vmem:[#allocation8 + $0x650] sm:$0xf]
          %v7676 = vld [vmem:[#allocation8 + $0x654] sm:$0xf]
          %v7677 = vld [vmem:[#allocation8 + $0x658] sm:$0xf]
          %v7678 = vld [vmem:[#allocation8 + $0x65c] sm:$0xf]
          %v7679 = vld [vmem:[#allocation8 + $0x660] sm:$0xf]
          %v7680 = vld [vmem:[#allocation8 + $0x664] sm:$0xf]
          %v7681 = vld [vmem:[#allocation8 + $0x668] sm:$0xf]
          %v7682 = vld [vmem:[#allocation8 + $0x66c] sm:$0xf]
          %v7683 = vld [vmem:[#allocation8 + $0x670] sm:$0xf]
          %v7684 = vld [vmem:[#allocation8 + $0x674] sm:$0xf]
          %v7685 = vld [vmem:[#allocation8 + $0x678] sm:$0xf]
          %v7686 = vld [vmem:[#allocation8 + $0x67c] sm:$0xf]
          %v7687 = vld [vmem:[#allocation8 + $0x680] sm:$0xf]
          %v7688 = vld [vmem:[#allocation8 + $0x684] sm:$0xf]
          %v7689 = vld [vmem:[#allocation8 + $0x688] sm:$0xf]
          %v7690 = vld [vmem:[#allocation8 + $0x68c] sm:$0xf]
          %v7691 = vld [vmem:[#allocation8 + $0x690] sm:$0xf]
          %v7692 = vld [vmem:[#allocation8 + $0x694] sm:$0xf]
          %v7693 = vld [vmem:[#allocation8 + $0x698] sm:$0xf]
          %v7694 = vld [vmem:[#allocation8 + $0x69c] sm:$0xf]
          %v7695 = vld [vmem:[#allocation8 + $0x6a0] sm:$0xf]
          %v7696 = vld [vmem:[#allocation8 + $0x6a4] sm:$0xf]
          %v7697 = vld [vmem:[#allocation8 + $0x6a8] sm:$0xf]
          %v7698 = vld [vmem:[#allocation8 + $0x6ac] sm:$0xf]
          %v7699 = vld [vmem:[#allocation8 + $0x6b0] sm:$0xf]
          %v7700 = vld [vmem:[#allocation8 + $0x6b4] sm:$0xf]
          %v7701 = vld [vmem:[#allocation8 + $0x6b8] sm:$0xf]
          %v7702 = vld [vmem:[#allocation8 + $0x6bc] sm:$0xf]
          %v7703 = vld [vmem:[#allocation8 + $0x6c0] sm:$0xf]
          %v7704 = vld [vmem:[#allocation8 + $0x6c4] sm:$0xf]
          %v7705 = vld [vmem:[#allocation8 + $0x6c8] sm:$0xf]
          %v7706 = vld [vmem:[#allocation8 + $0x6cc] sm:$0xf]
          %v7707 = vld [vmem:[#allocation8 + $0x6d0] sm:$0xf]
          %v7708 = vld [vmem:[#allocation8 + $0x6d4] sm:$0xf]
          %v7709 = vld [vmem:[#allocation8 + $0x6d8] sm:$0xf]
          %v7710 = vld [vmem:[#allocation8 + $0x6dc] sm:$0xf]
          %v7711 = vld [vmem:[#allocation8 + $0x6e0] sm:$0xf]
          %v7712 = vld [vmem:[#allocation8 + $0x6e4] sm:$0xf]
          %v7713 = vld [vmem:[#allocation8 + $0x6e8] sm:$0xf]
          %v7714 = vld [vmem:[#allocation8 + $0x6ec] sm:$0xf]
          %v7715 = vld [vmem:[#allocation8 + $0x6f0] sm:$0xf]
          %v7716 = vld [vmem:[#allocation8 + $0x6f4] sm:$0xf]
          %v7717 = vld [vmem:[#allocation8 + $0x6f8] sm:$0xf]
          %v7718 = vld [vmem:[#allocation8 + $0x6fc] sm:$0xf]
          %v7719 = vld [vmem:[#allocation8 + $0x700] sm:$0xf]
          %v7720 = vld [vmem:[#allocation8 + $0x704] sm:$0xf]
          %v7721 = vld [vmem:[#allocation8 + $0x708] sm:$0xf]
          %v7722 = vld [vmem:[#allocation8 + $0x70c] sm:$0xf]
          %v7723 = vld [vmem:[#allocation8 + $0x710] sm:$0xf]
          %v7724 = vld [vmem:[#allocation8 + $0x714] sm:$0xf]
          %v7725 = vld [vmem:[#allocation8 + $0x718] sm:$0xf]
          %v7726 = vld [vmem:[#allocation8 + $0x71c] sm:$0xf]
          %v7727 = vld [vmem:[#allocation8 + $0x720] sm:$0xf]
          %v7728 = vld [vmem:[#allocation8 + $0x724] sm:$0xf]
          %v7729 = vld [vmem:[#allocation8 + $0x728] sm:$0xf]
          %v7730 = vld [vmem:[#allocation8 + $0x72c] sm:$0xf]
          %v7731 = vld [vmem:[#allocation8 + $0x730] sm:$0xf]
          %v7732 = vld [vmem:[#allocation8 + $0x734] sm:$0xf]
          %v7733 = vld [vmem:[#allocation8 + $0x738] sm:$0xf]
          %v7734 = vld [vmem:[#allocation8 + $0x73c] sm:$0xf]
          %v7735 = vld [vmem:[#allocation8 + $0x740] sm:$0xf]
          %v7736 = vld [vmem:[#allocation8 + $0x744] sm:$0xf]
          %v7737 = vld [vmem:[#allocation8 + $0x748] sm:$0xf]
          %v7738 = vld [vmem:[#allocation8 + $0x74c] sm:$0xf]
          %v7739 = vld [vmem:[#allocation8 + $0x750] sm:$0xf]
          %v7740 = vld [vmem:[#allocation8 + $0x754] sm:$0xf]
          %v7741 = vld [vmem:[#allocation8 + $0x758] sm:$0xf]
          %v7742 = vld [vmem:[#allocation8 + $0x75c] sm:$0xf]
          %v7743 = vld [vmem:[#allocation8 + $0x760] sm:$0xf]
          %v7744 = vld [vmem:[#allocation8 + $0x764] sm:$0xf]
          %v7745 = vld [vmem:[#allocation8 + $0x768] sm:$0xf]
          %v7746 = vld [vmem:[#allocation8 + $0x76c] sm:$0xf]
          %v7747 = vld [vmem:[#allocation8 + $0x770] sm:$0xf]
          %v7748 = vld [vmem:[#allocation8 + $0x774] sm:$0xf]
          %v7749 = vld [vmem:[#allocation8 + $0x778] sm:$0xf]
          %v7750 = vld [vmem:[#allocation8 + $0x77c] sm:$0xf]
          %v7751 = vld [vmem:[#allocation8 + $0x780] sm:$0xf]
          %v7752 = vld [vmem:[#allocation8 + $0x784] sm:$0xf]
          %v7753 = vld [vmem:[#allocation8 + $0x788] sm:$0xf]
          %v7754 = vld [vmem:[#allocation8 + $0x78c] sm:$0xf]
          %v7755 = vld [vmem:[#allocation8 + $0x790] sm:$0xf]
          %v7756 = vld [vmem:[#allocation8 + $0x794] sm:$0xf]
          %v7757 = vld [vmem:[#allocation8 + $0x798] sm:$0xf]
          %v7758 = vld [vmem:[#allocation8 + $0x79c] sm:$0xf]
          %v7759 = vld [vmem:[#allocation8 + $0x7a0] sm:$0xf]
          %v7760 = vld [vmem:[#allocation8 + $0x7a4] sm:$0xf]
          %v7761 = vld [vmem:[#allocation8 + $0x7a8] sm:$0xf]
          %v7762 = vld [vmem:[#allocation8 + $0x7ac] sm:$0xf]
          %v7763 = vld [vmem:[#allocation8 + $0x7b0] sm:$0xf]
          %v7764 = vld [vmem:[#allocation8 + $0x7b4] sm:$0xf]
          %v7765 = vld [vmem:[#allocation8 + $0x7b8] sm:$0xf]
          %v7766 = vld [vmem:[#allocation8 + $0x7bc] sm:$0xf]
          %v7767 = vld [vmem:[#allocation8 + $0x7c0] sm:$0xf]
          %v7768 = vld [vmem:[#allocation8 + $0x7c4] sm:$0xf]
          %v7769 = vld [vmem:[#allocation8 + $0x7c8] sm:$0xf]
          %v7770 = vld [vmem:[#allocation8 + $0x7cc] sm:$0xf]
          %v7771 = vld [vmem:[#allocation8 + $0x7d0] sm:$0xf]
          %v7772 = vld [vmem:[#allocation8 + $0x7d4] sm:$0xf]
          %v7773 = vld [vmem:[#allocation8 + $0x7d8] sm:$0xf]
          %v7774 = vld [vmem:[#allocation8 + $0x7dc] sm:$0xf]
          %v7775 = vld [vmem:[#allocation8 + $0x7e0] sm:$0xf]
          %v7776 = vld [vmem:[#allocation8 + $0x7e4] sm:$0xf]
          %v7777 = vld [vmem:[#allocation8 + $0x7e8] sm:$0xf]
          %v7778 = vld [vmem:[#allocation8 + $0x7ec] sm:$0xf]
          %v7779 = vld [vmem:[#allocation8 + $0x7f0] sm:$0xf]
          %v7780 = vld [vmem:[#allocation8 + $0x7f4] sm:$0xf]
          %v7781 = vld [vmem:[#allocation8 + $0x7f8] sm:$0xf]
          %v7782 = vld [vmem:[#allocation8 + $0x7fc] sm:$0xf]
          %v7783 = vunpack.c.l.bf16 %v7271
          %v7784 = vunpack.c.l.bf16 %v7272
          %v7785 = vunpack.c.l.bf16 %v7273
          %v7786 = vunpack.c.l.bf16 %v7274
          %v7787 = vunpack.c.l.bf16 %v7275
          %v7788 = vunpack.c.l.bf16 %v7276
          %v7789 = vunpack.c.l.bf16 %v7277
          %v7790 = vunpack.c.l.bf16 %v7278
          %v7791 = vunpack.c.l.bf16 %v7279
          %v7792 = vunpack.c.l.bf16 %v7280
          %v7793 = vunpack.c.l.bf16 %v7281
          %v7794 = vunpack.c.l.bf16 %v7282
          %v7795 = vunpack.c.l.bf16 %v7283
          %v7796 = vunpack.c.l.bf16 %v7284
          %v7797 = vunpack.c.l.bf16 %v7285
          %v7798 = vunpack.c.l.bf16 %v7286
          %v7799 = vunpack.c.l.bf16 %v7287
          %v7800 = vunpack.c.l.bf16 %v7288
          %v7801 = vunpack.c.l.bf16 %v7289
          %v7802 = vunpack.c.l.bf16 %v7290
          %v7803 = vunpack.c.l.bf16 %v7291
          %v7804 = vunpack.c.l.bf16 %v7292
          %v7805 = vunpack.c.l.bf16 %v7293
          %v7806 = vunpack.c.l.bf16 %v7294
          %v7807 = vunpack.c.l.bf16 %v7295
          %v7808 = vunpack.c.l.bf16 %v7296
          %v7809 = vunpack.c.l.bf16 %v7297
          %v7810 = vunpack.c.l.bf16 %v7298
          %v7811 = vunpack.c.l.bf16 %v7299
          %v7812 = vunpack.c.l.bf16 %v7300
          %v7813 = vunpack.c.l.bf16 %v7301
          %v7814 = vunpack.c.l.bf16 %v7302
          %v7815 = vunpack.c.l.bf16 %v7303
          %v7816 = vunpack.c.l.bf16 %v7304
          %v7817 = vunpack.c.l.bf16 %v7305
          %v7818 = vunpack.c.l.bf16 %v7306
          %v7819 = vunpack.c.l.bf16 %v7307
          %v7820 = vunpack.c.l.bf16 %v7308
          %v7821 = vunpack.c.l.bf16 %v7309
          %v7822 = vunpack.c.l.bf16 %v7310
          %v7823 = vunpack.c.l.bf16 %v7311
          %v7824 = vunpack.c.l.bf16 %v7312
          %v7825 = vunpack.c.l.bf16 %v7313
          %v7826 = vunpack.c.l.bf16 %v7314
          %v7827 = vunpack.c.l.bf16 %v7315
          %v7828 = vunpack.c.l.bf16 %v7316
          %v7829 = vunpack.c.l.bf16 %v7317
          %v7830 = vunpack.c.l.bf16 %v7318
          %v7831 = vunpack.c.l.bf16 %v7319
          %v7832 = vunpack.c.l.bf16 %v7320
          %v7833 = vunpack.c.l.bf16 %v7321
          %v7834 = vunpack.c.l.bf16 %v7322
          %v7835 = vunpack.c.l.bf16 %v7323
          %v7836 = vunpack.c.l.bf16 %v7324
          %v7837 = vunpack.c.l.bf16 %v7325
          %v7838 = vunpack.c.l.bf16 %v7326
          %v7839 = vunpack.c.l.bf16 %v7327
          %v7840 = vunpack.c.l.bf16 %v7328
          %v7841 = vunpack.c.l.bf16 %v7329
          %v7842 = vunpack.c.l.bf16 %v7330
          %v7843 = vunpack.c.l.bf16 %v7331
          %v7844 = vunpack.c.l.bf16 %v7332
          %v7845 = vunpack.c.l.bf16 %v7333
          %v7846 = vunpack.c.l.bf16 %v7334
          %v7847 = vunpack.c.l.bf16 %v7335
          %v7848 = vunpack.c.l.bf16 %v7336
          %v7849 = vunpack.c.l.bf16 %v7337
          %v7850 = vunpack.c.l.bf16 %v7338
          %v7851 = vunpack.c.l.bf16 %v7339
          %v7852 = vunpack.c.l.bf16 %v7340
          %v7853 = vunpack.c.l.bf16 %v7341
          %v7854 = vunpack.c.l.bf16 %v7342
          %v7855 = vunpack.c.l.bf16 %v7343
          %v7856 = vunpack.c.l.bf16 %v7344
          %v7857 = vunpack.c.l.bf16 %v7345
          %v7858 = vunpack.c.l.bf16 %v7346
          %v7859 = vunpack.c.l.bf16 %v7347
          %v7860 = vunpack.c.l.bf16 %v7348
          %v7861 = vunpack.c.l.bf16 %v7349
          %v7862 = vunpack.c.l.bf16 %v7350
          %v7863 = vunpack.c.l.bf16 %v7351
          %v7864 = vunpack.c.l.bf16 %v7352
          %v7865 = vunpack.c.l.bf16 %v7353
          %v7866 = vunpack.c.l.bf16 %v7354
          %v7867 = vunpack.c.l.bf16 %v7355
          %v7868 = vunpack.c.l.bf16 %v7356
          %v7869 = vunpack.c.l.bf16 %v7357
          %v7870 = vunpack.c.l.bf16 %v7358
          %v7871 = vunpack.c.l.bf16 %v7359
          %v7872 = vunpack.c.l.bf16 %v7360
          %v7873 = vunpack.c.l.bf16 %v7361
          %v7874 = vunpack.c.l.bf16 %v7362
          %v7875 = vunpack.c.l.bf16 %v7363
          %v7876 = vunpack.c.l.bf16 %v7364
          %v7877 = vunpack.c.l.bf16 %v7365
          %v7878 = vunpack.c.l.bf16 %v7366
          %v7879 = vunpack.c.l.bf16 %v7367
          %v7880 = vunpack.c.l.bf16 %v7368
          %v7881 = vunpack.c.l.bf16 %v7369
          %v7882 = vunpack.c.l.bf16 %v7370
          %v7883 = vunpack.c.l.bf16 %v7371
          %v7884 = vunpack.c.l.bf16 %v7372
          %v7885 = vunpack.c.l.bf16 %v7373
          %v7886 = vunpack.c.l.bf16 %v7374
          %v7887 = vunpack.c.l.bf16 %v7375
          %v7888 = vunpack.c.l.bf16 %v7376
          %v7889 = vunpack.c.l.bf16 %v7377
          %v7890 = vunpack.c.l.bf16 %v7378
          %v7891 = vunpack.c.l.bf16 %v7379
          %v7892 = vunpack.c.l.bf16 %v7380
          %v7893 = vunpack.c.l.bf16 %v7381
          %v7894 = vunpack.c.l.bf16 %v7382
          %v7895 = vunpack.c.l.bf16 %v7383
          %v7896 = vunpack.c.l.bf16 %v7384
          %v7897 = vunpack.c.l.bf16 %v7385
          %v7898 = vunpack.c.l.bf16 %v7386
          %v7899 = vunpack.c.l.bf16 %v7387
          %v7900 = vunpack.c.l.bf16 %v7388
          %v7901 = vunpack.c.l.bf16 %v7389
          %v7902 = vunpack.c.l.bf16 %v7390
          %v7903 = vunpack.c.l.bf16 %v7391
          %v7904 = vunpack.c.l.bf16 %v7392
          %v7905 = vunpack.c.l.bf16 %v7393
          %v7906 = vunpack.c.l.bf16 %v7394
          %v7907 = vunpack.c.l.bf16 %v7395
          %v7908 = vunpack.c.l.bf16 %v7396
          %v7909 = vunpack.c.l.bf16 %v7397
          %v7910 = vunpack.c.l.bf16 %v7398
          %v7911 = vunpack.c.l.bf16 %v7399
          %v7912 = vunpack.c.l.bf16 %v7400
          %v7913 = vunpack.c.l.bf16 %v7401
          %v7914 = vunpack.c.l.bf16 %v7402
          %v7915 = vunpack.c.l.bf16 %v7403
          %v7916 = vunpack.c.l.bf16 %v7404
          %v7917 = vunpack.c.l.bf16 %v7405
          %v7918 = vunpack.c.l.bf16 %v7406
          %v7919 = vunpack.c.l.bf16 %v7407
          %v7920 = vunpack.c.l.bf16 %v7408
          %v7921 = vunpack.c.l.bf16 %v7409
          %v7922 = vunpack.c.l.bf16 %v7410
          %v7923 = vunpack.c.l.bf16 %v7411
          %v7924 = vunpack.c.l.bf16 %v7412
          %v7925 = vunpack.c.l.bf16 %v7413
          %v7926 = vunpack.c.l.bf16 %v7414
          %v7927 = vunpack.c.l.bf16 %v7415
          %v7928 = vunpack.c.l.bf16 %v7416
          %v7929 = vunpack.c.l.bf16 %v7417
          %v7930 = vunpack.c.l.bf16 %v7418
          %v7931 = vunpack.c.l.bf16 %v7419
          %v7932 = vunpack.c.l.bf16 %v7420
          %v7933 = vunpack.c.l.bf16 %v7421
          %v7934 = vunpack.c.l.bf16 %v7422
          %v7935 = vunpack.c.l.bf16 %v7423
          %v7936 = vunpack.c.l.bf16 %v7424
          %v7937 = vunpack.c.l.bf16 %v7425
          %v7938 = vunpack.c.l.bf16 %v7426
          %v7939 = vunpack.c.l.bf16 %v7427
          %v7940 = vunpack.c.l.bf16 %v7428
          %v7941 = vunpack.c.l.bf16 %v7429
          %v7942 = vunpack.c.l.bf16 %v7430
          %v7943 = vunpack.c.l.bf16 %v7431
          %v7944 = vunpack.c.l.bf16 %v7432
          %v7945 = vunpack.c.l.bf16 %v7433
          %v7946 = vunpack.c.l.bf16 %v7434
          %v7947 = vunpack.c.l.bf16 %v7435
          %v7948 = vunpack.c.l.bf16 %v7436
          %v7949 = vunpack.c.l.bf16 %v7437
          %v7950 = vunpack.c.l.bf16 %v7438
          %v7951 = vunpack.c.l.bf16 %v7439
          %v7952 = vunpack.c.l.bf16 %v7440
          %v7953 = vunpack.c.l.bf16 %v7441
          %v7954 = vunpack.c.l.bf16 %v7442
          %v7955 = vunpack.c.l.bf16 %v7443
          %v7956 = vunpack.c.l.bf16 %v7444
          %v7957 = vunpack.c.l.bf16 %v7445
          %v7958 = vunpack.c.l.bf16 %v7446
          %v7959 = vunpack.c.l.bf16 %v7447
          %v7960 = vunpack.c.l.bf16 %v7448
          %v7961 = vunpack.c.l.bf16 %v7449
          %v7962 = vunpack.c.l.bf16 %v7450
          %v7963 = vunpack.c.l.bf16 %v7451
          %v7964 = vunpack.c.l.bf16 %v7452
          %v7965 = vunpack.c.l.bf16 %v7453
          %v7966 = vunpack.c.l.bf16 %v7454
          %v7967 = vunpack.c.l.bf16 %v7455
          %v7968 = vunpack.c.l.bf16 %v7456
          %v7969 = vunpack.c.l.bf16 %v7457
          %v7970 = vunpack.c.l.bf16 %v7458
          %v7971 = vunpack.c.l.bf16 %v7459
          %v7972 = vunpack.c.l.bf16 %v7460
          %v7973 = vunpack.c.l.bf16 %v7461
          %v7974 = vunpack.c.l.bf16 %v7462
          %v7975 = vunpack.c.l.bf16 %v7463
          %v7976 = vunpack.c.l.bf16 %v7464
          %v7977 = vunpack.c.l.bf16 %v7465
          %v7978 = vunpack.c.l.bf16 %v7466
          %v7979 = vunpack.c.l.bf16 %v7467
          %v7980 = vunpack.c.l.bf16 %v7468
          %v7981 = vunpack.c.l.bf16 %v7469
          %v7982 = vunpack.c.l.bf16 %v7470
          %v7983 = vunpack.c.l.bf16 %v7471
          %v7984 = vunpack.c.l.bf16 %v7472
          %v7985 = vunpack.c.l.bf16 %v7473
          %v7986 = vunpack.c.l.bf16 %v7474
          %v7987 = vunpack.c.l.bf16 %v7475
          %v7988 = vunpack.c.l.bf16 %v7476
          %v7989 = vunpack.c.l.bf16 %v7477
          %v7990 = vunpack.c.l.bf16 %v7478
          %v7991 = vunpack.c.l.bf16 %v7479
          %v7992 = vunpack.c.l.bf16 %v7480
          %v7993 = vunpack.c.l.bf16 %v7481
          %v7994 = vunpack.c.l.bf16 %v7482
          %v7995 = vunpack.c.l.bf16 %v7483
          %v7996 = vunpack.c.l.bf16 %v7484
          %v7997 = vunpack.c.l.bf16 %v7485
          %v7998 = vunpack.c.l.bf16 %v7486
          %v7999 = vunpack.c.l.bf16 %v7487
          %v8000 = vunpack.c.l.bf16 %v7488
          %v8001 = vunpack.c.l.bf16 %v7489
          %v8002 = vunpack.c.l.bf16 %v7490
          %v8003 = vunpack.c.l.bf16 %v7491
          %v8004 = vunpack.c.l.bf16 %v7492
          %v8005 = vunpack.c.l.bf16 %v7493
          %v8006 = vunpack.c.l.bf16 %v7494
          %v8007 = vunpack.c.l.bf16 %v7495
          %v8008 = vunpack.c.l.bf16 %v7496
          %v8009 = vunpack.c.l.bf16 %v7497
          %v8010 = vunpack.c.l.bf16 %v7498
          %v8011 = vunpack.c.l.bf16 %v7499
          %v8012 = vunpack.c.l.bf16 %v7500
          %v8013 = vunpack.c.l.bf16 %v7501
          %v8014 = vunpack.c.l.bf16 %v7502
          %v8015 = vunpack.c.l.bf16 %v7503
          %v8016 = vunpack.c.l.bf16 %v7504
          %v8017 = vunpack.c.l.bf16 %v7505
          %v8018 = vunpack.c.l.bf16 %v7506
          %v8019 = vunpack.c.l.bf16 %v7507
          %v8020 = vunpack.c.l.bf16 %v7508
          %v8021 = vunpack.c.l.bf16 %v7509
          %v8022 = vunpack.c.l.bf16 %v7510
          %v8023 = vunpack.c.l.bf16 %v7511
          %v8024 = vunpack.c.l.bf16 %v7512
          %v8025 = vunpack.c.l.bf16 %v7513
          %v8026 = vunpack.c.l.bf16 %v7514
          %v8027 = vunpack.c.l.bf16 %v7515
          %v8028 = vunpack.c.l.bf16 %v7516
          %v8029 = vunpack.c.l.bf16 %v7517
          %v8030 = vunpack.c.l.bf16 %v7518
          %v8031 = vunpack.c.l.bf16 %v7519
          %v8032 = vunpack.c.l.bf16 %v7520
          %v8033 = vunpack.c.l.bf16 %v7521
          %v8034 = vunpack.c.l.bf16 %v7522
          %v8035 = vunpack.c.l.bf16 %v7523
          %v8036 = vunpack.c.l.bf16 %v7524
          %v8037 = vunpack.c.l.bf16 %v7525
          %v8038 = vunpack.c.l.bf16 %v7526
          %v8039 = vunpack.c.l.bf16 %v7527
          %v8040 = vunpack.c.l.bf16 %v7528
          %v8041 = vunpack.c.l.bf16 %v7529
          %v8042 = vunpack.c.l.bf16 %v7530
          %v8043 = vunpack.c.l.bf16 %v7531
          %v8044 = vunpack.c.l.bf16 %v7532
          %v8045 = vunpack.c.l.bf16 %v7533
          %v8046 = vunpack.c.l.bf16 %v7534
          %v8047 = vunpack.c.l.bf16 %v7535
          %v8048 = vunpack.c.l.bf16 %v7536
          %v8049 = vunpack.c.l.bf16 %v7537
          %v8050 = vunpack.c.l.bf16 %v7538
          %v8051 = vunpack.c.l.bf16 %v7539
          %v8052 = vunpack.c.l.bf16 %v7540
          %v8053 = vunpack.c.l.bf16 %v7541
          %v8054 = vunpack.c.l.bf16 %v7542
          %v8055 = vunpack.c.l.bf16 %v7543
          %v8056 = vunpack.c.l.bf16 %v7544
          %v8057 = vunpack.c.l.bf16 %v7545
          %v8058 = vunpack.c.l.bf16 %v7546
          %v8059 = vunpack.c.l.bf16 %v7547
          %v8060 = vunpack.c.l.bf16 %v7548
          %v8061 = vunpack.c.l.bf16 %v7549
          %v8062 = vunpack.c.l.bf16 %v7550
          %v8063 = vunpack.c.l.bf16 %v7551
          %v8064 = vunpack.c.l.bf16 %v7552
          %v8065 = vunpack.c.l.bf16 %v7553
          %v8066 = vunpack.c.l.bf16 %v7554
          %v8067 = vunpack.c.l.bf16 %v7555
          %v8068 = vunpack.c.l.bf16 %v7556
          %v8069 = vunpack.c.l.bf16 %v7557
          %v8070 = vunpack.c.l.bf16 %v7558
          %v8071 = vunpack.c.l.bf16 %v7559
          %v8072 = vunpack.c.l.bf16 %v7560
          %v8073 = vunpack.c.l.bf16 %v7561
          %v8074 = vunpack.c.l.bf16 %v7562
          %v8075 = vunpack.c.l.bf16 %v7563
          %v8076 = vunpack.c.l.bf16 %v7564
          %v8077 = vunpack.c.l.bf16 %v7565
          %v8078 = vunpack.c.l.bf16 %v7566
          %v8079 = vunpack.c.l.bf16 %v7567
          %v8080 = vunpack.c.l.bf16 %v7568
          %v8081 = vunpack.c.l.bf16 %v7569
          %v8082 = vunpack.c.l.bf16 %v7570
          %v8083 = vunpack.c.l.bf16 %v7571
          %v8084 = vunpack.c.l.bf16 %v7572
          %v8085 = vunpack.c.l.bf16 %v7573
          %v8086 = vunpack.c.l.bf16 %v7574
          %v8087 = vunpack.c.l.bf16 %v7575
          %v8088 = vunpack.c.l.bf16 %v7576
          %v8089 = vunpack.c.l.bf16 %v7577
          %v8090 = vunpack.c.l.bf16 %v7578
          %v8091 = vunpack.c.l.bf16 %v7579
          %v8092 = vunpack.c.l.bf16 %v7580
          %v8093 = vunpack.c.l.bf16 %v7581
          %v8094 = vunpack.c.l.bf16 %v7582
          %v8095 = vunpack.c.l.bf16 %v7583
          %v8096 = vunpack.c.l.bf16 %v7584
          %v8097 = vunpack.c.l.bf16 %v7585
          %v8098 = vunpack.c.l.bf16 %v7586
          %v8099 = vunpack.c.l.bf16 %v7587
          %v8100 = vunpack.c.l.bf16 %v7588
          %v8101 = vunpack.c.l.bf16 %v7589
          %v8102 = vunpack.c.l.bf16 %v7590
          %v8103 = vunpack.c.l.bf16 %v7591
          %v8104 = vunpack.c.l.bf16 %v7592
          %v8105 = vunpack.c.l.bf16 %v7593
          %v8106 = vunpack.c.l.bf16 %v7594
          %v8107 = vunpack.c.l.bf16 %v7595
          %v8108 = vunpack.c.l.bf16 %v7596
          %v8109 = vunpack.c.l.bf16 %v7597
          %v8110 = vunpack.c.l.bf16 %v7598
          %v8111 = vunpack.c.l.bf16 %v7599
          %v8112 = vunpack.c.l.bf16 %v7600
          %v8113 = vunpack.c.l.bf16 %v7601
          %v8114 = vunpack.c.l.bf16 %v7602
          %v8115 = vunpack.c.l.bf16 %v7603
          %v8116 = vunpack.c.l.bf16 %v7604
          %v8117 = vunpack.c.l.bf16 %v7605
          %v8118 = vunpack.c.l.bf16 %v7606
          %v8119 = vunpack.c.l.bf16 %v7607
          %v8120 = vunpack.c.l.bf16 %v7608
          %v8121 = vunpack.c.l.bf16 %v7609
          %v8122 = vunpack.c.l.bf16 %v7610
          %v8123 = vunpack.c.l.bf16 %v7611
          %v8124 = vunpack.c.l.bf16 %v7612
          %v8125 = vunpack.c.l.bf16 %v7613
          %v8126 = vunpack.c.l.bf16 %v7614
          %v8127 = vunpack.c.l.bf16 %v7615
          %v8128 = vunpack.c.l.bf16 %v7616
          %v8129 = vunpack.c.l.bf16 %v7617
          %v8130 = vunpack.c.l.bf16 %v7618
          %v8131 = vunpack.c.l.bf16 %v7619
          %v8132 = vunpack.c.l.bf16 %v7620
          %v8133 = vunpack.c.l.bf16 %v7621
          %v8134 = vunpack.c.l.bf16 %v7622
          %v8135 = vunpack.c.l.bf16 %v7623
          %v8136 = vunpack.c.l.bf16 %v7624
          %v8137 = vunpack.c.l.bf16 %v7625
          %v8138 = vunpack.c.l.bf16 %v7626
          %v8139 = vunpack.c.l.bf16 %v7627
          %v8140 = vunpack.c.l.bf16 %v7628
          %v8141 = vunpack.c.l.bf16 %v7629
          %v8142 = vunpack.c.l.bf16 %v7630
          %v8143 = vunpack.c.l.bf16 %v7631
          %v8144 = vunpack.c.l.bf16 %v7632
          %v8145 = vunpack.c.l.bf16 %v7633
          %v8146 = vunpack.c.l.bf16 %v7634
          %v8147 = vunpack.c.l.bf16 %v7635
          %v8148 = vunpack.c.l.bf16 %v7636
          %v8149 = vunpack.c.l.bf16 %v7637
          %v8150 = vunpack.c.l.bf16 %v7638
          %v8151 = vunpack.c.l.bf16 %v7639
          %v8152 = vunpack.c.l.bf16 %v7640
          %v8153 = vunpack.c.l.bf16 %v7641
          %v8154 = vunpack.c.l.bf16 %v7642
          %v8155 = vunpack.c.l.bf16 %v7643
          %v8156 = vunpack.c.l.bf16 %v7644
          %v8157 = vunpack.c.l.bf16 %v7645
          %v8158 = vunpack.c.l.bf16 %v7646
          %v8159 = vunpack.c.l.bf16 %v7647
          %v8160 = vunpack.c.l.bf16 %v7648
          %v8161 = vunpack.c.l.bf16 %v7649
          %v8162 = vunpack.c.l.bf16 %v7650
          %v8163 = vunpack.c.l.bf16 %v7651
          %v8164 = vunpack.c.l.bf16 %v7652
          %v8165 = vunpack.c.l.bf16 %v7653
          %v8166 = vunpack.c.l.bf16 %v7654
          %v8167 = vunpack.c.l.bf16 %v7655
          %v8168 = vunpack.c.l.bf16 %v7656
          %v8169 = vunpack.c.l.bf16 %v7657
          %v8170 = vunpack.c.l.bf16 %v7658
          %v8171 = vunpack.c.l.bf16 %v7659
          %v8172 = vunpack.c.l.bf16 %v7660
          %v8173 = vunpack.c.l.bf16 %v7661
          %v8174 = vunpack.c.l.bf16 %v7662
          %v8175 = vunpack.c.l.bf16 %v7663
          %v8176 = vunpack.c.l.bf16 %v7664
          %v8177 = vunpack.c.l.bf16 %v7665
          %v8178 = vunpack.c.l.bf16 %v7666
          %v8179 = vunpack.c.l.bf16 %v7667
          %v8180 = vunpack.c.l.bf16 %v7668
          %v8181 = vunpack.c.l.bf16 %v7669
          %v8182 = vunpack.c.l.bf16 %v7670
          %v8183 = vunpack.c.l.bf16 %v7671
          %v8184 = vunpack.c.l.bf16 %v7672
          %v8185 = vunpack.c.l.bf16 %v7673
          %v8186 = vunpack.c.l.bf16 %v7674
          %v8187 = vunpack.c.l.bf16 %v7675
          %v8188 = vunpack.c.l.bf16 %v7676
          %v8189 = vunpack.c.l.bf16 %v7677
          %v8190 = vunpack.c.l.bf16 %v7678
          %v8191 = vunpack.c.l.bf16 %v7679
          %v8192 = vunpack.c.l.bf16 %v7680
          %v8193 = vunpack.c.l.bf16 %v7681
          %v8194 = vunpack.c.l.bf16 %v7682
          %v8195 = vunpack.c.l.bf16 %v7683
          %v8196 = vunpack.c.l.bf16 %v7684
          %v8197 = vunpack.c.l.bf16 %v7685
          %v8198 = vunpack.c.l.bf16 %v7686
          %v8199 = vunpack.c.l.bf16 %v7687
          %v8200 = vunpack.c.l.bf16 %v7688
          %v8201 = vunpack.c.l.bf16 %v7689
          %v8202 = vunpack.c.l.bf16 %v7690
          %v8203 = vunpack.c.l.bf16 %v7691
          %v8204 = vunpack.c.l.bf16 %v7692
          %v8205 = vunpack.c.l.bf16 %v7693
          %v8206 = vunpack.c.l.bf16 %v7694
          %v8207 = vunpack.c.l.bf16 %v7695
          %v8208 = vunpack.c.l.bf16 %v7696
          %v8209 = vunpack.c.l.bf16 %v7697
          %v8210 = vunpack.c.l.bf16 %v7698
          %v8211 = vunpack.c.l.bf16 %v7699
          %v8212 = vunpack.c.l.bf16 %v7700
          %v8213 = vunpack.c.l.bf16 %v7701
          %v8214 = vunpack.c.l.bf16 %v7702
          %v8215 = vunpack.c.l.bf16 %v7703
          %v8216 = vunpack.c.l.bf16 %v7704
          %v8217 = vunpack.c.l.bf16 %v7705
          %v8218 = vunpack.c.l.bf16 %v7706
          %v8219 = vunpack.c.l.bf16 %v7707
          %v8220 = vunpack.c.l.bf16 %v7708
          %v8221 = vunpack.c.l.bf16 %v7709
          %v8222 = vunpack.c.l.bf16 %v7710
          %v8223 = vunpack.c.l.bf16 %v7711
          %v8224 = vunpack.c.l.bf16 %v7712
          %v8225 = vunpack.c.l.bf16 %v7713
          %v8226 = vunpack.c.l.bf16 %v7714
          %v8227 = vunpack.c.l.bf16 %v7715
          %v8228 = vunpack.c.l.bf16 %v7716
          %v8229 = vunpack.c.l.bf16 %v7717
          %v8230 = vunpack.c.l.bf16 %v7718
          %v8231 = vunpack.c.l.bf16 %v7719
          %v8232 = vunpack.c.l.bf16 %v7720
          %v8233 = vunpack.c.l.bf16 %v7721
          %v8234 = vunpack.c.l.bf16 %v7722
          %v8235 = vunpack.c.l.bf16 %v7723
          %v8236 = vunpack.c.l.bf16 %v7724
          %v8237 = vunpack.c.l.bf16 %v7725
          %v8238 = vunpack.c.l.bf16 %v7726
          %v8239 = vunpack.c.l.bf16 %v7727
          %v8240 = vunpack.c.l.bf16 %v7728
          %v8241 = vunpack.c.l.bf16 %v7729
          %v8242 = vunpack.c.l.bf16 %v7730
          %v8243 = vunpack.c.l.bf16 %v7731
          %v8244 = vunpack.c.l.bf16 %v7732
          %v8245 = vunpack.c.l.bf16 %v7733
          %v8246 = vunpack.c.l.bf16 %v7734
          %v8247 = vunpack.c.l.bf16 %v7735
          %v8248 = vunpack.c.l.bf16 %v7736
          %v8249 = vunpack.c.l.bf16 %v7737
          %v8250 = vunpack.c.l.bf16 %v7738
          %v8251 = vunpack.c.l.bf16 %v7739
          %v8252 = vunpack.c.l.bf16 %v7740
          %v8253 = vunpack.c.l.bf16 %v7741
          %v8254 = vunpack.c.l.bf16 %v7742
          %v8255 = vunpack.c.l.bf16 %v7743
          %v8256 = vunpack.c.l.bf16 %v7744
          %v8257 = vunpack.c.l.bf16 %v7745
          %v8258 = vunpack.c.l.bf16 %v7746
          %v8259 = vunpack.c.l.bf16 %v7747
          %v8260 = vunpack.c.l.bf16 %v7748
          %v8261 = vunpack.c.l.bf16 %v7749
          %v8262 = vunpack.c.l.bf16 %v7750
          %v8263 = vunpack.c.l.bf16 %v7751
          %v8264 = vunpack.c.l.bf16 %v7752
          %v8265 = vunpack.c.l.bf16 %v7753
          %v8266 = vunpack.c.l.bf16 %v7754
          %v8267 = vunpack.c.l.bf16 %v7755
          %v8268 = vunpack.c.l.bf16 %v7756
          %v8269 = vunpack.c.l.bf16 %v7757
          %v8270 = vunpack.c.l.bf16 %v7758
          %v8271 = vunpack.c.l.bf16 %v7759
          %v8272 = vunpack.c.l.bf16 %v7760
          %v8273 = vunpack.c.l.bf16 %v7761
          %v8274 = vunpack.c.l.bf16 %v7762
          %v8275 = vunpack.c.l.bf16 %v7763
          %v8276 = vunpack.c.l.bf16 %v7764
          %v8277 = vunpack.c.l.bf16 %v7765
          %v8278 = vunpack.c.l.bf16 %v7766
          %v8279 = vunpack.c.l.bf16 %v7767
          %v8280 = vunpack.c.l.bf16 %v7768
          %v8281 = vunpack.c.l.bf16 %v7769
          %v8282 = vunpack.c.l.bf16 %v7770
          %v8283 = vunpack.c.l.bf16 %v7771
          %v8284 = vunpack.c.l.bf16 %v7772
          %v8285 = vunpack.c.l.bf16 %v7773
          %v8286 = vunpack.c.l.bf16 %v7774
          %v8287 = vunpack.c.l.bf16 %v7775
          %v8288 = vunpack.c.l.bf16 %v7776
          %v8289 = vunpack.c.l.bf16 %v7777
          %v8290 = vunpack.c.l.bf16 %v7778
          %v8291 = vunpack.c.l.bf16 %v7779
          %v8292 = vunpack.c.l.bf16 %v7780
          %v8293 = vunpack.c.l.bf16 %v7781
          %v8294 = vunpack.c.l.bf16 %v7782
          %v8295 = vld [vmem:[#allocation2] sm:$0xff]
          %v8296 = vld [vmem:[#allocation2 + $0x8] sm:$0xff]
          %v8297 = vld [vmem:[#allocation2 + $0x10] sm:$0xff]
          %v8298 = vld [vmem:[#allocation2 + $0x18] sm:$0xff]
          %v8299 = vld [vmem:[#allocation9] sm:$0x1]
          %v8304 = vlaneseq
          %v8305 = vshrl.u32 %v8304, 7
          %v8306 = vsub.s32 0, %v8305
          %v8307 = vrot.slane %v8295, %v8306
          %v8308 = vlaneseq
          %v8309 = vshrl.u32 %v8308, 7
          %v8310 = vsub.s32 1, %v8309
          %v8311 = vrot.slane %v8295, %v8310
          %v8312 = vlaneseq
          %v8313 = vshrl.u32 %v8312, 7
          %v8314 = vsub.s32 2, %v8313
          %v8315 = vrot.slane %v8295, %v8314
          %v8316 = vlaneseq
          %v8317 = vshrl.u32 %v8316, 7
          %v8318 = vsub.s32 3, %v8317
          %v8319 = vrot.slane %v8295, %v8318
          %v8320 = vlaneseq
          %v8321 = vshrl.u32 %v8320, 7
          %v8322 = vsub.s32 4, %v8321
          %v8323 = vrot.slane %v8295, %v8322
          %v8324 = vlaneseq
          %v8325 = vshrl.u32 %v8324, 7
          %v8326 = vsub.s32 5, %v8325
          %v8327 = vrot.slane %v8295, %v8326
          %v8328 = vlaneseq
          %v8329 = vshrl.u32 %v8328, 7
          %v8330 = vsub.s32 6, %v8329
          %v8331 = vrot.slane %v8295, %v8330
          %v8332 = vlaneseq
          %v8333 = vshrl.u32 %v8332, 7
          %v8334 = vsub.s32 7, %v8333
          %v8335 = vrot.slane %v8295, %v8334
          %v8336 = vlaneseq
          %v8337 = vshrl.u32 %v8336, 7
          %v8338 = vsub.s32 0, %v8337
          %v8339 = vrot.slane %v8296, %v8338
          %v8340 = vlaneseq
          %v8341 = vshrl.u32 %v8340, 7
          %v8342 = vsub.s32 1, %v8341
          %v8343 = vrot.slane %v8296, %v8342
          %v8344 = vlaneseq
          %v8345 = vshrl.u32 %v8344, 7
          %v8346 = vsub.s32 2, %v8345
          %v8347 = vrot.slane %v8296, %v8346
          %v8348 = vlaneseq
          %v8349 = vshrl.u32 %v8348, 7
          %v8350 = vsub.s32 3, %v8349
          %v8351 = vrot.slane %v8296, %v8350
          %v8352 = vlaneseq
          %v8353 = vshrl.u32 %v8352, 7
          %v8354 = vsub.s32 4, %v8353
          %v8355 = vrot.slane %v8296, %v8354
          %v8356 = vlaneseq
          %v8357 = vshrl.u32 %v8356, 7
          %v8358 = vsub.s32 5, %v8357
          %v8359 = vrot.slane %v8296, %v8358
          %v8360 = vlaneseq
          %v8361 = vshrl.u32 %v8360, 7
          %v8362 = vsub.s32 6, %v8361
          %v8363 = vrot.slane %v8296, %v8362
          %v8364 = vlaneseq
          %v8365 = vshrl.u32 %v8364, 7
          %v8366 = vsub.s32 7, %v8365
          %v8367 = vrot.slane %v8296, %v8366
          %v8368 = vlaneseq
          %v8369 = vshrl.u32 %v8368, 7
          %v8370 = vsub.s32 0, %v8369
          %v8371 = vrot.slane %v8297, %v8370
          %v8372 = vlaneseq
          %v8373 = vshrl.u32 %v8372, 7
          %v8374 = vsub.s32 1, %v8373
          %v8375 = vrot.slane %v8297, %v8374
          %v8376 = vlaneseq
          %v8377 = vshrl.u32 %v8376, 7
          %v8378 = vsub.s32 2, %v8377
          %v8379 = vrot.slane %v8297, %v8378
          %v8380 = vlaneseq
          %v8381 = vshrl.u32 %v8380, 7
          %v8382 = vsub.s32 3, %v8381
          %v8383 = vrot.slane %v8297, %v8382
          %v8384 = vlaneseq
          %v8385 = vshrl.u32 %v8384, 7
          %v8386 = vsub.s32 4, %v8385
          %v8387 = vrot.slane %v8297, %v8386
          %v8388 = vlaneseq
          %v8389 = vshrl.u32 %v8388, 7
          %v8390 = vsub.s32 5, %v8389
          %v8391 = vrot.slane %v8297, %v8390
          %v8392 = vlaneseq
          %v8393 = vshrl.u32 %v8392, 7
          %v8394 = vsub.s32 6, %v8393
          %v8395 = vrot.slane %v8297, %v8394
          %v8396 = vlaneseq
          %v8397 = vshrl.u32 %v8396, 7
          %v8398 = vsub.s32 7, %v8397
          %v8399 = vrot.slane %v8297, %v8398
          %v8400 = vlaneseq
          %v8401 = vshrl.u32 %v8400, 7
          %v8402 = vsub.s32 0, %v8401
          %v8403 = vrot.slane %v8298, %v8402
          %v8404 = vlaneseq
          %v8405 = vshrl.u32 %v8404, 7
          %v8406 = vsub.s32 1, %v8405
          %v8407 = vrot.slane %v8298, %v8406
          %v8408 = vlaneseq
          %v8409 = vshrl.u32 %v8408, 7
          %v8410 = vsub.s32 2, %v8409
          %v8411 = vrot.slane %v8298, %v8410
          %v8412 = vlaneseq
          %v8413 = vshrl.u32 %v8412, 7
          %v8414 = vsub.s32 3, %v8413
          %v8415 = vrot.slane %v8298, %v8414
          %v8416 = vlaneseq
          %v8417 = vshrl.u32 %v8416, 7
          %v8418 = vsub.s32 4, %v8417
          %v8419 = vrot.slane %v8298, %v8418
          %v8420 = vlaneseq
          %v8421 = vshrl.u32 %v8420, 7
          %v8422 = vsub.s32 5, %v8421
          %v8423 = vrot.slane %v8298, %v8422
          %v8424 = vlaneseq
          %v8425 = vshrl.u32 %v8424, 7
          %v8426 = vsub.s32 6, %v8425
          %v8427 = vrot.slane %v8298, %v8426
          %v8428 = vlaneseq
          %v8429 = vshrl.u32 %v8428, 7
          %v8430 = vsub.s32 7, %v8429
          %v8431 = vrot.slane %v8298, %v8430
          %8464 = vmatprep.subr.mxu0 0.0
          %8465 = vmatpush1.msra.mxu0 %v7798
          %8466 = vmatprep.subr.mxu0 0.0
          %8467 = vmatpush1.msra.mxu0 %v7797
          %8468 = vmatprep.subr.mxu0 0.0
          %8469 = vmatpush1.msra.mxu0 %v7796
          %8470 = vmatprep.subr.mxu0 0.0
          %8471 = vmatpush1.msra.mxu0 %v7795
          %8472 = vmatprep.subr.mxu0 0.0
          %8473 = vmatpush1.msra.mxu0 %v7794
          %8474 = vmatprep.subr.mxu0 0.0
          %8475 = vmatpush1.msra.mxu0 %v7793
          %8476 = vmatprep.subr.mxu0 0.0
          %8477 = vmatpush1.msra.mxu0 %v7792
          %8478 = vmatprep.subr.mxu0 0.0
          %8479 = vmatpush1.msra.mxu0 %v7791
          %8480 = vmatprep.subr.mxu0 0.0
          %8481 = vmatpush1.msra.mxu0 %v7790
          %8482 = vmatprep.subr.mxu0 0.0
          %8483 = vmatpush1.msra.mxu0 %v7789
          %8484 = vmatprep.subr.mxu0 0.0
          %8485 = vmatpush1.msra.mxu0 %v7788
          %8486 = vmatprep.subr.mxu0 0.0
          %8487 = vmatpush1.msra.mxu0 %v7787
          %8488 = vmatprep.subr.mxu0 0.0
          %8489 = vmatpush1.msra.mxu0 %v7786
          %8490 = vmatprep.subr.mxu0 0.0
          %8491 = vmatpush1.msra.mxu0 %v7785
          %8492 = vmatprep.subr.mxu0 0.0
          %8493 = vmatpush1.msra.mxu0 %v7784
          %8494 = vmatprep.subr.mxu0 0.0
          %8495 = vmatpush1.msra.mxu0 %v7783
          %8496 = vmatprep.subr.mxu0 0.0
          %8497 = vmatpush2.msra.mxu0 %v7814
          %8498 = vmatprep.subr.mxu0 0.0
          %8499 = vmatpush2.msra.mxu0 %v7813
          %8500 = vmatprep.subr.mxu0 0.0
          %8501 = vmatpush2.msra.mxu0 %v7812
          %8502 = vmatprep.subr.mxu0 0.0
          %8503 = vmatpush2.msra.mxu0 %v7811
          %8504 = vmatprep.subr.mxu0 0.0
          %8505 = vmatpush2.msra.mxu0 %v7810
          %8506 = vmatprep.subr.mxu0 0.0
          %8507 = vmatpush2.msra.mxu0 %v7809
          %8508 = vmatprep.subr.mxu0 0.0
          %8509 = vmatpush2.msra.mxu0 %v7808
          %8510 = vmatprep.subr.mxu0 0.0
          %8511 = vmatpush2.msra.mxu0 %v7807
          %8512 = vmatprep.subr.mxu0 0.0
          %8513 = vmatpush2.msra.mxu0 %v7806
          %8514 = vmatprep.subr.mxu0 0.0
          %8515 = vmatpush2.msra.mxu0 %v7805
          %8516 = vmatprep.subr.mxu0 0.0
          %8517 = vmatpush2.msra.mxu0 %v7804
          %8518 = vmatprep.subr.mxu0 0.0
          %8519 = vmatpush2.msra.mxu0 %v7803
          %8520 = vmatprep.subr.mxu0 0.0
          %8521 = vmatpush2.msra.mxu0 %v7802
          %8522 = vmatprep.subr.mxu0 0.0
          %8523 = vmatpush2.msra.mxu0 %v7801
          %8524 = vmatprep.subr.mxu0 0.0
          %8525 = vmatpush2.msra.mxu0 %v7800
          %8526 = vmatprep.subr.mxu0 0.0
          %8527 = vmatpush2.msra.mxu0 %v7799
          %8528 = vmatprep.mubr.f32.mxu0 %v8311
          %8529 = vmatmul.mubr.f32.gmra.mxu0 %v8307
          %v8530 = vpop.f32.mrf.mxu0
          %v8531 = vadd.f32 %v8299, %v8530
          %v8532 = vpop.f32.mrf.mxu0
          %8533 = vdwg.mxu0
          %8534 = vmatprep.subr.mxu0 0.0
          %8535 = vmatpush1.msra.mxu0 %v7830
          %8536 = vmatprep.subr.mxu0 0.0
          %8537 = vmatpush1.msra.mxu0 %v7829
          %8538 = vmatprep.subr.mxu0 0.0
          %8539 = vmatpush1.msra.mxu0 %v7828
          %8540 = vmatprep.subr.mxu0 0.0
          %8541 = vmatpush1.msra.mxu0 %v7827
          %8542 = vmatprep.subr.mxu0 0.0
          %8543 = vmatpush1.msra.mxu0 %v7826
          %8544 = vmatprep.subr.mxu0 0.0
          %8545 = vmatpush1.msra.mxu0 %v7825
          %8546 = vmatprep.subr.mxu0 0.0
          %8547 = vmatpush1.msra.mxu0 %v7824
          %8548 = vmatprep.subr.mxu0 0.0
          %8549 = vmatpush1.msra.mxu0 %v7823
          %8550 = vmatprep.subr.mxu0 0.0
          %8551 = vmatpush1.msra.mxu0 %v7822
          %8552 = vmatprep.subr.mxu0 0.0
          %8553 = vmatpush1.msra.mxu0 %v7821
          %8554 = vmatprep.subr.mxu0 0.0
          %8555 = vmatpush1.msra.mxu0 %v7820
          %8556 = vmatprep.subr.mxu0 0.0
          %8557 = vmatpush1.msra.mxu0 %v7819
          %8558 = vmatprep.subr.mxu0 0.0
          %8559 = vmatpush1.msra.mxu0 %v7818
          %8560 = vmatprep.subr.mxu0 0.0
          %8561 = vmatpush1.msra.mxu0 %v7817
          %8562 = vmatprep.subr.mxu0 0.0
          %8563 = vmatpush1.msra.mxu0 %v7816
          %8564 = vmatprep.subr.mxu0 0.0
          %8565 = vmatpush1.msra.mxu0 %v7815
          %8566 = vmatprep.subr.mxu0 0.0
          %8567 = vmatpush2.msra.mxu0 %v7846
          %8568 = vmatprep.subr.mxu0 0.0
          %8569 = vmatpush2.msra.mxu0 %v7845
          %8570 = vmatprep.subr.mxu0 0.0
          %8571 = vmatpush2.msra.mxu0 %v7844
          %8572 = vmatprep.subr.mxu0 0.0
          %8573 = vmatpush2.msra.mxu0 %v7843
          %8574 = vmatprep.subr.mxu0 0.0
          %8575 = vmatpush2.msra.mxu0 %v7842
          %8576 = vmatprep.subr.mxu0 0.0
          %8577 = vmatpush2.msra.mxu0 %v7841
          %8578 = vmatprep.subr.mxu0 0.0
          %8579 = vmatpush2.msra.mxu0 %v7840
          %8580 = vmatprep.subr.mxu0 0.0
          %8581 = vmatpush2.msra.mxu0 %v7839
          %8582 = vmatprep.subr.mxu0 0.0
          %8583 = vmatpush2.msra.mxu0 %v7838
          %8584 = vmatprep.subr.mxu0 0.0
          %8585 = vmatpush2.msra.mxu0 %v7837
          %8586 = vmatprep.subr.mxu0 0.0
          %8587 = vmatpush2.msra.mxu0 %v7836
          %8588 = vmatprep.subr.mxu0 0.0
          %8589 = vmatpush2.msra.mxu0 %v7835
          %8590 = vmatprep.subr.mxu0 0.0
          %8591 = vmatpush2.msra.mxu0 %v7834
          %8592 = vmatprep.subr.mxu0 0.0
          %8593 = vmatpush2.msra.mxu0 %v7833
          %8594 = vmatprep.subr.mxu0 0.0
          %8595 = vmatpush2.msra.mxu0 %v7832
          %8596 = vmatprep.subr.mxu0 0.0
          %8597 = vmatpush2.msra.mxu0 %v7831
          %8598 = vmatprep.mubr.f32.mxu0 %v8319
          %8599 = vmatmul.mubr.f32.gmra.mxu0 %v8315
          %v8600 = vpop.f32.mrf.mxu0
          %v8601 = vadd.f32 %v8531, %v8600
          %v8602 = vpop.f32.mrf.mxu0
          %8603 = vdwg.mxu0
          %8604 = vmatprep.subr.mxu0 0.0
          %8605 = vmatpush1.msra.mxu0 %v7862
          %8606 = vmatprep.subr.mxu0 0.0
          %8607 = vmatpush1.msra.mxu0 %v7861
          %8608 = vmatprep.subr.mxu0 0.0
          %8609 = vmatpush1.msra.mxu0 %v7860
          %8610 = vmatprep.subr.mxu0 0.0
          %8611 = vmatpush1.msra.mxu0 %v7859
          %8612 = vmatprep.subr.mxu0 0.0
          %8613 = vmatpush1.msra.mxu0 %v7858
          %8614 = vmatprep.subr.mxu0 0.0
          %8615 = vmatpush1.msra.mxu0 %v7857
          %8616 = vmatprep.subr.mxu0 0.0
          %8617 = vmatpush1.msra.mxu0 %v7856
          %8618 = vmatprep.subr.mxu0 0.0
          %8619 = vmatpush1.msra.mxu0 %v7855
          %8620 = vmatprep.subr.mxu0 0.0
          %8621 = vmatpush1.msra.mxu0 %v7854
          %8622 = vmatprep.subr.mxu0 0.0
          %8623 = vmatpush1.msra.mxu0 %v7853
          %8624 = vmatprep.subr.mxu0 0.0
          %8625 = vmatpush1.msra.mxu0 %v7852
          %8626 = vmatprep.subr.mxu0 0.0
          %8627 = vmatpush1.msra.mxu0 %v7851
          %8628 = vmatprep.subr.mxu0 0.0
          %8629 = vmatpush1.msra.mxu0 %v7850
          %8630 = vmatprep.subr.mxu0 0.0
          %8631 = vmatpush1.msra.mxu0 %v7849
          %8632 = vmatprep.subr.mxu0 0.0
          %8633 = vmatpush1.msra.mxu0 %v7848
          %8634 = vmatprep.subr.mxu0 0.0
          %8635 = vmatpush1.msra.mxu0 %v7847
          %8636 = vmatprep.subr.mxu0 0.0
          %8637 = vmatpush2.msra.mxu0 %v7878
          %8638 = vmatprep.subr.mxu0 0.0
          %8639 = vmatpush2.msra.mxu0 %v7877
          %8640 = vmatprep.subr.mxu0 0.0
          %8641 = vmatpush2.msra.mxu0 %v7876
          %8642 = vmatprep.subr.mxu0 0.0
          %8643 = vmatpush2.msra.mxu0 %v7875
          %8644 = vmatprep.subr.mxu0 0.0
          %8645 = vmatpush2.msra.mxu0 %v7874
          %8646 = vmatprep.subr.mxu0 0.0
          %8647 = vmatpush2.msra.mxu0 %v7873
          %8648 = vmatprep.subr.mxu0 0.0
          %8649 = vmatpush2.msra.mxu0 %v7872
          %8650 = vmatprep.subr.mxu0 0.0
          %8651 = vmatpush2.msra.mxu0 %v7871
          %8652 = vmatprep.subr.mxu0 0.0
          %8653 = vmatpush2.msra.mxu0 %v7870
          %8654 = vmatprep.subr.mxu0 0.0
          %8655 = vmatpush2.msra.mxu0 %v7869
          %8656 = vmatprep.subr.mxu0 0.0
          %8657 = vmatpush2.msra.mxu0 %v7868
          %8658 = vmatprep.subr.mxu0 0.0
          %8659 = vmatpush2.msra.mxu0 %v7867
          %8660 = vmatprep.subr.mxu0 0.0
          %8661 = vmatpush2.msra.mxu0 %v7866
          %8662 = vmatprep.subr.mxu0 0.0
          %8663 = vmatpush2.msra.mxu0 %v7865
          %8664 = vmatprep.subr.mxu0 0.0
          %8665 = vmatpush2.msra.mxu0 %v7864
          %8666 = vmatprep.subr.mxu0 0.0
          %8667 = vmatpush2.msra.mxu0 %v7863
          %8668 = vmatprep.mubr.f32.mxu0 %v8327
          %8669 = vmatmul.mubr.f32.gmra.mxu0 %v8323
          %v8670 = vpop.f32.mrf.mxu0
          %v8671 = vadd.f32 %v8601, %v8670
          %v8672 = vpop.f32.mrf.mxu0
          %8673 = vdwg.mxu0
          %8674 = vmatprep.subr.mxu0 0.0
          %8675 = vmatpush1.msra.mxu0 %v7894
          %8676 = vmatprep.subr.mxu0 0.0
          %8677 = vmatpush1.msra.mxu0 %v7893
          %8678 = vmatprep.subr.mxu0 0.0
          %8679 = vmatpush1.msra.mxu0 %v7892
          %8680 = vmatprep.subr.mxu0 0.0
          %8681 = vmatpush1.msra.mxu0 %v7891
          %8682 = vmatprep.subr.mxu0 0.0
          %8683 = vmatpush1.msra.mxu0 %v7890
          %8684 = vmatprep.subr.mxu0 0.0
          %8685 = vmatpush1.msra.mxu0 %v7889
          %8686 = vmatprep.subr.mxu0 0.0
          %8687 = vmatpush1.msra.mxu0 %v7888
          %8688 = vmatprep.subr.mxu0 0.0
          %8689 = vmatpush1.msra.mxu0 %v7887
          %8690 = vmatprep.subr.mxu0 0.0
          %8691 = vmatpush1.msra.mxu0 %v7886
          %8692 = vmatprep.subr.mxu0 0.0
          %8693 = vmatpush1.msra.mxu0 %v7885
          %8694 = vmatprep.subr.mxu0 0.0
          %8695 = vmatpush1.msra.mxu0 %v7884
          %8696 = vmatprep.subr.mxu0 0.0
          %8697 = vmatpush1.msra.mxu0 %v7883
          %8698 = vmatprep.subr.mxu0 0.0
          %8699 = vmatpush1.msra.mxu0 %v7882
          %8700 = vmatprep.subr.mxu0 0.0
          %8701 = vmatpush1.msra.mxu0 %v7881
          %8702 = vmatprep.subr.mxu0 0.0
          %8703 = vmatpush1.msra.mxu0 %v7880
          %8704 = vmatprep.subr.mxu0 0.0
          %8705 = vmatpush1.msra.mxu0 %v7879
          %8706 = vmatprep.subr.mxu0 0.0
          %8707 = vmatpush2.msra.mxu0 %v7910
          %8708 = vmatprep.subr.mxu0 0.0
          %8709 = vmatpush2.msra.mxu0 %v7909
          %8710 = vmatprep.subr.mxu0 0.0
          %8711 = vmatpush2.msra.mxu0 %v7908
          %8712 = vmatprep.subr.mxu0 0.0
          %8713 = vmatpush2.msra.mxu0 %v7907
          %8714 = vmatprep.subr.mxu0 0.0
          %8715 = vmatpush2.msra.mxu0 %v7906
          %8716 = vmatprep.subr.mxu0 0.0
          %8717 = vmatpush2.msra.mxu0 %v7905
          %8718 = vmatprep.subr.mxu0 0.0
          %8719 = vmatpush2.msra.mxu0 %v7904
          %8720 = vmatprep.subr.mxu0 0.0
          %8721 = vmatpush2.msra.mxu0 %v7903
          %8722 = vmatprep.subr.mxu0 0.0
          %8723 = vmatpush2.msra.mxu0 %v7902
          %8724 = vmatprep.subr.mxu0 0.0
          %8725 = vmatpush2.msra.mxu0 %v7901
          %8726 = vmatprep.subr.mxu0 0.0
          %8727 = vmatpush2.msra.mxu0 %v7900
          %8728 = vmatprep.subr.mxu0 0.0
          %8729 = vmatpush2.msra.mxu0 %v7899
          %8730 = vmatprep.subr.mxu0 0.0
          %8731 = vmatpush2.msra.mxu0 %v7898
          %8732 = vmatprep.subr.mxu0 0.0
          %8733 = vmatpush2.msra.mxu0 %v7897
          %8734 = vmatprep.subr.mxu0 0.0
          %8735 = vmatpush2.msra.mxu0 %v7896
          %8736 = vmatprep.subr.mxu0 0.0
          %8737 = vmatpush2.msra.mxu0 %v7895
          %8738 = vmatprep.mubr.f32.mxu0 %v8335
          %8739 = vmatmul.mubr.f32.gmra.mxu0 %v8331
          %v8740 = vpop.f32.mrf.mxu0
          %v8741 = vadd.f32 %v8671, %v8740
          %v8742 = vpop.f32.mrf.mxu0
          %8743 = vdwg.mxu0
          %8744 = vmatprep.subr.mxu0 0.0
          %8745 = vmatpush1.msra.mxu0 %v7926
          %8746 = vmatprep.subr.mxu0 0.0
          %8747 = vmatpush1.msra.mxu0 %v7925
          %8748 = vmatprep.subr.mxu0 0.0
          %8749 = vmatpush1.msra.mxu0 %v7924
          %8750 = vmatprep.subr.mxu0 0.0
          %8751 = vmatpush1.msra.mxu0 %v7923
          %8752 = vmatprep.subr.mxu0 0.0
          %8753 = vmatpush1.msra.mxu0 %v7922
          %8754 = vmatprep.subr.mxu0 0.0
          %8755 = vmatpush1.msra.mxu0 %v7921
          %8756 = vmatprep.subr.mxu0 0.0
          %8757 = vmatpush1.msra.mxu0 %v7920
          %8758 = vmatprep.subr.mxu0 0.0
          %8759 = vmatpush1.msra.mxu0 %v7919
          %8760 = vmatprep.subr.mxu0 0.0
          %8761 = vmatpush1.msra.mxu0 %v7918
          %8762 = vmatprep.subr.mxu0 0.0
          %8763 = vmatpush1.msra.mxu0 %v7917
          %8764 = vmatprep.subr.mxu0 0.0
          %8765 = vmatpush1.msra.mxu0 %v7916
          %8766 = vmatprep.subr.mxu0 0.0
          %8767 = vmatpush1.msra.mxu0 %v7915
          %8768 = vmatprep.subr.mxu0 0.0
          %8769 = vmatpush1.msra.mxu0 %v7914
          %8770 = vmatprep.subr.mxu0 0.0
          %8771 = vmatpush1.msra.mxu0 %v7913
          %8772 = vmatprep.subr.mxu0 0.0
          %8773 = vmatpush1.msra.mxu0 %v7912
          %8774 = vmatprep.subr.mxu0 0.0
          %8775 = vmatpush1.msra.mxu0 %v7911
          %8776 = vmatprep.subr.mxu0 0.0
          %8777 = vmatpush2.msra.mxu0 %v7942
          %8778 = vmatprep.subr.mxu0 0.0
          %8779 = vmatpush2.msra.mxu0 %v7941
          %8780 = vmatprep.subr.mxu0 0.0
          %8781 = vmatpush2.msra.mxu0 %v7940
          %8782 = vmatprep.subr.mxu0 0.0
          %8783 = vmatpush2.msra.mxu0 %v7939
          %8784 = vmatprep.subr.mxu0 0.0
          %8785 = vmatpush2.msra.mxu0 %v7938
          %8786 = vmatprep.subr.mxu0 0.0
          %8787 = vmatpush2.msra.mxu0 %v7937
          %8788 = vmatprep.subr.mxu0 0.0
          %8789 = vmatpush2.msra.mxu0 %v7936
          %8790 = vmatprep.subr.mxu0 0.0
          %8791 = vmatpush2.msra.mxu0 %v7935
          %8792 = vmatprep.subr.mxu0 0.0
          %8793 = vmatpush2.msra.mxu0 %v7934
          %8794 = vmatprep.subr.mxu0 0.0
          %8795 = vmatpush2.msra.mxu0 %v7933
          %8796 = vmatprep.subr.mxu0 0.0
          %8797 = vmatpush2.msra.mxu0 %v7932
          %8798 = vmatprep.subr.mxu0 0.0
          %8799 = vmatpush2.msra.mxu0 %v7931
          %8800 = vmatprep.subr.mxu0 0.0
          %8801 = vmatpush2.msra.mxu0 %v7930
          %8802 = vmatprep.subr.mxu0 0.0
          %8803 = vmatpush2.msra.mxu0 %v7929
          %8804 = vmatprep.subr.mxu0 0.0
          %8805 = vmatpush2.msra.mxu0 %v7928
          %8806 = vmatprep.subr.mxu0 0.0
          %8807 = vmatpush2.msra.mxu0 %v7927
          %8808 = vmatprep.mubr.f32.mxu0 %v8343
          %8809 = vmatmul.mubr.f32.gmra.mxu0 %v8339
          %v8810 = vpop.f32.mrf.mxu0
          %v8811 = vadd.f32 %v8741, %v8810
          %v8812 = vpop.f32.mrf.mxu0
          %8813 = vdwg.mxu0
          %8814 = vmatprep.subr.mxu0 0.0
          %8815 = vmatpush1.msra.mxu0 %v7958
          %8816 = vmatprep.subr.mxu0 0.0
          %8817 = vmatpush1.msra.mxu0 %v7957
          %8818 = vmatprep.subr.mxu0 0.0
          %8819 = vmatpush1.msra.mxu0 %v7956
          %8820 = vmatprep.subr.mxu0 0.0
          %8821 = vmatpush1.msra.mxu0 %v7955
          %8822 = vmatprep.subr.mxu0 0.0
          %8823 = vmatpush1.msra.mxu0 %v7954
          %8824 = vmatprep.subr.mxu0 0.0
          %8825 = vmatpush1.msra.mxu0 %v7953
          %8826 = vmatprep.subr.mxu0 0.0
          %8827 = vmatpush1.msra.mxu0 %v7952
          %8828 = vmatprep.subr.mxu0 0.0
          %8829 = vmatpush1.msra.mxu0 %v7951
          %8830 = vmatprep.subr.mxu0 0.0
          %8831 = vmatpush1.msra.mxu0 %v7950
          %8832 = vmatprep.subr.mxu0 0.0
          %8833 = vmatpush1.msra.mxu0 %v7949
          %8834 = vmatprep.subr.mxu0 0.0
          %8835 = vmatpush1.msra.mxu0 %v7948
          %8836 = vmatprep.subr.mxu0 0.0
          %8837 = vmatpush1.msra.mxu0 %v7947
          %8838 = vmatprep.subr.mxu0 0.0
          %8839 = vmatpush1.msra.mxu0 %v7946
          %8840 = vmatprep.subr.mxu0 0.0
          %8841 = vmatpush1.msra.mxu0 %v7945
          %8842 = vmatprep.subr.mxu0 0.0
          %8843 = vmatpush1.msra.mxu0 %v7944
          %8844 = vmatprep.subr.mxu0 0.0
          %8845 = vmatpush1.msra.mxu0 %v7943
          %8846 = vmatprep.subr.mxu0 0.0
          %8847 = vmatpush2.msra.mxu0 %v7974
          %8848 = vmatprep.subr.mxu0 0.0
          %8849 = vmatpush2.msra.mxu0 %v7973
          %8850 = vmatprep.subr.mxu0 0.0
          %8851 = vmatpush2.msra.mxu0 %v7972
          %8852 = vmatprep.subr.mxu0 0.0
          %8853 = vmatpush2.msra.mxu0 %v7971
          %8854 = vmatprep.subr.mxu0 0.0
          %8855 = vmatpush2.msra.mxu0 %v7970
          %8856 = vmatprep.subr.mxu0 0.0
          %8857 = vmatpush2.msra.mxu0 %v7969
          %8858 = vmatprep.subr.mxu0 0.0
          %8859 = vmatpush2.msra.mxu0 %v7968
          %8860 = vmatprep.subr.mxu0 0.0
          %8861 = vmatpush2.msra.mxu0 %v7967
          %8862 = vmatprep.subr.mxu0 0.0
          %8863 = vmatpush2.msra.mxu0 %v7966
          %8864 = vmatprep.subr.mxu0 0.0
          %8865 = vmatpush2.msra.mxu0 %v7965
          %8866 = vmatprep.subr.mxu0 0.0
          %8867 = vmatpush2.msra.mxu0 %v7964
          %8868 = vmatprep.subr.mxu0 0.0
          %8869 = vmatpush2.msra.mxu0 %v7963
          %8870 = vmatprep.subr.mxu0 0.0
          %8871 = vmatpush2.msra.mxu0 %v7962
          %8872 = vmatprep.subr.mxu0 0.0
          %8873 = vmatpush2.msra.mxu0 %v7961
          %8874 = vmatprep.subr.mxu0 0.0
          %8875 = vmatpush2.msra.mxu0 %v7960
          %8876 = vmatprep.subr.mxu0 0.0
          %8877 = vmatpush2.msra.mxu0 %v7959
          %8878 = vmatprep.mubr.f32.mxu0 %v8351
          %8879 = vmatmul.mubr.f32.gmra.mxu0 %v8347
          %v8880 = vpop.f32.mrf.mxu0
          %v8881 = vadd.f32 %v8811, %v8880
          %v8882 = vpop.f32.mrf.mxu0
          %8883 = vdwg.mxu0
          %8884 = vmatprep.subr.mxu0 0.0
          %8885 = vmatpush1.msra.mxu0 %v7990
          %8886 = vmatprep.subr.mxu0 0.0
          %8887 = vmatpush1.msra.mxu0 %v7989
          %8888 = vmatprep.subr.mxu0 0.0
          %8889 = vmatpush1.msra.mxu0 %v7988
          %8890 = vmatprep.subr.mxu0 0.0
          %8891 = vmatpush1.msra.mxu0 %v7987
          %8892 = vmatprep.subr.mxu0 0.0
          %8893 = vmatpush1.msra.mxu0 %v7986
          %8894 = vmatprep.subr.mxu0 0.0
          %8895 = vmatpush1.msra.mxu0 %v7985
          %8896 = vmatprep.subr.mxu0 0.0
          %8897 = vmatpush1.msra.mxu0 %v7984
          %8898 = vmatprep.subr.mxu0 0.0
          %8899 = vmatpush1.msra.mxu0 %v7983
          %8900 = vmatprep.subr.mxu0 0.0
          %8901 = vmatpush1.msra.mxu0 %v7982
          %8902 = vmatprep.subr.mxu0 0.0
          %8903 = vmatpush1.msra.mxu0 %v7981
          %8904 = vmatprep.subr.mxu0 0.0
          %8905 = vmatpush1.msra.mxu0 %v7980
          %8906 = vmatprep.subr.mxu0 0.0
          %8907 = vmatpush1.msra.mxu0 %v7979
          %8908 = vmatprep.subr.mxu0 0.0
          %8909 = vmatpush1.msra.mxu0 %v7978
          %8910 = vmatprep.subr.mxu0 0.0
          %8911 = vmatpush1.msra.mxu0 %v7977
          %8912 = vmatprep.subr.mxu0 0.0
          %8913 = vmatpush1.msra.mxu0 %v7976
          %8914 = vmatprep.subr.mxu0 0.0
          %8915 = vmatpush1.msra.mxu0 %v7975
          %8916 = vmatprep.subr.mxu0 0.0
          %8917 = vmatpush2.msra.mxu0 %v8006
          %8918 = vmatprep.subr.mxu0 0.0
          %8919 = vmatpush2.msra.mxu0 %v8005
          %8920 = vmatprep.subr.mxu0 0.0
          %8921 = vmatpush2.msra.mxu0 %v8004
          %8922 = vmatprep.subr.mxu0 0.0
          %8923 = vmatpush2.msra.mxu0 %v8003
          %8924 = vmatprep.subr.mxu0 0.0
          %8925 = vmatpush2.msra.mxu0 %v8002
          %8926 = vmatprep.subr.mxu0 0.0
          %8927 = vmatpush2.msra.mxu0 %v8001
          %8928 = vmatprep.subr.mxu0 0.0
          %8929 = vmatpush2.msra.mxu0 %v8000
          %8930 = vmatprep.subr.mxu0 0.0
          %8931 = vmatpush2.msra.mxu0 %v7999
          %8932 = vmatprep.subr.mxu0 0.0
          %8933 = vmatpush2.msra.mxu0 %v7998
          %8934 = vmatprep.subr.mxu0 0.0
          %8935 = vmatpush2.msra.mxu0 %v7997
          %8936 = vmatprep.subr.mxu0 0.0
          %8937 = vmatpush2.msra.mxu0 %v7996
          %8938 = vmatprep.subr.mxu0 0.0
          %8939 = vmatpush2.msra.mxu0 %v7995
          %8940 = vmatprep.subr.mxu0 0.0
          %8941 = vmatpush2.msra.mxu0 %v7994
          %8942 = vmatprep.subr.mxu0 0.0
          %8943 = vmatpush2.msra.mxu0 %v7993
          %8944 = vmatprep.subr.mxu0 0.0
          %8945 = vmatpush2.msra.mxu0 %v7992
          %8946 = vmatprep.subr.mxu0 0.0
          %8947 = vmatpush2.msra.mxu0 %v7991
          %8948 = vmatprep.mubr.f32.mxu0 %v8359
          %8949 = vmatmul.mubr.f32.gmra.mxu0 %v8355
          %v8950 = vpop.f32.mrf.mxu0
          %v8951 = vadd.f32 %v8881, %v8950
          %v8952 = vpop.f32.mrf.mxu0
          %8953 = vdwg.mxu0
          %8954 = vmatprep.subr.mxu0 0.0
          %8955 = vmatpush1.msra.mxu0 %v8022
          %8956 = vmatprep.subr.mxu0 0.0
          %8957 = vmatpush1.msra.mxu0 %v8021
          %8958 = vmatprep.subr.mxu0 0.0
          %8959 = vmatpush1.msra.mxu0 %v8020
          %8960 = vmatprep.subr.mxu0 0.0
          %8961 = vmatpush1.msra.mxu0 %v8019
          %8962 = vmatprep.subr.mxu0 0.0
          %8963 = vmatpush1.msra.mxu0 %v8018
          %8964 = vmatprep.subr.mxu0 0.0
          %8965 = vmatpush1.msra.mxu0 %v8017
          %8966 = vmatprep.subr.mxu0 0.0
          %8967 = vmatpush1.msra.mxu0 %v8016
          %8968 = vmatprep.subr.mxu0 0.0
          %8969 = vmatpush1.msra.mxu0 %v8015
          %8970 = vmatprep.subr.mxu0 0.0
          %8971 = vmatpush1.msra.mxu0 %v8014
          %8972 = vmatprep.subr.mxu0 0.0
          %8973 = vmatpush1.msra.mxu0 %v8013
          %8974 = vmatprep.subr.mxu0 0.0
          %8975 = vmatpush1.msra.mxu0 %v8012
          %8976 = vmatprep.subr.mxu0 0.0
          %8977 = vmatpush1.msra.mxu0 %v8011
          %8978 = vmatprep.subr.mxu0 0.0
          %8979 = vmatpush1.msra.mxu0 %v8010
          %8980 = vmatprep.subr.mxu0 0.0
          %8981 = vmatpush1.msra.mxu0 %v8009
          %8982 = vmatprep.subr.mxu0 0.0
          %8983 = vmatpush1.msra.mxu0 %v8008
          %8984 = vmatprep.subr.mxu0 0.0
          %8985 = vmatpush1.msra.mxu0 %v8007
          %8986 = vmatprep.subr.mxu0 0.0
          %8987 = vmatpush2.msra.mxu0 %v8038
          %8988 = vmatprep.subr.mxu0 0.0
          %8989 = vmatpush2.msra.mxu0 %v8037
          %8990 = vmatprep.subr.mxu0 0.0
          %8991 = vmatpush2.msra.mxu0 %v8036
          %8992 = vmatprep.subr.mxu0 0.0
          %8993 = vmatpush2.msra.mxu0 %v8035
          %8994 = vmatprep.subr.mxu0 0.0
          %8995 = vmatpush2.msra.mxu0 %v8034
          %8996 = vmatprep.subr.mxu0 0.0
          %8997 = vmatpush2.msra.mxu0 %v8033
          %8998 = vmatprep.subr.mxu0 0.0
          %8999 = vmatpush2.msra.mxu0 %v8032
          %9000 = vmatprep.subr.mxu0 0.0
          %9001 = vmatpush2.msra.mxu0 %v8031
          %9002 = vmatprep.subr.mxu0 0.0
          %9003 = vmatpush2.msra.mxu0 %v8030
          %9004 = vmatprep.subr.mxu0 0.0
          %9005 = vmatpush2.msra.mxu0 %v8029
          %9006 = vmatprep.subr.mxu0 0.0
          %9007 = vmatpush2.msra.mxu0 %v8028
          %9008 = vmatprep.subr.mxu0 0.0
          %9009 = vmatpush2.msra.mxu0 %v8027
          %9010 = vmatprep.subr.mxu0 0.0
          %9011 = vmatpush2.msra.mxu0 %v8026
          %9012 = vmatprep.subr.mxu0 0.0
          %9013 = vmatpush2.msra.mxu0 %v8025
          %9014 = vmatprep.subr.mxu0 0.0
          %9015 = vmatpush2.msra.mxu0 %v8024
          %9016 = vmatprep.subr.mxu0 0.0
          %9017 = vmatpush2.msra.mxu0 %v8023
          %9018 = vmatprep.mubr.f32.mxu0 %v8367
          %9019 = vmatmul.mubr.f32.gmra.mxu0 %v8363
          %v9020 = vpop.f32.mrf.mxu0
          %v9021 = vadd.f32 %v8951, %v9020
          %v9022 = vpop.f32.mrf.mxu0
          %9023 = vdwg.mxu0
          %9024 = vmatprep.subr.mxu0 0.0
          %9025 = vmatpush1.msra.mxu0 %v8054
          %9026 = vmatprep.subr.mxu0 0.0
          %9027 = vmatpush1.msra.mxu0 %v8053
          %9028 = vmatprep.subr.mxu0 0.0
          %9029 = vmatpush1.msra.mxu0 %v8052
          %9030 = vmatprep.subr.mxu0 0.0
          %9031 = vmatpush1.msra.mxu0 %v8051
          %9032 = vmatprep.subr.mxu0 0.0
          %9033 = vmatpush1.msra.mxu0 %v8050
          %9034 = vmatprep.subr.mxu0 0.0
          %9035 = vmatpush1.msra.mxu0 %v8049
          %9036 = vmatprep.subr.mxu0 0.0
          %9037 = vmatpush1.msra.mxu0 %v8048
          %9038 = vmatprep.subr.mxu0 0.0
          %9039 = vmatpush1.msra.mxu0 %v8047
          %9040 = vmatprep.subr.mxu0 0.0
          %9041 = vmatpush1.msra.mxu0 %v8046
          %9042 = vmatprep.subr.mxu0 0.0
          %9043 = vmatpush1.msra.mxu0 %v8045
          %9044 = vmatprep.subr.mxu0 0.0
          %9045 = vmatpush1.msra.mxu0 %v8044
          %9046 = vmatprep.subr.mxu0 0.0
          %9047 = vmatpush1.msra.mxu0 %v8043
          %9048 = vmatprep.subr.mxu0 0.0
          %9049 = vmatpush1.msra.mxu0 %v8042
          %9050 = vmatprep.subr.mxu0 0.0
          %9051 = vmatpush1.msra.mxu0 %v8041
          %9052 = vmatprep.subr.mxu0 0.0
          %9053 = vmatpush1.msra.mxu0 %v8040
          %9054 = vmatprep.subr.mxu0 0.0
          %9055 = vmatpush1.msra.mxu0 %v8039
          %9056 = vmatprep.subr.mxu0 0.0
          %9057 = vmatpush2.msra.mxu0 %v8070
          %9058 = vmatprep.subr.mxu0 0.0
          %9059 = vmatpush2.msra.mxu0 %v8069
          %9060 = vmatprep.subr.mxu0 0.0
          %9061 = vmatpush2.msra.mxu0 %v8068
          %9062 = vmatprep.subr.mxu0 0.0
          %9063 = vmatpush2.msra.mxu0 %v8067
          %9064 = vmatprep.subr.mxu0 0.0
          %9065 = vmatpush2.msra.mxu0 %v8066
          %9066 = vmatprep.subr.mxu0 0.0
          %9067 = vmatpush2.msra.mxu0 %v8065
          %9068 = vmatprep.subr.mxu0 0.0
          %9069 = vmatpush2.msra.mxu0 %v8064
          %9070 = vmatprep.subr.mxu0 0.0
          %9071 = vmatpush2.msra.mxu0 %v8063
          %9072 = vmatprep.subr.mxu0 0.0
          %9073 = vmatpush2.msra.mxu0 %v8062
          %9074 = vmatprep.subr.mxu0 0.0
          %9075 = vmatpush2.msra.mxu0 %v8061
          %9076 = vmatprep.subr.mxu0 0.0
          %9077 = vmatpush2.msra.mxu0 %v8060
          %9078 = vmatprep.subr.mxu0 0.0
          %9079 = vmatpush2.msra.mxu0 %v8059
          %9080 = vmatprep.subr.mxu0 0.0
          %9081 = vmatpush2.msra.mxu0 %v8058
          %9082 = vmatprep.subr.mxu0 0.0
          %9083 = vmatpush2.msra.mxu0 %v8057
          %9084 = vmatprep.subr.mxu0 0.0
          %9085 = vmatpush2.msra.mxu0 %v8056
          %9086 = vmatprep.subr.mxu0 0.0
          %9087 = vmatpush2.msra.mxu0 %v8055
          %9088 = vmatprep.mubr.f32.mxu0 %v8375
          %9089 = vmatmul.mubr.f32.gmra.mxu0 %v8371
          %v9090 = vpop.f32.mrf.mxu0
          %v9091 = vadd.f32 %v9021, %v9090
          %v9092 = vpop.f32.mrf.mxu0
          %9093 = vdwg.mxu0
          %9094 = vmatprep.subr.mxu0 0.0
          %9095 = vmatpush1.msra.mxu0 %v8086
          %9096 = vmatprep.subr.mxu0 0.0
          %9097 = vmatpush1.msra.mxu0 %v8085
          %9098 = vmatprep.subr.mxu0 0.0
          %9099 = vmatpush1.msra.mxu0 %v8084
          %9100 = vmatprep.subr.mxu0 0.0
          %9101 = vmatpush1.msra.mxu0 %v8083
          %9102 = vmatprep.subr.mxu0 0.0
          %9103 = vmatpush1.msra.mxu0 %v8082
          %9104 = vmatprep.subr.mxu0 0.0
          %9105 = vmatpush1.msra.mxu0 %v8081
          %9106 = vmatprep.subr.mxu0 0.0
          %9107 = vmatpush1.msra.mxu0 %v8080
          %9108 = vmatprep.subr.mxu0 0.0
          %9109 = vmatpush1.msra.mxu0 %v8079
          %9110 = vmatprep.subr.mxu0 0.0
          %9111 = vmatpush1.msra.mxu0 %v8078
          %9112 = vmatprep.subr.mxu0 0.0
          %9113 = vmatpush1.msra.mxu0 %v8077
          %9114 = vmatprep.subr.mxu0 0.0
          %9115 = vmatpush1.msra.mxu0 %v8076
          %9116 = vmatprep.subr.mxu0 0.0
          %9117 = vmatpush1.msra.mxu0 %v8075
          %9118 = vmatprep.subr.mxu0 0.0
          %9119 = vmatpush1.msra.mxu0 %v8074
          %9120 = vmatprep.subr.mxu0 0.0
          %9121 = vmatpush1.msra.mxu0 %v8073
          %9122 = vmatprep.subr.mxu0 0.0
          %9123 = vmatpush1.msra.mxu0 %v8072
          %9124 = vmatprep.subr.mxu0 0.0
          %9125 = vmatpush1.msra.mxu0 %v8071
          %9126 = vmatprep.subr.mxu0 0.0
          %9127 = vmatpush2.msra.mxu0 %v8102
          %9128 = vmatprep.subr.mxu0 0.0
          %9129 = vmatpush2.msra.mxu0 %v8101
          %9130 = vmatprep.subr.mxu0 0.0
          %9131 = vmatpush2.msra.mxu0 %v8100
          %9132 = vmatprep.subr.mxu0 0.0
          %9133 = vmatpush2.msra.mxu0 %v8099
          %9134 = vmatprep.subr.mxu0 0.0
          %9135 = vmatpush2.msra.mxu0 %v8098
          %9136 = vmatprep.subr.mxu0 0.0
          %9137 = vmatpush2.msra.mxu0 %v8097
          %9138 = vmatprep.subr.mxu0 0.0
          %9139 = vmatpush2.msra.mxu0 %v8096
          %9140 = vmatprep.subr.mxu0 0.0
          %9141 = vmatpush2.msra.mxu0 %v8095
          %9142 = vmatprep.subr.mxu0 0.0
          %9143 = vmatpush2.msra.mxu0 %v8094
          %9144 = vmatprep.subr.mxu0 0.0
          %9145 = vmatpush2.msra.mxu0 %v8093
          %9146 = vmatprep.subr.mxu0 0.0
          %9147 = vmatpush2.msra.mxu0 %v8092
          %9148 = vmatprep.subr.mxu0 0.0
          %9149 = vmatpush2.msra.mxu0 %v8091
          %9150 = vmatprep.subr.mxu0 0.0
          %9151 = vmatpush2.msra.mxu0 %v8090
          %9152 = vmatprep.subr.mxu0 0.0
          %9153 = vmatpush2.msra.mxu0 %v8089
          %9154 = vmatprep.subr.mxu0 0.0
          %9155 = vmatpush2.msra.mxu0 %v8088
          %9156 = vmatprep.subr.mxu0 0.0
          %9157 = vmatpush2.msra.mxu0 %v8087
          %9158 = vmatprep.mubr.f32.mxu0 %v8383
          %9159 = vmatmul.mubr.f32.gmra.mxu0 %v8379
          %v9160 = vpop.f32.mrf.mxu0
          %v9161 = vadd.f32 %v9091, %v9160
          %v9162 = vpop.f32.mrf.mxu0
          %9163 = vdwg.mxu0
          %9164 = vmatprep.subr.mxu0 0.0
          %9165 = vmatpush1.msra.mxu0 %v8118
          %9166 = vmatprep.subr.mxu0 0.0
          %9167 = vmatpush1.msra.mxu0 %v8117
          %9168 = vmatprep.subr.mxu0 0.0
          %9169 = vmatpush1.msra.mxu0 %v8116
          %9170 = vmatprep.subr.mxu0 0.0
          %9171 = vmatpush1.msra.mxu0 %v8115
          %9172 = vmatprep.subr.mxu0 0.0
          %9173 = vmatpush1.msra.mxu0 %v8114
          %9174 = vmatprep.subr.mxu0 0.0
          %9175 = vmatpush1.msra.mxu0 %v8113
          %9176 = vmatprep.subr.mxu0 0.0
          %9177 = vmatpush1.msra.mxu0 %v8112
          %9178 = vmatprep.subr.mxu0 0.0
          %9179 = vmatpush1.msra.mxu0 %v8111
          %9180 = vmatprep.subr.mxu0 0.0
          %9181 = vmatpush1.msra.mxu0 %v8110
          %9182 = vmatprep.subr.mxu0 0.0
          %9183 = vmatpush1.msra.mxu0 %v8109
          %9184 = vmatprep.subr.mxu0 0.0
          %9185 = vmatpush1.msra.mxu0 %v8108
          %9186 = vmatprep.subr.mxu0 0.0
          %9187 = vmatpush1.msra.mxu0 %v8107
          %9188 = vmatprep.subr.mxu0 0.0
          %9189 = vmatpush1.msra.mxu0 %v8106
          %9190 = vmatprep.subr.mxu0 0.0
          %9191 = vmatpush1.msra.mxu0 %v8105
          %9192 = vmatprep.subr.mxu0 0.0
          %9193 = vmatpush1.msra.mxu0 %v8104
          %9194 = vmatprep.subr.mxu0 0.0
          %9195 = vmatpush1.msra.mxu0 %v8103
          %9196 = vmatprep.subr.mxu0 0.0
          %9197 = vmatpush2.msra.mxu0 %v8134
          %9198 = vmatprep.subr.mxu0 0.0
          %9199 = vmatpush2.msra.mxu0 %v8133
          %9200 = vmatprep.subr.mxu0 0.0
          %9201 = vmatpush2.msra.mxu0 %v8132
          %9202 = vmatprep.subr.mxu0 0.0
          %9203 = vmatpush2.msra.mxu0 %v8131
          %9204 = vmatprep.subr.mxu0 0.0
          %9205 = vmatpush2.msra.mxu0 %v8130
          %9206 = vmatprep.subr.mxu0 0.0
          %9207 = vmatpush2.msra.mxu0 %v8129
          %9208 = vmatprep.subr.mxu0 0.0
          %9209 = vmatpush2.msra.mxu0 %v8128
          %9210 = vmatprep.subr.mxu0 0.0
          %9211 = vmatpush2.msra.mxu0 %v8127
          %9212 = vmatprep.subr.mxu0 0.0
          %9213 = vmatpush2.msra.mxu0 %v8126
          %9214 = vmatprep.subr.mxu0 0.0
          %9215 = vmatpush2.msra.mxu0 %v8125
          %9216 = vmatprep.subr.mxu0 0.0
          %9217 = vmatpush2.msra.mxu0 %v8124
          %9218 = vmatprep.subr.mxu0 0.0
          %9219 = vmatpush2.msra.mxu0 %v8123
          %9220 = vmatprep.subr.mxu0 0.0
          %9221 = vmatpush2.msra.mxu0 %v8122
          %9222 = vmatprep.subr.mxu0 0.0
          %9223 = vmatpush2.msra.mxu0 %v8121
          %9224 = vmatprep.subr.mxu0 0.0
          %9225 = vmatpush2.msra.mxu0 %v8120
          %9226 = vmatprep.subr.mxu0 0.0
          %9227 = vmatpush2.msra.mxu0 %v8119
          %9228 = vmatprep.mubr.f32.mxu0 %v8391
          %9229 = vmatmul.mubr.f32.gmra.mxu0 %v8387
          %v9230 = vpop.f32.mrf.mxu0
          %v9231 = vadd.f32 %v9161, %v9230
          %v9232 = vpop.f32.mrf.mxu0
          %9233 = vdwg.mxu0
          %9234 = vmatprep.subr.mxu0 0.0
          %9235 = vmatpush1.msra.mxu0 %v8150
          %9236 = vmatprep.subr.mxu0 0.0
          %9237 = vmatpush1.msra.mxu0 %v8149
          %9238 = vmatprep.subr.mxu0 0.0
          %9239 = vmatpush1.msra.mxu0 %v8148
          %9240 = vmatprep.subr.mxu0 0.0
          %9241 = vmatpush1.msra.mxu0 %v8147
          %9242 = vmatprep.subr.mxu0 0.0
          %9243 = vmatpush1.msra.mxu0 %v8146
          %9244 = vmatprep.subr.mxu0 0.0
          %9245 = vmatpush1.msra.mxu0 %v8145
          %9246 = vmatprep.subr.mxu0 0.0
          %9247 = vmatpush1.msra.mxu0 %v8144
          %9248 = vmatprep.subr.mxu0 0.0
          %9249 = vmatpush1.msra.mxu0 %v8143
          %9250 = vmatprep.subr.mxu0 0.0
          %9251 = vmatpush1.msra.mxu0 %v8142
          %9252 = vmatprep.subr.mxu0 0.0
          %9253 = vmatpush1.msra.mxu0 %v8141
          %9254 = vmatprep.subr.mxu0 0.0
          %9255 = vmatpush1.msra.mxu0 %v8140
          %9256 = vmatprep.subr.mxu0 0.0
          %9257 = vmatpush1.msra.mxu0 %v8139
          %9258 = vmatprep.subr.mxu0 0.0
          %9259 = vmatpush1.msra.mxu0 %v8138
          %9260 = vmatprep.subr.mxu0 0.0
          %9261 = vmatpush1.msra.mxu0 %v8137
          %9262 = vmatprep.subr.mxu0 0.0
          %9263 = vmatpush1.msra.mxu0 %v8136
          %9264 = vmatprep.subr.mxu0 0.0
          %9265 = vmatpush1.msra.mxu0 %v8135
          %9266 = vmatprep.subr.mxu0 0.0
          %9267 = vmatpush2.msra.mxu0 %v8166
          %9268 = vmatprep.subr.mxu0 0.0
          %9269 = vmatpush2.msra.mxu0 %v8165
          %9270 = vmatprep.subr.mxu0 0.0
          %9271 = vmatpush2.msra.mxu0 %v8164
          %9272 = vmatprep.subr.mxu0 0.0
          %9273 = vmatpush2.msra.mxu0 %v8163
          %9274 = vmatprep.subr.mxu0 0.0
          %9275 = vmatpush2.msra.mxu0 %v8162
          %9276 = vmatprep.subr.mxu0 0.0
          %9277 = vmatpush2.msra.mxu0 %v8161
          %9278 = vmatprep.subr.mxu0 0.0
          %9279 = vmatpush2.msra.mxu0 %v8160
          %9280 = vmatprep.subr.mxu0 0.0
          %9281 = vmatpush2.msra.mxu0 %v8159
          %9282 = vmatprep.subr.mxu0 0.0
          %9283 = vmatpush2.msra.mxu0 %v8158
          %9284 = vmatprep.subr.mxu0 0.0
          %9285 = vmatpush2.msra.mxu0 %v8157
          %9286 = vmatprep.subr.mxu0 0.0
          %9287 = vmatpush2.msra.mxu0 %v8156
          %9288 = vmatprep.subr.mxu0 0.0
          %9289 = vmatpush2.msra.mxu0 %v8155
          %9290 = vmatprep.subr.mxu0 0.0
          %9291 = vmatpush2.msra.mxu0 %v8154
          %9292 = vmatprep.subr.mxu0 0.0
          %9293 = vmatpush2.msra.mxu0 %v8153
          %9294 = vmatprep.subr.mxu0 0.0
          %9295 = vmatpush2.msra.mxu0 %v8152
          %9296 = vmatprep.subr.mxu0 0.0
          %9297 = vmatpush2.msra.mxu0 %v8151
          %9298 = vmatprep.mubr.f32.mxu0 %v8399
          %9299 = vmatmul.mubr.f32.gmra.mxu0 %v8395
          %v9300 = vpop.f32.mrf.mxu0
          %v9301 = vadd.f32 %v9231, %v9300
          %v9302 = vpop.f32.mrf.mxu0
          %9303 = vdwg.mxu0
          %9304 = vmatprep.subr.mxu0 0.0
          %9305 = vmatpush1.msra.mxu0 %v8182
          %9306 = vmatprep.subr.mxu0 0.0
          %9307 = vmatpush1.msra.mxu0 %v8181
          %9308 = vmatprep.subr.mxu0 0.0
          %9309 = vmatpush1.msra.mxu0 %v8180
          %9310 = vmatprep.subr.mxu0 0.0
          %9311 = vmatpush1.msra.mxu0 %v8179
          %9312 = vmatprep.subr.mxu0 0.0
          %9313 = vmatpush1.msra.mxu0 %v8178
          %9314 = vmatprep.subr.mxu0 0.0
          %9315 = vmatpush1.msra.mxu0 %v8177
          %9316 = vmatprep.subr.mxu0 0.0
          %9317 = vmatpush1.msra.mxu0 %v8176
          %9318 = vmatprep.subr.mxu0 0.0
          %9319 = vmatpush1.msra.mxu0 %v8175
          %9320 = vmatprep.subr.mxu0 0.0
          %9321 = vmatpush1.msra.mxu0 %v8174
          %9322 = vmatprep.subr.mxu0 0.0
          %9323 = vmatpush1.msra.mxu0 %v8173
          %9324 = vmatprep.subr.mxu0 0.0
          %9325 = vmatpush1.msra.mxu0 %v8172
          %9326 = vmatprep.subr.mxu0 0.0
          %9327 = vmatpush1.msra.mxu0 %v8171
          %9328 = vmatprep.subr.mxu0 0.0
          %9329 = vmatpush1.msra.mxu0 %v8170
          %9330 = vmatprep.subr.mxu0 0.0
          %9331 = vmatpush1.msra.mxu0 %v8169
          %9332 = vmatprep.subr.mxu0 0.0
          %9333 = vmatpush1.msra.mxu0 %v8168
          %9334 = vmatprep.subr.mxu0 0.0
          %9335 = vmatpush1.msra.mxu0 %v8167
          %9336 = vmatprep.subr.mxu0 0.0
          %9337 = vmatpush2.msra.mxu0 %v8198
          %9338 = vmatprep.subr.mxu0 0.0
          %9339 = vmatpush2.msra.mxu0 %v8197
          %9340 = vmatprep.subr.mxu0 0.0
          %9341 = vmatpush2.msra.mxu0 %v8196
          %9342 = vmatprep.subr.mxu0 0.0
          %9343 = vmatpush2.msra.mxu0 %v8195
          %9344 = vmatprep.subr.mxu0 0.0
          %9345 = vmatpush2.msra.mxu0 %v8194
          %9346 = vmatprep.subr.mxu0 0.0
          %9347 = vmatpush2.msra.mxu0 %v8193
          %9348 = vmatprep.subr.mxu0 0.0
          %9349 = vmatpush2.msra.mxu0 %v8192
          %9350 = vmatprep.subr.mxu0 0.0
          %9351 = vmatpush2.msra.mxu0 %v8191
          %9352 = vmatprep.subr.mxu0 0.0
          %9353 = vmatpush2.msra.mxu0 %v8190
          %9354 = vmatprep.subr.mxu0 0.0
          %9355 = vmatpush2.msra.mxu0 %v8189
          %9356 = vmatprep.subr.mxu0 0.0
          %9357 = vmatpush2.msra.mxu0 %v8188
          %9358 = vmatprep.subr.mxu0 0.0
          %9359 = vmatpush2.msra.mxu0 %v8187
          %9360 = vmatprep.subr.mxu0 0.0
          %9361 = vmatpush2.msra.mxu0 %v8186
          %9362 = vmatprep.subr.mxu0 0.0
          %9363 = vmatpush2.msra.mxu0 %v8185
          %9364 = vmatprep.subr.mxu0 0.0
          %9365 = vmatpush2.msra.mxu0 %v8184
          %9366 = vmatprep.subr.mxu0 0.0
          %9367 = vmatpush2.msra.mxu0 %v8183
          %9368 = vmatprep.mubr.f32.mxu0 %v8407
          %9369 = vmatmul.mubr.f32.gmra.mxu0 %v8403
          %v9370 = vpop.f32.mrf.mxu0
          %v9371 = vadd.f32 %v9301, %v9370
          %v9372 = vpop.f32.mrf.mxu0
          %9373 = vdwg.mxu0
          %9374 = vmatprep.subr.mxu0 0.0
          %9375 = vmatpush1.msra.mxu0 %v8214
          %9376 = vmatprep.subr.mxu0 0.0
          %9377 = vmatpush1.msra.mxu0 %v8213
          %9378 = vmatprep.subr.mxu0 0.0
          %9379 = vmatpush1.msra.mxu0 %v8212
          %9380 = vmatprep.subr.mxu0 0.0
          %9381 = vmatpush1.msra.mxu0 %v8211
          %9382 = vmatprep.subr.mxu0 0.0
          %9383 = vmatpush1.msra.mxu0 %v8210
          %9384 = vmatprep.subr.mxu0 0.0
          %9385 = vmatpush1.msra.mxu0 %v8209
          %9386 = vmatprep.subr.mxu0 0.0
          %9387 = vmatpush1.msra.mxu0 %v8208
          %9388 = vmatprep.subr.mxu0 0.0
          %9389 = vmatpush1.msra.mxu0 %v8207
          %9390 = vmatprep.subr.mxu0 0.0
          %9391 = vmatpush1.msra.mxu0 %v8206
          %9392 = vmatprep.subr.mxu0 0.0
          %9393 = vmatpush1.msra.mxu0 %v8205
          %9394 = vmatprep.subr.mxu0 0.0
          %9395 = vmatpush1.msra.mxu0 %v8204
          %9396 = vmatprep.subr.mxu0 0.0
          %9397 = vmatpush1.msra.mxu0 %v8203
          %9398 = vmatprep.subr.mxu0 0.0
          %9399 = vmatpush1.msra.mxu0 %v8202
          %9400 = vmatprep.subr.mxu0 0.0
          %9401 = vmatpush1.msra.mxu0 %v8201
          %9402 = vmatprep.subr.mxu0 0.0
          %9403 = vmatpush1.msra.mxu0 %v8200
          %9404 = vmatprep.subr.mxu0 0.0
          %9405 = vmatpush1.msra.mxu0 %v8199
          %9406 = vmatprep.subr.mxu0 0.0
          %9407 = vmatpush2.msra.mxu0 %v8230
          %9408 = vmatprep.subr.mxu0 0.0
          %9409 = vmatpush2.msra.mxu0 %v8229
          %9410 = vmatprep.subr.mxu0 0.0
          %9411 = vmatpush2.msra.mxu0 %v8228
          %9412 = vmatprep.subr.mxu0 0.0
          %9413 = vmatpush2.msra.mxu0 %v8227
          %9414 = vmatprep.subr.mxu0 0.0
          %9415 = vmatpush2.msra.mxu0 %v8226
          %9416 = vmatprep.subr.mxu0 0.0
          %9417 = vmatpush2.msra.mxu0 %v8225
          %9418 = vmatprep.subr.mxu0 0.0
          %9419 = vmatpush2.msra.mxu0 %v8224
          %9420 = vmatprep.subr.mxu0 0.0
          %9421 = vmatpush2.msra.mxu0 %v8223
          %9422 = vmatprep.subr.mxu0 0.0
          %9423 = vmatpush2.msra.mxu0 %v8222
          %9424 = vmatprep.subr.mxu0 0.0
          %9425 = vmatpush2.msra.mxu0 %v8221
          %9426 = vmatprep.subr.mxu0 0.0
          %9427 = vmatpush2.msra.mxu0 %v8220
          %9428 = vmatprep.subr.mxu0 0.0
          %9429 = vmatpush2.msra.mxu0 %v8219
          %9430 = vmatprep.subr.mxu0 0.0
          %9431 = vmatpush2.msra.mxu0 %v8218
          %9432 = vmatprep.subr.mxu0 0.0
          %9433 = vmatpush2.msra.mxu0 %v8217
          %9434 = vmatprep.subr.mxu0 0.0
          %9435 = vmatpush2.msra.mxu0 %v8216
          %9436 = vmatprep.subr.mxu0 0.0
          %9437 = vmatpush2.msra.mxu0 %v8215
          %9438 = vmatprep.mubr.f32.mxu0 %v8415
          %9439 = vmatmul.mubr.f32.gmra.mxu0 %v8411
          %v9440 = vpop.f32.mrf.mxu0
          %v9441 = vadd.f32 %v9371, %v9440
          %v9442 = vpop.f32.mrf.mxu0
          %9443 = vdwg.mxu0
          %9444 = vmatprep.subr.mxu0 0.0
          %9445 = vmatpush1.msra.mxu0 %v8246
          %9446 = vmatprep.subr.mxu0 0.0
          %9447 = vmatpush1.msra.mxu0 %v8245
          %9448 = vmatprep.subr.mxu0 0.0
          %9449 = vmatpush1.msra.mxu0 %v8244
          %9450 = vmatprep.subr.mxu0 0.0
          %9451 = vmatpush1.msra.mxu0 %v8243
          %9452 = vmatprep.subr.mxu0 0.0
          %9453 = vmatpush1.msra.mxu0 %v8242
          %9454 = vmatprep.subr.mxu0 0.0
          %9455 = vmatpush1.msra.mxu0 %v8241
          %9456 = vmatprep.subr.mxu0 0.0
          %9457 = vmatpush1.msra.mxu0 %v8240
          %9458 = vmatprep.subr.mxu0 0.0
          %9459 = vmatpush1.msra.mxu0 %v8239
          %9460 = vmatprep.subr.mxu0 0.0
          %9461 = vmatpush1.msra.mxu0 %v8238
          %9462 = vmatprep.subr.mxu0 0.0
          %9463 = vmatpush1.msra.mxu0 %v8237
          %9464 = vmatprep.subr.mxu0 0.0
          %9465 = vmatpush1.msra.mxu0 %v8236
          %9466 = vmatprep.subr.mxu0 0.0
          %9467 = vmatpush1.msra.mxu0 %v8235
          %9468 = vmatprep.subr.mxu0 0.0
          %9469 = vmatpush1.msra.mxu0 %v8234
          %9470 = vmatprep.subr.mxu0 0.0
          %9471 = vmatpush1.msra.mxu0 %v8233
          %9472 = vmatprep.subr.mxu0 0.0
          %9473 = vmatpush1.msra.mxu0 %v8232
          %9474 = vmatprep.subr.mxu0 0.0
          %9475 = vmatpush1.msra.mxu0 %v8231
          %9476 = vmatprep.subr.mxu0 0.0
          %9477 = vmatpush2.msra.mxu0 %v8262
          %9478 = vmatprep.subr.mxu0 0.0
          %9479 = vmatpush2.msra.mxu0 %v8261
          %9480 = vmatprep.subr.mxu0 0.0
          %9481 = vmatpush2.msra.mxu0 %v8260
          %9482 = vmatprep.subr.mxu0 0.0
          %9483 = vmatpush2.msra.mxu0 %v8259
          %9484 = vmatprep.subr.mxu0 0.0
          %9485 = vmatpush2.msra.mxu0 %v8258
          %9486 = vmatprep.subr.mxu0 0.0
          %9487 = vmatpush2.msra.mxu0 %v8257
          %9488 = vmatprep.subr.mxu0 0.0
          %9489 = vmatpush2.msra.mxu0 %v8256
          %9490 = vmatprep.subr.mxu0 0.0
          %9491 = vmatpush2.msra.mxu0 %v8255
          %9492 = vmatprep.subr.mxu0 0.0
          %9493 = vmatpush2.msra.mxu0 %v8254
          %9494 = vmatprep.subr.mxu0 0.0
          %9495 = vmatpush2.msra.mxu0 %v8253
          %9496 = vmatprep.subr.mxu0 0.0
          %9497 = vmatpush2.msra.mxu0 %v8252
          %9498 = vmatprep.subr.mxu0 0.0
          %9499 = vmatpush2.msra.mxu0 %v8251
          %9500 = vmatprep.subr.mxu0 0.0
          %9501 = vmatpush2.msra.mxu0 %v8250
          %9502 = vmatprep.subr.mxu0 0.0
          %9503 = vmatpush2.msra.mxu0 %v8249
          %9504 = vmatprep.subr.mxu0 0.0
          %9505 = vmatpush2.msra.mxu0 %v8248
          %9506 = vmatprep.subr.mxu0 0.0
          %9507 = vmatpush2.msra.mxu0 %v8247
          %9508 = vmatprep.mubr.f32.mxu0 %v8423
          %9509 = vmatmul.mubr.f32.gmra.mxu0 %v8419
          %v9510 = vpop.f32.mrf.mxu0
          %v9511 = vadd.f32 %v9441, %v9510
          %v9512 = vpop.f32.mrf.mxu0
          %9513 = vdwg.mxu0
          %9514 = vmatprep.subr.mxu0 0.0
          %9515 = vmatpush1.msra.mxu0 %v8278
          %9516 = vmatprep.subr.mxu0 0.0
          %9517 = vmatpush1.msra.mxu0 %v8277
          %9518 = vmatprep.subr.mxu0 0.0
          %9519 = vmatpush1.msra.mxu0 %v8276
          %9520 = vmatprep.subr.mxu0 0.0
          %9521 = vmatpush1.msra.mxu0 %v8275
          %9522 = vmatprep.subr.mxu0 0.0
          %9523 = vmatpush1.msra.mxu0 %v8274
          %9524 = vmatprep.subr.mxu0 0.0
          %9525 = vmatpush1.msra.mxu0 %v8273
          %9526 = vmatprep.subr.mxu0 0.0
          %9527 = vmatpush1.msra.mxu0 %v8272
          %9528 = vmatprep.subr.mxu0 0.0
          %9529 = vmatpush1.msra.mxu0 %v8271
          %9530 = vmatprep.subr.mxu0 0.0
          %9531 = vmatpush1.msra.mxu0 %v8270
          %9532 = vmatprep.subr.mxu0 0.0
          %9533 = vmatpush1.msra.mxu0 %v8269
          %9534 = vmatprep.subr.mxu0 0.0
          %9535 = vmatpush1.msra.mxu0 %v8268
          %9536 = vmatprep.subr.mxu0 0.0
          %9537 = vmatpush1.msra.mxu0 %v8267
          %9538 = vmatprep.subr.mxu0 0.0
          %9539 = vmatpush1.msra.mxu0 %v8266
          %9540 = vmatprep.subr.mxu0 0.0
          %9541 = vmatpush1.msra.mxu0 %v8265
          %9542 = vmatprep.subr.mxu0 0.0
          %9543 = vmatpush1.msra.mxu0 %v8264
          %9544 = vmatprep.subr.mxu0 0.0
          %9545 = vmatpush1.msra.mxu0 %v8263
          %9546 = vmatprep.subr.mxu0 0.0
          %9547 = vmatpush2.msra.mxu0 %v8294
          %9548 = vmatprep.subr.mxu0 0.0
          %9549 = vmatpush2.msra.mxu0 %v8293
          %9550 = vmatprep.subr.mxu0 0.0
          %9551 = vmatpush2.msra.mxu0 %v8292
          %9552 = vmatprep.subr.mxu0 0.0
          %9553 = vmatpush2.msra.mxu0 %v8291
          %9554 = vmatprep.subr.mxu0 0.0
          %9555 = vmatpush2.msra.mxu0 %v8290
          %9556 = vmatprep.subr.mxu0 0.0
          %9557 = vmatpush2.msra.mxu0 %v8289
          %9558 = vmatprep.subr.mxu0 0.0
          %9559 = vmatpush2.msra.mxu0 %v8288
          %9560 = vmatprep.subr.mxu0 0.0
          %9561 = vmatpush2.msra.mxu0 %v8287
          %9562 = vmatprep.subr.mxu0 0.0
          %9563 = vmatpush2.msra.mxu0 %v8286
          %9564 = vmatprep.subr.mxu0 0.0
          %9565 = vmatpush2.msra.mxu0 %v8285
          %9566 = vmatprep.subr.mxu0 0.0
          %9567 = vmatpush2.msra.mxu0 %v8284
          %9568 = vmatprep.subr.mxu0 0.0
          %9569 = vmatpush2.msra.mxu0 %v8283
          %9570 = vmatprep.subr.mxu0 0.0
          %9571 = vmatpush2.msra.mxu0 %v8282
          %9572 = vmatprep.subr.mxu0 0.0
          %9573 = vmatpush2.msra.mxu0 %v8281
          %9574 = vmatprep.subr.mxu0 0.0
          %9575 = vmatpush2.msra.mxu0 %v8280
          %9576 = vmatprep.subr.mxu0 0.0
          %9577 = vmatpush2.msra.mxu0 %v8279
          %9578 = vmatprep.mubr.f32.mxu0 %v8431
          %9579 = vmatmul.mubr.f32.gmra.mxu0 %v8427
          %v9580 = vpop.f32.mrf.mxu0
          %v9581 = vadd.f32 %v9511, %v9580
          %v9582 = vpop.f32.mrf.mxu0
          %9583 = vdwg.mxu0
          %9584 = vst [vmem:[%s283] sm:$0x1] %v9581
        $region64: #{tpu_custom_call.1} parent=39 // pred_fallthru
          _
        %s9585 = sand.u32 %s152, 1
        %s9586 = scalar_lea.sflag [#allocation5], %s9585
        %s9587 = sand.u32 %s152, 1
        %s9588 = scalar_lea.vmem [#allocation11], %s9587
        // Predicated region
        $region65: #{tpu_custom_call.1} parent=39 // pred_check
          %p9589 = pneg %p162
        $region66: #{tpu_custom_call.1} parent=39 // pred_check_branch
          %9591 = sbr.rel (%p9589) target = $region68
        $region67: #{tpu_custom_call.1} parent=39 // pred_region
          %s9593 = ssub.s32 16, 16
          %9594 = vsyncadd %s9586, %s9593
          %s9595 = smul.addr %s26, 16
          %s9596 = scalar_lea.hbm %s5, %s9595
          %s9598 = sshll.u32 %s9588, 4
          %s9599 = int_to_ptr.vmem [resolvable:$true] %s9598
          %9601 = dma.vmem_to_hbm [thread:$0]  %s9599, 16, %s9596, %s9586
        $region68: #{tpu_custom_call.1} parent=39 // pred_fallthru
          _
      $region40: #{tpu_custom_call.1} parent=5 // pred_fallthru
        _
      %p9602 = scmp.le.s32.totalorder 2, %s17
      // Predicated region
      $region69: #{tpu_custom_call.1} parent=5 // pred_check
        %p9603 = pneg %p9602
      $region70: #{tpu_custom_call.1} parent=5 // pred_check_branch
        %9605 = sbr.rel (%p9603) target = $region72
      $region71: #{tpu_custom_call.1} parent=5 // pred_region
        %s9606 = ssub.s32 %s17, 2
        // Predicated region
        $region73: #{tpu_custom_call.1} parent=71 // pred_check
          %p9607 = pneg %p168
        $region74: #{tpu_custom_call.1} parent=71 // pred_check_branch
          %9609 = sbr.rel (%p9607) target = $region76
        $region75: #{tpu_custom_call.1} parent=71 // pred_region
          %s9610 = sand.u32 %s153, 1
          %s9611 = scalar_lea.sflag [#allocation5], %s9610
          %s9612 = sand.u32 %s153, 1
          %s9613 = scalar_lea.vmem [#allocation11], %s9612
          %9614 = dma.done %s9611, 16
        $region76: #{tpu_custom_call.1} parent=71 // pred_fallthru
          _
      $region72: #{tpu_custom_call.1} parent=5 // pred_fallthru
        _
    $region6: #{tpu_custom_call.1} parent=1 // loop_footer
      %s21 = sadd.s32 1, %s17
    $region7: #{tpu_custom_call.1} parent=1 // loop_footer_branch
      %16 = sbr.rel target = $region3
    $region8: #{tpu_custom_call.1} parent=1 // loop_exit
      _
    %9615 = vsyncpa [#allocation4], 1
    %s9616 = scalar_lea.sflag [#allocation4], 1
    %9617 = vsyncpa %s9616, 1
    %9618 = vsyncpa [#allocation7], 1
    %9619 = vsyncpa [#allocation10], 1
    %9620 = vsyncpa [#allocation5], 1
    %s9621 = scalar_lea.sflag [#allocation5], 1
    %9622 = vsyncpa %s9621, 1

</llo_original>
